<compile_context>
chip_gen: v7x
topology: tpu7x:2x2x1
jax: 0.10.0
libtpu: 0.0.40
codegen_flags: <defaults>
</compile_context>

<pallas_src>
import functools

import jax
import jax.numpy as jnp
import numpy as np
from jax import lax
from jax.experimental import pallas as pl
from jax.experimental.pallas import tpu as pltpu


# ----------------------------------------------------------------------------
# static trace-time helpers
# ----------------------------------------------------------------------------
def _conv_out(n, k, s, p):
    return (n + 2 * p - k) // s + 1


def _round_up(x, m):
    return (x + m - 1) // m * m


_OFFS = tuple((dy, dx) for dy in (-1, 0, 1) for dx in (-1, 0, 1))


def _subsample_matrix(H, W):
    """Selects the even (i, j) positions: stride-1 result -> stride-2 result."""
    Ho, Wo = _conv_out(H, 3, 2, 1), _conv_out(W, 3, 2, 1)
    S = np.zeros((H * W, Ho * Wo), np.float32)
    for io in range(Ho):
        for jo in range(Wo):
            S[(2 * io) * W + 2 * jo, io * Wo + jo] = 1.0
    return S


def _neighborhood_matrix(H, W):
    """3x3 mean with reflect padding as a [H*W, H*W] linear operator."""
    def refl(k, n):
        if k < 0:
            return -k
        if k >= n:
            return 2 * n - 2 - k
        return k

    M = np.zeros((H * W, H * W), np.float32)
    for i in range(H):
        for j in range(W):
            for dy in (-1, 0, 1):
                for dx in (-1, 0, 1):
                    M[i * W + j, refl(i + dy, H) * W + refl(j + dx, W)] += 1.0 / 9.0
    return M


def _bilinear_matrix(in_size, out_size):
    """1-D interpolation matrix for F.interpolate(bilinear, align_corners=False)."""
    scale = in_size / out_size
    dst = np.arange(out_size, dtype=np.float64)
    src = np.clip((dst + 0.5) * scale - 0.5, 0.0, in_size - 1)
    i0 = np.floor(src).astype(np.int64)
    i1 = np.minimum(i0 + 1, in_size - 1)
    w1 = src - i0
    w0 = 1.0 - w1
    mat = np.zeros((out_size, in_size), np.float32)
    for r in range(out_size):
        mat[r, i0[r]] += w0[r]
        mat[r, i1[r]] += w1[r]
    return mat


def _bilinear_kron(h, w, H2, W2):
    return np.kron(_bilinear_matrix(h, H2), _bilinear_matrix(w, W2)).astype(np.float32)


def _shared_spec(shape):
    nd = len(shape)
    return pl.BlockSpec(tuple(shape), lambda b: (0,) * nd)


def _per_image_spec(shape):
    nd = len(shape)
    return pl.BlockSpec((None,) + tuple(shape), lambda b: (b,) + (0,) * nd)


# ----------------------------------------------------------------------------
# in-kernel building blocks (operate on [C, H*W] values, per image)
# ----------------------------------------------------------------------------
def _tap_masks(H, W):
    """8 lane masks (center=None): which flattened positions have a valid
    in-image neighbor at offset (dy, dx).  Built once per resolution."""
    M = H * W
    lane = lax.broadcasted_iota(jnp.int32, (1, M), 1)
    ii = lane >> (W.bit_length() - 1)          # row index   (W is a power of 2)
    jj = lane & (W - 1)                        # column index
    masks = []
    for dy, dx in _OFFS:
        if dy == 0 and dx == 0:
            masks.append(None)
        else:
            masks.append((ii + dy >= 0) & (ii + dy < H) &
                         (jj + dx >= 0) & (jj + dx < W))
    return masks


def _taps(x, H, W, masks, fill, buf=None):
    """9 shifted views of x (3x3 window, stride 1); invalid neighbors -> fill.

    buf is None  -> lane dim is a multiple of 128: in-register pltpu.roll
                    (XLU slot), no VMEM traffic.
    buf is a ref -> tiny feature map: store x once into the middle of a halo
                    scratch and read static shifted slices.  The halo is never
                    zeroed -- every halo read is replaced by the mask select.
    """
    C, M = x.shape
    views = []
    if buf is None:
        assert M % 128 == 0
        for idx, (dy, dx) in enumerate(_OFFS):
            s = dy * W + dx
            if s == 0:
                views.append(x)
                continue
            rolled = pltpu.roll(x, shift=(-s) % M, axis=1)
            views.append(jnp.where(masks[idx], rolled, fill))
    else:
        pad = (buf.shape[1] - M) // 2
        buf[:, pad:pad + M] = x
        for idx, (dy, dx) in enumerate(_OFFS):
            s = dy * W + dx
            if s == 0:
                views.append(x)
                continue
            shifted = buf[:, pad + s:pad + s + M]
            views.append(jnp.where(masks[idx], shifted, fill))
    return views


def _conv3x3(x, w_ref, b_ref, H, W, masks, buf=None, residual=None):
    """3x3 stride-1 zero-pad conv + folded-BN bias (+ residual) + ReLU as a
    SINGLE matmul: 9 masked taps stacked into one [9*Cin, M] bf16 matrix,
    weights pre-reshaped to [Cout, 9*Cin] bf16 at trace time."""
    tap_mat = jnp.concatenate(_taps(x, H, W, masks, 0.0, buf=buf), axis=0)
    out = jnp.dot(w_ref[...], tap_mat.astype(jnp.bfloat16),
                  preferred_element_type=jnp.float32)
    out = out + b_ref[...]
    if residual is not None:
        out = out + residual
    return jnp.maximum(out, 0.0)


def _maxpool3x3(x, H, W, masks):
    """3x3 stride-1 max (padding=1); invalid neighbors contribute -1e30."""
    views = _taps(x, H, W, masks, -1e30)
    out = views[0]
    for v in views[1:]:
        out = jnp.maximum(out, v)
    return out


# ----------------------------------------------------------------------------
# the fused kernel: whole backbone for one image per grid step
# ----------------------------------------------------------------------------
def _fused_kernel(spatial, c_split,
                  a1_ref, w1_ref, b1_ref, sp_ref,
                  l1c1w, l1c1b, l1c2w, l1c2b,
                  l2c1w, l2c1b, l2c2w, l2c2b, l2dw, l2db, s2_ref,
                  l3c1w, l3c1b, l3c2w, l3c2b, l3dw, l3db, s3_ref,
                  t2_ref, t3_ref,
                  out_ref,
                  buf8, buf4):
    (H1, W1), (Hp, Wp), (H2, W2), (H3, W3) = spatial
    C2, C3 = c_split
    bf = jnp.bfloat16

    # tap-validity masks: built once per resolution, reused by every call
    m_pool = _tap_masks(H1, W1)
    m_p = _tap_masks(Hp, Wp)
    m_2 = _tap_masks(H2, W2)
    m_3 = _tap_masks(H3, W3)

    # conv1 7x7/s2 (BN folded) + ReLU: one bf16 matmul on the prebuilt im2col
    x0 = jnp.dot(w1_ref[...], a1_ref[...], preferred_element_type=jnp.float32)
    x0 = jnp.maximum(x0 + b1_ref[...], 0.0)                        # [C1, H1*W1]

    # maxpool 3x3/s2/p1 = stride-1 max (rolled taps) + even-position selection
    mpool = _maxpool3x3(x0, H1, W1, m_pool)
    xp = jnp.dot(mpool.astype(bf), sp_ref[...],
                 preferred_element_type=jnp.float32)               # [C1, Hp*Wp]

    # layer1 (BasicBlock, stride 1, no downsample)
    y = _conv3x3(xp, l1c1w, l1c1b, Hp, Wp, m_p)
    x1 = _conv3x3(y, l1c2w, l1c2b, Hp, Wp, m_p, residual=xp)

    # layer2 (BasicBlock, stride 2, 1x1 downsample)
    y = _conv3x3(x1, l2c1w, l2c1b, Hp, Wp, m_p)
    y = jnp.dot(y.astype(bf), s2_ref[...], preferred_element_type=jnp.float32)
    x1s = jnp.dot(x1.astype(bf), s2_ref[...], preferred_element_type=jnp.float32)
    idn = jnp.dot(l2dw[...], x1s.astype(bf),
                  preferred_element_type=jnp.float32) + l2db[...]
    x2 = _conv3x3(y, l2c2w, l2c2b, H2, W2, m_2, buf=buf8, residual=idn)

    # layer2 neighborhood (reflect 3x3 mean): rows [0, C2) of the output slab
    out_ref[0:C2, :] = jnp.dot(x2.astype(bf), t2_ref[...],
                               preferred_element_type=jnp.float32)

    # layer3 (BasicBlock, stride 2, 1x1 downsample)
    y = _conv3x3(x2, l3c1w, l3c1b, H2, W2, m_2, buf=buf8)
    y = jnp.dot(y.astype(bf), s3_ref[...], preferred_element_type=jnp.float32)
    x2s = jnp.dot(x2.astype(bf), s3_ref[...], preferred_element_type=jnp.float32)
    idn = jnp.dot(l3dw[...], x2s.astype(bf),
                  preferred_element_type=jnp.float32) + l3db[...]
    x3 = _conv3x3(y, l3c2w, l3c2b, H3, W3, m_3, buf=buf4, residual=idn)

    # layer3 neighborhood mean + bilinear upsample (one fused matmul)
    out_ref[C2:C2 + C3, :] = jnp.dot(x3.astype(bf), t3_ref[...],
                                     preferred_element_type=jnp.float32)


# ----------------------------------------------------------------------------
# wrapper: parameter folding, trace-time constants, one pallas_call
# ----------------------------------------------------------------------------
def feature_extractor_forward(x_nchw, params):
    B, Cin, H, W = x_nchw.shape

    C1 = params["conv1_w"].shape[3]
    C2 = params["layer2"]["w2"].shape[3]
    C3 = params["layer3"]["w2"].shape[3]

    # stage spatial sizes
    H1, W1 = _conv_out(H, 7, 2, 3), _conv_out(W, 7, 2, 3)            # conv1
    Hp, Wp = _conv_out(H1, 3, 2, 1), _conv_out(W1, 3, 2, 1)          # maxpool
    H2, W2 = _conv_out(Hp, 3, 2, 1), _conv_out(Wp, 3, 2, 1)          # layer2
    H3, W3 = _conv_out(H2, 3, 2, 1), _conv_out(W2, 3, 2, 1)          # layer3
    for w_ in (W1, Wp, W2, W3):
        assert w_ > 0 and (w_ & (w_ - 1)) == 0, "feature-map widths must be powers of two"
    assert (H1 * W1) % 128 == 0 and (Hp * Wp) % 128 == 0             # roll-path alignment

    # conv1 im2col built directly from NCHW (no NHWC / 5-D transposes)
    xpad = jnp.pad(x_nchw.astype(jnp.float32), ((0, 0), (0, 0), (3, 3), (3, 3)))
    cols = [xpad[:, :, i:i + 2 * H1:2, j:j + 2 * W1:2]
            for i in range(7) for j in range(7)]                     # 49 x [B,Cin,H1,W1]
    a1 = jnp.stack(cols, axis=1).reshape(B, 49 * Cin, H1 * W1)       # K order (tap, cin)
    K = 49 * Cin
    K_pad = _round_up(K, 16)                                         # bf16 sublane tile
    a1 = jnp.pad(a1, ((0, 0), (0, K_pad - K), (0, 0))).astype(jnp.bfloat16)

    # fold BN scale into all conv weights; cast to bf16
    w1 = (jnp.transpose(params["conv1_w"], (3, 0, 1, 2)).reshape(C1, K)
          * params["bn1_s"][:, None])
    w1 = jnp.pad(w1, ((0, 0), (0, K_pad - K))).astype(jnp.bfloat16)
    b1 = params["bn1_b"].reshape(C1, 1).astype(jnp.float32)

    def conv3(p, wk, sk, bk):
        wgt = p[wk]                                                  # [3,3,cin,cout]
        cin, cout = wgt.shape[2], wgt.shape[3]
        wt = jnp.transpose(wgt, (3, 0, 1, 2)).reshape(cout, 9 * cin)  # [Cout, 9*Cin]
        wt = (wt * p[sk][:, None]).astype(jnp.bfloat16)
        return wt, p[bk].reshape(cout, 1).astype(jnp.float32)

    def conv1x1(p):
        wt = (jnp.transpose(p["wd"][0, 0], (1, 0)) * p["sd"][:, None]).astype(jnp.bfloat16)
        return wt, p["bd"].reshape(-1, 1).astype(jnp.float32)

    l1c1w, l1c1b = conv3(params["layer1"], "w1", "s1", "b1")
    l1c2w, l1c2b = conv3(params["layer1"], "w2", "s2", "b2")
    l2c1w, l2c1b = conv3(params["layer2"], "w1", "s1", "b1")
    l2c2w, l2c2b = conv3(params["layer2"], "w2", "s2", "b2")
    l2dw, l2db = conv1x1(params["layer2"])
    l3c1w, l3c1b = conv3(params["layer3"], "w1", "s1", "b1")
    l3c2w, l3c2b = conv3(params["layer3"], "w2", "s2", "b2")
    l3dw, l3db = conv1x1(params["layer3"])

    # constant spatial operators.  Selectors are 0/1 (exact in bf16); the
    # mean/bilinear operators are deliberately bf16 (whole net runs bf16 on
    # the MXU with f32 accumulation).
    S_pool = jnp.asarray(_subsample_matrix(H1, W1), jnp.bfloat16)    # [H1W1, HpWp]
    S2m = jnp.asarray(_subsample_matrix(Hp, Wp), jnp.bfloat16)       # [HpWp, H2W2]
    S3m = jnp.asarray(_subsample_matrix(H2, W2), jnp.bfloat16)       # [H2W2, H3W3]
    T2m = jnp.asarray(_neighborhood_matrix(H2, W2).T, jnp.bfloat16)  # [H2W2, H2W2]
    k3 = _bilinear_kron(H3, W3, H2, W2) @ _neighborhood_matrix(H3, W3)
    T3m = jnp.asarray(np.ascontiguousarray(k3.T, dtype=np.float32),
                      jnp.bfloat16)                                  # [H3W3, H2W2]

    spatial = ((H1, W1), (Hp, Wp), (H2, W2), (H3, W3))
    kernel = functools.partial(_fused_kernel, spatial, (C2, C3))

    inputs = [a1, w1, b1, S_pool,
              l1c1w, l1c1b, l1c2w, l1c2b,
              l2c1w, l2c1b, l2c2w, l2c2b, l2dw, l2db, S2m,
              l3c1w, l3c1b, l3c2w, l3c2b, l3dw, l3db, S3m,
              T2m, T3m]
    in_specs = ([_per_image_spec(a1.shape[1:])] +
                [_shared_spec(v.shape) for v in inputs[1:]])

    halo = 128                                     # >= W+1, lane-aligned store
    scratch_shapes = [
        pltpu.VMEM((C2, H2 * W2 + 2 * halo), jnp.float32),   # 8x8-stage taps
        pltpu.VMEM((C3, H3 * W3 + 2 * halo), jnp.float32),   # 4x4-stage taps
    ]

    out = pl.pallas_call(
        kernel,
        out_shape=jax.ShapeDtypeStruct((B, C2 + C3, H2 * W2), jnp.float32),
        grid=(B,),
        in_specs=in_specs,
        out_specs=_per_image_spec((C2 + C3, H2 * W2)),
        scratch_shapes=scratch_shapes,
        compiler_params=pltpu.CompilerParams(dimension_semantics=("parallel",)),
    )(*inputs)

    # split the fused slab; spatial was flattened row-major so reshape is free
    l2t = out[:, :C2, :].reshape(B, C2, H2, W2)
    l3t = out[:, C2:, :].reshape(B, C3, H2, W2)
    return l2t, l3t


# ----------------------------------------------------------------------------
# Deterministic synthetic backbone parameters (eval-mode BN, folded)
# ----------------------------------------------------------------------------
def _init_conv(key, kh, kw, cin, cout):
    fan_in = kh * kw * cin
    return (jax.random.normal(key, (kh, kw, cin, cout), jnp.float32)
            * (2.0 / fan_in) ** 0.5)


def _init_bn(key, c):
    k1, k2, k3, k4 = jax.random.split(key, 4)
    gamma = 1.0 + 0.1 * jax.random.normal(k1, (c,), jnp.float32)
    beta = 0.1 * jax.random.normal(k2, (c,), jnp.float32)
    mean = 0.1 * jax.random.normal(k3, (c,), jnp.float32)
    var = jnp.abs(jax.random.normal(k4, (c,), jnp.float32)) * 0.1 + 0.5
    scale = gamma / jnp.sqrt(var + 1e-5)      # BN folded into conv weight/bias
    bias = beta - mean * scale
    return scale, bias


def make_params(key):
    keys = iter(jax.random.split(key, 32))
    p = {}
    p["conv1_w"] = _init_conv(next(keys), 7, 7, 3, 8)
    p["bn1_s"], p["bn1_b"] = _init_bn(next(keys), 8)

    def block(cin, cout, downsample):
        d = {}
        d["w1"] = _init_conv(next(keys), 3, 3, cin, cout)
        d["s1"], d["b1"] = _init_bn(next(keys), cout)
        d["w2"] = _init_conv(next(keys), 3, 3, cout, cout)
        d["s2"], d["b2"] = _init_bn(next(keys), cout)
        if downsample:
            d["wd"] = _init_conv(next(keys), 1, 1, cin, cout)
            d["sd"], d["bd"] = _init_bn(next(keys), cout)
        return d

    p["layer1"] = block(8, 8, downsample=False)
    p["layer2"] = block(8, 16, downsample=True)
    p["layer3"] = block(16, 32, downsample=True)
    return p


if __name__ == "__main__":
    root = jax.random.PRNGKey(0)
    k_params, k_input = jax.random.split(root)
    params = make_params(k_params)
    x = jax.random.normal(k_input, (2, 3, 64, 64), jnp.float32)   # NCHW like PyTorch

    fwd = jax.jit(feature_extractor_forward)
    l2_feat, l3_feat = fwd(x, params)
    jax.block_until_ready((l2_feat, l3_feat))

    assert l2_feat.shape == (2, 16, 8, 8), l2_feat.shape
    assert l3_feat.shape == (2, 32, 8, 8), l3_feat.shape
    assert l2_feat.dtype == jnp.float32 and l3_feat.dtype == jnp.float32
    print("KERNEL_OK")
</pallas_src>

<mosaic_0001>
module attributes {stable_mosaic.version = 11 : i64} {
  func.func @_fused_kernel(%arg0: i32, %arg1: memref<1x160x1024xbf16, #tpu.memory_space<vmem>>, %arg2: memref<8x160xbf16, #tpu.memory_space<vmem>>, %arg3: memref<8x1xf32, #tpu.memory_space<vmem>>, %arg4: memref<1024x256xbf16, #tpu.memory_space<vmem>>, %arg5: memref<8x72xbf16, #tpu.memory_space<vmem>>, %arg6: memref<8x1xf32, #tpu.memory_space<vmem>>, %arg7: memref<8x72xbf16, #tpu.memory_space<vmem>>, %arg8: memref<8x1xf32, #tpu.memory_space<vmem>>, %arg9: memref<16x72xbf16, #tpu.memory_space<vmem>>, %arg10: memref<16x1xf32, #tpu.memory_space<vmem>>, %arg11: memref<16x144xbf16, #tpu.memory_space<vmem>>, %arg12: memref<16x1xf32, #tpu.memory_space<vmem>>, %arg13: memref<16x8xbf16, #tpu.memory_space<vmem>>, %arg14: memref<16x1xf32, #tpu.memory_space<vmem>>, %arg15: memref<256x64xbf16, #tpu.memory_space<vmem>>, %arg16: memref<32x144xbf16, #tpu.memory_space<vmem>>, %arg17: memref<32x1xf32, #tpu.memory_space<vmem>>, %arg18: memref<32x288xbf16, #tpu.memory_space<vmem>>, %arg19: memref<32x1xf32, #tpu.memory_space<vmem>>, %arg20: memref<32x16xbf16, #tpu.memory_space<vmem>>, %arg21: memref<32x1xf32, #tpu.memory_space<vmem>>, %arg22: memref<64x16xbf16, #tpu.memory_space<vmem>>, %arg23: memref<64x64xbf16, #tpu.memory_space<vmem>>, %arg24: memref<16x64xbf16, #tpu.memory_space<vmem>>, %arg25: memref<1x48x64xf32, #tpu.memory_space<vmem>>, %arg26: memref<16x320xf32, #tpu.memory_space<vmem>>, %arg27: memref<32x272xf32, #tpu.memory_space<vmem>>) attributes {dimension_semantics = [#tpu.dimension_semantics<parallel>], iteration_bounds = array<i64: 2>, scalar_prefetch = 0 : i64, scratch_operands = 2 : i64, tpu.core_type = #tpu.core_type<tc>, window_params = [{transform_indices = @transform_0, window_bounds = array<i64: 1, 160, 1024>}, {pipeline_mode = #tpu.pipeline_mode<synchronous>, transform_indices = @transform_1, window_bounds = array<i64: 8, 160>}, {pipeline_mode = #tpu.pipeline_mode<synchronous>, transform_indices = @transform_2, window_bounds = array<i64: 8, 1>}, {pipeline_mode = #tpu.pipeline_mode<synchronous>, transform_indices = @transform_3, window_bounds = array<i64: 1024, 256>}, {pipeline_mode = #tpu.pipeline_mode<synchronous>, transform_indices = @transform_4, window_bounds = array<i64: 8, 72>}, {pipeline_mode = #tpu.pipeline_mode<synchronous>, transform_indices = @transform_5, window_bounds = array<i64: 8, 1>}, {pipeline_mode = #tpu.pipeline_mode<synchronous>, transform_indices = @transform_6, window_bounds = array<i64: 8, 72>}, {pipeline_mode = #tpu.pipeline_mode<synchronous>, transform_indices = @transform_7, window_bounds = array<i64: 8, 1>}, {pipeline_mode = #tpu.pipeline_mode<synchronous>, transform_indices = @transform_8, window_bounds = array<i64: 16, 72>}, {pipeline_mode = #tpu.pipeline_mode<synchronous>, transform_indices = @transform_9, window_bounds = array<i64: 16, 1>}, {pipeline_mode = #tpu.pipeline_mode<synchronous>, transform_indices = @transform_10, window_bounds = array<i64: 16, 144>}, {pipeline_mode = #tpu.pipeline_mode<synchronous>, transform_indices = @transform_11, window_bounds = array<i64: 16, 1>}, {pipeline_mode = #tpu.pipeline_mode<synchronous>, transform_indices = @transform_12, window_bounds = array<i64: 16, 8>}, {pipeline_mode = #tpu.pipeline_mode<synchronous>, transform_indices = @transform_13, window_bounds = array<i64: 16, 1>}, {pipeline_mode = #tpu.pipeline_mode<synchronous>, transform_indices = @transform_14, window_bounds = array<i64: 256, 64>}, {pipeline_mode = #tpu.pipeline_mode<synchronous>, transform_indices = @transform_15, window_bounds = array<i64: 32, 144>}, {pipeline_mode = #tpu.pipeline_mode<synchronous>, transform_indices = @transform_16, window_bounds = array<i64: 32, 1>}, {pipeline_mode = #tpu.pipeline_mode<synchronous>, transform_indices = @transform_17, window_bounds = array<i64: 32, 288>}, {pipeline_mode = #tpu.pipeline_mode<synchronous>, transform_indices = @transform_18, window_bounds = array<i64: 32, 1>}, {pipeline_mode = #tpu.pipeline_mode<synchronous>, transform_indices = @transform_19, window_bounds = array<i64: 32, 16>}, {pipeline_mode = #tpu.pipeline_mode<synchronous>, transform_indices = @transform_20, window_bounds = array<i64: 32, 1>}, {pipeline_mode = #tpu.pipeline_mode<synchronous>, transform_indices = @transform_21, window_bounds = array<i64: 64, 16>}, {pipeline_mode = #tpu.pipeline_mode<synchronous>, transform_indices = @transform_22, window_bounds = array<i64: 64, 64>}, {pipeline_mode = #tpu.pipeline_mode<synchronous>, transform_indices = @transform_23, window_bounds = array<i64: 16, 64>}, {transform_indices = @transform_24, window_bounds = array<i64: 1, 48, 64>}]} {
    %0 = tpu.iota {dimensions = array<i32: 1>} : vector<1x1024xi32>
    %c5_i32 = arith.constant 5 : i32
    %1 = vector.broadcast %c5_i32 : i32 to vector<1x1024xi32>
    %2 = arith.shrsi %0, %1 : vector<1x1024xi32>
    %c31_i32 = arith.constant 31 : i32
    %3 = vector.broadcast %c31_i32 : i32 to vector<1x1024xi32>
    %4 = arith.andi %0, %3 : vector<1x1024xi32>
    %c-1_i32 = arith.constant -1 : i32
    %5 = vector.broadcast %c-1_i32 : i32 to vector<1x1024xi32>
    %6 = arith.addi %2, %5 : vector<1x1024xi32>
    %c0_i32 = arith.constant 0 : i32
    %7 = vector.broadcast %c0_i32 : i32 to vector<1x1024xi32>
    %8 = arith.cmpi sge, %6, %7 : vector<1x1024xi32>
    %c-1_i32_0 = arith.constant -1 : i32
    %9 = vector.broadcast %c-1_i32_0 : i32 to vector<1x1024xi32>
    %10 = arith.addi %2, %9 : vector<1x1024xi32>
    %c32_i32 = arith.constant 32 : i32
    %11 = vector.broadcast %c32_i32 : i32 to vector<1x1024xi32>
    %12 = arith.cmpi slt, %10, %11 : vector<1x1024xi32>
    %13 = arith.andi %8, %12 : vector<1x1024xi1>
    %c-1_i32_1 = arith.constant -1 : i32
    %14 = vector.broadcast %c-1_i32_1 : i32 to vector<1x1024xi32>
    %15 = arith.addi %4, %14 : vector<1x1024xi32>
    %c0_i32_2 = arith.constant 0 : i32
    %16 = vector.broadcast %c0_i32_2 : i32 to vector<1x1024xi32>
    %17 = arith.cmpi sge, %15, %16 : vector<1x1024xi32>
    %18 = arith.andi %13, %17 : vector<1x1024xi1>
    %c-1_i32_3 = arith.constant -1 : i32
    %19 = vector.broadcast %c-1_i32_3 : i32 to vector<1x1024xi32>
    %20 = arith.addi %4, %19 : vector<1x1024xi32>
    %c32_i32_4 = arith.constant 32 : i32
    %21 = vector.broadcast %c32_i32_4 : i32 to vector<1x1024xi32>
    %22 = arith.cmpi slt, %20, %21 : vector<1x1024xi32>
    %23 = arith.andi %18, %22 : vector<1x1024xi1>
    %c-1_i32_5 = arith.constant -1 : i32
    %24 = vector.broadcast %c-1_i32_5 : i32 to vector<1x1024xi32>
    %25 = arith.addi %2, %24 : vector<1x1024xi32>
    %c0_i32_6 = arith.constant 0 : i32
    %26 = vector.broadcast %c0_i32_6 : i32 to vector<1x1024xi32>
    %27 = arith.cmpi sge, %25, %26 : vector<1x1024xi32>
    %c-1_i32_7 = arith.constant -1 : i32
    %28 = vector.broadcast %c-1_i32_7 : i32 to vector<1x1024xi32>
    %29 = arith.addi %2, %28 : vector<1x1024xi32>
    %c32_i32_8 = arith.constant 32 : i32
    %30 = vector.broadcast %c32_i32_8 : i32 to vector<1x1024xi32>
    %31 = arith.cmpi slt, %29, %30 : vector<1x1024xi32>
    %32 = arith.andi %27, %31 : vector<1x1024xi1>
    %c0_i32_9 = arith.constant 0 : i32
    %33 = vector.broadcast %c0_i32_9 : i32 to vector<1x1024xi32>
    %34 = arith.addi %4, %33 : vector<1x1024xi32>
    %c0_i32_10 = arith.constant 0 : i32
    %35 = vector.broadcast %c0_i32_10 : i32 to vector<1x1024xi32>
    %36 = arith.cmpi sge, %34, %35 : vector<1x1024xi32>
    %37 = arith.andi %32, %36 : vector<1x1024xi1>
    %c0_i32_11 = arith.constant 0 : i32
    %38 = vector.broadcast %c0_i32_11 : i32 to vector<1x1024xi32>
    %39 = arith.addi %4, %38 : vector<1x1024xi32>
    %c32_i32_12 = arith.constant 32 : i32
    %40 = vector.broadcast %c32_i32_12 : i32 to vector<1x1024xi32>
    %41 = arith.cmpi slt, %39, %40 : vector<1x1024xi32>
    %42 = arith.andi %37, %41 : vector<1x1024xi1>
    %c-1_i32_13 = arith.constant -1 : i32
    %43 = vector.broadcast %c-1_i32_13 : i32 to vector<1x1024xi32>
    %44 = arith.addi %2, %43 : vector<1x1024xi32>
    %c0_i32_14 = arith.constant 0 : i32
    %45 = vector.broadcast %c0_i32_14 : i32 to vector<1x1024xi32>
    %46 = arith.cmpi sge, %44, %45 : vector<1x1024xi32>
    %c-1_i32_15 = arith.constant -1 : i32
    %47 = vector.broadcast %c-1_i32_15 : i32 to vector<1x1024xi32>
    %48 = arith.addi %2, %47 : vector<1x1024xi32>
    %c32_i32_16 = arith.constant 32 : i32
    %49 = vector.broadcast %c32_i32_16 : i32 to vector<1x1024xi32>
    %50 = arith.cmpi slt, %48, %49 : vector<1x1024xi32>
    %51 = arith.andi %46, %50 : vector<1x1024xi1>
    %c1_i32 = arith.constant 1 : i32
    %52 = vector.broadcast %c1_i32 : i32 to vector<1x1024xi32>
    %53 = arith.addi %4, %52 : vector<1x1024xi32>
    %c0_i32_17 = arith.constant 0 : i32
    %54 = vector.broadcast %c0_i32_17 : i32 to vector<1x1024xi32>
    %55 = arith.cmpi sge, %53, %54 : vector<1x1024xi32>
    %56 = arith.andi %51, %55 : vector<1x1024xi1>
    %c1_i32_18 = arith.constant 1 : i32
    %57 = vector.broadcast %c1_i32_18 : i32 to vector<1x1024xi32>
    %58 = arith.addi %4, %57 : vector<1x1024xi32>
    %c32_i32_19 = arith.constant 32 : i32
    %59 = vector.broadcast %c32_i32_19 : i32 to vector<1x1024xi32>
    %60 = arith.cmpi slt, %58, %59 : vector<1x1024xi32>
    %61 = arith.andi %56, %60 : vector<1x1024xi1>
    %c0_i32_20 = arith.constant 0 : i32
    %62 = vector.broadcast %c0_i32_20 : i32 to vector<1x1024xi32>
    %63 = arith.addi %2, %62 : vector<1x1024xi32>
    %c0_i32_21 = arith.constant 0 : i32
    %64 = vector.broadcast %c0_i32_21 : i32 to vector<1x1024xi32>
    %65 = arith.cmpi sge, %63, %64 : vector<1x1024xi32>
    %c0_i32_22 = arith.constant 0 : i32
    %66 = vector.broadcast %c0_i32_22 : i32 to vector<1x1024xi32>
    %67 = arith.addi %2, %66 : vector<1x1024xi32>
    %c32_i32_23 = arith.constant 32 : i32
    %68 = vector.broadcast %c32_i32_23 : i32 to vector<1x1024xi32>
    %69 = arith.cmpi slt, %67, %68 : vector<1x1024xi32>
    %70 = arith.andi %65, %69 : vector<1x1024xi1>
    %c-1_i32_24 = arith.constant -1 : i32
    %71 = vector.broadcast %c-1_i32_24 : i32 to vector<1x1024xi32>
    %72 = arith.addi %4, %71 : vector<1x1024xi32>
    %c0_i32_25 = arith.constant 0 : i32
    %73 = vector.broadcast %c0_i32_25 : i32 to vector<1x1024xi32>
    %74 = arith.cmpi sge, %72, %73 : vector<1x1024xi32>
    %75 = arith.andi %70, %74 : vector<1x1024xi1>
    %c-1_i32_26 = arith.constant -1 : i32
    %76 = vector.broadcast %c-1_i32_26 : i32 to vector<1x1024xi32>
    %77 = arith.addi %4, %76 : vector<1x1024xi32>
    %c32_i32_27 = arith.constant 32 : i32
    %78 = vector.broadcast %c32_i32_27 : i32 to vector<1x1024xi32>
    %79 = arith.cmpi slt, %77, %78 : vector<1x1024xi32>
    %80 = arith.andi %75, %79 : vector<1x1024xi1>
    %c0_i32_28 = arith.constant 0 : i32
    %81 = vector.broadcast %c0_i32_28 : i32 to vector<1x1024xi32>
    %82 = arith.addi %2, %81 : vector<1x1024xi32>
    %c0_i32_29 = arith.constant 0 : i32
    %83 = vector.broadcast %c0_i32_29 : i32 to vector<1x1024xi32>
    %84 = arith.cmpi sge, %82, %83 : vector<1x1024xi32>
    %c0_i32_30 = arith.constant 0 : i32
    %85 = vector.broadcast %c0_i32_30 : i32 to vector<1x1024xi32>
    %86 = arith.addi %2, %85 : vector<1x1024xi32>
    %c32_i32_31 = arith.constant 32 : i32
    %87 = vector.broadcast %c32_i32_31 : i32 to vector<1x1024xi32>
    %88 = arith.cmpi slt, %86, %87 : vector<1x1024xi32>
    %89 = arith.andi %84, %88 : vector<1x1024xi1>
    %c1_i32_32 = arith.constant 1 : i32
    %90 = vector.broadcast %c1_i32_32 : i32 to vector<1x1024xi32>
    %91 = arith.addi %4, %90 : vector<1x1024xi32>
    %c0_i32_33 = arith.constant 0 : i32
    %92 = vector.broadcast %c0_i32_33 : i32 to vector<1x1024xi32>
    %93 = arith.cmpi sge, %91, %92 : vector<1x1024xi32>
    %94 = arith.andi %89, %93 : vector<1x1024xi1>
    %c1_i32_34 = arith.constant 1 : i32
    %95 = vector.broadcast %c1_i32_34 : i32 to vector<1x1024xi32>
    %96 = arith.addi %4, %95 : vector<1x1024xi32>
    %c32_i32_35 = arith.constant 32 : i32
    %97 = vector.broadcast %c32_i32_35 : i32 to vector<1x1024xi32>
    %98 = arith.cmpi slt, %96, %97 : vector<1x1024xi32>
    %99 = arith.andi %94, %98 : vector<1x1024xi1>
    %c1_i32_36 = arith.constant 1 : i32
    %100 = vector.broadcast %c1_i32_36 : i32 to vector<1x1024xi32>
    %101 = arith.addi %2, %100 : vector<1x1024xi32>
    %c0_i32_37 = arith.constant 0 : i32
    %102 = vector.broadcast %c0_i32_37 : i32 to vector<1x1024xi32>
    %103 = arith.cmpi sge, %101, %102 : vector<1x1024xi32>
    %c1_i32_38 = arith.constant 1 : i32
    %104 = vector.broadcast %c1_i32_38 : i32 to vector<1x1024xi32>
    %105 = arith.addi %2, %104 : vector<1x1024xi32>
    %c32_i32_39 = arith.constant 32 : i32
    %106 = vector.broadcast %c32_i32_39 : i32 to vector<1x1024xi32>
    %107 = arith.cmpi slt, %105, %106 : vector<1x1024xi32>
    %108 = arith.andi %103, %107 : vector<1x1024xi1>
    %c-1_i32_40 = arith.constant -1 : i32
    %109 = vector.broadcast %c-1_i32_40 : i32 to vector<1x1024xi32>
    %110 = arith.addi %4, %109 : vector<1x1024xi32>
    %c0_i32_41 = arith.constant 0 : i32
    %111 = vector.broadcast %c0_i32_41 : i32 to vector<1x1024xi32>
    %112 = arith.cmpi sge, %110, %111 : vector<1x1024xi32>
    %113 = arith.andi %108, %112 : vector<1x1024xi1>
    %c-1_i32_42 = arith.constant -1 : i32
    %114 = vector.broadcast %c-1_i32_42 : i32 to vector<1x1024xi32>
    %115 = arith.addi %4, %114 : vector<1x1024xi32>
    %c32_i32_43 = arith.constant 32 : i32
    %116 = vector.broadcast %c32_i32_43 : i32 to vector<1x1024xi32>
    %117 = arith.cmpi slt, %115, %116 : vector<1x1024xi32>
    %118 = arith.andi %113, %117 : vector<1x1024xi1>
    %c1_i32_44 = arith.constant 1 : i32
    %119 = vector.broadcast %c1_i32_44 : i32 to vector<1x1024xi32>
    %120 = arith.addi %2, %119 : vector<1x1024xi32>
    %c0_i32_45 = arith.constant 0 : i32
    %121 = vector.broadcast %c0_i32_45 : i32 to vector<1x1024xi32>
    %122 = arith.cmpi sge, %120, %121 : vector<1x1024xi32>
    %c1_i32_46 = arith.constant 1 : i32
    %123 = vector.broadcast %c1_i32_46 : i32 to vector<1x1024xi32>
    %124 = arith.addi %2, %123 : vector<1x1024xi32>
    %c32_i32_47 = arith.constant 32 : i32
    %125 = vector.broadcast %c32_i32_47 : i32 to vector<1x1024xi32>
    %126 = arith.cmpi slt, %124, %125 : vector<1x1024xi32>
    %127 = arith.andi %122, %126 : vector<1x1024xi1>
    %c0_i32_48 = arith.constant 0 : i32
    %128 = vector.broadcast %c0_i32_48 : i32 to vector<1x1024xi32>
    %129 = arith.addi %4, %128 : vector<1x1024xi32>
    %c0_i32_49 = arith.constant 0 : i32
    %130 = vector.broadcast %c0_i32_49 : i32 to vector<1x1024xi32>
    %131 = arith.cmpi sge, %129, %130 : vector<1x1024xi32>
    %132 = arith.andi %127, %131 : vector<1x1024xi1>
    %c0_i32_50 = arith.constant 0 : i32
    %133 = vector.broadcast %c0_i32_50 : i32 to vector<1x1024xi32>
    %134 = arith.addi %4, %133 : vector<1x1024xi32>
    %c32_i32_51 = arith.constant 32 : i32
    %135 = vector.broadcast %c32_i32_51 : i32 to vector<1x1024xi32>
    %136 = arith.cmpi slt, %134, %135 : vector<1x1024xi32>
    %137 = arith.andi %132, %136 : vector<1x1024xi1>
    %c1_i32_52 = arith.constant 1 : i32
    %138 = vector.broadcast %c1_i32_52 : i32 to vector<1x1024xi32>
    %139 = arith.addi %2, %138 : vector<1x1024xi32>
    %c0_i32_53 = arith.constant 0 : i32
    %140 = vector.broadcast %c0_i32_53 : i32 to vector<1x1024xi32>
    %141 = arith.cmpi sge, %139, %140 : vector<1x1024xi32>
    %c1_i32_54 = arith.constant 1 : i32
    %142 = vector.broadcast %c1_i32_54 : i32 to vector<1x1024xi32>
    %143 = arith.addi %2, %142 : vector<1x1024xi32>
    %c32_i32_55 = arith.constant 32 : i32
    %144 = vector.broadcast %c32_i32_55 : i32 to vector<1x1024xi32>
    %145 = arith.cmpi slt, %143, %144 : vector<1x1024xi32>
    %146 = arith.andi %141, %145 : vector<1x1024xi1>
    %c1_i32_56 = arith.constant 1 : i32
    %147 = vector.broadcast %c1_i32_56 : i32 to vector<1x1024xi32>
    %148 = arith.addi %4, %147 : vector<1x1024xi32>
    %c0_i32_57 = arith.constant 0 : i32
    %149 = vector.broadcast %c0_i32_57 : i32 to vector<1x1024xi32>
    %150 = arith.cmpi sge, %148, %149 : vector<1x1024xi32>
    %151 = arith.andi %146, %150 : vector<1x1024xi1>
    %c1_i32_58 = arith.constant 1 : i32
    %152 = vector.broadcast %c1_i32_58 : i32 to vector<1x1024xi32>
    %153 = arith.addi %4, %152 : vector<1x1024xi32>
    %c32_i32_59 = arith.constant 32 : i32
    %154 = vector.broadcast %c32_i32_59 : i32 to vector<1x1024xi32>
    %155 = arith.cmpi slt, %153, %154 : vector<1x1024xi32>
    %156 = arith.andi %151, %155 : vector<1x1024xi1>
    %157 = tpu.iota {dimensions = array<i32: 1>} : vector<1x256xi32>
    %c4_i32 = arith.constant 4 : i32
    %158 = vector.broadcast %c4_i32 : i32 to vector<1x256xi32>
    %159 = arith.shrsi %157, %158 : vector<1x256xi32>
    %c15_i32 = arith.constant 15 : i32
    %160 = vector.broadcast %c15_i32 : i32 to vector<1x256xi32>
    %161 = arith.andi %157, %160 : vector<1x256xi32>
    %c-1_i32_60 = arith.constant -1 : i32
    %162 = vector.broadcast %c-1_i32_60 : i32 to vector<1x256xi32>
    %163 = arith.addi %159, %162 : vector<1x256xi32>
    %c0_i32_61 = arith.constant 0 : i32
    %164 = vector.broadcast %c0_i32_61 : i32 to vector<1x256xi32>
    %165 = arith.cmpi sge, %163, %164 : vector<1x256xi32>
    %c-1_i32_62 = arith.constant -1 : i32
    %166 = vector.broadcast %c-1_i32_62 : i32 to vector<1x256xi32>
    %167 = arith.addi %159, %166 : vector<1x256xi32>
    %c16_i32 = arith.constant 16 : i32
    %168 = vector.broadcast %c16_i32 : i32 to vector<1x256xi32>
    %169 = arith.cmpi slt, %167, %168 : vector<1x256xi32>
    %170 = arith.andi %165, %169 : vector<1x256xi1>
    %c-1_i32_63 = arith.constant -1 : i32
    %171 = vector.broadcast %c-1_i32_63 : i32 to vector<1x256xi32>
    %172 = arith.addi %161, %171 : vector<1x256xi32>
    %c0_i32_64 = arith.constant 0 : i32
    %173 = vector.broadcast %c0_i32_64 : i32 to vector<1x256xi32>
    %174 = arith.cmpi sge, %172, %173 : vector<1x256xi32>
    %175 = arith.andi %170, %174 : vector<1x256xi1>
    %c-1_i32_65 = arith.constant -1 : i32
    %176 = vector.broadcast %c-1_i32_65 : i32 to vector<1x256xi32>
    %177 = arith.addi %161, %176 : vector<1x256xi32>
    %c16_i32_66 = arith.constant 16 : i32
    %178 = vector.broadcast %c16_i32_66 : i32 to vector<1x256xi32>
    %179 = arith.cmpi slt, %177, %178 : vector<1x256xi32>
    %180 = arith.andi %175, %179 : vector<1x256xi1>
    %c-1_i32_67 = arith.constant -1 : i32
    %181 = vector.broadcast %c-1_i32_67 : i32 to vector<1x256xi32>
    %182 = arith.addi %159, %181 : vector<1x256xi32>
    %c0_i32_68 = arith.constant 0 : i32
    %183 = vector.broadcast %c0_i32_68 : i32 to vector<1x256xi32>
    %184 = arith.cmpi sge, %182, %183 : vector<1x256xi32>
    %c-1_i32_69 = arith.constant -1 : i32
    %185 = vector.broadcast %c-1_i32_69 : i32 to vector<1x256xi32>
    %186 = arith.addi %159, %185 : vector<1x256xi32>
    %c16_i32_70 = arith.constant 16 : i32
    %187 = vector.broadcast %c16_i32_70 : i32 to vector<1x256xi32>
    %188 = arith.cmpi slt, %186, %187 : vector<1x256xi32>
    %189 = arith.andi %184, %188 : vector<1x256xi1>
    %c0_i32_71 = arith.constant 0 : i32
    %190 = vector.broadcast %c0_i32_71 : i32 to vector<1x256xi32>
    %191 = arith.addi %161, %190 : vector<1x256xi32>
    %c0_i32_72 = arith.constant 0 : i32
    %192 = vector.broadcast %c0_i32_72 : i32 to vector<1x256xi32>
    %193 = arith.cmpi sge, %191, %192 : vector<1x256xi32>
    %194 = arith.andi %189, %193 : vector<1x256xi1>
    %c0_i32_73 = arith.constant 0 : i32
    %195 = vector.broadcast %c0_i32_73 : i32 to vector<1x256xi32>
    %196 = arith.addi %161, %195 : vector<1x256xi32>
    %c16_i32_74 = arith.constant 16 : i32
    %197 = vector.broadcast %c16_i32_74 : i32 to vector<1x256xi32>
    %198 = arith.cmpi slt, %196, %197 : vector<1x256xi32>
    %199 = arith.andi %194, %198 : vector<1x256xi1>
    %c-1_i32_75 = arith.constant -1 : i32
    %200 = vector.broadcast %c-1_i32_75 : i32 to vector<1x256xi32>
    %201 = arith.addi %159, %200 : vector<1x256xi32>
    %c0_i32_76 = arith.constant 0 : i32
    %202 = vector.broadcast %c0_i32_76 : i32 to vector<1x256xi32>
    %203 = arith.cmpi sge, %201, %202 : vector<1x256xi32>
    %c-1_i32_77 = arith.constant -1 : i32
    %204 = vector.broadcast %c-1_i32_77 : i32 to vector<1x256xi32>
    %205 = arith.addi %159, %204 : vector<1x256xi32>
    %c16_i32_78 = arith.constant 16 : i32
    %206 = vector.broadcast %c16_i32_78 : i32 to vector<1x256xi32>
    %207 = arith.cmpi slt, %205, %206 : vector<1x256xi32>
    %208 = arith.andi %203, %207 : vector<1x256xi1>
    %c1_i32_79 = arith.constant 1 : i32
    %209 = vector.broadcast %c1_i32_79 : i32 to vector<1x256xi32>
    %210 = arith.addi %161, %209 : vector<1x256xi32>
    %c0_i32_80 = arith.constant 0 : i32
    %211 = vector.broadcast %c0_i32_80 : i32 to vector<1x256xi32>
    %212 = arith.cmpi sge, %210, %211 : vector<1x256xi32>
    %213 = arith.andi %208, %212 : vector<1x256xi1>
    %c1_i32_81 = arith.constant 1 : i32
    %214 = vector.broadcast %c1_i32_81 : i32 to vector<1x256xi32>
    %215 = arith.addi %161, %214 : vector<1x256xi32>
    %c16_i32_82 = arith.constant 16 : i32
    %216 = vector.broadcast %c16_i32_82 : i32 to vector<1x256xi32>
    %217 = arith.cmpi slt, %215, %216 : vector<1x256xi32>
    %218 = arith.andi %213, %217 : vector<1x256xi1>
    %c0_i32_83 = arith.constant 0 : i32
    %219 = vector.broadcast %c0_i32_83 : i32 to vector<1x256xi32>
    %220 = arith.addi %159, %219 : vector<1x256xi32>
    %c0_i32_84 = arith.constant 0 : i32
    %221 = vector.broadcast %c0_i32_84 : i32 to vector<1x256xi32>
    %222 = arith.cmpi sge, %220, %221 : vector<1x256xi32>
    %c0_i32_85 = arith.constant 0 : i32
    %223 = vector.broadcast %c0_i32_85 : i32 to vector<1x256xi32>
    %224 = arith.addi %159, %223 : vector<1x256xi32>
    %c16_i32_86 = arith.constant 16 : i32
    %225 = vector.broadcast %c16_i32_86 : i32 to vector<1x256xi32>
    %226 = arith.cmpi slt, %224, %225 : vector<1x256xi32>
    %227 = arith.andi %222, %226 : vector<1x256xi1>
    %c-1_i32_87 = arith.constant -1 : i32
    %228 = vector.broadcast %c-1_i32_87 : i32 to vector<1x256xi32>
    %229 = arith.addi %161, %228 : vector<1x256xi32>
    %c0_i32_88 = arith.constant 0 : i32
    %230 = vector.broadcast %c0_i32_88 : i32 to vector<1x256xi32>
    %231 = arith.cmpi sge, %229, %230 : vector<1x256xi32>
    %232 = arith.andi %227, %231 : vector<1x256xi1>
    %c-1_i32_89 = arith.constant -1 : i32
    %233 = vector.broadcast %c-1_i32_89 : i32 to vector<1x256xi32>
    %234 = arith.addi %161, %233 : vector<1x256xi32>
    %c16_i32_90 = arith.constant 16 : i32
    %235 = vector.broadcast %c16_i32_90 : i32 to vector<1x256xi32>
    %236 = arith.cmpi slt, %234, %235 : vector<1x256xi32>
    %237 = arith.andi %232, %236 : vector<1x256xi1>
    %c0_i32_91 = arith.constant 0 : i32
    %238 = vector.broadcast %c0_i32_91 : i32 to vector<1x256xi32>
    %239 = arith.addi %159, %238 : vector<1x256xi32>
    %c0_i32_92 = arith.constant 0 : i32
    %240 = vector.broadcast %c0_i32_92 : i32 to vector<1x256xi32>
    %241 = arith.cmpi sge, %239, %240 : vector<1x256xi32>
    %c0_i32_93 = arith.constant 0 : i32
    %242 = vector.broadcast %c0_i32_93 : i32 to vector<1x256xi32>
    %243 = arith.addi %159, %242 : vector<1x256xi32>
    %c16_i32_94 = arith.constant 16 : i32
    %244 = vector.broadcast %c16_i32_94 : i32 to vector<1x256xi32>
    %245 = arith.cmpi slt, %243, %244 : vector<1x256xi32>
    %246 = arith.andi %241, %245 : vector<1x256xi1>
    %c1_i32_95 = arith.constant 1 : i32
    %247 = vector.broadcast %c1_i32_95 : i32 to vector<1x256xi32>
    %248 = arith.addi %161, %247 : vector<1x256xi32>
    %c0_i32_96 = arith.constant 0 : i32
    %249 = vector.broadcast %c0_i32_96 : i32 to vector<1x256xi32>
    %250 = arith.cmpi sge, %248, %249 : vector<1x256xi32>
    %251 = arith.andi %246, %250 : vector<1x256xi1>
    %c1_i32_97 = arith.constant 1 : i32
    %252 = vector.broadcast %c1_i32_97 : i32 to vector<1x256xi32>
    %253 = arith.addi %161, %252 : vector<1x256xi32>
    %c16_i32_98 = arith.constant 16 : i32
    %254 = vector.broadcast %c16_i32_98 : i32 to vector<1x256xi32>
    %255 = arith.cmpi slt, %253, %254 : vector<1x256xi32>
    %256 = arith.andi %251, %255 : vector<1x256xi1>
    %c1_i32_99 = arith.constant 1 : i32
    %257 = vector.broadcast %c1_i32_99 : i32 to vector<1x256xi32>
    %258 = arith.addi %159, %257 : vector<1x256xi32>
    %c0_i32_100 = arith.constant 0 : i32
    %259 = vector.broadcast %c0_i32_100 : i32 to vector<1x256xi32>
    %260 = arith.cmpi sge, %258, %259 : vector<1x256xi32>
    %c1_i32_101 = arith.constant 1 : i32
    %261 = vector.broadcast %c1_i32_101 : i32 to vector<1x256xi32>
    %262 = arith.addi %159, %261 : vector<1x256xi32>
    %c16_i32_102 = arith.constant 16 : i32
    %263 = vector.broadcast %c16_i32_102 : i32 to vector<1x256xi32>
    %264 = arith.cmpi slt, %262, %263 : vector<1x256xi32>
    %265 = arith.andi %260, %264 : vector<1x256xi1>
    %c-1_i32_103 = arith.constant -1 : i32
    %266 = vector.broadcast %c-1_i32_103 : i32 to vector<1x256xi32>
    %267 = arith.addi %161, %266 : vector<1x256xi32>
    %c0_i32_104 = arith.constant 0 : i32
    %268 = vector.broadcast %c0_i32_104 : i32 to vector<1x256xi32>
    %269 = arith.cmpi sge, %267, %268 : vector<1x256xi32>
    %270 = arith.andi %265, %269 : vector<1x256xi1>
    %c-1_i32_105 = arith.constant -1 : i32
    %271 = vector.broadcast %c-1_i32_105 : i32 to vector<1x256xi32>
    %272 = arith.addi %161, %271 : vector<1x256xi32>
    %c16_i32_106 = arith.constant 16 : i32
    %273 = vector.broadcast %c16_i32_106 : i32 to vector<1x256xi32>
    %274 = arith.cmpi slt, %272, %273 : vector<1x256xi32>
    %275 = arith.andi %270, %274 : vector<1x256xi1>
    %c1_i32_107 = arith.constant 1 : i32
    %276 = vector.broadcast %c1_i32_107 : i32 to vector<1x256xi32>
    %277 = arith.addi %159, %276 : vector<1x256xi32>
    %c0_i32_108 = arith.constant 0 : i32
    %278 = vector.broadcast %c0_i32_108 : i32 to vector<1x256xi32>
    %279 = arith.cmpi sge, %277, %278 : vector<1x256xi32>
    %c1_i32_109 = arith.constant 1 : i32
    %280 = vector.broadcast %c1_i32_109 : i32 to vector<1x256xi32>
    %281 = arith.addi %159, %280 : vector<1x256xi32>
    %c16_i32_110 = arith.constant 16 : i32
    %282 = vector.broadcast %c16_i32_110 : i32 to vector<1x256xi32>
    %283 = arith.cmpi slt, %281, %282 : vector<1x256xi32>
    %284 = arith.andi %279, %283 : vector<1x256xi1>
    %c0_i32_111 = arith.constant 0 : i32
    %285 = vector.broadcast %c0_i32_111 : i32 to vector<1x256xi32>
    %286 = arith.addi %161, %285 : vector<1x256xi32>
    %c0_i32_112 = arith.constant 0 : i32
    %287 = vector.broadcast %c0_i32_112 : i32 to vector<1x256xi32>
    %288 = arith.cmpi sge, %286, %287 : vector<1x256xi32>
    %289 = arith.andi %284, %288 : vector<1x256xi1>
    %c0_i32_113 = arith.constant 0 : i32
    %290 = vector.broadcast %c0_i32_113 : i32 to vector<1x256xi32>
    %291 = arith.addi %161, %290 : vector<1x256xi32>
    %c16_i32_114 = arith.constant 16 : i32
    %292 = vector.broadcast %c16_i32_114 : i32 to vector<1x256xi32>
    %293 = arith.cmpi slt, %291, %292 : vector<1x256xi32>
    %294 = arith.andi %289, %293 : vector<1x256xi1>
    %c1_i32_115 = arith.constant 1 : i32
    %295 = vector.broadcast %c1_i32_115 : i32 to vector<1x256xi32>
    %296 = arith.addi %159, %295 : vector<1x256xi32>
    %c0_i32_116 = arith.constant 0 : i32
    %297 = vector.broadcast %c0_i32_116 : i32 to vector<1x256xi32>
    %298 = arith.cmpi sge, %296, %297 : vector<1x256xi32>
    %c1_i32_117 = arith.constant 1 : i32
    %299 = vector.broadcast %c1_i32_117 : i32 to vector<1x256xi32>
    %300 = arith.addi %159, %299 : vector<1x256xi32>
    %c16_i32_118 = arith.constant 16 : i32
    %301 = vector.broadcast %c16_i32_118 : i32 to vector<1x256xi32>
    %302 = arith.cmpi slt, %300, %301 : vector<1x256xi32>
    %303 = arith.andi %298, %302 : vector<1x256xi1>
    %c1_i32_119 = arith.constant 1 : i32
    %304 = vector.broadcast %c1_i32_119 : i32 to vector<1x256xi32>
    %305 = arith.addi %161, %304 : vector<1x256xi32>
    %c0_i32_120 = arith.constant 0 : i32
    %306 = vector.broadcast %c0_i32_120 : i32 to vector<1x256xi32>
    %307 = arith.cmpi sge, %305, %306 : vector<1x256xi32>
    %308 = arith.andi %303, %307 : vector<1x256xi1>
    %c1_i32_121 = arith.constant 1 : i32
    %309 = vector.broadcast %c1_i32_121 : i32 to vector<1x256xi32>
    %310 = arith.addi %161, %309 : vector<1x256xi32>
    %c16_i32_122 = arith.constant 16 : i32
    %311 = vector.broadcast %c16_i32_122 : i32 to vector<1x256xi32>
    %312 = arith.cmpi slt, %310, %311 : vector<1x256xi32>
    %313 = arith.andi %308, %312 : vector<1x256xi1>
    %314 = tpu.iota {dimensions = array<i32: 1>} : vector<1x64xi32>
    %c3_i32 = arith.constant 3 : i32
    %315 = vector.broadcast %c3_i32 : i32 to vector<1x64xi32>
    %316 = arith.shrsi %314, %315 : vector<1x64xi32>
    %c7_i32 = arith.constant 7 : i32
    %317 = vector.broadcast %c7_i32 : i32 to vector<1x64xi32>
    %318 = arith.andi %314, %317 : vector<1x64xi32>
    %c-1_i32_123 = arith.constant -1 : i32
    %319 = vector.broadcast %c-1_i32_123 : i32 to vector<1x64xi32>
    %320 = arith.addi %316, %319 : vector<1x64xi32>
    %c0_i32_124 = arith.constant 0 : i32
    %321 = vector.broadcast %c0_i32_124 : i32 to vector<1x64xi32>
    %322 = arith.cmpi sge, %320, %321 : vector<1x64xi32>
    %c-1_i32_125 = arith.constant -1 : i32
    %323 = vector.broadcast %c-1_i32_125 : i32 to vector<1x64xi32>
    %324 = arith.addi %316, %323 : vector<1x64xi32>
    %c8_i32 = arith.constant 8 : i32
    %325 = vector.broadcast %c8_i32 : i32 to vector<1x64xi32>
    %326 = arith.cmpi slt, %324, %325 : vector<1x64xi32>
    %327 = arith.andi %322, %326 : vector<1x64xi1>
    %c-1_i32_126 = arith.constant -1 : i32
    %328 = vector.broadcast %c-1_i32_126 : i32 to vector<1x64xi32>
    %329 = arith.addi %318, %328 : vector<1x64xi32>
    %c0_i32_127 = arith.constant 0 : i32
    %330 = vector.broadcast %c0_i32_127 : i32 to vector<1x64xi32>
    %331 = arith.cmpi sge, %329, %330 : vector<1x64xi32>
    %332 = arith.andi %327, %331 : vector<1x64xi1>
    %c-1_i32_128 = arith.constant -1 : i32
    %333 = vector.broadcast %c-1_i32_128 : i32 to vector<1x64xi32>
    %334 = arith.addi %318, %333 : vector<1x64xi32>
    %c8_i32_129 = arith.constant 8 : i32
    %335 = vector.broadcast %c8_i32_129 : i32 to vector<1x64xi32>
    %336 = arith.cmpi slt, %334, %335 : vector<1x64xi32>
    %337 = arith.andi %332, %336 : vector<1x64xi1>
    %c-1_i32_130 = arith.constant -1 : i32
    %338 = vector.broadcast %c-1_i32_130 : i32 to vector<1x64xi32>
    %339 = arith.addi %316, %338 : vector<1x64xi32>
    %c0_i32_131 = arith.constant 0 : i32
    %340 = vector.broadcast %c0_i32_131 : i32 to vector<1x64xi32>
    %341 = arith.cmpi sge, %339, %340 : vector<1x64xi32>
    %c-1_i32_132 = arith.constant -1 : i32
    %342 = vector.broadcast %c-1_i32_132 : i32 to vector<1x64xi32>
    %343 = arith.addi %316, %342 : vector<1x64xi32>
    %c8_i32_133 = arith.constant 8 : i32
    %344 = vector.broadcast %c8_i32_133 : i32 to vector<1x64xi32>
    %345 = arith.cmpi slt, %343, %344 : vector<1x64xi32>
    %346 = arith.andi %341, %345 : vector<1x64xi1>
    %c0_i32_134 = arith.constant 0 : i32
    %347 = vector.broadcast %c0_i32_134 : i32 to vector<1x64xi32>
    %348 = arith.addi %318, %347 : vector<1x64xi32>
    %c0_i32_135 = arith.constant 0 : i32
    %349 = vector.broadcast %c0_i32_135 : i32 to vector<1x64xi32>
    %350 = arith.cmpi sge, %348, %349 : vector<1x64xi32>
    %351 = arith.andi %346, %350 : vector<1x64xi1>
    %c0_i32_136 = arith.constant 0 : i32
    %352 = vector.broadcast %c0_i32_136 : i32 to vector<1x64xi32>
    %353 = arith.addi %318, %352 : vector<1x64xi32>
    %c8_i32_137 = arith.constant 8 : i32
    %354 = vector.broadcast %c8_i32_137 : i32 to vector<1x64xi32>
    %355 = arith.cmpi slt, %353, %354 : vector<1x64xi32>
    %356 = arith.andi %351, %355 : vector<1x64xi1>
    %c-1_i32_138 = arith.constant -1 : i32
    %357 = vector.broadcast %c-1_i32_138 : i32 to vector<1x64xi32>
    %358 = arith.addi %316, %357 : vector<1x64xi32>
    %c0_i32_139 = arith.constant 0 : i32
    %359 = vector.broadcast %c0_i32_139 : i32 to vector<1x64xi32>
    %360 = arith.cmpi sge, %358, %359 : vector<1x64xi32>
    %c-1_i32_140 = arith.constant -1 : i32
    %361 = vector.broadcast %c-1_i32_140 : i32 to vector<1x64xi32>
    %362 = arith.addi %316, %361 : vector<1x64xi32>
    %c8_i32_141 = arith.constant 8 : i32
    %363 = vector.broadcast %c8_i32_141 : i32 to vector<1x64xi32>
    %364 = arith.cmpi slt, %362, %363 : vector<1x64xi32>
    %365 = arith.andi %360, %364 : vector<1x64xi1>
    %c1_i32_142 = arith.constant 1 : i32
    %366 = vector.broadcast %c1_i32_142 : i32 to vector<1x64xi32>
    %367 = arith.addi %318, %366 : vector<1x64xi32>
    %c0_i32_143 = arith.constant 0 : i32
    %368 = vector.broadcast %c0_i32_143 : i32 to vector<1x64xi32>
    %369 = arith.cmpi sge, %367, %368 : vector<1x64xi32>
    %370 = arith.andi %365, %369 : vector<1x64xi1>
    %c1_i32_144 = arith.constant 1 : i32
    %371 = vector.broadcast %c1_i32_144 : i32 to vector<1x64xi32>
    %372 = arith.addi %318, %371 : vector<1x64xi32>
    %c8_i32_145 = arith.constant 8 : i32
    %373 = vector.broadcast %c8_i32_145 : i32 to vector<1x64xi32>
    %374 = arith.cmpi slt, %372, %373 : vector<1x64xi32>
    %375 = arith.andi %370, %374 : vector<1x64xi1>
    %c0_i32_146 = arith.constant 0 : i32
    %376 = vector.broadcast %c0_i32_146 : i32 to vector<1x64xi32>
    %377 = arith.addi %316, %376 : vector<1x64xi32>
    %c0_i32_147 = arith.constant 0 : i32
    %378 = vector.broadcast %c0_i32_147 : i32 to vector<1x64xi32>
    %379 = arith.cmpi sge, %377, %378 : vector<1x64xi32>
    %c0_i32_148 = arith.constant 0 : i32
    %380 = vector.broadcast %c0_i32_148 : i32 to vector<1x64xi32>
    %381 = arith.addi %316, %380 : vector<1x64xi32>
    %c8_i32_149 = arith.constant 8 : i32
    %382 = vector.broadcast %c8_i32_149 : i32 to vector<1x64xi32>
    %383 = arith.cmpi slt, %381, %382 : vector<1x64xi32>
    %384 = arith.andi %379, %383 : vector<1x64xi1>
    %c-1_i32_150 = arith.constant -1 : i32
    %385 = vector.broadcast %c-1_i32_150 : i32 to vector<1x64xi32>
    %386 = arith.addi %318, %385 : vector<1x64xi32>
    %c0_i32_151 = arith.constant 0 : i32
    %387 = vector.broadcast %c0_i32_151 : i32 to vector<1x64xi32>
    %388 = arith.cmpi sge, %386, %387 : vector<1x64xi32>
    %389 = arith.andi %384, %388 : vector<1x64xi1>
    %c-1_i32_152 = arith.constant -1 : i32
    %390 = vector.broadcast %c-1_i32_152 : i32 to vector<1x64xi32>
    %391 = arith.addi %318, %390 : vector<1x64xi32>
    %c8_i32_153 = arith.constant 8 : i32
    %392 = vector.broadcast %c8_i32_153 : i32 to vector<1x64xi32>
    %393 = arith.cmpi slt, %391, %392 : vector<1x64xi32>
    %394 = arith.andi %389, %393 : vector<1x64xi1>
    %c0_i32_154 = arith.constant 0 : i32
    %395 = vector.broadcast %c0_i32_154 : i32 to vector<1x64xi32>
    %396 = arith.addi %316, %395 : vector<1x64xi32>
    %c0_i32_155 = arith.constant 0 : i32
    %397 = vector.broadcast %c0_i32_155 : i32 to vector<1x64xi32>
    %398 = arith.cmpi sge, %396, %397 : vector<1x64xi32>
    %c0_i32_156 = arith.constant 0 : i32
    %399 = vector.broadcast %c0_i32_156 : i32 to vector<1x64xi32>
    %400 = arith.addi %316, %399 : vector<1x64xi32>
    %c8_i32_157 = arith.constant 8 : i32
    %401 = vector.broadcast %c8_i32_157 : i32 to vector<1x64xi32>
    %402 = arith.cmpi slt, %400, %401 : vector<1x64xi32>
    %403 = arith.andi %398, %402 : vector<1x64xi1>
    %c1_i32_158 = arith.constant 1 : i32
    %404 = vector.broadcast %c1_i32_158 : i32 to vector<1x64xi32>
    %405 = arith.addi %318, %404 : vector<1x64xi32>
    %c0_i32_159 = arith.constant 0 : i32
    %406 = vector.broadcast %c0_i32_159 : i32 to vector<1x64xi32>
    %407 = arith.cmpi sge, %405, %406 : vector<1x64xi32>
    %408 = arith.andi %403, %407 : vector<1x64xi1>
    %c1_i32_160 = arith.constant 1 : i32
    %409 = vector.broadcast %c1_i32_160 : i32 to vector<1x64xi32>
    %410 = arith.addi %318, %409 : vector<1x64xi32>
    %c8_i32_161 = arith.constant 8 : i32
    %411 = vector.broadcast %c8_i32_161 : i32 to vector<1x64xi32>
    %412 = arith.cmpi slt, %410, %411 : vector<1x64xi32>
    %413 = arith.andi %408, %412 : vector<1x64xi1>
    %c1_i32_162 = arith.constant 1 : i32
    %414 = vector.broadcast %c1_i32_162 : i32 to vector<1x64xi32>
    %415 = arith.addi %316, %414 : vector<1x64xi32>
    %c0_i32_163 = arith.constant 0 : i32
    %416 = vector.broadcast %c0_i32_163 : i32 to vector<1x64xi32>
    %417 = arith.cmpi sge, %415, %416 : vector<1x64xi32>
    %c1_i32_164 = arith.constant 1 : i32
    %418 = vector.broadcast %c1_i32_164 : i32 to vector<1x64xi32>
    %419 = arith.addi %316, %418 : vector<1x64xi32>
    %c8_i32_165 = arith.constant 8 : i32
    %420 = vector.broadcast %c8_i32_165 : i32 to vector<1x64xi32>
    %421 = arith.cmpi slt, %419, %420 : vector<1x64xi32>
    %422 = arith.andi %417, %421 : vector<1x64xi1>
    %c-1_i32_166 = arith.constant -1 : i32
    %423 = vector.broadcast %c-1_i32_166 : i32 to vector<1x64xi32>
    %424 = arith.addi %318, %423 : vector<1x64xi32>
    %c0_i32_167 = arith.constant 0 : i32
    %425 = vector.broadcast %c0_i32_167 : i32 to vector<1x64xi32>
    %426 = arith.cmpi sge, %424, %425 : vector<1x64xi32>
    %427 = arith.andi %422, %426 : vector<1x64xi1>
    %c-1_i32_168 = arith.constant -1 : i32
    %428 = vector.broadcast %c-1_i32_168 : i32 to vector<1x64xi32>
    %429 = arith.addi %318, %428 : vector<1x64xi32>
    %c8_i32_169 = arith.constant 8 : i32
    %430 = vector.broadcast %c8_i32_169 : i32 to vector<1x64xi32>
    %431 = arith.cmpi slt, %429, %430 : vector<1x64xi32>
    %432 = arith.andi %427, %431 : vector<1x64xi1>
    %c1_i32_170 = arith.constant 1 : i32
    %433 = vector.broadcast %c1_i32_170 : i32 to vector<1x64xi32>
    %434 = arith.addi %316, %433 : vector<1x64xi32>
    %c0_i32_171 = arith.constant 0 : i32
    %435 = vector.broadcast %c0_i32_171 : i32 to vector<1x64xi32>
    %436 = arith.cmpi sge, %434, %435 : vector<1x64xi32>
    %c1_i32_172 = arith.constant 1 : i32
    %437 = vector.broadcast %c1_i32_172 : i32 to vector<1x64xi32>
    %438 = arith.addi %316, %437 : vector<1x64xi32>
    %c8_i32_173 = arith.constant 8 : i32
    %439 = vector.broadcast %c8_i32_173 : i32 to vector<1x64xi32>
    %440 = arith.cmpi slt, %438, %439 : vector<1x64xi32>
    %441 = arith.andi %436, %440 : vector<1x64xi1>
    %c0_i32_174 = arith.constant 0 : i32
    %442 = vector.broadcast %c0_i32_174 : i32 to vector<1x64xi32>
    %443 = arith.addi %318, %442 : vector<1x64xi32>
    %c0_i32_175 = arith.constant 0 : i32
    %444 = vector.broadcast %c0_i32_175 : i32 to vector<1x64xi32>
    %445 = arith.cmpi sge, %443, %444 : vector<1x64xi32>
    %446 = arith.andi %441, %445 : vector<1x64xi1>
    %c0_i32_176 = arith.constant 0 : i32
    %447 = vector.broadcast %c0_i32_176 : i32 to vector<1x64xi32>
    %448 = arith.addi %318, %447 : vector<1x64xi32>
    %c8_i32_177 = arith.constant 8 : i32
    %449 = vector.broadcast %c8_i32_177 : i32 to vector<1x64xi32>
    %450 = arith.cmpi slt, %448, %449 : vector<1x64xi32>
    %451 = arith.andi %446, %450 : vector<1x64xi1>
    %c1_i32_178 = arith.constant 1 : i32
    %452 = vector.broadcast %c1_i32_178 : i32 to vector<1x64xi32>
    %453 = arith.addi %316, %452 : vector<1x64xi32>
    %c0_i32_179 = arith.constant 0 : i32
    %454 = vector.broadcast %c0_i32_179 : i32 to vector<1x64xi32>
    %455 = arith.cmpi sge, %453, %454 : vector<1x64xi32>
    %c1_i32_180 = arith.constant 1 : i32
    %456 = vector.broadcast %c1_i32_180 : i32 to vector<1x64xi32>
    %457 = arith.addi %316, %456 : vector<1x64xi32>
    %c8_i32_181 = arith.constant 8 : i32
    %458 = vector.broadcast %c8_i32_181 : i32 to vector<1x64xi32>
    %459 = arith.cmpi slt, %457, %458 : vector<1x64xi32>
    %460 = arith.andi %455, %459 : vector<1x64xi1>
    %c1_i32_182 = arith.constant 1 : i32
    %461 = vector.broadcast %c1_i32_182 : i32 to vector<1x64xi32>
    %462 = arith.addi %318, %461 : vector<1x64xi32>
    %c0_i32_183 = arith.constant 0 : i32
    %463 = vector.broadcast %c0_i32_183 : i32 to vector<1x64xi32>
    %464 = arith.cmpi sge, %462, %463 : vector<1x64xi32>
    %465 = arith.andi %460, %464 : vector<1x64xi1>
    %c1_i32_184 = arith.constant 1 : i32
    %466 = vector.broadcast %c1_i32_184 : i32 to vector<1x64xi32>
    %467 = arith.addi %318, %466 : vector<1x64xi32>
    %c8_i32_185 = arith.constant 8 : i32
    %468 = vector.broadcast %c8_i32_185 : i32 to vector<1x64xi32>
    %469 = arith.cmpi slt, %467, %468 : vector<1x64xi32>
    %470 = arith.andi %465, %469 : vector<1x64xi1>
    %471 = tpu.iota {dimensions = array<i32: 1>} : vector<1x16xi32>
    %c2_i32 = arith.constant 2 : i32
    %472 = vector.broadcast %c2_i32 : i32 to vector<1x16xi32>
    %473 = arith.shrsi %471, %472 : vector<1x16xi32>
    %c3_i32_186 = arith.constant 3 : i32
    %474 = vector.broadcast %c3_i32_186 : i32 to vector<1x16xi32>
    %475 = arith.andi %471, %474 : vector<1x16xi32>
    %c-1_i32_187 = arith.constant -1 : i32
    %476 = vector.broadcast %c-1_i32_187 : i32 to vector<1x16xi32>
    %477 = arith.addi %473, %476 : vector<1x16xi32>
    %c0_i32_188 = arith.constant 0 : i32
    %478 = vector.broadcast %c0_i32_188 : i32 to vector<1x16xi32>
    %479 = arith.cmpi sge, %477, %478 : vector<1x16xi32>
    %c-1_i32_189 = arith.constant -1 : i32
    %480 = vector.broadcast %c-1_i32_189 : i32 to vector<1x16xi32>
    %481 = arith.addi %473, %480 : vector<1x16xi32>
    %c4_i32_190 = arith.constant 4 : i32
    %482 = vector.broadcast %c4_i32_190 : i32 to vector<1x16xi32>
    %483 = arith.cmpi slt, %481, %482 : vector<1x16xi32>
    %484 = arith.andi %479, %483 : vector<1x16xi1>
    %c-1_i32_191 = arith.constant -1 : i32
    %485 = vector.broadcast %c-1_i32_191 : i32 to vector<1x16xi32>
    %486 = arith.addi %475, %485 : vector<1x16xi32>
    %c0_i32_192 = arith.constant 0 : i32
    %487 = vector.broadcast %c0_i32_192 : i32 to vector<1x16xi32>
    %488 = arith.cmpi sge, %486, %487 : vector<1x16xi32>
    %489 = arith.andi %484, %488 : vector<1x16xi1>
    %c-1_i32_193 = arith.constant -1 : i32
    %490 = vector.broadcast %c-1_i32_193 : i32 to vector<1x16xi32>
    %491 = arith.addi %475, %490 : vector<1x16xi32>
    %c4_i32_194 = arith.constant 4 : i32
    %492 = vector.broadcast %c4_i32_194 : i32 to vector<1x16xi32>
    %493 = arith.cmpi slt, %491, %492 : vector<1x16xi32>
    %494 = arith.andi %489, %493 : vector<1x16xi1>
    %c-1_i32_195 = arith.constant -1 : i32
    %495 = vector.broadcast %c-1_i32_195 : i32 to vector<1x16xi32>
    %496 = arith.addi %473, %495 : vector<1x16xi32>
    %c0_i32_196 = arith.constant 0 : i32
    %497 = vector.broadcast %c0_i32_196 : i32 to vector<1x16xi32>
    %498 = arith.cmpi sge, %496, %497 : vector<1x16xi32>
    %c-1_i32_197 = arith.constant -1 : i32
    %499 = vector.broadcast %c-1_i32_197 : i32 to vector<1x16xi32>
    %500 = arith.addi %473, %499 : vector<1x16xi32>
    %c4_i32_198 = arith.constant 4 : i32
    %501 = vector.broadcast %c4_i32_198 : i32 to vector<1x16xi32>
    %502 = arith.cmpi slt, %500, %501 : vector<1x16xi32>
    %503 = arith.andi %498, %502 : vector<1x16xi1>
    %c0_i32_199 = arith.constant 0 : i32
    %504 = vector.broadcast %c0_i32_199 : i32 to vector<1x16xi32>
    %505 = arith.addi %475, %504 : vector<1x16xi32>
    %c0_i32_200 = arith.constant 0 : i32
    %506 = vector.broadcast %c0_i32_200 : i32 to vector<1x16xi32>
    %507 = arith.cmpi sge, %505, %506 : vector<1x16xi32>
    %508 = arith.andi %503, %507 : vector<1x16xi1>
    %c0_i32_201 = arith.constant 0 : i32
    %509 = vector.broadcast %c0_i32_201 : i32 to vector<1x16xi32>
    %510 = arith.addi %475, %509 : vector<1x16xi32>
    %c4_i32_202 = arith.constant 4 : i32
    %511 = vector.broadcast %c4_i32_202 : i32 to vector<1x16xi32>
    %512 = arith.cmpi slt, %510, %511 : vector<1x16xi32>
    %513 = arith.andi %508, %512 : vector<1x16xi1>
    %c-1_i32_203 = arith.constant -1 : i32
    %514 = vector.broadcast %c-1_i32_203 : i32 to vector<1x16xi32>
    %515 = arith.addi %473, %514 : vector<1x16xi32>
    %c0_i32_204 = arith.constant 0 : i32
    %516 = vector.broadcast %c0_i32_204 : i32 to vector<1x16xi32>
    %517 = arith.cmpi sge, %515, %516 : vector<1x16xi32>
    %c-1_i32_205 = arith.constant -1 : i32
    %518 = vector.broadcast %c-1_i32_205 : i32 to vector<1x16xi32>
    %519 = arith.addi %473, %518 : vector<1x16xi32>
    %c4_i32_206 = arith.constant 4 : i32
    %520 = vector.broadcast %c4_i32_206 : i32 to vector<1x16xi32>
    %521 = arith.cmpi slt, %519, %520 : vector<1x16xi32>
    %522 = arith.andi %517, %521 : vector<1x16xi1>
    %c1_i32_207 = arith.constant 1 : i32
    %523 = vector.broadcast %c1_i32_207 : i32 to vector<1x16xi32>
    %524 = arith.addi %475, %523 : vector<1x16xi32>
    %c0_i32_208 = arith.constant 0 : i32
    %525 = vector.broadcast %c0_i32_208 : i32 to vector<1x16xi32>
    %526 = arith.cmpi sge, %524, %525 : vector<1x16xi32>
    %527 = arith.andi %522, %526 : vector<1x16xi1>
    %c1_i32_209 = arith.constant 1 : i32
    %528 = vector.broadcast %c1_i32_209 : i32 to vector<1x16xi32>
    %529 = arith.addi %475, %528 : vector<1x16xi32>
    %c4_i32_210 = arith.constant 4 : i32
    %530 = vector.broadcast %c4_i32_210 : i32 to vector<1x16xi32>
    %531 = arith.cmpi slt, %529, %530 : vector<1x16xi32>
    %532 = arith.andi %527, %531 : vector<1x16xi1>
    %c0_i32_211 = arith.constant 0 : i32
    %533 = vector.broadcast %c0_i32_211 : i32 to vector<1x16xi32>
    %534 = arith.addi %473, %533 : vector<1x16xi32>
    %c0_i32_212 = arith.constant 0 : i32
    %535 = vector.broadcast %c0_i32_212 : i32 to vector<1x16xi32>
    %536 = arith.cmpi sge, %534, %535 : vector<1x16xi32>
    %c0_i32_213 = arith.constant 0 : i32
    %537 = vector.broadcast %c0_i32_213 : i32 to vector<1x16xi32>
    %538 = arith.addi %473, %537 : vector<1x16xi32>
    %c4_i32_214 = arith.constant 4 : i32
    %539 = vector.broadcast %c4_i32_214 : i32 to vector<1x16xi32>
    %540 = arith.cmpi slt, %538, %539 : vector<1x16xi32>
    %541 = arith.andi %536, %540 : vector<1x16xi1>
    %c-1_i32_215 = arith.constant -1 : i32
    %542 = vector.broadcast %c-1_i32_215 : i32 to vector<1x16xi32>
    %543 = arith.addi %475, %542 : vector<1x16xi32>
    %c0_i32_216 = arith.constant 0 : i32
    %544 = vector.broadcast %c0_i32_216 : i32 to vector<1x16xi32>
    %545 = arith.cmpi sge, %543, %544 : vector<1x16xi32>
    %546 = arith.andi %541, %545 : vector<1x16xi1>
    %c-1_i32_217 = arith.constant -1 : i32
    %547 = vector.broadcast %c-1_i32_217 : i32 to vector<1x16xi32>
    %548 = arith.addi %475, %547 : vector<1x16xi32>
    %c4_i32_218 = arith.constant 4 : i32
    %549 = vector.broadcast %c4_i32_218 : i32 to vector<1x16xi32>
    %550 = arith.cmpi slt, %548, %549 : vector<1x16xi32>
    %551 = arith.andi %546, %550 : vector<1x16xi1>
    %c0_i32_219 = arith.constant 0 : i32
    %552 = vector.broadcast %c0_i32_219 : i32 to vector<1x16xi32>
    %553 = arith.addi %473, %552 : vector<1x16xi32>
    %c0_i32_220 = arith.constant 0 : i32
    %554 = vector.broadcast %c0_i32_220 : i32 to vector<1x16xi32>
    %555 = arith.cmpi sge, %553, %554 : vector<1x16xi32>
    %c0_i32_221 = arith.constant 0 : i32
    %556 = vector.broadcast %c0_i32_221 : i32 to vector<1x16xi32>
    %557 = arith.addi %473, %556 : vector<1x16xi32>
    %c4_i32_222 = arith.constant 4 : i32
    %558 = vector.broadcast %c4_i32_222 : i32 to vector<1x16xi32>
    %559 = arith.cmpi slt, %557, %558 : vector<1x16xi32>
    %560 = arith.andi %555, %559 : vector<1x16xi1>
    %c1_i32_223 = arith.constant 1 : i32
    %561 = vector.broadcast %c1_i32_223 : i32 to vector<1x16xi32>
    %562 = arith.addi %475, %561 : vector<1x16xi32>
    %c0_i32_224 = arith.constant 0 : i32
    %563 = vector.broadcast %c0_i32_224 : i32 to vector<1x16xi32>
    %564 = arith.cmpi sge, %562, %563 : vector<1x16xi32>
    %565 = arith.andi %560, %564 : vector<1x16xi1>
    %c1_i32_225 = arith.constant 1 : i32
    %566 = vector.broadcast %c1_i32_225 : i32 to vector<1x16xi32>
    %567 = arith.addi %475, %566 : vector<1x16xi32>
    %c4_i32_226 = arith.constant 4 : i32
    %568 = vector.broadcast %c4_i32_226 : i32 to vector<1x16xi32>
    %569 = arith.cmpi slt, %567, %568 : vector<1x16xi32>
    %570 = arith.andi %565, %569 : vector<1x16xi1>
    %c1_i32_227 = arith.constant 1 : i32
    %571 = vector.broadcast %c1_i32_227 : i32 to vector<1x16xi32>
    %572 = arith.addi %473, %571 : vector<1x16xi32>
    %c0_i32_228 = arith.constant 0 : i32
    %573 = vector.broadcast %c0_i32_228 : i32 to vector<1x16xi32>
    %574 = arith.cmpi sge, %572, %573 : vector<1x16xi32>
    %c1_i32_229 = arith.constant 1 : i32
    %575 = vector.broadcast %c1_i32_229 : i32 to vector<1x16xi32>
    %576 = arith.addi %473, %575 : vector<1x16xi32>
    %c4_i32_230 = arith.constant 4 : i32
    %577 = vector.broadcast %c4_i32_230 : i32 to vector<1x16xi32>
    %578 = arith.cmpi slt, %576, %577 : vector<1x16xi32>
    %579 = arith.andi %574, %578 : vector<1x16xi1>
    %c-1_i32_231 = arith.constant -1 : i32
    %580 = vector.broadcast %c-1_i32_231 : i32 to vector<1x16xi32>
    %581 = arith.addi %475, %580 : vector<1x16xi32>
    %c0_i32_232 = arith.constant 0 : i32
    %582 = vector.broadcast %c0_i32_232 : i32 to vector<1x16xi32>
    %583 = arith.cmpi sge, %581, %582 : vector<1x16xi32>
    %584 = arith.andi %579, %583 : vector<1x16xi1>
    %c-1_i32_233 = arith.constant -1 : i32
    %585 = vector.broadcast %c-1_i32_233 : i32 to vector<1x16xi32>
    %586 = arith.addi %475, %585 : vector<1x16xi32>
    %c4_i32_234 = arith.constant 4 : i32
    %587 = vector.broadcast %c4_i32_234 : i32 to vector<1x16xi32>
    %588 = arith.cmpi slt, %586, %587 : vector<1x16xi32>
    %589 = arith.andi %584, %588 : vector<1x16xi1>
    %c1_i32_235 = arith.constant 1 : i32
    %590 = vector.broadcast %c1_i32_235 : i32 to vector<1x16xi32>
    %591 = arith.addi %473, %590 : vector<1x16xi32>
    %c0_i32_236 = arith.constant 0 : i32
    %592 = vector.broadcast %c0_i32_236 : i32 to vector<1x16xi32>
    %593 = arith.cmpi sge, %591, %592 : vector<1x16xi32>
    %c1_i32_237 = arith.constant 1 : i32
    %594 = vector.broadcast %c1_i32_237 : i32 to vector<1x16xi32>
    %595 = arith.addi %473, %594 : vector<1x16xi32>
    %c4_i32_238 = arith.constant 4 : i32
    %596 = vector.broadcast %c4_i32_238 : i32 to vector<1x16xi32>
    %597 = arith.cmpi slt, %595, %596 : vector<1x16xi32>
    %598 = arith.andi %593, %597 : vector<1x16xi1>
    %c0_i32_239 = arith.constant 0 : i32
    %599 = vector.broadcast %c0_i32_239 : i32 to vector<1x16xi32>
    %600 = arith.addi %475, %599 : vector<1x16xi32>
    %c0_i32_240 = arith.constant 0 : i32
    %601 = vector.broadcast %c0_i32_240 : i32 to vector<1x16xi32>
    %602 = arith.cmpi sge, %600, %601 : vector<1x16xi32>
    %603 = arith.andi %598, %602 : vector<1x16xi1>
    %c0_i32_241 = arith.constant 0 : i32
    %604 = vector.broadcast %c0_i32_241 : i32 to vector<1x16xi32>
    %605 = arith.addi %475, %604 : vector<1x16xi32>
    %c4_i32_242 = arith.constant 4 : i32
    %606 = vector.broadcast %c4_i32_242 : i32 to vector<1x16xi32>
    %607 = arith.cmpi slt, %605, %606 : vector<1x16xi32>
    %608 = arith.andi %603, %607 : vector<1x16xi1>
    %c1_i32_243 = arith.constant 1 : i32
    %609 = vector.broadcast %c1_i32_243 : i32 to vector<1x16xi32>
    %610 = arith.addi %473, %609 : vector<1x16xi32>
    %c0_i32_244 = arith.constant 0 : i32
    %611 = vector.broadcast %c0_i32_244 : i32 to vector<1x16xi32>
    %612 = arith.cmpi sge, %610, %611 : vector<1x16xi32>
    %c1_i32_245 = arith.constant 1 : i32
    %613 = vector.broadcast %c1_i32_245 : i32 to vector<1x16xi32>
    %614 = arith.addi %473, %613 : vector<1x16xi32>
    %c4_i32_246 = arith.constant 4 : i32
    %615 = vector.broadcast %c4_i32_246 : i32 to vector<1x16xi32>
    %616 = arith.cmpi slt, %614, %615 : vector<1x16xi32>
    %617 = arith.andi %612, %616 : vector<1x16xi1>
    %c1_i32_247 = arith.constant 1 : i32
    %618 = vector.broadcast %c1_i32_247 : i32 to vector<1x16xi32>
    %619 = arith.addi %475, %618 : vector<1x16xi32>
    %c0_i32_248 = arith.constant 0 : i32
    %620 = vector.broadcast %c0_i32_248 : i32 to vector<1x16xi32>
    %621 = arith.cmpi sge, %619, %620 : vector<1x16xi32>
    %622 = arith.andi %617, %621 : vector<1x16xi1>
    %c1_i32_249 = arith.constant 1 : i32
    %623 = vector.broadcast %c1_i32_249 : i32 to vector<1x16xi32>
    %624 = arith.addi %475, %623 : vector<1x16xi32>
    %c4_i32_250 = arith.constant 4 : i32
    %625 = vector.broadcast %c4_i32_250 : i32 to vector<1x16xi32>
    %626 = arith.cmpi slt, %624, %625 : vector<1x16xi32>
    %627 = arith.andi %622, %626 : vector<1x16xi1>
    %c0 = arith.constant 0 : index
    %c0_251 = arith.constant 0 : index
    %628 = vector.load %arg2[%c0, %c0_251] : memref<8x160xbf16, #tpu.memory_space<vmem>>, vector<8x160xbf16>
    %c0_252 = arith.constant 0 : index
    %c0_253 = arith.constant 0 : index
    %c0_254 = arith.constant 0 : index
    %629 = vector.load %arg1[%c0_252, %c0_253, %c0_254] : memref<1x160x1024xbf16, #tpu.memory_space<vmem>>, vector<1x160x1024xbf16>
    %630 = vector.shape_cast %629 : vector<1x160x1024xbf16> to vector<160x1024xbf16>
    %cst = arith.constant dense<0.000000e+00> : vector<8x1024xf32>
    %631 = tpu.matmul %628, %630, %cst {dimension_numbers = #tpu.dot_dimension_numbers<[1], [0], [0], [1], [0, 0, 1, 1], [], []>} : vector<8x160xbf16>, vector<160x1024xbf16>, vector<8x1024xf32> -> vector<8x1024xf32>
    %c0_255 = arith.constant 0 : index
    %c0_256 = arith.constant 0 : index
    %632 = vector.load %arg3[%c0_255, %c0_256] : memref<8x1xf32, #tpu.memory_space<vmem>>, vector<8x1xf32>
    %633 = vector.broadcast %632 : vector<8x1xf32> to vector<8x1024xf32>
    %634 = arith.addf %631, %633 : vector<8x1024xf32>
    %cst_257 = arith.constant 0.000000e+00 : f32
    %635 = vector.broadcast %cst_257 : f32 to vector<8x1024xf32>
    %636 = arith.maximumf %634, %635 : vector<8x1024xf32>
    %c33_i32 = arith.constant 33 : i32
    %637 = tpu.dynamic_rotate %636 by %c33_i32 dim 1 : vector<8x1024xf32>, i32 -> vector<8x1024xf32>
    %cst_258 = arith.constant -1.000000e+30 : f32
    %638 = vector.shape_cast %23 : vector<1x1024xi1> to vector<1x1024xi1>
    %639 = vector.broadcast %638 : vector<1x1024xi1> to vector<8x1024xi1>
    %640 = vector.broadcast %cst_258 : f32 to vector<8x1024xf32>
    %641 = arith.select %639, %637, %640 : vector<8x1024xi1>, vector<8x1024xf32>
    %c32_i32_259 = arith.constant 32 : i32
    %642 = tpu.dynamic_rotate %636 by %c32_i32_259 dim 1 : vector<8x1024xf32>, i32 -> vector<8x1024xf32>
    %cst_260 = arith.constant -1.000000e+30 : f32
    %643 = vector.shape_cast %42 : vector<1x1024xi1> to vector<1x1024xi1>
    %644 = vector.broadcast %643 : vector<1x1024xi1> to vector<8x1024xi1>
    %645 = vector.broadcast %cst_260 : f32 to vector<8x1024xf32>
    %646 = arith.select %644, %642, %645 : vector<8x1024xi1>, vector<8x1024xf32>
    %c31_i32_261 = arith.constant 31 : i32
    %647 = tpu.dynamic_rotate %636 by %c31_i32_261 dim 1 : vector<8x1024xf32>, i32 -> vector<8x1024xf32>
    %cst_262 = arith.constant -1.000000e+30 : f32
    %648 = vector.shape_cast %61 : vector<1x1024xi1> to vector<1x1024xi1>
    %649 = vector.broadcast %648 : vector<1x1024xi1> to vector<8x1024xi1>
    %650 = vector.broadcast %cst_262 : f32 to vector<8x1024xf32>
    %651 = arith.select %649, %647, %650 : vector<8x1024xi1>, vector<8x1024xf32>
    %c1_i32_263 = arith.constant 1 : i32
    %652 = tpu.dynamic_rotate %636 by %c1_i32_263 dim 1 : vector<8x1024xf32>, i32 -> vector<8x1024xf32>
    %cst_264 = arith.constant -1.000000e+30 : f32
    %653 = vector.shape_cast %80 : vector<1x1024xi1> to vector<1x1024xi1>
    %654 = vector.broadcast %653 : vector<1x1024xi1> to vector<8x1024xi1>
    %655 = vector.broadcast %cst_264 : f32 to vector<8x1024xf32>
    %656 = arith.select %654, %652, %655 : vector<8x1024xi1>, vector<8x1024xf32>
    %c1023_i32 = arith.constant 1023 : i32
    %657 = tpu.dynamic_rotate %636 by %c1023_i32 dim 1 : vector<8x1024xf32>, i32 -> vector<8x1024xf32>
    %cst_265 = arith.constant -1.000000e+30 : f32
    %658 = vector.shape_cast %99 : vector<1x1024xi1> to vector<1x1024xi1>
    %659 = vector.broadcast %658 : vector<1x1024xi1> to vector<8x1024xi1>
    %660 = vector.broadcast %cst_265 : f32 to vector<8x1024xf32>
    %661 = arith.select %659, %657, %660 : vector<8x1024xi1>, vector<8x1024xf32>
    %c993_i32 = arith.constant 993 : i32
    %662 = tpu.dynamic_rotate %636 by %c993_i32 dim 1 : vector<8x1024xf32>, i32 -> vector<8x1024xf32>
    %cst_266 = arith.constant -1.000000e+30 : f32
    %663 = vector.shape_cast %118 : vector<1x1024xi1> to vector<1x1024xi1>
    %664 = vector.broadcast %663 : vector<1x1024xi1> to vector<8x1024xi1>
    %665 = vector.broadcast %cst_266 : f32 to vector<8x1024xf32>
    %666 = arith.select %664, %662, %665 : vector<8x1024xi1>, vector<8x1024xf32>
    %c992_i32 = arith.constant 992 : i32
    %667 = tpu.dynamic_rotate %636 by %c992_i32 dim 1 : vector<8x1024xf32>, i32 -> vector<8x1024xf32>
    %cst_267 = arith.constant -1.000000e+30 : f32
    %668 = vector.shape_cast %137 : vector<1x1024xi1> to vector<1x1024xi1>
    %669 = vector.broadcast %668 : vector<1x1024xi1> to vector<8x1024xi1>
    %670 = vector.broadcast %cst_267 : f32 to vector<8x1024xf32>
    %671 = arith.select %669, %667, %670 : vector<8x1024xi1>, vector<8x1024xf32>
    %c991_i32 = arith.constant 991 : i32
    %672 = tpu.dynamic_rotate %636 by %c991_i32 dim 1 : vector<8x1024xf32>, i32 -> vector<8x1024xf32>
    %cst_268 = arith.constant -1.000000e+30 : f32
    %673 = vector.shape_cast %156 : vector<1x1024xi1> to vector<1x1024xi1>
    %674 = vector.broadcast %673 : vector<1x1024xi1> to vector<8x1024xi1>
    %675 = vector.broadcast %cst_268 : f32 to vector<8x1024xf32>
    %676 = arith.select %674, %672, %675 : vector<8x1024xi1>, vector<8x1024xf32>
    %677 = arith.maximumf %641, %646 : vector<8x1024xf32>
    %678 = arith.maximumf %677, %651 : vector<8x1024xf32>
    %679 = arith.maximumf %678, %656 : vector<8x1024xf32>
    %680 = arith.maximumf %679, %636 : vector<8x1024xf32>
    %681 = arith.maximumf %680, %661 : vector<8x1024xf32>
    %682 = arith.maximumf %681, %666 : vector<8x1024xf32>
    %683 = arith.maximumf %682, %671 : vector<8x1024xf32>
    %684 = arith.maximumf %683, %676 : vector<8x1024xf32>
    %685 = arith.truncf %684 : vector<8x1024xf32> to vector<8x1024xbf16>
    %c0_269 = arith.constant 0 : index
    %c0_270 = arith.constant 0 : index
    %686 = vector.load %arg4[%c0_269, %c0_270] : memref<1024x256xbf16, #tpu.memory_space<vmem>>, vector<1024x256xbf16>
    %cst_271 = arith.constant dense<0.000000e+00> : vector<8x256xf32>
    %687 = tpu.matmul %685, %686, %cst_271 {dimension_numbers = #tpu.dot_dimension_numbers<[1], [0], [0], [1], [0, 0, 1, 1], [], []>} : vector<8x1024xbf16>, vector<1024x256xbf16>, vector<8x256xf32> -> vector<8x256xf32>
    %c17_i32 = arith.constant 17 : i32
    %688 = tpu.dynamic_rotate %687 by %c17_i32 dim 1 : vector<8x256xf32>, i32 -> vector<8x256xf32>
    %cst_272 = arith.constant 0.000000e+00 : f32
    %689 = vector.shape_cast %180 : vector<1x256xi1> to vector<1x256xi1>
    %690 = vector.broadcast %689 : vector<1x256xi1> to vector<8x256xi1>
    %691 = vector.broadcast %cst_272 : f32 to vector<8x256xf32>
    %692 = arith.select %690, %688, %691 : vector<8x256xi1>, vector<8x256xf32>
    %c16_i32_273 = arith.constant 16 : i32
    %693 = tpu.dynamic_rotate %687 by %c16_i32_273 dim 1 : vector<8x256xf32>, i32 -> vector<8x256xf32>
    %cst_274 = arith.constant 0.000000e+00 : f32
    %694 = vector.shape_cast %199 : vector<1x256xi1> to vector<1x256xi1>
    %695 = vector.broadcast %694 : vector<1x256xi1> to vector<8x256xi1>
    %696 = vector.broadcast %cst_274 : f32 to vector<8x256xf32>
    %697 = arith.select %695, %693, %696 : vector<8x256xi1>, vector<8x256xf32>
    %c15_i32_275 = arith.constant 15 : i32
    %698 = tpu.dynamic_rotate %687 by %c15_i32_275 dim 1 : vector<8x256xf32>, i32 -> vector<8x256xf32>
    %cst_276 = arith.constant 0.000000e+00 : f32
    %699 = vector.shape_cast %218 : vector<1x256xi1> to vector<1x256xi1>
    %700 = vector.broadcast %699 : vector<1x256xi1> to vector<8x256xi1>
    %701 = vector.broadcast %cst_276 : f32 to vector<8x256xf32>
    %702 = arith.select %700, %698, %701 : vector<8x256xi1>, vector<8x256xf32>
    %c1_i32_277 = arith.constant 1 : i32
    %703 = tpu.dynamic_rotate %687 by %c1_i32_277 dim 1 : vector<8x256xf32>, i32 -> vector<8x256xf32>
    %cst_278 = arith.constant 0.000000e+00 : f32
    %704 = vector.shape_cast %237 : vector<1x256xi1> to vector<1x256xi1>
    %705 = vector.broadcast %704 : vector<1x256xi1> to vector<8x256xi1>
    %706 = vector.broadcast %cst_278 : f32 to vector<8x256xf32>
    %707 = arith.select %705, %703, %706 : vector<8x256xi1>, vector<8x256xf32>
    %c255_i32 = arith.constant 255 : i32
    %708 = tpu.dynamic_rotate %687 by %c255_i32 dim 1 : vector<8x256xf32>, i32 -> vector<8x256xf32>
    %cst_279 = arith.constant 0.000000e+00 : f32
    %709 = vector.shape_cast %256 : vector<1x256xi1> to vector<1x256xi1>
    %710 = vector.broadcast %709 : vector<1x256xi1> to vector<8x256xi1>
    %711 = vector.broadcast %cst_279 : f32 to vector<8x256xf32>
    %712 = arith.select %710, %708, %711 : vector<8x256xi1>, vector<8x256xf32>
    %c241_i32 = arith.constant 241 : i32
    %713 = tpu.dynamic_rotate %687 by %c241_i32 dim 1 : vector<8x256xf32>, i32 -> vector<8x256xf32>
    %cst_280 = arith.constant 0.000000e+00 : f32
    %714 = vector.shape_cast %275 : vector<1x256xi1> to vector<1x256xi1>
    %715 = vector.broadcast %714 : vector<1x256xi1> to vector<8x256xi1>
    %716 = vector.broadcast %cst_280 : f32 to vector<8x256xf32>
    %717 = arith.select %715, %713, %716 : vector<8x256xi1>, vector<8x256xf32>
    %c240_i32 = arith.constant 240 : i32
    %718 = tpu.dynamic_rotate %687 by %c240_i32 dim 1 : vector<8x256xf32>, i32 -> vector<8x256xf32>
    %cst_281 = arith.constant 0.000000e+00 : f32
    %719 = vector.shape_cast %294 : vector<1x256xi1> to vector<1x256xi1>
    %720 = vector.broadcast %719 : vector<1x256xi1> to vector<8x256xi1>
    %721 = vector.broadcast %cst_281 : f32 to vector<8x256xf32>
    %722 = arith.select %720, %718, %721 : vector<8x256xi1>, vector<8x256xf32>
    %c239_i32 = arith.constant 239 : i32
    %723 = tpu.dynamic_rotate %687 by %c239_i32 dim 1 : vector<8x256xf32>, i32 -> vector<8x256xf32>
    %cst_282 = arith.constant 0.000000e+00 : f32
    %724 = vector.shape_cast %313 : vector<1x256xi1> to vector<1x256xi1>
    %725 = vector.broadcast %724 : vector<1x256xi1> to vector<8x256xi1>
    %726 = vector.broadcast %cst_282 : f32 to vector<8x256xf32>
    %727 = arith.select %725, %723, %726 : vector<8x256xi1>, vector<8x256xf32>
    %728 = tpu.concatenate %692, %697, %702, %707, %687, %712, %717, %722, %727 in 0 : vector<8x256xf32>, vector<8x256xf32>, vector<8x256xf32>, vector<8x256xf32>, vector<8x256xf32>, vector<8x256xf32>, vector<8x256xf32>, vector<8x256xf32>, vector<8x256xf32> -> vector<72x256xf32>
    %c0_283 = arith.constant 0 : index
    %c0_284 = arith.constant 0 : index
    %729 = vector.load %arg5[%c0_283, %c0_284] : memref<8x72xbf16, #tpu.memory_space<vmem>>, vector<8x72xbf16>
    %730 = arith.truncf %728 : vector<72x256xf32> to vector<72x256xbf16>
    %cst_285 = arith.constant dense<0.000000e+00> : vector<8x256xf32>
    %731 = tpu.matmul %729, %730, %cst_285 {dimension_numbers = #tpu.dot_dimension_numbers<[1], [0], [0], [1], [0, 0, 1, 1], [], []>} : vector<8x72xbf16>, vector<72x256xbf16>, vector<8x256xf32> -> vector<8x256xf32>
    %c0_286 = arith.constant 0 : index
    %c0_287 = arith.constant 0 : index
    %732 = vector.load %arg6[%c0_286, %c0_287] : memref<8x1xf32, #tpu.memory_space<vmem>>, vector<8x1xf32>
    %733 = vector.broadcast %732 : vector<8x1xf32> to vector<8x256xf32>
    %734 = arith.addf %731, %733 : vector<8x256xf32>
    %cst_288 = arith.constant 0.000000e+00 : f32
    %735 = vector.broadcast %cst_288 : f32 to vector<8x256xf32>
    %736 = arith.maximumf %734, %735 : vector<8x256xf32>
    %c17_i32_289 = arith.constant 17 : i32
    %737 = tpu.dynamic_rotate %736 by %c17_i32_289 dim 1 : vector<8x256xf32>, i32 -> vector<8x256xf32>
    %cst_290 = arith.constant 0.000000e+00 : f32
    %738 = vector.shape_cast %180 : vector<1x256xi1> to vector<1x256xi1>
    %739 = vector.broadcast %738 : vector<1x256xi1> to vector<8x256xi1>
    %740 = vector.broadcast %cst_290 : f32 to vector<8x256xf32>
    %741 = arith.select %739, %737, %740 : vector<8x256xi1>, vector<8x256xf32>
    %c16_i32_291 = arith.constant 16 : i32
    %742 = tpu.dynamic_rotate %736 by %c16_i32_291 dim 1 : vector<8x256xf32>, i32 -> vector<8x256xf32>
    %cst_292 = arith.constant 0.000000e+00 : f32
    %743 = vector.shape_cast %199 : vector<1x256xi1> to vector<1x256xi1>
    %744 = vector.broadcast %743 : vector<1x256xi1> to vector<8x256xi1>
    %745 = vector.broadcast %cst_292 : f32 to vector<8x256xf32>
    %746 = arith.select %744, %742, %745 : vector<8x256xi1>, vector<8x256xf32>
    %c15_i32_293 = arith.constant 15 : i32
    %747 = tpu.dynamic_rotate %736 by %c15_i32_293 dim 1 : vector<8x256xf32>, i32 -> vector<8x256xf32>
    %cst_294 = arith.constant 0.000000e+00 : f32
    %748 = vector.shape_cast %218 : vector<1x256xi1> to vector<1x256xi1>
    %749 = vector.broadcast %748 : vector<1x256xi1> to vector<8x256xi1>
    %750 = vector.broadcast %cst_294 : f32 to vector<8x256xf32>
    %751 = arith.select %749, %747, %750 : vector<8x256xi1>, vector<8x256xf32>
    %c1_i32_295 = arith.constant 1 : i32
    %752 = tpu.dynamic_rotate %736 by %c1_i32_295 dim 1 : vector<8x256xf32>, i32 -> vector<8x256xf32>
    %cst_296 = arith.constant 0.000000e+00 : f32
    %753 = vector.shape_cast %237 : vector<1x256xi1> to vector<1x256xi1>
    %754 = vector.broadcast %753 : vector<1x256xi1> to vector<8x256xi1>
    %755 = vector.broadcast %cst_296 : f32 to vector<8x256xf32>
    %756 = arith.select %754, %752, %755 : vector<8x256xi1>, vector<8x256xf32>
    %c255_i32_297 = arith.constant 255 : i32
    %757 = tpu.dynamic_rotate %736 by %c255_i32_297 dim 1 : vector<8x256xf32>, i32 -> vector<8x256xf32>
    %cst_298 = arith.constant 0.000000e+00 : f32
    %758 = vector.shape_cast %256 : vector<1x256xi1> to vector<1x256xi1>
    %759 = vector.broadcast %758 : vector<1x256xi1> to vector<8x256xi1>
    %760 = vector.broadcast %cst_298 : f32 to vector<8x256xf32>
    %761 = arith.select %759, %757, %760 : vector<8x256xi1>, vector<8x256xf32>
    %c241_i32_299 = arith.constant 241 : i32
    %762 = tpu.dynamic_rotate %736 by %c241_i32_299 dim 1 : vector<8x256xf32>, i32 -> vector<8x256xf32>
    %cst_300 = arith.constant 0.000000e+00 : f32
    %763 = vector.shape_cast %275 : vector<1x256xi1> to vector<1x256xi1>
    %764 = vector.broadcast %763 : vector<1x256xi1> to vector<8x256xi1>
    %765 = vector.broadcast %cst_300 : f32 to vector<8x256xf32>
    %766 = arith.select %764, %762, %765 : vector<8x256xi1>, vector<8x256xf32>
    %c240_i32_301 = arith.constant 240 : i32
    %767 = tpu.dynamic_rotate %736 by %c240_i32_301 dim 1 : vector<8x256xf32>, i32 -> vector<8x256xf32>
    %cst_302 = arith.constant 0.000000e+00 : f32
    %768 = vector.shape_cast %294 : vector<1x256xi1> to vector<1x256xi1>
    %769 = vector.broadcast %768 : vector<1x256xi1> to vector<8x256xi1>
    %770 = vector.broadcast %cst_302 : f32 to vector<8x256xf32>
    %771 = arith.select %769, %767, %770 : vector<8x256xi1>, vector<8x256xf32>
    %c239_i32_303 = arith.constant 239 : i32
    %772 = tpu.dynamic_rotate %736 by %c239_i32_303 dim 1 : vector<8x256xf32>, i32 -> vector<8x256xf32>
    %cst_304 = arith.constant 0.000000e+00 : f32
    %773 = vector.shape_cast %313 : vector<1x256xi1> to vector<1x256xi1>
    %774 = vector.broadcast %773 : vector<1x256xi1> to vector<8x256xi1>
    %775 = vector.broadcast %cst_304 : f32 to vector<8x256xf32>
    %776 = arith.select %774, %772, %775 : vector<8x256xi1>, vector<8x256xf32>
    %777 = tpu.concatenate %741, %746, %751, %756, %736, %761, %766, %771, %776 in 0 : vector<8x256xf32>, vector<8x256xf32>, vector<8x256xf32>, vector<8x256xf32>, vector<8x256xf32>, vector<8x256xf32>, vector<8x256xf32>, vector<8x256xf32>, vector<8x256xf32> -> vector<72x256xf32>
    %c0_305 = arith.constant 0 : index
    %c0_306 = arith.constant 0 : index
    %778 = vector.load %arg7[%c0_305, %c0_306] : memref<8x72xbf16, #tpu.memory_space<vmem>>, vector<8x72xbf16>
    %779 = arith.truncf %777 : vector<72x256xf32> to vector<72x256xbf16>
    %cst_307 = arith.constant dense<0.000000e+00> : vector<8x256xf32>
    %780 = tpu.matmul %778, %779, %cst_307 {dimension_numbers = #tpu.dot_dimension_numbers<[1], [0], [0], [1], [0, 0, 1, 1], [], []>} : vector<8x72xbf16>, vector<72x256xbf16>, vector<8x256xf32> -> vector<8x256xf32>
    %c0_308 = arith.constant 0 : index
    %c0_309 = arith.constant 0 : index
    %781 = vector.load %arg8[%c0_308, %c0_309] : memref<8x1xf32, #tpu.memory_space<vmem>>, vector<8x1xf32>
    %782 = vector.broadcast %781 : vector<8x1xf32> to vector<8x256xf32>
    %783 = arith.addf %780, %782 : vector<8x256xf32>
    %784 = arith.addf %783, %687 : vector<8x256xf32>
    %cst_310 = arith.constant 0.000000e+00 : f32
    %785 = vector.broadcast %cst_310 : f32 to vector<8x256xf32>
    %786 = arith.maximumf %784, %785 : vector<8x256xf32>
    %c17_i32_311 = arith.constant 17 : i32
    %787 = tpu.dynamic_rotate %786 by %c17_i32_311 dim 1 : vector<8x256xf32>, i32 -> vector<8x256xf32>
    %cst_312 = arith.constant 0.000000e+00 : f32
    %788 = vector.shape_cast %180 : vector<1x256xi1> to vector<1x256xi1>
    %789 = vector.broadcast %788 : vector<1x256xi1> to vector<8x256xi1>
    %790 = vector.broadcast %cst_312 : f32 to vector<8x256xf32>
    %791 = arith.select %789, %787, %790 : vector<8x256xi1>, vector<8x256xf32>
    %c16_i32_313 = arith.constant 16 : i32
    %792 = tpu.dynamic_rotate %786 by %c16_i32_313 dim 1 : vector<8x256xf32>, i32 -> vector<8x256xf32>
    %cst_314 = arith.constant 0.000000e+00 : f32
    %793 = vector.shape_cast %199 : vector<1x256xi1> to vector<1x256xi1>
    %794 = vector.broadcast %793 : vector<1x256xi1> to vector<8x256xi1>
    %795 = vector.broadcast %cst_314 : f32 to vector<8x256xf32>
    %796 = arith.select %794, %792, %795 : vector<8x256xi1>, vector<8x256xf32>
    %c15_i32_315 = arith.constant 15 : i32
    %797 = tpu.dynamic_rotate %786 by %c15_i32_315 dim 1 : vector<8x256xf32>, i32 -> vector<8x256xf32>
    %cst_316 = arith.constant 0.000000e+00 : f32
    %798 = vector.shape_cast %218 : vector<1x256xi1> to vector<1x256xi1>
    %799 = vector.broadcast %798 : vector<1x256xi1> to vector<8x256xi1>
    %800 = vector.broadcast %cst_316 : f32 to vector<8x256xf32>
    %801 = arith.select %799, %797, %800 : vector<8x256xi1>, vector<8x256xf32>
    %c1_i32_317 = arith.constant 1 : i32
    %802 = tpu.dynamic_rotate %786 by %c1_i32_317 dim 1 : vector<8x256xf32>, i32 -> vector<8x256xf32>
    %cst_318 = arith.constant 0.000000e+00 : f32
    %803 = vector.shape_cast %237 : vector<1x256xi1> to vector<1x256xi1>
    %804 = vector.broadcast %803 : vector<1x256xi1> to vector<8x256xi1>
    %805 = vector.broadcast %cst_318 : f32 to vector<8x256xf32>
    %806 = arith.select %804, %802, %805 : vector<8x256xi1>, vector<8x256xf32>
    %c255_i32_319 = arith.constant 255 : i32
    %807 = tpu.dynamic_rotate %786 by %c255_i32_319 dim 1 : vector<8x256xf32>, i32 -> vector<8x256xf32>
    %cst_320 = arith.constant 0.000000e+00 : f32
    %808 = vector.shape_cast %256 : vector<1x256xi1> to vector<1x256xi1>
    %809 = vector.broadcast %808 : vector<1x256xi1> to vector<8x256xi1>
    %810 = vector.broadcast %cst_320 : f32 to vector<8x256xf32>
    %811 = arith.select %809, %807, %810 : vector<8x256xi1>, vector<8x256xf32>
    %c241_i32_321 = arith.constant 241 : i32
    %812 = tpu.dynamic_rotate %786 by %c241_i32_321 dim 1 : vector<8x256xf32>, i32 -> vector<8x256xf32>
    %cst_322 = arith.constant 0.000000e+00 : f32
    %813 = vector.shape_cast %275 : vector<1x256xi1> to vector<1x256xi1>
    %814 = vector.broadcast %813 : vector<1x256xi1> to vector<8x256xi1>
    %815 = vector.broadcast %cst_322 : f32 to vector<8x256xf32>
    %816 = arith.select %814, %812, %815 : vector<8x256xi1>, vector<8x256xf32>
    %c240_i32_323 = arith.constant 240 : i32
    %817 = tpu.dynamic_rotate %786 by %c240_i32_323 dim 1 : vector<8x256xf32>, i32 -> vector<8x256xf32>
    %cst_324 = arith.constant 0.000000e+00 : f32
    %818 = vector.shape_cast %294 : vector<1x256xi1> to vector<1x256xi1>
    %819 = vector.broadcast %818 : vector<1x256xi1> to vector<8x256xi1>
    %820 = vector.broadcast %cst_324 : f32 to vector<8x256xf32>
    %821 = arith.select %819, %817, %820 : vector<8x256xi1>, vector<8x256xf32>
    %c239_i32_325 = arith.constant 239 : i32
    %822 = tpu.dynamic_rotate %786 by %c239_i32_325 dim 1 : vector<8x256xf32>, i32 -> vector<8x256xf32>
    %cst_326 = arith.constant 0.000000e+00 : f32
    %823 = vector.shape_cast %313 : vector<1x256xi1> to vector<1x256xi1>
    %824 = vector.broadcast %823 : vector<1x256xi1> to vector<8x256xi1>
    %825 = vector.broadcast %cst_326 : f32 to vector<8x256xf32>
    %826 = arith.select %824, %822, %825 : vector<8x256xi1>, vector<8x256xf32>
    %827 = tpu.concatenate %791, %796, %801, %806, %786, %811, %816, %821, %826 in 0 : vector<8x256xf32>, vector<8x256xf32>, vector<8x256xf32>, vector<8x256xf32>, vector<8x256xf32>, vector<8x256xf32>, vector<8x256xf32>, vector<8x256xf32>, vector<8x256xf32> -> vector<72x256xf32>
    %c0_327 = arith.constant 0 : index
    %c0_328 = arith.constant 0 : index
    %828 = vector.load %arg9[%c0_327, %c0_328] : memref<16x72xbf16, #tpu.memory_space<vmem>>, vector<16x72xbf16>
    %829 = arith.truncf %827 : vector<72x256xf32> to vector<72x256xbf16>
    %cst_329 = arith.constant dense<0.000000e+00> : vector<16x256xf32>
    %830 = tpu.matmul %828, %829, %cst_329 {dimension_numbers = #tpu.dot_dimension_numbers<[1], [0], [0], [1], [0, 0, 1, 1], [], []>} : vector<16x72xbf16>, vector<72x256xbf16>, vector<16x256xf32> -> vector<16x256xf32>
    %c0_330 = arith.constant 0 : index
    %c0_331 = arith.constant 0 : index
    %831 = vector.load %arg10[%c0_330, %c0_331] : memref<16x1xf32, #tpu.memory_space<vmem>>, vector<16x1xf32>
    %832 = vector.broadcast %831 : vector<16x1xf32> to vector<16x256xf32>
    %833 = arith.addf %830, %832 : vector<16x256xf32>
    %cst_332 = arith.constant 0.000000e+00 : f32
    %834 = vector.broadcast %cst_332 : f32 to vector<16x256xf32>
    %835 = arith.maximumf %833, %834 : vector<16x256xf32>
    %836 = arith.truncf %835 : vector<16x256xf32> to vector<16x256xbf16>
    %c0_333 = arith.constant 0 : index
    %c0_334 = arith.constant 0 : index
    %837 = vector.load %arg15[%c0_333, %c0_334] : memref<256x64xbf16, #tpu.memory_space<vmem>>, vector<256x64xbf16>
    %cst_335 = arith.constant dense<0.000000e+00> : vector<16x64xf32>
    %838 = tpu.matmul %836, %837, %cst_335 {dimension_numbers = #tpu.dot_dimension_numbers<[1], [0], [0], [1], [0, 0, 1, 1], [], []>} : vector<16x256xbf16>, vector<256x64xbf16>, vector<16x64xf32> -> vector<16x64xf32>
    %839 = arith.truncf %786 : vector<8x256xf32> to vector<8x256xbf16>
    %c0_336 = arith.constant 0 : index
    %c0_337 = arith.constant 0 : index
    %840 = vector.load %arg15[%c0_336, %c0_337] : memref<256x64xbf16, #tpu.memory_space<vmem>>, vector<256x64xbf16>
    %cst_338 = arith.constant dense<0.000000e+00> : vector<8x64xf32>
    %841 = tpu.matmul %839, %840, %cst_338 {dimension_numbers = #tpu.dot_dimension_numbers<[1], [0], [0], [1], [0, 0, 1, 1], [], []>} : vector<8x256xbf16>, vector<256x64xbf16>, vector<8x64xf32> -> vector<8x64xf32>
    %c0_339 = arith.constant 0 : index
    %c0_340 = arith.constant 0 : index
    %842 = vector.load %arg13[%c0_339, %c0_340] : memref<16x8xbf16, #tpu.memory_space<vmem>>, vector<16x8xbf16>
    %843 = arith.truncf %841 : vector<8x64xf32> to vector<8x64xbf16>
    %cst_341 = arith.constant dense<0.000000e+00> : vector<16x64xf32>
    %844 = tpu.matmul %842, %843, %cst_341 {dimension_numbers = #tpu.dot_dimension_numbers<[1], [0], [0], [1], [0, 0, 1, 1], [], []>} : vector<16x8xbf16>, vector<8x64xbf16>, vector<16x64xf32> -> vector<16x64xf32>
    %c0_342 = arith.constant 0 : index
    %c0_343 = arith.constant 0 : index
    %845 = vector.load %arg14[%c0_342, %c0_343] : memref<16x1xf32, #tpu.memory_space<vmem>>, vector<16x1xf32>
    %846 = vector.broadcast %845 : vector<16x1xf32> to vector<16x64xf32>
    %847 = arith.addf %844, %846 : vector<16x64xf32>
    %c0_344 = arith.constant 0 : index
    %c128 = arith.constant 128 : index
    %848 = vector.load %arg26[%c0_344, %c128] : memref<16x320xf32, #tpu.memory_space<vmem>>, vector<16x64xf32>
    tpu.vector_store %arg26[%c0_344, %c128], %838 {strides = array<i32>} : memref<16x320xf32, #tpu.memory_space<vmem>>, vector<16x64xf32>,
    %c0_345 = arith.constant 0 : index
    %c119 = arith.constant 119 : index
    %849 = vector.load %arg26[%c0_345, %c119] : memref<16x320xf32, #tpu.memory_space<vmem>>, vector<16x64xf32>
    %cst_346 = arith.constant 0.000000e+00 : f32
    %850 = vector.shape_cast %337 : vector<1x64xi1> to vector<1x64xi1>
    %851 = vector.broadcast %850 : vector<1x64xi1> to vector<16x64xi1>
    %852 = vector.broadcast %cst_346 : f32 to vector<16x64xf32>
    %853 = arith.select %851, %849, %852 : vector<16x64xi1>, vector<16x64xf32>
    %c0_347 = arith.constant 0 : index
    %c120 = arith.constant 120 : index
    %854 = vector.load %arg26[%c0_347, %c120] : memref<16x320xf32, #tpu.memory_space<vmem>>, vector<16x64xf32>
    %cst_348 = arith.constant 0.000000e+00 : f32
    %855 = vector.shape_cast %356 : vector<1x64xi1> to vector<1x64xi1>
    %856 = vector.broadcast %855 : vector<1x64xi1> to vector<16x64xi1>
    %857 = vector.broadcast %cst_348 : f32 to vector<16x64xf32>
    %858 = arith.select %856, %854, %857 : vector<16x64xi1>, vector<16x64xf32>
    %c0_349 = arith.constant 0 : index
    %c121 = arith.constant 121 : index
    %859 = vector.load %arg26[%c0_349, %c121] : memref<16x320xf32, #tpu.memory_space<vmem>>, vector<16x64xf32>
    %cst_350 = arith.constant 0.000000e+00 : f32
    %860 = vector.shape_cast %375 : vector<1x64xi1> to vector<1x64xi1>
    %861 = vector.broadcast %860 : vector<1x64xi1> to vector<16x64xi1>
    %862 = vector.broadcast %cst_350 : f32 to vector<16x64xf32>
    %863 = arith.select %861, %859, %862 : vector<16x64xi1>, vector<16x64xf32>
    %c0_351 = arith.constant 0 : index
    %c127 = arith.constant 127 : index
    %864 = vector.load %arg26[%c0_351, %c127] : memref<16x320xf32, #tpu.memory_space<vmem>>, vector<16x64xf32>
    %cst_352 = arith.constant 0.000000e+00 : f32
    %865 = vector.shape_cast %394 : vector<1x64xi1> to vector<1x64xi1>
    %866 = vector.broadcast %865 : vector<1x64xi1> to vector<16x64xi1>
    %867 = vector.broadcast %cst_352 : f32 to vector<16x64xf32>
    %868 = arith.select %866, %864, %867 : vector<16x64xi1>, vector<16x64xf32>
    %c0_353 = arith.constant 0 : index
    %c129 = arith.constant 129 : index
    %869 = vector.load %arg26[%c0_353, %c129] : memref<16x320xf32, #tpu.memory_space<vmem>>, vector<16x64xf32>
    %cst_354 = arith.constant 0.000000e+00 : f32
    %870 = vector.shape_cast %413 : vector<1x64xi1> to vector<1x64xi1>
    %871 = vector.broadcast %870 : vector<1x64xi1> to vector<16x64xi1>
    %872 = vector.broadcast %cst_354 : f32 to vector<16x64xf32>
    %873 = arith.select %871, %869, %872 : vector<16x64xi1>, vector<16x64xf32>
    %c0_355 = arith.constant 0 : index
    %c135 = arith.constant 135 : index
    %874 = vector.load %arg26[%c0_355, %c135] : memref<16x320xf32, #tpu.memory_space<vmem>>, vector<16x64xf32>
    %cst_356 = arith.constant 0.000000e+00 : f32
    %875 = vector.shape_cast %432 : vector<1x64xi1> to vector<1x64xi1>
    %876 = vector.broadcast %875 : vector<1x64xi1> to vector<16x64xi1>
    %877 = vector.broadcast %cst_356 : f32 to vector<16x64xf32>
    %878 = arith.select %876, %874, %877 : vector<16x64xi1>, vector<16x64xf32>
    %c0_357 = arith.constant 0 : index
    %c136 = arith.constant 136 : index
    %879 = vector.load %arg26[%c0_357, %c136] : memref<16x320xf32, #tpu.memory_space<vmem>>, vector<16x64xf32>
    %cst_358 = arith.constant 0.000000e+00 : f32
    %880 = vector.shape_cast %451 : vector<1x64xi1> to vector<1x64xi1>
    %881 = vector.broadcast %880 : vector<1x64xi1> to vector<16x64xi1>
    %882 = vector.broadcast %cst_358 : f32 to vector<16x64xf32>
    %883 = arith.select %881, %879, %882 : vector<16x64xi1>, vector<16x64xf32>
    %c0_359 = arith.constant 0 : index
    %c137 = arith.constant 137 : index
    %884 = vector.load %arg26[%c0_359, %c137] : memref<16x320xf32, #tpu.memory_space<vmem>>, vector<16x64xf32>
    %cst_360 = arith.constant 0.000000e+00 : f32
    %885 = vector.shape_cast %470 : vector<1x64xi1> to vector<1x64xi1>
    %886 = vector.broadcast %885 : vector<1x64xi1> to vector<16x64xi1>
    %887 = vector.broadcast %cst_360 : f32 to vector<16x64xf32>
    %888 = arith.select %886, %884, %887 : vector<16x64xi1>, vector<16x64xf32>
    %889 = tpu.concatenate %853, %858, %863, %868, %838, %873, %878, %883, %888 in 0 : vector<16x64xf32>, vector<16x64xf32>, vector<16x64xf32>, vector<16x64xf32>, vector<16x64xf32>, vector<16x64xf32>, vector<16x64xf32>, vector<16x64xf32>, vector<16x64xf32> -> vector<144x64xf32>
    %c0_361 = arith.constant 0 : index
    %c0_362 = arith.constant 0 : index
    %890 = vector.load %arg11[%c0_361, %c0_362] : memref<16x144xbf16, #tpu.memory_space<vmem>>, vector<16x144xbf16>
    %891 = arith.truncf %889 : vector<144x64xf32> to vector<144x64xbf16>
    %cst_363 = arith.constant dense<0.000000e+00> : vector<16x64xf32>
    %892 = tpu.matmul %890, %891, %cst_363 {dimension_numbers = #tpu.dot_dimension_numbers<[1], [0], [0], [1], [0, 0, 1, 1], [], []>} : vector<16x144xbf16>, vector<144x64xbf16>, vector<16x64xf32> -> vector<16x64xf32>
    %c0_364 = arith.constant 0 : index
    %c0_365 = arith.constant 0 : index
    %893 = vector.load %arg12[%c0_364, %c0_365] : memref<16x1xf32, #tpu.memory_space<vmem>>, vector<16x1xf32>
    %894 = vector.broadcast %893 : vector<16x1xf32> to vector<16x64xf32>
    %895 = arith.addf %892, %894 : vector<16x64xf32>
    %896 = arith.addf %895, %847 : vector<16x64xf32>
    %cst_366 = arith.constant 0.000000e+00 : f32
    %897 = vector.broadcast %cst_366 : f32 to vector<16x64xf32>
    %898 = arith.maximumf %896, %897 : vector<16x64xf32>
    %899 = arith.truncf %898 : vector<16x64xf32> to vector<16x64xbf16>
    %c0_367 = arith.constant 0 : index
    %c0_368 = arith.constant 0 : index
    %900 = vector.load %arg23[%c0_367, %c0_368] : memref<64x64xbf16, #tpu.memory_space<vmem>>, vector<64x64xbf16>
    %cst_369 = arith.constant dense<0.000000e+00> : vector<16x64xf32>
    %901 = tpu.matmul %899, %900, %cst_369 {dimension_numbers = #tpu.dot_dimension_numbers<[1], [0], [0], [1], [0, 0, 1, 1], [], []>} : vector<16x64xbf16>, vector<64x64xbf16>, vector<16x64xf32> -> vector<16x64xf32>
    %c0_370 = arith.constant 0 : index
    %c0_371 = arith.constant 0 : index
    %c0_372 = arith.constant 0 : index
    %902 = vector.load %arg25[%c0_370, %c0_371, %c0_372] : memref<1x48x64xf32, #tpu.memory_space<vmem>>, vector<1x16x64xf32>
    %903 = vector.shape_cast %902 : vector<1x16x64xf32> to vector<16x64xf32>
    %904 = vector.shape_cast %901 : vector<16x64xf32> to vector<1x16x64xf32>
    tpu.vector_store %arg25[%c0_370, %c0_371, %c0_372], %904 {strides = array<i32>} : memref<1x48x64xf32, #tpu.memory_space<vmem>>, vector<1x16x64xf32>,
    %c0_373 = arith.constant 0 : index
    %c128_374 = arith.constant 128 : index
    %905 = vector.load %arg26[%c0_373, %c128_374] : memref<16x320xf32, #tpu.memory_space<vmem>>, vector<16x64xf32>
    tpu.vector_store %arg26[%c0_373, %c128_374], %898 {strides = array<i32>} : memref<16x320xf32, #tpu.memory_space<vmem>>, vector<16x64xf32>,
    %c0_375 = arith.constant 0 : index
    %c119_376 = arith.constant 119 : index
    %906 = vector.load %arg26[%c0_375, %c119_376] : memref<16x320xf32, #tpu.memory_space<vmem>>, vector<16x64xf32>
    %cst_377 = arith.constant 0.000000e+00 : f32
    %907 = vector.shape_cast %337 : vector<1x64xi1> to vector<1x64xi1>
    %908 = vector.broadcast %907 : vector<1x64xi1> to vector<16x64xi1>
    %909 = vector.broadcast %cst_377 : f32 to vector<16x64xf32>
    %910 = arith.select %908, %906, %909 : vector<16x64xi1>, vector<16x64xf32>
    %c0_378 = arith.constant 0 : index
    %c120_379 = arith.constant 120 : index
    %911 = vector.load %arg26[%c0_378, %c120_379] : memref<16x320xf32, #tpu.memory_space<vmem>>, vector<16x64xf32>
    %cst_380 = arith.constant 0.000000e+00 : f32
    %912 = vector.shape_cast %356 : vector<1x64xi1> to vector<1x64xi1>
    %913 = vector.broadcast %912 : vector<1x64xi1> to vector<16x64xi1>
    %914 = vector.broadcast %cst_380 : f32 to vector<16x64xf32>
    %915 = arith.select %913, %911, %914 : vector<16x64xi1>, vector<16x64xf32>
    %c0_381 = arith.constant 0 : index
    %c121_382 = arith.constant 121 : index
    %916 = vector.load %arg26[%c0_381, %c121_382] : memref<16x320xf32, #tpu.memory_space<vmem>>, vector<16x64xf32>
    %cst_383 = arith.constant 0.000000e+00 : f32
    %917 = vector.shape_cast %375 : vector<1x64xi1> to vector<1x64xi1>
    %918 = vector.broadcast %917 : vector<1x64xi1> to vector<16x64xi1>
    %919 = vector.broadcast %cst_383 : f32 to vector<16x64xf32>
    %920 = arith.select %918, %916, %919 : vector<16x64xi1>, vector<16x64xf32>
    %c0_384 = arith.constant 0 : index
    %c127_385 = arith.constant 127 : index
    %921 = vector.load %arg26[%c0_384, %c127_385] : memref<16x320xf32, #tpu.memory_space<vmem>>, vector<16x64xf32>
    %cst_386 = arith.constant 0.000000e+00 : f32
    %922 = vector.shape_cast %394 : vector<1x64xi1> to vector<1x64xi1>
    %923 = vector.broadcast %922 : vector<1x64xi1> to vector<16x64xi1>
    %924 = vector.broadcast %cst_386 : f32 to vector<16x64xf32>
    %925 = arith.select %923, %921, %924 : vector<16x64xi1>, vector<16x64xf32>
    %c0_387 = arith.constant 0 : index
    %c129_388 = arith.constant 129 : index
    %926 = vector.load %arg26[%c0_387, %c129_388] : memref<16x320xf32, #tpu.memory_space<vmem>>, vector<16x64xf32>
    %cst_389 = arith.constant 0.000000e+00 : f32
    %927 = vector.shape_cast %413 : vector<1x64xi1> to vector<1x64xi1>
    %928 = vector.broadcast %927 : vector<1x64xi1> to vector<16x64xi1>
    %929 = vector.broadcast %cst_389 : f32 to vector<16x64xf32>
    %930 = arith.select %928, %926, %929 : vector<16x64xi1>, vector<16x64xf32>
    %c0_390 = arith.constant 0 : index
    %c135_391 = arith.constant 135 : index
    %931 = vector.load %arg26[%c0_390, %c135_391] : memref<16x320xf32, #tpu.memory_space<vmem>>, vector<16x64xf32>
    %cst_392 = arith.constant 0.000000e+00 : f32
    %932 = vector.shape_cast %432 : vector<1x64xi1> to vector<1x64xi1>
    %933 = vector.broadcast %932 : vector<1x64xi1> to vector<16x64xi1>
    %934 = vector.broadcast %cst_392 : f32 to vector<16x64xf32>
    %935 = arith.select %933, %931, %934 : vector<16x64xi1>, vector<16x64xf32>
    %c0_393 = arith.constant 0 : index
    %c136_394 = arith.constant 136 : index
    %936 = vector.load %arg26[%c0_393, %c136_394] : memref<16x320xf32, #tpu.memory_space<vmem>>, vector<16x64xf32>
    %cst_395 = arith.constant 0.000000e+00 : f32
    %937 = vector.shape_cast %451 : vector<1x64xi1> to vector<1x64xi1>
    %938 = vector.broadcast %937 : vector<1x64xi1> to vector<16x64xi1>
    %939 = vector.broadcast %cst_395 : f32 to vector<16x64xf32>
    %940 = arith.select %938, %936, %939 : vector<16x64xi1>, vector<16x64xf32>
    %c0_396 = arith.constant 0 : index
    %c137_397 = arith.constant 137 : index
    %941 = vector.load %arg26[%c0_396, %c137_397] : memref<16x320xf32, #tpu.memory_space<vmem>>, vector<16x64xf32>
    %cst_398 = arith.constant 0.000000e+00 : f32
    %942 = vector.shape_cast %470 : vector<1x64xi1> to vector<1x64xi1>
    %943 = vector.broadcast %942 : vector<1x64xi1> to vector<16x64xi1>
    %944 = vector.broadcast %cst_398 : f32 to vector<16x64xf32>
    %945 = arith.select %943, %941, %944 : vector<16x64xi1>, vector<16x64xf32>
    %946 = tpu.concatenate %910, %915, %920, %925, %898, %930, %935, %940, %945 in 0 : vector<16x64xf32>, vector<16x64xf32>, vector<16x64xf32>, vector<16x64xf32>, vector<16x64xf32>, vector<16x64xf32>, vector<16x64xf32>, vector<16x64xf32>, vector<16x64xf32> -> vector<144x64xf32>
    %c0_399 = arith.constant 0 : index
    %c0_400 = arith.constant 0 : index
    %947 = vector.load %arg16[%c0_399, %c0_400] : memref<32x144xbf16, #tpu.memory_space<vmem>>, vector<32x144xbf16>
    %948 = arith.truncf %946 : vector<144x64xf32> to vector<144x64xbf16>
    %cst_401 = arith.constant dense<0.000000e+00> : vector<32x64xf32>
    %949 = tpu.matmul %947, %948, %cst_401 {dimension_numbers = #tpu.dot_dimension_numbers<[1], [0], [0], [1], [0, 0, 1, 1], [], []>} : vector<32x144xbf16>, vector<144x64xbf16>, vector<32x64xf32> -> vector<32x64xf32>
    %c0_402 = arith.constant 0 : index
    %c0_403 = arith.constant 0 : index
    %950 = vector.load %arg17[%c0_402, %c0_403] : memref<32x1xf32, #tpu.memory_space<vmem>>, vector<32x1xf32>
    %951 = vector.broadcast %950 : vector<32x1xf32> to vector<32x64xf32>
    %952 = arith.addf %949, %951 : vector<32x64xf32>
    %cst_404 = arith.constant 0.000000e+00 : f32
    %953 = vector.broadcast %cst_404 : f32 to vector<32x64xf32>
    %954 = arith.maximumf %952, %953 : vector<32x64xf32>
    %955 = arith.truncf %954 : vector<32x64xf32> to vector<32x64xbf16>
    %c0_405 = arith.constant 0 : index
    %c0_406 = arith.constant 0 : index
    %956 = vector.load %arg22[%c0_405, %c0_406] : memref<64x16xbf16, #tpu.memory_space<vmem>>, vector<64x16xbf16>
    %cst_407 = arith.constant dense<0.000000e+00> : vector<32x16xf32>
    %957 = tpu.matmul %955, %956, %cst_407 {dimension_numbers = #tpu.dot_dimension_numbers<[1], [0], [0], [1], [0, 0, 1, 1], [], []>} : vector<32x64xbf16>, vector<64x16xbf16>, vector<32x16xf32> -> vector<32x16xf32>
    %958 = arith.truncf %898 : vector<16x64xf32> to vector<16x64xbf16>
    %c0_408 = arith.constant 0 : index
    %c0_409 = arith.constant 0 : index
    %959 = vector.load %arg22[%c0_408, %c0_409] : memref<64x16xbf16, #tpu.memory_space<vmem>>, vector<64x16xbf16>
    %cst_410 = arith.constant dense<0.000000e+00> : vector<16x16xf32>
    %960 = tpu.matmul %958, %959, %cst_410 {dimension_numbers = #tpu.dot_dimension_numbers<[1], [0], [0], [1], [0, 0, 1, 1], [], []>} : vector<16x64xbf16>, vector<64x16xbf16>, vector<16x16xf32> -> vector<16x16xf32>
    %c0_411 = arith.constant 0 : index
    %c0_412 = arith.constant 0 : index
    %961 = vector.load %arg20[%c0_411, %c0_412] : memref<32x16xbf16, #tpu.memory_space<vmem>>, vector<32x16xbf16>
    %962 = arith.truncf %960 : vector<16x16xf32> to vector<16x16xbf16>
    %cst_413 = arith.constant dense<0.000000e+00> : vector<32x16xf32>
    %963 = tpu.matmul %961, %962, %cst_413 {dimension_numbers = #tpu.dot_dimension_numbers<[1], [0], [0], [1], [0, 0, 1, 1], [], []>} : vector<32x16xbf16>, vector<16x16xbf16>, vector<32x16xf32> -> vector<32x16xf32>
    %c0_414 = arith.constant 0 : index
    %c0_415 = arith.constant 0 : index
    %964 = vector.load %arg21[%c0_414, %c0_415] : memref<32x1xf32, #tpu.memory_space<vmem>>, vector<32x1xf32>
    %965 = vector.broadcast %964 : vector<32x1xf32> to vector<32x16xf32>
    %966 = arith.addf %963, %965 : vector<32x16xf32>
    %c0_416 = arith.constant 0 : index
    %c128_417 = arith.constant 128 : index
    %967 = vector.load %arg27[%c0_416, %c128_417] : memref<32x272xf32, #tpu.memory_space<vmem>>, vector<32x16xf32>
    tpu.vector_store %arg27[%c0_416, %c128_417], %957 {strides = array<i32>} : memref<32x272xf32, #tpu.memory_space<vmem>>, vector<32x16xf32>,
    %c0_418 = arith.constant 0 : index
    %c123 = arith.constant 123 : index
    %968 = vector.load %arg27[%c0_418, %c123] : memref<32x272xf32, #tpu.memory_space<vmem>>, vector<32x16xf32>
    %cst_419 = arith.constant 0.000000e+00 : f32
    %969 = vector.shape_cast %494 : vector<1x16xi1> to vector<1x16xi1>
    %970 = vector.broadcast %969 : vector<1x16xi1> to vector<32x16xi1>
    %971 = vector.broadcast %cst_419 : f32 to vector<32x16xf32>
    %972 = arith.select %970, %968, %971 : vector<32x16xi1>, vector<32x16xf32>
    %c0_420 = arith.constant 0 : index
    %c124 = arith.constant 124 : index
    %973 = vector.load %arg27[%c0_420, %c124] : memref<32x272xf32, #tpu.memory_space<vmem>>, vector<32x16xf32>
    %cst_421 = arith.constant 0.000000e+00 : f32
    %974 = vector.shape_cast %513 : vector<1x16xi1> to vector<1x16xi1>
    %975 = vector.broadcast %974 : vector<1x16xi1> to vector<32x16xi1>
    %976 = vector.broadcast %cst_421 : f32 to vector<32x16xf32>
    %977 = arith.select %975, %973, %976 : vector<32x16xi1>, vector<32x16xf32>
    %c0_422 = arith.constant 0 : index
    %c125 = arith.constant 125 : index
    %978 = vector.load %arg27[%c0_422, %c125] : memref<32x272xf32, #tpu.memory_space<vmem>>, vector<32x16xf32>
    %cst_423 = arith.constant 0.000000e+00 : f32
    %979 = vector.shape_cast %532 : vector<1x16xi1> to vector<1x16xi1>
    %980 = vector.broadcast %979 : vector<1x16xi1> to vector<32x16xi1>
    %981 = vector.broadcast %cst_423 : f32 to vector<32x16xf32>
    %982 = arith.select %980, %978, %981 : vector<32x16xi1>, vector<32x16xf32>
    %c0_424 = arith.constant 0 : index
    %c127_425 = arith.constant 127 : index
    %983 = vector.load %arg27[%c0_424, %c127_425] : memref<32x272xf32, #tpu.memory_space<vmem>>, vector<32x16xf32>
    %cst_426 = arith.constant 0.000000e+00 : f32
    %984 = vector.shape_cast %551 : vector<1x16xi1> to vector<1x16xi1>
    %985 = vector.broadcast %984 : vector<1x16xi1> to vector<32x16xi1>
    %986 = vector.broadcast %cst_426 : f32 to vector<32x16xf32>
    %987 = arith.select %985, %983, %986 : vector<32x16xi1>, vector<32x16xf32>
    %c0_427 = arith.constant 0 : index
    %c129_428 = arith.constant 129 : index
    %988 = vector.load %arg27[%c0_427, %c129_428] : memref<32x272xf32, #tpu.memory_space<vmem>>, vector<32x16xf32>
    %cst_429 = arith.constant 0.000000e+00 : f32
    %989 = vector.shape_cast %570 : vector<1x16xi1> to vector<1x16xi1>
    %990 = vector.broadcast %989 : vector<1x16xi1> to vector<32x16xi1>
    %991 = vector.broadcast %cst_429 : f32 to vector<32x16xf32>
    %992 = arith.select %990, %988, %991 : vector<32x16xi1>, vector<32x16xf32>
    %c0_430 = arith.constant 0 : index
    %c131 = arith.constant 131 : index
    %993 = vector.load %arg27[%c0_430, %c131] : memref<32x272xf32, #tpu.memory_space<vmem>>, vector<32x16xf32>
    %cst_431 = arith.constant 0.000000e+00 : f32
    %994 = vector.shape_cast %589 : vector<1x16xi1> to vector<1x16xi1>
    %995 = vector.broadcast %994 : vector<1x16xi1> to vector<32x16xi1>
    %996 = vector.broadcast %cst_431 : f32 to vector<32x16xf32>
    %997 = arith.select %995, %993, %996 : vector<32x16xi1>, vector<32x16xf32>
    %c0_432 = arith.constant 0 : index
    %c132 = arith.constant 132 : index
    %998 = vector.load %arg27[%c0_432, %c132] : memref<32x272xf32, #tpu.memory_space<vmem>>, vector<32x16xf32>
    %cst_433 = arith.constant 0.000000e+00 : f32
    %999 = vector.shape_cast %608 : vector<1x16xi1> to vector<1x16xi1>
    %1000 = vector.broadcast %999 : vector<1x16xi1> to vector<32x16xi1>
    %1001 = vector.broadcast %cst_433 : f32 to vector<32x16xf32>
    %1002 = arith.select %1000, %998, %1001 : vector<32x16xi1>, vector<32x16xf32>
    %c0_434 = arith.constant 0 : index
    %c133 = arith.constant 133 : index
    %1003 = vector.load %arg27[%c0_434, %c133] : memref<32x272xf32, #tpu.memory_space<vmem>>, vector<32x16xf32>
    %cst_435 = arith.constant 0.000000e+00 : f32
    %1004 = vector.shape_cast %627 : vector<1x16xi1> to vector<1x16xi1>
    %1005 = vector.broadcast %1004 : vector<1x16xi1> to vector<32x16xi1>
    %1006 = vector.broadcast %cst_435 : f32 to vector<32x16xf32>
    %1007 = arith.select %1005, %1003, %1006 : vector<32x16xi1>, vector<32x16xf32>
    %1008 = tpu.concatenate %972, %977, %982, %987, %957, %992, %997, %1002, %1007 in 0 : vector<32x16xf32>, vector<32x16xf32>, vector<32x16xf32>, vector<32x16xf32>, vector<32x16xf32>, vector<32x16xf32>, vector<32x16xf32>, vector<32x16xf32>, vector<32x16xf32> -> vector<288x16xf32>
    %c0_436 = arith.constant 0 : index
    %c0_437 = arith.constant 0 : index
    %1009 = vector.load %arg18[%c0_436, %c0_437] : memref<32x288xbf16, #tpu.memory_space<vmem>>, vector<32x288xbf16>
    %1010 = arith.truncf %1008 : vector<288x16xf32> to vector<288x16xbf16>
    %cst_438 = arith.constant dense<0.000000e+00> : vector<32x16xf32>
    %1011 = tpu.matmul %1009, %1010, %cst_438 {dimension_numbers = #tpu.dot_dimension_numbers<[1], [0], [0], [1], [0, 0, 1, 1], [], []>} : vector<32x288xbf16>, vector<288x16xbf16>, vector<32x16xf32> -> vector<32x16xf32>
    %c0_439 = arith.constant 0 : index
    %c0_440 = arith.constant 0 : index
    %1012 = vector.load %arg19[%c0_439, %c0_440] : memref<32x1xf32, #tpu.memory_space<vmem>>, vector<32x1xf32>
    %1013 = vector.broadcast %1012 : vector<32x1xf32> to vector<32x16xf32>
    %1014 = arith.addf %1011, %1013 : vector<32x16xf32>
    %1015 = arith.addf %1014, %966 : vector<32x16xf32>
    %cst_441 = arith.constant 0.000000e+00 : f32
    %1016 = vector.broadcast %cst_441 : f32 to vector<32x16xf32>
    %1017 = arith.maximumf %1015, %1016 : vector<32x16xf32>
    %1018 = arith.truncf %1017 : vector<32x16xf32> to vector<32x16xbf16>
    %c0_442 = arith.constant 0 : index
    %c0_443 = arith.constant 0 : index
    %1019 = vector.load %arg24[%c0_442, %c0_443] : memref<16x64xbf16, #tpu.memory_space<vmem>>, vector<16x64xbf16>
    %cst_444 = arith.constant dense<0.000000e+00> : vector<32x64xf32>
    %1020 = tpu.matmul %1018, %1019, %cst_444 {dimension_numbers = #tpu.dot_dimension_numbers<[1], [0], [0], [1], [0, 0, 1, 1], [], []>} : vector<32x16xbf16>, vector<16x64xbf16>, vector<32x64xf32> -> vector<32x64xf32>
    %c0_445 = arith.constant 0 : index
    %c16 = arith.constant 16 : index
    %c0_446 = arith.constant 0 : index
    %1021 = vector.load %arg25[%c0_445, %c16, %c0_446] : memref<1x48x64xf32, #tpu.memory_space<vmem>>, vector<1x32x64xf32>
    %1022 = vector.shape_cast %1021 : vector<1x32x64xf32> to vector<32x64xf32>
    %1023 = vector.shape_cast %1020 : vector<32x64xf32> to vector<1x32x64xf32>
    tpu.vector_store %arg25[%c0_445, %c16, %c0_446], %1023 {strides = array<i32>} : memref<1x48x64xf32, #tpu.memory_space<vmem>>, vector<1x32x64xf32>,
    return
  }
  func.func @transform_0(%arg0: i32) -> (i32, i32, i32) {
    %c0_i32 = arith.constant 0 : i32
    %c0_i32_0 = arith.constant 0 : i32
    %c0_i32_1 = arith.constant 0 : i32
    return %arg0, %c0_i32, %c0_i32_0 : i32, i32, i32
  }
  func.func @transform_1(%arg0: i32) -> (i32, i32) {
    %c0_i32 = arith.constant 0 : i32
    %c0_i32_0 = arith.constant 0 : i32
    %c0_i32_1 = arith.constant 0 : i32
    return %c0_i32, %c0_i32_0 : i32, i32
  }
  func.func @transform_2(%arg0: i32) -> (i32, i32) {
    %c0_i32 = arith.constant 0 : i32
    %c0_i32_0 = arith.constant 0 : i32
    %c0_i32_1 = arith.constant 0 : i32
    return %c0_i32, %c0_i32_0 : i32, i32
  }
  func.func @transform_3(%arg0: i32) -> (i32, i32) {
    %c0_i32 = arith.constant 0 : i32
    %c0_i32_0 = arith.constant 0 : i32
    %c0_i32_1 = arith.constant 0 : i32
    return %c0_i32, %c0_i32_0 : i32, i32
  }
  func.func @transform_4(%arg0: i32) -> (i32, i32) {
    %c0_i32 = arith.constant 0 : i32
    %c0_i32_0 = arith.constant 0 : i32
    %c0_i32_1 = arith.constant 0 : i32
    return %c0_i32, %c0_i32_0 : i32, i32
  }
  func.func @transform_5(%arg0: i32) -> (i32, i32) {
    %c0_i32 = arith.constant 0 : i32
    %c0_i32_0 = arith.constant 0 : i32
    %c0_i32_1 = arith.constant 0 : i32
    return %c0_i32, %c0_i32_0 : i32, i32
  }
  func.func @transform_6(%arg0: i32) -> (i32, i32) {
    %c0_i32 = arith.constant 0 : i32
    %c0_i32_0 = arith.constant 0 : i32
    %c0_i32_1 = arith.constant 0 : i32
    return %c0_i32, %c0_i32_0 : i32, i32
  }
  func.func @transform_7(%arg0: i32) -> (i32, i32) {
    %c0_i32 = arith.constant 0 : i32
    %c0_i32_0 = arith.constant 0 : i32
    %c0_i32_1 = arith.constant 0 : i32
    return %c0_i32, %c0_i32_0 : i32, i32
  }
  func.func @transform_8(%arg0: i32) -> (i32, i32) {
    %c0_i32 = arith.constant 0 : i32
    %c0_i32_0 = arith.constant 0 : i32
    %c0_i32_1 = arith.constant 0 : i32
    return %c0_i32, %c0_i32_0 : i32, i32
  }
  func.func @transform_9(%arg0: i32) -> (i32, i32) {
    %c0_i32 = arith.constant 0 : i32
    %c0_i32_0 = arith.constant 0 : i32
    %c0_i32_1 = arith.constant 0 : i32
    return %c0_i32, %c0_i32_0 : i32, i32
  }
  func.func @transform_10(%arg0: i32) -> (i32, i32) {
    %c0_i32 = arith.constant 0 : i32
    %c0_i32_0 = arith.constant 0 : i32
    %c0_i32_1 = arith.constant 0 : i32
    return %c0_i32, %c0_i32_0 : i32, i32
  }
  func.func @transform_11(%arg0: i32) -> (i32, i32) {
    %c0_i32 = arith.constant 0 : i32
    %c0_i32_0 = arith.constant 0 : i32
    %c0_i32_1 = arith.constant 0 : i32
    return %c0_i32, %c0_i32_0 : i32, i32
  }
  func.func @transform_12(%arg0: i32) -> (i32, i32) {
    %c0_i32 = arith.constant 0 : i32
    %c0_i32_0 = arith.constant 0 : i32
    %c0_i32_1 = arith.constant 0 : i32
    return %c0_i32, %c0_i32_0 : i32, i32
  }
  func.func @transform_13(%arg0: i32) -> (i32, i32) {
    %c0_i32 = arith.constant 0 : i32
    %c0_i32_0 = arith.constant 0 : i32
    %c0_i32_1 = arith.constant 0 : i32
    return %c0_i32, %c0_i32_0 : i32, i32
  }
  func.func @transform_14(%arg0: i32) -> (i32, i32) {
    %c0_i32 = arith.constant 0 : i32
    %c0_i32_0 = arith.constant 0 : i32
    %c0_i32_1 = arith.constant 0 : i32
    return %c0_i32, %c0_i32_0 : i32, i32
  }
  func.func @transform_15(%arg0: i32) -> (i32, i32) {
    %c0_i32 = arith.constant 0 : i32
    %c0_i32_0 = arith.constant 0 : i32
    %c0_i32_1 = arith.constant 0 : i32
    return %c0_i32, %c0_i32_0 : i32, i32
  }
  func.func @transform_16(%arg0: i32) -> (i32, i32) {
    %c0_i32 = arith.constant 0 : i32
    %c0_i32_0 = arith.constant 0 : i32
    %c0_i32_1 = arith.constant 0 : i32
    return %c0_i32, %c0_i32_0 : i32, i32
  }
  func.func @transform_17(%arg0: i32) -> (i32, i32) {
    %c0_i32 = arith.constant 0 : i32
    %c0_i32_0 = arith.constant 0 : i32
    %c0_i32_1 = arith.constant 0 : i32
    return %c0_i32, %c0_i32_0 : i32, i32
  }
  func.func @transform_18(%arg0: i32) -> (i32, i32) {
    %c0_i32 = arith.constant 0 : i32
    %c0_i32_0 = arith.constant 0 : i32
    %c0_i32_1 = arith.constant 0 : i32
    return %c0_i32, %c0_i32_0 : i32, i32
  }
  func.func @transform_19(%arg0: i32) -> (i32, i32) {
    %c0_i32 = arith.constant 0 : i32
    %c0_i32_0 = arith.constant 0 : i32
    %c0_i32_1 = arith.constant 0 : i32
    return %c0_i32, %c0_i32_0 : i32, i32
  }
  func.func @transform_20(%arg0: i32) -> (i32, i32) {
    %c0_i32 = arith.constant 0 : i32
    %c0_i32_0 = arith.constant 0 : i32
    %c0_i32_1 = arith.constant 0 : i32
    return %c0_i32, %c0_i32_0 : i32, i32
  }
  func.func @transform_21(%arg0: i32) -> (i32, i32) {
    %c0_i32 = arith.constant 0 : i32
    %c0_i32_0 = arith.constant 0 : i32
    %c0_i32_1 = arith.constant 0 : i32
    return %c0_i32, %c0_i32_0 : i32, i32
  }
  func.func @transform_22(%arg0: i32) -> (i32, i32) {
    %c0_i32 = arith.constant 0 : i32
    %c0_i32_0 = arith.constant 0 : i32
    %c0_i32_1 = arith.constant 0 : i32
    return %c0_i32, %c0_i32_0 : i32, i32
  }
  func.func @transform_23(%arg0: i32) -> (i32, i32) {
    %c0_i32 = arith.constant 0 : i32
    %c0_i32_0 = arith.constant 0 : i32
    %c0_i32_1 = arith.constant 0 : i32
    return %c0_i32, %c0_i32_0 : i32, i32
  }
  func.func @transform_24(%arg0: i32) -> (i32, i32, i32) {
    %c0_i32 = arith.constant 0 : i32
    %c0_i32_0 = arith.constant 0 : i32
    %c0_i32_1 = arith.constant 0 : i32
    return %arg0, %c0_i32, %c0_i32_0 : i32, i32, i32
  }
}

</mosaic_0001>

<llo_original>
// kernel: feature_extractor_forward.1
$region0: #{feature_extractor_forward.1}
  #allocation0 [shape = 'u32[]', space=smem, size = 0x4, offset = 0x4, fixed_abs, tag = 'smem constant byte address 0x4 - core index']
  #allocation1 [shape = 'u32[144,128]{1,0:T(1,128)}', space=vmem, size = 0x12000, scoped, tag = 'internal scratch']
  #allocation2 [shape = 'f32[16,320]{1,0:T(8,128)}', space=vmem, size = 0x6000, scoped, tag = 'scratch operand']
  #allocation3 [shape = 'f32[32,272]{1,0:T(8,128)}', space=vmem, size = 0xc000, scoped, tag = 'scratch operand']
  %s0 = inlined_call_operand.vmem [shape: bf16[2,160,1024], index: 0, kind: input, shape index: {}]
  %s1 = inlined_call_operand.vmem [shape: bf16[8,160], index: 1, kind: input, shape index: {}]
  %s2 = inlined_call_operand.vmem [shape: f32[8,1], index: 2, kind: input, shape index: {}]
  %s3 = inlined_call_operand.vmem [shape: bf16[1024,256], index: 3, kind: input, shape index: {}]
  %s4 = inlined_call_operand.vmem [shape: bf16[8,72], index: 4, kind: input, shape index: {}]
  %s5 = inlined_call_operand.vmem [shape: f32[8,1], index: 5, kind: input, shape index: {}]
  %s6 = inlined_call_operand.vmem [shape: bf16[8,72], index: 6, kind: input, shape index: {}]
  %s7 = inlined_call_operand.vmem [shape: f32[8,1], index: 7, kind: input, shape index: {}]
  %s8 = inlined_call_operand.vmem [shape: bf16[16,72], index: 8, kind: input, shape index: {}]
  %s9 = inlined_call_operand.vmem [shape: f32[16,1], index: 9, kind: input, shape index: {}]
  %s10 = inlined_call_operand.vmem [shape: bf16[16,144], index: 10, kind: input, shape index: {}]
  %s11 = inlined_call_operand.vmem [shape: f32[16,1], index: 11, kind: input, shape index: {}]
  %s12 = inlined_call_operand.vmem [shape: bf16[16,8], index: 12, kind: input, shape index: {}]
  %s13 = inlined_call_operand.vmem [shape: f32[16,1], index: 13, kind: input, shape index: {}]
  %s14 = inlined_call_operand.vmem [shape: bf16[256,64], index: 14, kind: input, shape index: {}]
  %s15 = inlined_call_operand.vmem [shape: bf16[32,144], index: 15, kind: input, shape index: {}]
  %s16 = inlined_call_operand.vmem [shape: f32[32,1], index: 16, kind: input, shape index: {}]
  %s17 = inlined_call_operand.vmem [shape: bf16[32,288], index: 17, kind: input, shape index: {}]
  %s18 = inlined_call_operand.vmem [shape: f32[32,1], index: 18, kind: input, shape index: {}]
  %s19 = inlined_call_operand.vmem [shape: bf16[32,16], index: 19, kind: input, shape index: {}]
  %s20 = inlined_call_operand.vmem [shape: f32[32,1], index: 20, kind: input, shape index: {}]
  %s21 = inlined_call_operand.vmem [shape: bf16[64,16], index: 21, kind: input, shape index: {}]
  %s22 = inlined_call_operand.vmem [shape: bf16[64,64], index: 22, kind: input, shape index: {}]
  %s23 = inlined_call_operand.vmem [shape: bf16[16,64], index: 23, kind: input, shape index: {}]
  %s24 = inlined_call_operand.vmem [shape: f32[2,48,64], index: 24, kind: output, shape index: {}]
  %s25 = sld [smem:[#allocation0]]
  $region129: #{feature_extractor_forward.1} parent=0
    _
  %s27 = ssub.s32 1, %s25
  %s28 = scalar_select 0, %s27, %s25
  loop: start=0, step=1, limit=4
  $region2: #{feature_extractor_forward.1} parent=0 // loop_pre_header
    _
  $region3: #{feature_extractor_forward.1} parent=0 // loop_header
    %s30 = sphi 0, %s34
    %p31 = scmp.ge.s32.totalorder %s30, 4
    %s40 = sphi 0, %s42
    %s43 = sphi 0, %s40
    %s44 = sphi 0, %s43
    %s60 = sphi 0, %s44
    %s64 = sphi 0, %s64
    %s66 = sphi 0, %s64
    %s67 = sphi 0, %s66
    %s81 = sphi 0, %s67
    %s85 = sphi 0, %s85
    %s87 = sphi 0, %s85
    %s88 = sphi 0, %s87
    %s102 = sphi 0, %s88
    %s106 = sphi 0, %s106
    %s108 = sphi 0, %s106
    %s109 = sphi 0, %s108
    %s123 = sphi 0, %s109
    %s127 = sphi 0, %s127
    %s129 = sphi 0, %s127
    %s130 = sphi 0, %s129
    %s144 = sphi 0, %s130
    %s148 = sphi 0, %s148
    %s150 = sphi 0, %s148
    %s151 = sphi 0, %s150
    %s165 = sphi 0, %s151
    %s169 = sphi 0, %s169
    %s171 = sphi 0, %s169
    %s172 = sphi 0, %s171
    %s186 = sphi 0, %s172
    %s190 = sphi 0, %s190
    %s192 = sphi 0, %s190
    %s193 = sphi 0, %s192
    %s207 = sphi 0, %s193
    %s211 = sphi 0, %s211
    %s213 = sphi 0, %s211
    %s214 = sphi 0, %s213
    %s228 = sphi 0, %s214
    %s232 = sphi 0, %s232
    %s234 = sphi 0, %s232
    %s235 = sphi 0, %s234
    %s249 = sphi 0, %s235
    %s253 = sphi 0, %s253
    %s255 = sphi 0, %s253
    %s256 = sphi 0, %s255
    %s270 = sphi 0, %s256
    %s274 = sphi 0, %s274
    %s276 = sphi 0, %s274
    %s277 = sphi 0, %s276
    %s291 = sphi 0, %s277
    %s295 = sphi 0, %s295
    %s297 = sphi 0, %s295
    %s298 = sphi 0, %s297
    %s312 = sphi 0, %s298
    %s316 = sphi 0, %s316
    %s318 = sphi 0, %s316
    %s319 = sphi 0, %s318
    %s333 = sphi 0, %s319
    %s337 = sphi 0, %s337
    %s339 = sphi 0, %s337
    %s340 = sphi 0, %s339
    %s354 = sphi 0, %s340
    %s358 = sphi 0, %s358
    %s360 = sphi 0, %s358
    %s361 = sphi 0, %s360
    %s375 = sphi 0, %s361
    %s379 = sphi 0, %s379
    %s381 = sphi 0, %s379
    %s382 = sphi 0, %s381
    %s396 = sphi 0, %s382
    %s400 = sphi 0, %s400
    %s402 = sphi 0, %s400
    %s403 = sphi 0, %s402
    %s417 = sphi 0, %s403
    %s421 = sphi 0, %s421
    %s423 = sphi 0, %s421
    %s424 = sphi 0, %s423
    %s438 = sphi 0, %s424
    %s442 = sphi 0, %s442
    %s444 = sphi 0, %s442
    %s445 = sphi 0, %s444
    %s459 = sphi 0, %s445
    %s463 = sphi 0, %s463
    %s465 = sphi 0, %s463
    %s466 = sphi 0, %s465
    %s480 = sphi 0, %s466
    %s484 = sphi 0, %s484
    %s486 = sphi 0, %s484
    %s487 = sphi 0, %s486
    %s501 = sphi 0, %s487
    %s505 = sphi 0, %s505
    %s507 = sphi 0, %s505
    %s508 = sphi 0, %s507
    %s522 = sphi 0, %s508
    %s526 = sphi 0, %s526
    %s528 = sphi 0, %s526
    %s529 = sphi 0, %s528
    %s543 = sphi 0, %s529
    %s549 = sphi 0, %s551
    %s552 = sphi 0, %s549
    %s553 = sphi 0, %s552
    %s569 = sphi 0, %s553
  $region4: #{feature_extractor_forward.1} parent=0 // loop_header_branch
    %33 = sbr.rel (%p31) target = $region8
  $region5: #{feature_extractor_forward.1} parent=0 // loop_body
    %s35 = ssub.s32 %s30, 1
    %s36 = ssub.s32 %s30, 2
    %s37 = sadd.s32 %s30, 1
    %s38 = ssub.s32 %s30, %s37
    %p39 = scmp.eq.s32.totalorder %s38, 0
    %s41 = sadd.s32 %s40, 1
    %s42 = scalar_select %p39, %s40, %s41
    %p45 = pneg %p39
    %p46 = scmp.eq.s32.totalorder %s30, 1
    %p47 = por %p45, %p46
    %p48 = scmp.ne.s32.totalorder %s40, %s43
    %p49 = scmp.eq.s32.totalorder %s30, 0
    %p50 = por %p48, %p49
    %p51 = scmp.ne.s32.totalorder %s40, %s43
    %p52 = scmp.eq.s32.totalorder %s35, 1
    %p53 = por %p51, %p52
    %p54 = scmp.ne.s32.totalorder %s43, %s44
    %p55 = scmp.eq.s32.totalorder %s35, 0
    %p56 = por %p54, %p55
    %p57 = scmp.ne.s32.totalorder %s43, %s44
    %p58 = scmp.eq.s32.totalorder %s36, 1
    %p59 = por %p57, %p58
    %p61 = scmp.ne.s32.totalorder %s44, %s60
    %p62 = scmp.eq.s32.totalorder %s36, 0
    %p63 = por %p61, %p62
    %s65 = sadd.s32 %s64, 1
    %p68 = scmp.eq.s32.totalorder %s30, 1
    %p69 = scmp.ne.s32.totalorder %s64, %s66
    %p70 = scmp.eq.s32.totalorder %s30, 0
    %p71 = por %p69, %p70
    %p72 = scmp.ne.s32.totalorder %s64, %s66
    %p73 = scmp.eq.s32.totalorder %s35, 1
    %p74 = por %p72, %p73
    %p75 = scmp.ne.s32.totalorder %s66, %s67
    %p76 = scmp.eq.s32.totalorder %s35, 0
    %p77 = por %p75, %p76
    %p78 = scmp.ne.s32.totalorder %s66, %s67
    %p79 = scmp.eq.s32.totalorder %s36, 1
    %p80 = por %p78, %p79
    %p82 = scmp.ne.s32.totalorder %s67, %s81
    %p83 = scmp.eq.s32.totalorder %s36, 0
    %p84 = por %p82, %p83
    %s86 = sadd.s32 %s85, 1
    %p89 = scmp.eq.s32.totalorder %s30, 1
    %p90 = scmp.ne.s32.totalorder %s85, %s87
    %p91 = scmp.eq.s32.totalorder %s30, 0
    %p92 = por %p90, %p91
    %p93 = scmp.ne.s32.totalorder %s85, %s87
    %p94 = scmp.eq.s32.totalorder %s35, 1
    %p95 = por %p93, %p94
    %p96 = scmp.ne.s32.totalorder %s87, %s88
    %p97 = scmp.eq.s32.totalorder %s35, 0
    %p98 = por %p96, %p97
    %p99 = scmp.ne.s32.totalorder %s87, %s88
    %p100 = scmp.eq.s32.totalorder %s36, 1
    %p101 = por %p99, %p100
    %p103 = scmp.ne.s32.totalorder %s88, %s102
    %p104 = scmp.eq.s32.totalorder %s36, 0
    %p105 = por %p103, %p104
    %s107 = sadd.s32 %s106, 1
    %p110 = scmp.eq.s32.totalorder %s30, 1
    %p111 = scmp.ne.s32.totalorder %s106, %s108
    %p112 = scmp.eq.s32.totalorder %s30, 0
    %p113 = por %p111, %p112
    %p114 = scmp.ne.s32.totalorder %s106, %s108
    %p115 = scmp.eq.s32.totalorder %s35, 1
    %p116 = por %p114, %p115
    %p117 = scmp.ne.s32.totalorder %s108, %s109
    %p118 = scmp.eq.s32.totalorder %s35, 0
    %p119 = por %p117, %p118
    %p120 = scmp.ne.s32.totalorder %s108, %s109
    %p121 = scmp.eq.s32.totalorder %s36, 1
    %p122 = por %p120, %p121
    %p124 = scmp.ne.s32.totalorder %s109, %s123
    %p125 = scmp.eq.s32.totalorder %s36, 0
    %p126 = por %p124, %p125
    %s128 = sadd.s32 %s127, 1
    %p131 = scmp.eq.s32.totalorder %s30, 1
    %p132 = scmp.ne.s32.totalorder %s127, %s129
    %p133 = scmp.eq.s32.totalorder %s30, 0
    %p134 = por %p132, %p133
    %p135 = scmp.ne.s32.totalorder %s127, %s129
    %p136 = scmp.eq.s32.totalorder %s35, 1
    %p137 = por %p135, %p136
    %p138 = scmp.ne.s32.totalorder %s129, %s130
    %p139 = scmp.eq.s32.totalorder %s35, 0
    %p140 = por %p138, %p139
    %p141 = scmp.ne.s32.totalorder %s129, %s130
    %p142 = scmp.eq.s32.totalorder %s36, 1
    %p143 = por %p141, %p142
    %p145 = scmp.ne.s32.totalorder %s130, %s144
    %p146 = scmp.eq.s32.totalorder %s36, 0
    %p147 = por %p145, %p146
    %s149 = sadd.s32 %s148, 1
    %p152 = scmp.eq.s32.totalorder %s30, 1
    %p153 = scmp.ne.s32.totalorder %s148, %s150
    %p154 = scmp.eq.s32.totalorder %s30, 0
    %p155 = por %p153, %p154
    %p156 = scmp.ne.s32.totalorder %s148, %s150
    %p157 = scmp.eq.s32.totalorder %s35, 1
    %p158 = por %p156, %p157
    %p159 = scmp.ne.s32.totalorder %s150, %s151
    %p160 = scmp.eq.s32.totalorder %s35, 0
    %p161 = por %p159, %p160
    %p162 = scmp.ne.s32.totalorder %s150, %s151
    %p163 = scmp.eq.s32.totalorder %s36, 1
    %p164 = por %p162, %p163
    %p166 = scmp.ne.s32.totalorder %s151, %s165
    %p167 = scmp.eq.s32.totalorder %s36, 0
    %p168 = por %p166, %p167
    %s170 = sadd.s32 %s169, 1
    %p173 = scmp.eq.s32.totalorder %s30, 1
    %p174 = scmp.ne.s32.totalorder %s169, %s171
    %p175 = scmp.eq.s32.totalorder %s30, 0
    %p176 = por %p174, %p175
    %p177 = scmp.ne.s32.totalorder %s169, %s171
    %p178 = scmp.eq.s32.totalorder %s35, 1
    %p179 = por %p177, %p178
    %p180 = scmp.ne.s32.totalorder %s171, %s172
    %p181 = scmp.eq.s32.totalorder %s35, 0
    %p182 = por %p180, %p181
    %p183 = scmp.ne.s32.totalorder %s171, %s172
    %p184 = scmp.eq.s32.totalorder %s36, 1
    %p185 = por %p183, %p184
    %p187 = scmp.ne.s32.totalorder %s172, %s186
    %p188 = scmp.eq.s32.totalorder %s36, 0
    %p189 = por %p187, %p188
    %s191 = sadd.s32 %s190, 1
    %p194 = scmp.eq.s32.totalorder %s30, 1
    %p195 = scmp.ne.s32.totalorder %s190, %s192
    %p196 = scmp.eq.s32.totalorder %s30, 0
    %p197 = por %p195, %p196
    %p198 = scmp.ne.s32.totalorder %s190, %s192
    %p199 = scmp.eq.s32.totalorder %s35, 1
    %p200 = por %p198, %p199
    %p201 = scmp.ne.s32.totalorder %s192, %s193
    %p202 = scmp.eq.s32.totalorder %s35, 0
    %p203 = por %p201, %p202
    %p204 = scmp.ne.s32.totalorder %s192, %s193
    %p205 = scmp.eq.s32.totalorder %s36, 1
    %p206 = por %p204, %p205
    %p208 = scmp.ne.s32.totalorder %s193, %s207
    %p209 = scmp.eq.s32.totalorder %s36, 0
    %p210 = por %p208, %p209
    %s212 = sadd.s32 %s211, 1
    %p215 = scmp.eq.s32.totalorder %s30, 1
    %p216 = scmp.ne.s32.totalorder %s211, %s213
    %p217 = scmp.eq.s32.totalorder %s30, 0
    %p218 = por %p216, %p217
    %p219 = scmp.ne.s32.totalorder %s211, %s213
    %p220 = scmp.eq.s32.totalorder %s35, 1
    %p221 = por %p219, %p220
    %p222 = scmp.ne.s32.totalorder %s213, %s214
    %p223 = scmp.eq.s32.totalorder %s35, 0
    %p224 = por %p222, %p223
    %p225 = scmp.ne.s32.totalorder %s213, %s214
    %p226 = scmp.eq.s32.totalorder %s36, 1
    %p227 = por %p225, %p226
    %p229 = scmp.ne.s32.totalorder %s214, %s228
    %p230 = scmp.eq.s32.totalorder %s36, 0
    %p231 = por %p229, %p230
    %s233 = sadd.s32 %s232, 1
    %p236 = scmp.eq.s32.totalorder %s30, 1
    %p237 = scmp.ne.s32.totalorder %s232, %s234
    %p238 = scmp.eq.s32.totalorder %s30, 0
    %p239 = por %p237, %p238
    %p240 = scmp.ne.s32.totalorder %s232, %s234
    %p241 = scmp.eq.s32.totalorder %s35, 1
    %p242 = por %p240, %p241
    %p243 = scmp.ne.s32.totalorder %s234, %s235
    %p244 = scmp.eq.s32.totalorder %s35, 0
    %p245 = por %p243, %p244
    %p246 = scmp.ne.s32.totalorder %s234, %s235
    %p247 = scmp.eq.s32.totalorder %s36, 1
    %p248 = por %p246, %p247
    %p250 = scmp.ne.s32.totalorder %s235, %s249
    %p251 = scmp.eq.s32.totalorder %s36, 0
    %p252 = por %p250, %p251
    %s254 = sadd.s32 %s253, 1
    %p257 = scmp.eq.s32.totalorder %s30, 1
    %p258 = scmp.ne.s32.totalorder %s253, %s255
    %p259 = scmp.eq.s32.totalorder %s30, 0
    %p260 = por %p258, %p259
    %p261 = scmp.ne.s32.totalorder %s253, %s255
    %p262 = scmp.eq.s32.totalorder %s35, 1
    %p263 = por %p261, %p262
    %p264 = scmp.ne.s32.totalorder %s255, %s256
    %p265 = scmp.eq.s32.totalorder %s35, 0
    %p266 = por %p264, %p265
    %p267 = scmp.ne.s32.totalorder %s255, %s256
    %p268 = scmp.eq.s32.totalorder %s36, 1
    %p269 = por %p267, %p268
    %p271 = scmp.ne.s32.totalorder %s256, %s270
    %p272 = scmp.eq.s32.totalorder %s36, 0
    %p273 = por %p271, %p272
    %s275 = sadd.s32 %s274, 1
    %p278 = scmp.eq.s32.totalorder %s30, 1
    %p279 = scmp.ne.s32.totalorder %s274, %s276
    %p280 = scmp.eq.s32.totalorder %s30, 0
    %p281 = por %p279, %p280
    %p282 = scmp.ne.s32.totalorder %s274, %s276
    %p283 = scmp.eq.s32.totalorder %s35, 1
    %p284 = por %p282, %p283
    %p285 = scmp.ne.s32.totalorder %s276, %s277
    %p286 = scmp.eq.s32.totalorder %s35, 0
    %p287 = por %p285, %p286
    %p288 = scmp.ne.s32.totalorder %s276, %s277
    %p289 = scmp.eq.s32.totalorder %s36, 1
    %p290 = por %p288, %p289
    %p292 = scmp.ne.s32.totalorder %s277, %s291
    %p293 = scmp.eq.s32.totalorder %s36, 0
    %p294 = por %p292, %p293
    %s296 = sadd.s32 %s295, 1
    %p299 = scmp.eq.s32.totalorder %s30, 1
    %p300 = scmp.ne.s32.totalorder %s295, %s297
    %p301 = scmp.eq.s32.totalorder %s30, 0
    %p302 = por %p300, %p301
    %p303 = scmp.ne.s32.totalorder %s295, %s297
    %p304 = scmp.eq.s32.totalorder %s35, 1
    %p305 = por %p303, %p304
    %p306 = scmp.ne.s32.totalorder %s297, %s298
    %p307 = scmp.eq.s32.totalorder %s35, 0
    %p308 = por %p306, %p307
    %p309 = scmp.ne.s32.totalorder %s297, %s298
    %p310 = scmp.eq.s32.totalorder %s36, 1
    %p311 = por %p309, %p310
    %p313 = scmp.ne.s32.totalorder %s298, %s312
    %p314 = scmp.eq.s32.totalorder %s36, 0
    %p315 = por %p313, %p314
    %s317 = sadd.s32 %s316, 1
    %p320 = scmp.eq.s32.totalorder %s30, 1
    %p321 = scmp.ne.s32.totalorder %s316, %s318
    %p322 = scmp.eq.s32.totalorder %s30, 0
    %p323 = por %p321, %p322
    %p324 = scmp.ne.s32.totalorder %s316, %s318
    %p325 = scmp.eq.s32.totalorder %s35, 1
    %p326 = por %p324, %p325
    %p327 = scmp.ne.s32.totalorder %s318, %s319
    %p328 = scmp.eq.s32.totalorder %s35, 0
    %p329 = por %p327, %p328
    %p330 = scmp.ne.s32.totalorder %s318, %s319
    %p331 = scmp.eq.s32.totalorder %s36, 1
    %p332 = por %p330, %p331
    %p334 = scmp.ne.s32.totalorder %s319, %s333
    %p335 = scmp.eq.s32.totalorder %s36, 0
    %p336 = por %p334, %p335
    %s338 = sadd.s32 %s337, 1
    %p341 = scmp.eq.s32.totalorder %s30, 1
    %p342 = scmp.ne.s32.totalorder %s337, %s339
    %p343 = scmp.eq.s32.totalorder %s30, 0
    %p344 = por %p342, %p343
    %p345 = scmp.ne.s32.totalorder %s337, %s339
    %p346 = scmp.eq.s32.totalorder %s35, 1
    %p347 = por %p345, %p346
    %p348 = scmp.ne.s32.totalorder %s339, %s340
    %p349 = scmp.eq.s32.totalorder %s35, 0
    %p350 = por %p348, %p349
    %p351 = scmp.ne.s32.totalorder %s339, %s340
    %p352 = scmp.eq.s32.totalorder %s36, 1
    %p353 = por %p351, %p352
    %p355 = scmp.ne.s32.totalorder %s340, %s354
    %p356 = scmp.eq.s32.totalorder %s36, 0
    %p357 = por %p355, %p356
    %s359 = sadd.s32 %s358, 1
    %p362 = scmp.eq.s32.totalorder %s30, 1
    %p363 = scmp.ne.s32.totalorder %s358, %s360
    %p364 = scmp.eq.s32.totalorder %s30, 0
    %p365 = por %p363, %p364
    %p366 = scmp.ne.s32.totalorder %s358, %s360
    %p367 = scmp.eq.s32.totalorder %s35, 1
    %p368 = por %p366, %p367
    %p369 = scmp.ne.s32.totalorder %s360, %s361
    %p370 = scmp.eq.s32.totalorder %s35, 0
    %p371 = por %p369, %p370
    %p372 = scmp.ne.s32.totalorder %s360, %s361
    %p373 = scmp.eq.s32.totalorder %s36, 1
    %p374 = por %p372, %p373
    %p376 = scmp.ne.s32.totalorder %s361, %s375
    %p377 = scmp.eq.s32.totalorder %s36, 0
    %p378 = por %p376, %p377
    %s380 = sadd.s32 %s379, 1
    %p383 = scmp.eq.s32.totalorder %s30, 1
    %p384 = scmp.ne.s32.totalorder %s379, %s381
    %p385 = scmp.eq.s32.totalorder %s30, 0
    %p386 = por %p384, %p385
    %p387 = scmp.ne.s32.totalorder %s379, %s381
    %p388 = scmp.eq.s32.totalorder %s35, 1
    %p389 = por %p387, %p388
    %p390 = scmp.ne.s32.totalorder %s381, %s382
    %p391 = scmp.eq.s32.totalorder %s35, 0
    %p392 = por %p390, %p391
    %p393 = scmp.ne.s32.totalorder %s381, %s382
    %p394 = scmp.eq.s32.totalorder %s36, 1
    %p395 = por %p393, %p394
    %p397 = scmp.ne.s32.totalorder %s382, %s396
    %p398 = scmp.eq.s32.totalorder %s36, 0
    %p399 = por %p397, %p398
    %s401 = sadd.s32 %s400, 1
    %p404 = scmp.eq.s32.totalorder %s30, 1
    %p405 = scmp.ne.s32.totalorder %s400, %s402
    %p406 = scmp.eq.s32.totalorder %s30, 0
    %p407 = por %p405, %p406
    %p408 = scmp.ne.s32.totalorder %s400, %s402
    %p409 = scmp.eq.s32.totalorder %s35, 1
    %p410 = por %p408, %p409
    %p411 = scmp.ne.s32.totalorder %s402, %s403
    %p412 = scmp.eq.s32.totalorder %s35, 0
    %p413 = por %p411, %p412
    %p414 = scmp.ne.s32.totalorder %s402, %s403
    %p415 = scmp.eq.s32.totalorder %s36, 1
    %p416 = por %p414, %p415
    %p418 = scmp.ne.s32.totalorder %s403, %s417
    %p419 = scmp.eq.s32.totalorder %s36, 0
    %p420 = por %p418, %p419
    %s422 = sadd.s32 %s421, 1
    %p425 = scmp.eq.s32.totalorder %s30, 1
    %p426 = scmp.ne.s32.totalorder %s421, %s423
    %p427 = scmp.eq.s32.totalorder %s30, 0
    %p428 = por %p426, %p427
    %p429 = scmp.ne.s32.totalorder %s421, %s423
    %p430 = scmp.eq.s32.totalorder %s35, 1
    %p431 = por %p429, %p430
    %p432 = scmp.ne.s32.totalorder %s423, %s424
    %p433 = scmp.eq.s32.totalorder %s35, 0
    %p434 = por %p432, %p433
    %p435 = scmp.ne.s32.totalorder %s423, %s424
    %p436 = scmp.eq.s32.totalorder %s36, 1
    %p437 = por %p435, %p436
    %p439 = scmp.ne.s32.totalorder %s424, %s438
    %p440 = scmp.eq.s32.totalorder %s36, 0
    %p441 = por %p439, %p440
    %s443 = sadd.s32 %s442, 1
    %p446 = scmp.eq.s32.totalorder %s30, 1
    %p447 = scmp.ne.s32.totalorder %s442, %s444
    %p448 = scmp.eq.s32.totalorder %s30, 0
    %p449 = por %p447, %p448
    %p450 = scmp.ne.s32.totalorder %s442, %s444
    %p451 = scmp.eq.s32.totalorder %s35, 1
    %p452 = por %p450, %p451
    %p453 = scmp.ne.s32.totalorder %s444, %s445
    %p454 = scmp.eq.s32.totalorder %s35, 0
    %p455 = por %p453, %p454
    %p456 = scmp.ne.s32.totalorder %s444, %s445
    %p457 = scmp.eq.s32.totalorder %s36, 1
    %p458 = por %p456, %p457
    %p460 = scmp.ne.s32.totalorder %s445, %s459
    %p461 = scmp.eq.s32.totalorder %s36, 0
    %p462 = por %p460, %p461
    %s464 = sadd.s32 %s463, 1
    %p467 = scmp.eq.s32.totalorder %s30, 1
    %p468 = scmp.ne.s32.totalorder %s463, %s465
    %p469 = scmp.eq.s32.totalorder %s30, 0
    %p470 = por %p468, %p469
    %p471 = scmp.ne.s32.totalorder %s463, %s465
    %p472 = scmp.eq.s32.totalorder %s35, 1
    %p473 = por %p471, %p472
    %p474 = scmp.ne.s32.totalorder %s465, %s466
    %p475 = scmp.eq.s32.totalorder %s35, 0
    %p476 = por %p474, %p475
    %p477 = scmp.ne.s32.totalorder %s465, %s466
    %p478 = scmp.eq.s32.totalorder %s36, 1
    %p479 = por %p477, %p478
    %p481 = scmp.ne.s32.totalorder %s466, %s480
    %p482 = scmp.eq.s32.totalorder %s36, 0
    %p483 = por %p481, %p482
    %s485 = sadd.s32 %s484, 1
    %p488 = scmp.eq.s32.totalorder %s30, 1
    %p489 = scmp.ne.s32.totalorder %s484, %s486
    %p490 = scmp.eq.s32.totalorder %s30, 0
    %p491 = por %p489, %p490
    %p492 = scmp.ne.s32.totalorder %s484, %s486
    %p493 = scmp.eq.s32.totalorder %s35, 1
    %p494 = por %p492, %p493
    %p495 = scmp.ne.s32.totalorder %s486, %s487
    %p496 = scmp.eq.s32.totalorder %s35, 0
    %p497 = por %p495, %p496
    %p498 = scmp.ne.s32.totalorder %s486, %s487
    %p499 = scmp.eq.s32.totalorder %s36, 1
    %p500 = por %p498, %p499
    %p502 = scmp.ne.s32.totalorder %s487, %s501
    %p503 = scmp.eq.s32.totalorder %s36, 0
    %p504 = por %p502, %p503
    %s506 = sadd.s32 %s505, 1
    %p509 = scmp.eq.s32.totalorder %s30, 1
    %p510 = scmp.ne.s32.totalorder %s505, %s507
    %p511 = scmp.eq.s32.totalorder %s30, 0
    %p512 = por %p510, %p511
    %p513 = scmp.ne.s32.totalorder %s505, %s507
    %p514 = scmp.eq.s32.totalorder %s35, 1
    %p515 = por %p513, %p514
    %p516 = scmp.ne.s32.totalorder %s507, %s508
    %p517 = scmp.eq.s32.totalorder %s35, 0
    %p518 = por %p516, %p517
    %p519 = scmp.ne.s32.totalorder %s507, %s508
    %p520 = scmp.eq.s32.totalorder %s36, 1
    %p521 = por %p519, %p520
    %p523 = scmp.ne.s32.totalorder %s508, %s522
    %p524 = scmp.eq.s32.totalorder %s36, 0
    %p525 = por %p523, %p524
    %s527 = sadd.s32 %s526, 1
    %p530 = scmp.eq.s32.totalorder %s30, 1
    %p531 = scmp.ne.s32.totalorder %s526, %s528
    %p532 = scmp.eq.s32.totalorder %s30, 0
    %p533 = por %p531, %p532
    %p534 = scmp.ne.s32.totalorder %s526, %s528
    %p535 = scmp.eq.s32.totalorder %s35, 1
    %p536 = por %p534, %p535
    %p537 = scmp.ne.s32.totalorder %s528, %s529
    %p538 = scmp.eq.s32.totalorder %s35, 0
    %p539 = por %p537, %p538
    %p540 = scmp.ne.s32.totalorder %s528, %s529
    %p541 = scmp.eq.s32.totalorder %s36, 1
    %p542 = por %p540, %p541
    %p544 = scmp.ne.s32.totalorder %s529, %s543
    %p545 = scmp.eq.s32.totalorder %s36, 0
    %p546 = por %p544, %p545
    %s547 = ssub.s32 %s30, %s37
    %p548 = scmp.eq.s32.totalorder %s547, 0
    %s550 = sadd.s32 %s549, 1
    %s551 = scalar_select %p548, %s549, %s550
    %p554 = pneg %p548
    %p555 = scmp.eq.s32.totalorder %s30, 1
    %p556 = por %p554, %p555
    %p557 = scmp.ne.s32.totalorder %s549, %s552
    %p558 = scmp.eq.s32.totalorder %s30, 0
    %p559 = por %p557, %p558
    %p560 = scmp.ne.s32.totalorder %s549, %s552
    %p561 = scmp.eq.s32.totalorder %s35, 1
    %p562 = por %p560, %p561
    %p563 = scmp.ne.s32.totalorder %s552, %s553
    %p564 = scmp.eq.s32.totalorder %s35, 0
    %p565 = por %p563, %p564
    %p566 = scmp.ne.s32.totalorder %s552, %s553
    %p567 = scmp.eq.s32.totalorder %s36, 1
    %p568 = por %p566, %p567
    %p570 = scmp.ne.s32.totalorder %s553, %s569
    %p571 = scmp.eq.s32.totalorder %s36, 0
    %p572 = por %p570, %p571
    %p573 = scmp.le.s32.totalorder 1, %s30
    %p574 = scmp.lt.s32.totalorder %s30, 3
    %p575 = pnand %p573, %p574
    %p576 = pneg %p575
    // Predicated region
    $region9: #{feature_extractor_forward.1} parent=5 // pred_check
      _
    $region10: #{feature_extractor_forward.1} parent=5 // pred_check_branch
      %578 = sbr.rel (%p575) target = $region12
    $region11: #{feature_extractor_forward.1} parent=5 // pred_region
      %s579 = ssub.s32 %s30, 1
      // Predicated region
      $region13: #{feature_extractor_forward.1} parent=11 // pred_check
        %p580 = pneg %p77
      $region14: #{feature_extractor_forward.1} parent=11 // pred_check_branch
        %582 = sbr.rel (%p580) target = $region16
      $region15: #{feature_extractor_forward.1} parent=11 // pred_region
        _
      $region16: #{feature_extractor_forward.1} parent=11 // pred_fallthru
        _
      // Predicated region
      $region17: #{feature_extractor_forward.1} parent=11 // pred_check
        %p583 = pneg %p98
      $region18: #{feature_extractor_forward.1} parent=11 // pred_check_branch
        %585 = sbr.rel (%p583) target = $region20
      $region19: #{feature_extractor_forward.1} parent=11 // pred_region
        _
      $region20: #{feature_extractor_forward.1} parent=11 // pred_fallthru
        _
      // Predicated region
      $region21: #{feature_extractor_forward.1} parent=11 // pred_check
        %p586 = pneg %p119
      $region22: #{feature_extractor_forward.1} parent=11 // pred_check_branch
        %588 = sbr.rel (%p586) target = $region24
      $region23: #{feature_extractor_forward.1} parent=11 // pred_region
        _
      $region24: #{feature_extractor_forward.1} parent=11 // pred_fallthru
        _
      // Predicated region
      $region25: #{feature_extractor_forward.1} parent=11 // pred_check
        %p589 = pneg %p140
      $region26: #{feature_extractor_forward.1} parent=11 // pred_check_branch
        %591 = sbr.rel (%p589) target = $region28
      $region27: #{feature_extractor_forward.1} parent=11 // pred_region
        _
      $region28: #{feature_extractor_forward.1} parent=11 // pred_fallthru
        _
      // Predicated region
      $region29: #{feature_extractor_forward.1} parent=11 // pred_check
        %p592 = pneg %p161
      $region30: #{feature_extractor_forward.1} parent=11 // pred_check_branch
        %594 = sbr.rel (%p592) target = $region32
      $region31: #{feature_extractor_forward.1} parent=11 // pred_region
        _
      $region32: #{feature_extractor_forward.1} parent=11 // pred_fallthru
        _
      // Predicated region
      $region33: #{feature_extractor_forward.1} parent=11 // pred_check
        %p595 = pneg %p182
      $region34: #{feature_extractor_forward.1} parent=11 // pred_check_branch
        %597 = sbr.rel (%p595) target = $region36
      $region35: #{feature_extractor_forward.1} parent=11 // pred_region
        _
      $region36: #{feature_extractor_forward.1} parent=11 // pred_fallthru
        _
      // Predicated region
      $region37: #{feature_extractor_forward.1} parent=11 // pred_check
        %p598 = pneg %p203
      $region38: #{feature_extractor_forward.1} parent=11 // pred_check_branch
        %600 = sbr.rel (%p598) target = $region40
      $region39: #{feature_extractor_forward.1} parent=11 // pred_region
        _
      $region40: #{feature_extractor_forward.1} parent=11 // pred_fallthru
        _
      // Predicated region
      $region41: #{feature_extractor_forward.1} parent=11 // pred_check
        %p601 = pneg %p224
      $region42: #{feature_extractor_forward.1} parent=11 // pred_check_branch
        %603 = sbr.rel (%p601) target = $region44
      $region43: #{feature_extractor_forward.1} parent=11 // pred_region
        _
      $region44: #{feature_extractor_forward.1} parent=11 // pred_fallthru
        _
      // Predicated region
      $region45: #{feature_extractor_forward.1} parent=11 // pred_check
        %p604 = pneg %p245
      $region46: #{feature_extractor_forward.1} parent=11 // pred_check_branch
        %606 = sbr.rel (%p604) target = $region48
      $region47: #{feature_extractor_forward.1} parent=11 // pred_region
        _
      $region48: #{feature_extractor_forward.1} parent=11 // pred_fallthru
        _
      // Predicated region
      $region49: #{feature_extractor_forward.1} parent=11 // pred_check
        %p607 = pneg %p266
      $region50: #{feature_extractor_forward.1} parent=11 // pred_check_branch
        %609 = sbr.rel (%p607) target = $region52
      $region51: #{feature_extractor_forward.1} parent=11 // pred_region
        _
      $region52: #{feature_extractor_forward.1} parent=11 // pred_fallthru
        _
      // Predicated region
      $region53: #{feature_extractor_forward.1} parent=11 // pred_check
        %p610 = pneg %p287
      $region54: #{feature_extractor_forward.1} parent=11 // pred_check_branch
        %612 = sbr.rel (%p610) target = $region56
      $region55: #{feature_extractor_forward.1} parent=11 // pred_region
        _
      $region56: #{feature_extractor_forward.1} parent=11 // pred_fallthru
        _
      // Predicated region
      $region57: #{feature_extractor_forward.1} parent=11 // pred_check
        %p613 = pneg %p308
      $region58: #{feature_extractor_forward.1} parent=11 // pred_check_branch
        %615 = sbr.rel (%p613) target = $region60
      $region59: #{feature_extractor_forward.1} parent=11 // pred_region
        _
      $region60: #{feature_extractor_forward.1} parent=11 // pred_fallthru
        _
      // Predicated region
      $region61: #{feature_extractor_forward.1} parent=11 // pred_check
        %p616 = pneg %p329
      $region62: #{feature_extractor_forward.1} parent=11 // pred_check_branch
        %618 = sbr.rel (%p616) target = $region64
      $region63: #{feature_extractor_forward.1} parent=11 // pred_region
        _
      $region64: #{feature_extractor_forward.1} parent=11 // pred_fallthru
        _
      // Predicated region
      $region65: #{feature_extractor_forward.1} parent=11 // pred_check
        %p619 = pneg %p350
      $region66: #{feature_extractor_forward.1} parent=11 // pred_check_branch
        %621 = sbr.rel (%p619) target = $region68
      $region67: #{feature_extractor_forward.1} parent=11 // pred_region
        _
      $region68: #{feature_extractor_forward.1} parent=11 // pred_fallthru
        _
      // Predicated region
      $region69: #{feature_extractor_forward.1} parent=11 // pred_check
        %p622 = pneg %p371
      $region70: #{feature_extractor_forward.1} parent=11 // pred_check_branch
        %624 = sbr.rel (%p622) target = $region72
      $region71: #{feature_extractor_forward.1} parent=11 // pred_region
        _
      $region72: #{feature_extractor_forward.1} parent=11 // pred_fallthru
        _
      // Predicated region
      $region73: #{feature_extractor_forward.1} parent=11 // pred_check
        %p625 = pneg %p392
      $region74: #{feature_extractor_forward.1} parent=11 // pred_check_branch
        %627 = sbr.rel (%p625) target = $region76
      $region75: #{feature_extractor_forward.1} parent=11 // pred_region
        _
      $region76: #{feature_extractor_forward.1} parent=11 // pred_fallthru
        _
      // Predicated region
      $region77: #{feature_extractor_forward.1} parent=11 // pred_check
        %p628 = pneg %p413
      $region78: #{feature_extractor_forward.1} parent=11 // pred_check_branch
        %630 = sbr.rel (%p628) target = $region80
      $region79: #{feature_extractor_forward.1} parent=11 // pred_region
        _
      $region80: #{feature_extractor_forward.1} parent=11 // pred_fallthru
        _
      // Predicated region
      $region81: #{feature_extractor_forward.1} parent=11 // pred_check
        %p631 = pneg %p434
      $region82: #{feature_extractor_forward.1} parent=11 // pred_check_branch
        %633 = sbr.rel (%p631) target = $region84
      $region83: #{feature_extractor_forward.1} parent=11 // pred_region
        _
      $region84: #{feature_extractor_forward.1} parent=11 // pred_fallthru
        _
      // Predicated region
      $region85: #{feature_extractor_forward.1} parent=11 // pred_check
        %p634 = pneg %p455
      $region86: #{feature_extractor_forward.1} parent=11 // pred_check_branch
        %636 = sbr.rel (%p634) target = $region88
      $region87: #{feature_extractor_forward.1} parent=11 // pred_region
        _
      $region88: #{feature_extractor_forward.1} parent=11 // pred_fallthru
        _
      // Predicated region
      $region89: #{feature_extractor_forward.1} parent=11 // pred_check
        %p637 = pneg %p476
      $region90: #{feature_extractor_forward.1} parent=11 // pred_check_branch
        %639 = sbr.rel (%p637) target = $region92
      $region91: #{feature_extractor_forward.1} parent=11 // pred_region
        _
      $region92: #{feature_extractor_forward.1} parent=11 // pred_fallthru
        _
      // Predicated region
      $region93: #{feature_extractor_forward.1} parent=11 // pred_check
        %p640 = pneg %p497
      $region94: #{feature_extractor_forward.1} parent=11 // pred_check_branch
        %642 = sbr.rel (%p640) target = $region96
      $region95: #{feature_extractor_forward.1} parent=11 // pred_region
        _
      $region96: #{feature_extractor_forward.1} parent=11 // pred_fallthru
        _
      // Predicated region
      $region97: #{feature_extractor_forward.1} parent=11 // pred_check
        %p643 = pneg %p518
      $region98: #{feature_extractor_forward.1} parent=11 // pred_check_branch
        %645 = sbr.rel (%p643) target = $region100
      $region99: #{feature_extractor_forward.1} parent=11 // pred_region
        _
      $region100: #{feature_extractor_forward.1} parent=11 // pred_fallthru
        _
      // Predicated region
      $region101: #{feature_extractor_forward.1} parent=11 // pred_check
        %p646 = pneg %p539
      $region102: #{feature_extractor_forward.1} parent=11 // pred_check_branch
        %648 = sbr.rel (%p646) target = $region104
      $region103: #{feature_extractor_forward.1} parent=11 // pred_region
        _
      $region104: #{feature_extractor_forward.1} parent=11 // pred_fallthru
        _
    $region12: #{feature_extractor_forward.1} parent=5 // pred_fallthru
      _
    %p649 = scmp.lt.s32.totalorder %s30, 2
    // Predicated region
    $region105: #{feature_extractor_forward.1} parent=5 // pred_check
      %p650 = pneg %p649
    $region106: #{feature_extractor_forward.1} parent=5 // pred_check_branch
      %652 = sbr.rel (%p650) target = $region108
    $region107: #{feature_extractor_forward.1} parent=5 // pred_region
      // Predicated region
      $region109: #{feature_extractor_forward.1} parent=107 // pred_check
        %p653 = pneg %p50
      $region110: #{feature_extractor_forward.1} parent=107 // pred_check_branch
        %655 = sbr.rel (%p653) target = $region112
      $region111: #{feature_extractor_forward.1} parent=107 // pred_region
        %p656 = scmp.lt.s32.totalorder %s30, 1
        %s657 = scalar_select %p656, %s30, 1
        %s658 = smul.addr %s657, 160
        %s659 = smul.addr %s658, 4
        %s660 = scalar_lea.vmem %s0, %s659
      $region112: #{feature_extractor_forward.1} parent=107 // pred_fallthru
        _
    $region108: #{feature_extractor_forward.1} parent=5 // pred_fallthru
      _
    %p661 = scmp.le.s32.totalorder 1, %s30
    %p662 = scmp.lt.s32.totalorder %s30, 3
    %p663 = pnand %p661, %p662
    %p664 = pneg %p663
    // Predicated region
    $region113: #{feature_extractor_forward.1} parent=5 // pred_check
      _
    $region114: #{feature_extractor_forward.1} parent=5 // pred_check_branch
      %666 = sbr.rel (%p663) target = $region116
    $region115: #{feature_extractor_forward.1} parent=5 // pred_region
      %s667 = ssub.s32 %s30, 1
      %p668 = scmp.lt.s32.totalorder %s35, 1
      %s669 = scalar_select %p668, %s35, 1
      %s670 = smul.addr %s669, 160
      %s671 = smul.addr %s670, 4
      %s672 = scalar_lea.vmem %s0, %s671
      %p673 = pneg %p56
      %p674 = pneg %p53
      %p675 = pneg %p77
      %p676 = pneg %p74
      %p677 = pneg %p98
      %p678 = pneg %p95
      %p679 = pneg %p119
      %p680 = pneg %p116
      %p681 = pneg %p140
      %p682 = pneg %p137
      %p683 = pneg %p161
      %p684 = pneg %p158
      %p685 = pneg %p182
      %p686 = pneg %p179
      %p687 = pneg %p203
      %p688 = pneg %p200
      %p689 = pneg %p224
      %p690 = pneg %p221
      %p691 = pneg %p245
      %p692 = pneg %p242
      %p693 = pneg %p266
      %p694 = pneg %p263
      %p695 = pneg %p287
      %p696 = pneg %p284
      %p697 = pneg %p308
      %p698 = pneg %p305
      %p699 = pneg %p329
      %p700 = pneg %p326
      %p701 = pneg %p350
      %p702 = pneg %p347
      %p703 = pneg %p371
      %p704 = pneg %p368
      %p705 = pneg %p392
      %p706 = pneg %p389
      %p707 = pneg %p413
      %p708 = pneg %p410
      %p709 = pneg %p434
      %p710 = pneg %p431
      %p711 = pneg %p455
      %p712 = pneg %p452
      %p713 = pneg %p476
      %p714 = pneg %p473
      %p715 = pneg %p497
      %p716 = pneg %p494
      %p717 = pneg %p518
      %p718 = pneg %p515
      %p719 = pneg %p539
      %p720 = pneg %p536
      %p721 = pneg %p565
      %p722 = pneg %p562
      %p723 = scmp.lt.s32.totalorder %s35, 1
      %s724 = scalar_select %p723, %s35, 1
      %s725 = smul.addr %s724, 6
      %s726 = smul.addr %s725, 8
      %s727 = scalar_lea.vmem %s24, %s726
      %p728 = scmp.lt.s32.totalorder %s35, 1
      %s729 = scalar_select %p728, %s35, 1
      %s730 = smul.addr %s729, 160
      %s731 = smul.addr %s730, 4
      %s732 = scalar_lea.vmem %s0, %s731
      %p733 = scmp.lt.s32.totalorder %s35, 1
      %s734 = scalar_select %p733, %s35, 1
      %s735 = smul.addr %s734, 6
      %s736 = smul.addr %s735, 8
      %s737 = scalar_lea.vmem %s24, %s736
      %v739 = vlaneseq
      %v740 = vand.u32 %v739, 127
      %v741 = vadd.s32 %v740, 128
      %v742 = vadd.s32 %v740, 256
      %v743 = vadd.s32 %v740, 384
      %v744 = vadd.s32 %v740, 512
      %v745 = vadd.s32 %v740, 640
      %v746 = vadd.s32 %v740, 768
      %v747 = vadd.s32 %v740, 896
      %v748 = vshra.s32 %v740, 5
      %v749 = vshra.s32 %v741, 5
      %v750 = vshra.s32 %v742, 5
      %v751 = vshra.s32 %v743, 5
      %v752 = vshra.s32 %v744, 5
      %v753 = vshra.s32 %v745, 5
      %v754 = vshra.s32 %v746, 5
      %v755 = vshra.s32 %v747, 5
      %v756 = vand.u32 %v740, 31
      %v757 = vand.u32 %v741, 31
      %v758 = vand.u32 %v742, 31
      %v759 = vand.u32 %v743, 31
      %v760 = vand.u32 %v744, 31
      %v761 = vand.u32 %v745, 31
      %v762 = vand.u32 %v746, 31
      %v763 = vand.u32 %v747, 31
      %v764 = vadd.s32 %v748, 4294967295
      %v765 = vadd.s32 %v749, 4294967295
      %v766 = vadd.s32 %v750, 4294967295
      %v767 = vadd.s32 %v751, 4294967295
      %v768 = vadd.s32 %v752, 4294967295
      %v769 = vadd.s32 %v753, 4294967295
      %v770 = vadd.s32 %v754, 4294967295
      %v771 = vadd.s32 %v755, 4294967295
      %vm772 = vcmp.ge.s32.totalorder %v764, 0
      %vm773 = vcmp.ge.s32.totalorder %v765, 0
      %vm774 = vcmp.ge.s32.totalorder %v766, 0
      %vm775 = vcmp.ge.s32.totalorder %v767, 0
      %vm776 = vcmp.ge.s32.totalorder %v768, 0
      %vm777 = vcmp.ge.s32.totalorder %v769, 0
      %vm778 = vcmp.ge.s32.totalorder %v770, 0
      %vm779 = vcmp.ge.s32.totalorder %v771, 0
      %vm780 = vcmp.lt.s32.totalorder %v764, 32
      %vm781 = vcmp.lt.s32.totalorder %v765, 32
      %vm782 = vcmp.lt.s32.totalorder %v766, 32
      %vm783 = vcmp.lt.s32.totalorder %v767, 32
      %vm784 = vcmp.lt.s32.totalorder %v768, 32
      %vm785 = vcmp.lt.s32.totalorder %v769, 32
      %vm786 = vcmp.lt.s32.totalorder %v770, 32
      %vm787 = vcmp.lt.s32.totalorder %v771, 32
      %vm788 = vmand %vm772, %vm780
      %vm789 = vmand %vm773, %vm781
      %vm790 = vmand %vm774, %vm782
      %vm791 = vmand %vm775, %vm783
      %vm792 = vmand %vm776, %vm784
      %vm793 = vmand %vm777, %vm785
      %vm794 = vmand %vm778, %vm786
      %vm795 = vmand %vm779, %vm787
      %v796 = vadd.s32 %v756, 4294967295
      %v797 = vadd.s32 %v757, 4294967295
      %v798 = vadd.s32 %v758, 4294967295
      %v799 = vadd.s32 %v759, 4294967295
      %v800 = vadd.s32 %v760, 4294967295
      %v801 = vadd.s32 %v761, 4294967295
      %v802 = vadd.s32 %v762, 4294967295
      %v803 = vadd.s32 %v763, 4294967295
      %vm804 = vcmp.ge.s32.totalorder %v796, 0
      %vm805 = vcmp.ge.s32.totalorder %v797, 0
      %vm806 = vcmp.ge.s32.totalorder %v798, 0
      %vm807 = vcmp.ge.s32.totalorder %v799, 0
      %vm808 = vcmp.ge.s32.totalorder %v800, 0
      %vm809 = vcmp.ge.s32.totalorder %v801, 0
      %vm810 = vcmp.ge.s32.totalorder %v802, 0
      %vm811 = vcmp.ge.s32.totalorder %v803, 0
      %vm812 = vmand %vm788, %vm804
      %vm813 = vmand %vm789, %vm805
      %vm814 = vmand %vm790, %vm806
      %vm815 = vmand %vm791, %vm807
      %vm816 = vmand %vm792, %vm808
      %vm817 = vmand %vm793, %vm809
      %vm818 = vmand %vm794, %vm810
      %vm819 = vmand %vm795, %vm811
      %vm820 = vcmp.lt.s32.totalorder %v796, 32
      %vm821 = vcmp.lt.s32.totalorder %v797, 32
      %vm822 = vcmp.lt.s32.totalorder %v798, 32
      %vm823 = vcmp.lt.s32.totalorder %v799, 32
      %vm824 = vcmp.lt.s32.totalorder %v800, 32
      %vm825 = vcmp.lt.s32.totalorder %v801, 32
      %vm826 = vcmp.lt.s32.totalorder %v802, 32
      %vm827 = vcmp.lt.s32.totalorder %v803, 32
      %vm828 = vmand %vm812, %vm820
      %vm829 = vmand %vm813, %vm821
      %vm830 = vmand %vm814, %vm822
      %vm831 = vmand %vm815, %vm823
      %vm832 = vmand %vm816, %vm824
      %vm833 = vmand %vm817, %vm825
      %vm834 = vmand %vm818, %vm826
      %vm835 = vmand %vm819, %vm827
      %vm836 = vcmp.ge.s32.totalorder %v756, 0
      %vm837 = vcmp.ge.s32.totalorder %v757, 0
      %vm838 = vcmp.ge.s32.totalorder %v758, 0
      %vm839 = vcmp.ge.s32.totalorder %v759, 0
      %vm840 = vcmp.ge.s32.totalorder %v760, 0
      %vm841 = vcmp.ge.s32.totalorder %v761, 0
      %vm842 = vcmp.ge.s32.totalorder %v762, 0
      %vm843 = vcmp.ge.s32.totalorder %v763, 0
      %vm844 = vmand %vm788, %vm836
      %vm845 = vmand %vm789, %vm837
      %vm846 = vmand %vm790, %vm838
      %vm847 = vmand %vm791, %vm839
      %vm848 = vmand %vm792, %vm840
      %vm849 = vmand %vm793, %vm841
      %vm850 = vmand %vm794, %vm842
      %vm851 = vmand %vm795, %vm843
      %vm852 = vcmp.lt.s32.totalorder %v756, 32
      %vm853 = vcmp.lt.s32.totalorder %v757, 32
      %vm854 = vcmp.lt.s32.totalorder %v758, 32
      %vm855 = vcmp.lt.s32.totalorder %v759, 32
      %vm856 = vcmp.lt.s32.totalorder %v760, 32
      %vm857 = vcmp.lt.s32.totalorder %v761, 32
      %vm858 = vcmp.lt.s32.totalorder %v762, 32
      %vm859 = vcmp.lt.s32.totalorder %v763, 32
      %vm860 = vmand %vm844, %vm852
      %vm861 = vmand %vm845, %vm853
      %vm862 = vmand %vm846, %vm854
      %vm863 = vmand %vm847, %vm855
      %vm864 = vmand %vm848, %vm856
      %vm865 = vmand %vm849, %vm857
      %vm866 = vmand %vm850, %vm858
      %vm867 = vmand %vm851, %vm859
      %v868 = vadd.s32 %v756, 1
      %v869 = vadd.s32 %v757, 1
      %v870 = vadd.s32 %v758, 1
      %v871 = vadd.s32 %v759, 1
      %v872 = vadd.s32 %v760, 1
      %v873 = vadd.s32 %v761, 1
      %v874 = vadd.s32 %v762, 1
      %v875 = vadd.s32 %v763, 1
      %vm876 = vcmp.ge.s32.totalorder %v868, 0
      %vm877 = vcmp.ge.s32.totalorder %v869, 0
      %vm878 = vcmp.ge.s32.totalorder %v870, 0
      %vm879 = vcmp.ge.s32.totalorder %v871, 0
      %vm880 = vcmp.ge.s32.totalorder %v872, 0
      %vm881 = vcmp.ge.s32.totalorder %v873, 0
      %vm882 = vcmp.ge.s32.totalorder %v874, 0
      %vm883 = vcmp.ge.s32.totalorder %v875, 0
      %vm884 = vmand %vm788, %vm876
      %vm885 = vmand %vm789, %vm877
      %vm886 = vmand %vm790, %vm878
      %vm887 = vmand %vm791, %vm879
      %vm888 = vmand %vm792, %vm880
      %vm889 = vmand %vm793, %vm881
      %vm890 = vmand %vm794, %vm882
      %vm891 = vmand %vm795, %vm883
      %vm892 = vcmp.lt.s32.totalorder %v868, 32
      %vm893 = vcmp.lt.s32.totalorder %v869, 32
      %vm894 = vcmp.lt.s32.totalorder %v870, 32
      %vm895 = vcmp.lt.s32.totalorder %v871, 32
      %vm896 = vcmp.lt.s32.totalorder %v872, 32
      %vm897 = vcmp.lt.s32.totalorder %v873, 32
      %vm898 = vcmp.lt.s32.totalorder %v874, 32
      %vm899 = vcmp.lt.s32.totalorder %v875, 32
      %vm900 = vmand %vm884, %vm892
      %vm901 = vmand %vm885, %vm893
      %vm902 = vmand %vm886, %vm894
      %vm903 = vmand %vm887, %vm895
      %vm904 = vmand %vm888, %vm896
      %vm905 = vmand %vm889, %vm897
      %vm906 = vmand %vm890, %vm898
      %vm907 = vmand %vm891, %vm899
      %vm908 = vcmp.ge.s32.totalorder %v748, 0
      %vm909 = vcmp.ge.s32.totalorder %v749, 0
      %vm910 = vcmp.ge.s32.totalorder %v750, 0
      %vm911 = vcmp.ge.s32.totalorder %v751, 0
      %vm912 = vcmp.ge.s32.totalorder %v752, 0
      %vm913 = vcmp.ge.s32.totalorder %v753, 0
      %vm914 = vcmp.ge.s32.totalorder %v754, 0
      %vm915 = vcmp.ge.s32.totalorder %v755, 0
      %vm916 = vcmp.lt.s32.totalorder %v748, 32
      %vm917 = vcmp.lt.s32.totalorder %v749, 32
      %vm918 = vcmp.lt.s32.totalorder %v750, 32
      %vm919 = vcmp.lt.s32.totalorder %v751, 32
      %vm920 = vcmp.lt.s32.totalorder %v752, 32
      %vm921 = vcmp.lt.s32.totalorder %v753, 32
      %vm922 = vcmp.lt.s32.totalorder %v754, 32
      %vm923 = vcmp.lt.s32.totalorder %v755, 32
      %vm924 = vmand %vm908, %vm916
      %vm925 = vmand %vm909, %vm917
      %vm926 = vmand %vm910, %vm918
      %vm927 = vmand %vm911, %vm919
      %vm928 = vmand %vm912, %vm920
      %vm929 = vmand %vm913, %vm921
      %vm930 = vmand %vm914, %vm922
      %vm931 = vmand %vm915, %vm923
      %vm932 = vmand %vm924, %vm804
      %vm933 = vmand %vm925, %vm805
      %vm934 = vmand %vm926, %vm806
      %vm935 = vmand %vm927, %vm807
      %vm936 = vmand %vm928, %vm808
      %vm937 = vmand %vm929, %vm809
      %vm938 = vmand %vm930, %vm810
      %vm939 = vmand %vm931, %vm811
      %vm940 = vmand %vm932, %vm820
      %vm941 = vmand %vm933, %vm821
      %vm942 = vmand %vm934, %vm822
      %vm943 = vmand %vm935, %vm823
      %vm944 = vmand %vm936, %vm824
      %vm945 = vmand %vm937, %vm825
      %vm946 = vmand %vm938, %vm826
      %vm947 = vmand %vm939, %vm827
      %vm948 = vmand %vm924, %vm876
      %vm949 = vmand %vm925, %vm877
      %vm950 = vmand %vm926, %vm878
      %vm951 = vmand %vm927, %vm879
      %vm952 = vmand %vm928, %vm880
      %vm953 = vmand %vm929, %vm881
      %vm954 = vmand %vm930, %vm882
      %vm955 = vmand %vm931, %vm883
      %vm956 = vmand %vm948, %vm892
      %vm957 = vmand %vm949, %vm893
      %vm958 = vmand %vm950, %vm894
      %vm959 = vmand %vm951, %vm895
      %vm960 = vmand %vm952, %vm896
      %vm961 = vmand %vm953, %vm897
      %vm962 = vmand %vm954, %vm898
      %vm963 = vmand %vm955, %vm899
      %v964 = vadd.s32 %v748, 1
      %v965 = vadd.s32 %v749, 1
      %v966 = vadd.s32 %v750, 1
      %v967 = vadd.s32 %v751, 1
      %v968 = vadd.s32 %v752, 1
      %v969 = vadd.s32 %v753, 1
      %v970 = vadd.s32 %v754, 1
      %v971 = vadd.s32 %v755, 1
      %vm972 = vcmp.ge.s32.totalorder %v964, 0
      %vm973 = vcmp.ge.s32.totalorder %v965, 0
      %vm974 = vcmp.ge.s32.totalorder %v966, 0
      %vm975 = vcmp.ge.s32.totalorder %v967, 0
      %vm976 = vcmp.ge.s32.totalorder %v968, 0
      %vm977 = vcmp.ge.s32.totalorder %v969, 0
      %vm978 = vcmp.ge.s32.totalorder %v970, 0
      %vm979 = vcmp.ge.s32.totalorder %v971, 0
      %vm980 = vcmp.lt.s32.totalorder %v964, 32
      %vm981 = vcmp.lt.s32.totalorder %v965, 32
      %vm982 = vcmp.lt.s32.totalorder %v966, 32
      %vm983 = vcmp.lt.s32.totalorder %v967, 32
      %vm984 = vcmp.lt.s32.totalorder %v968, 32
      %vm985 = vcmp.lt.s32.totalorder %v969, 32
      %vm986 = vcmp.lt.s32.totalorder %v970, 32
      %vm987 = vcmp.lt.s32.totalorder %v971, 32
      %vm988 = vmand %vm972, %vm980
      %vm989 = vmand %vm973, %vm981
      %vm990 = vmand %vm974, %vm982
      %vm991 = vmand %vm975, %vm983
      %vm992 = vmand %vm976, %vm984
      %vm993 = vmand %vm977, %vm985
      %vm994 = vmand %vm978, %vm986
      %vm995 = vmand %vm979, %vm987
      %vm996 = vmand %vm988, %vm804
      %vm997 = vmand %vm989, %vm805
      %vm998 = vmand %vm990, %vm806
      %vm999 = vmand %vm991, %vm807
      %vm1000 = vmand %vm992, %vm808
      %vm1001 = vmand %vm993, %vm809
      %vm1002 = vmand %vm994, %vm810
      %vm1003 = vmand %vm995, %vm811
      %vm1004 = vmand %vm996, %vm820
      %vm1005 = vmand %vm997, %vm821
      %vm1006 = vmand %vm998, %vm822
      %vm1007 = vmand %vm999, %vm823
      %vm1008 = vmand %vm1000, %vm824
      %vm1009 = vmand %vm1001, %vm825
      %vm1010 = vmand %vm1002, %vm826
      %vm1011 = vmand %vm1003, %vm827
      %vm1012 = vmand %vm988, %vm836
      %vm1013 = vmand %vm989, %vm837
      %vm1014 = vmand %vm990, %vm838
      %vm1015 = vmand %vm991, %vm839
      %vm1016 = vmand %vm992, %vm840
      %vm1017 = vmand %vm993, %vm841
      %vm1018 = vmand %vm994, %vm842
      %vm1019 = vmand %vm995, %vm843
      %vm1020 = vmand %vm1012, %vm852
      %vm1021 = vmand %vm1013, %vm853
      %vm1022 = vmand %vm1014, %vm854
      %vm1023 = vmand %vm1015, %vm855
      %vm1024 = vmand %vm1016, %vm856
      %vm1025 = vmand %vm1017, %vm857
      %vm1026 = vmand %vm1018, %vm858
      %vm1027 = vmand %vm1019, %vm859
      %vm1028 = vmand %vm988, %vm876
      %vm1029 = vmand %vm989, %vm877
      %vm1030 = vmand %vm990, %vm878
      %vm1031 = vmand %vm991, %vm879
      %vm1032 = vmand %vm992, %vm880
      %vm1033 = vmand %vm993, %vm881
      %vm1034 = vmand %vm994, %vm882
      %vm1035 = vmand %vm995, %vm883
      %vm1036 = vmand %vm1028, %vm892
      %vm1037 = vmand %vm1029, %vm893
      %vm1038 = vmand %vm1030, %vm894
      %vm1039 = vmand %vm1031, %vm895
      %vm1040 = vmand %vm1032, %vm896
      %vm1041 = vmand %vm1033, %vm897
      %vm1042 = vmand %vm1034, %vm898
      %vm1043 = vmand %vm1035, %vm899
      %v1044 = vshra.s32 %v740, 4
      %v1045 = vshra.s32 %v741, 4
      %v1046 = vand.u32 %v740, 15
      %v1047 = vand.u32 %v741, 15
      %v1048 = vadd.s32 %v1044, 4294967295
      %v1049 = vadd.s32 %v1045, 4294967295
      %vm1050 = vcmp.ge.s32.totalorder %v1048, 0
      %vm1051 = vcmp.ge.s32.totalorder %v1049, 0
      %vm1052 = vcmp.lt.s32.totalorder %v1048, 16
      %vm1053 = vcmp.lt.s32.totalorder %v1049, 16
      %vm1054 = vmand %vm1050, %vm1052
      %vm1055 = vmand %vm1051, %vm1053
      %v1056 = vadd.s32 %v1046, 4294967295
      %v1057 = vadd.s32 %v1047, 4294967295
      %vm1058 = vcmp.ge.s32.totalorder %v1056, 0
      %vm1059 = vcmp.ge.s32.totalorder %v1057, 0
      %vm1060 = vmand %vm1054, %vm1058
      %vm1061 = vmand %vm1055, %vm1059
      %vm1062 = vcmp.lt.s32.totalorder %v1056, 16
      %vm1063 = vcmp.lt.s32.totalorder %v1057, 16
      %vm1064 = vmand %vm1060, %vm1062
      %vm1065 = vmand %vm1061, %vm1063
      %vm1066 = vcmp.ge.s32.totalorder %v1046, 0
      %vm1067 = vcmp.ge.s32.totalorder %v1047, 0
      %vm1068 = vmand %vm1054, %vm1066
      %vm1069 = vmand %vm1055, %vm1067
      %vm1070 = vcmp.lt.s32.totalorder %v1046, 16
      %vm1071 = vcmp.lt.s32.totalorder %v1047, 16
      %vm1072 = vmand %vm1068, %vm1070
      %vm1073 = vmand %vm1069, %vm1071
      %v1074 = vadd.s32 %v1046, 1
      %v1075 = vadd.s32 %v1047, 1
      %vm1076 = vcmp.ge.s32.totalorder %v1074, 0
      %vm1077 = vcmp.ge.s32.totalorder %v1075, 0
      %vm1078 = vmand %vm1054, %vm1076
      %vm1079 = vmand %vm1055, %vm1077
      %vm1080 = vcmp.lt.s32.totalorder %v1074, 16
      %vm1081 = vcmp.lt.s32.totalorder %v1075, 16
      %vm1082 = vmand %vm1078, %vm1080
      %vm1083 = vmand %vm1079, %vm1081
      %vm1084 = vcmp.ge.s32.totalorder %v1044, 0
      %vm1085 = vcmp.ge.s32.totalorder %v1045, 0
      %vm1086 = vcmp.lt.s32.totalorder %v1044, 16
      %vm1087 = vcmp.lt.s32.totalorder %v1045, 16
      %vm1088 = vmand %vm1084, %vm1086
      %vm1089 = vmand %vm1085, %vm1087
      %vm1090 = vmand %vm1088, %vm1058
      %vm1091 = vmand %vm1089, %vm1059
      %vm1092 = vmand %vm1090, %vm1062
      %vm1093 = vmand %vm1091, %vm1063
      %vm1094 = vmand %vm1088, %vm1076
      %vm1095 = vmand %vm1089, %vm1077
      %vm1096 = vmand %vm1094, %vm1080
      %vm1097 = vmand %vm1095, %vm1081
      %v1098 = vadd.s32 %v1044, 1
      %v1099 = vadd.s32 %v1045, 1
      %vm1100 = vcmp.ge.s32.totalorder %v1098, 0
      %vm1101 = vcmp.ge.s32.totalorder %v1099, 0
      %vm1102 = vcmp.lt.s32.totalorder %v1098, 16
      %vm1103 = vcmp.lt.s32.totalorder %v1099, 16
      %vm1104 = vmand %vm1100, %vm1102
      %vm1105 = vmand %vm1101, %vm1103
      %vm1106 = vmand %vm1104, %vm1058
      %vm1107 = vmand %vm1105, %vm1059
      %vm1108 = vmand %vm1106, %vm1062
      %vm1109 = vmand %vm1107, %vm1063
      %vm1110 = vmand %vm1104, %vm1066
      %vm1111 = vmand %vm1105, %vm1067
      %vm1112 = vmand %vm1110, %vm1070
      %vm1113 = vmand %vm1111, %vm1071
      %vm1114 = vmand %vm1104, %vm1076
      %vm1115 = vmand %vm1105, %vm1077
      %vm1116 = vmand %vm1114, %vm1080
      %vm1117 = vmand %vm1115, %vm1081
      %v1118 = vshra.s32 %v740, 3
      %v1119 = vand.u32 %v740, 7
      %v1120 = vadd.s32 %v1118, 4294967295
      %vm1121 = vcmp.ge.s32.totalorder %v1120, 0
      %vm1122 = vcmp.lt.s32.totalorder %v1120, 8
      %vm1123 = vmand %vm1121, %vm1122
      %v1124 = vadd.s32 %v1119, 4294967295
      %vm1125 = vcmp.ge.s32.totalorder %v1124, 0
      %vm1126 = vmand %vm1123, %vm1125
      %vm1127 = vcmp.lt.s32.totalorder %v1124, 8
      %vm1128 = vmand %vm1126, %vm1127
      %vm1129 = vcmp.ge.s32.totalorder %v1119, 0
      %vm1130 = vmand %vm1123, %vm1129
      %vm1131 = vcmp.lt.s32.totalorder %v1119, 8
      %vm1132 = vmand %vm1130, %vm1131
      %v1133 = vadd.s32 %v1119, 1
      %vm1134 = vcmp.ge.s32.totalorder %v1133, 0
      %vm1135 = vmand %vm1123, %vm1134
      %vm1136 = vcmp.lt.s32.totalorder %v1133, 8
      %vm1137 = vmand %vm1135, %vm1136
      %vm1138 = vcmp.ge.s32.totalorder %v1118, 0
      %vm1139 = vcmp.lt.s32.totalorder %v1118, 8
      %vm1140 = vmand %vm1138, %vm1139
      %vm1141 = vmand %vm1140, %vm1125
      %vm1142 = vmand %vm1141, %vm1127
      %vm1143 = vmand %vm1140, %vm1134
      %vm1144 = vmand %vm1143, %vm1136
      %v1145 = vadd.s32 %v1118, 1
      %vm1146 = vcmp.ge.s32.totalorder %v1145, 0
      %vm1147 = vcmp.lt.s32.totalorder %v1145, 8
      %vm1148 = vmand %vm1146, %vm1147
      %vm1149 = vmand %vm1148, %vm1125
      %vm1150 = vmand %vm1149, %vm1127
      %vm1151 = vmand %vm1148, %vm1129
      %vm1152 = vmand %vm1151, %vm1131
      %vm1153 = vmand %vm1148, %vm1134
      %vm1154 = vmand %vm1153, %vm1136
      %v1155 = vshra.s32 %v740, 2
      %v1156 = vand.u32 %v740, 3
      %v1157 = vadd.s32 %v1155, 4294967295
      %vm1158 = vcmp.ge.s32.totalorder %v1157, 0
      %vm1159 = vcmp.lt.s32.totalorder %v1157, 4
      %vm1160 = vmand %vm1158, %vm1159
      %v1161 = vadd.s32 %v1156, 4294967295
      %vm1162 = vcmp.ge.s32.totalorder %v1161, 0
      %vm1163 = vmand %vm1160, %vm1162
      %vm1164 = vcmp.lt.s32.totalorder %v1161, 4
      %vm1165 = vmand %vm1163, %vm1164
      %vm1166 = vcmp.ge.s32.totalorder %v1156, 0
      %vm1167 = vmand %vm1160, %vm1166
      %vm1168 = vcmp.lt.s32.totalorder %v1156, 4
      %vm1169 = vmand %vm1167, %vm1168
      %v1170 = vadd.s32 %v1156, 1
      %vm1171 = vcmp.ge.s32.totalorder %v1170, 0
      %vm1172 = vmand %vm1160, %vm1171
      %vm1173 = vcmp.lt.s32.totalorder %v1170, 4
      %vm1174 = vmand %vm1172, %vm1173
      %vm1175 = vcmp.ge.s32.totalorder %v1155, 0
      %vm1176 = vcmp.lt.s32.totalorder %v1155, 4
      %vm1177 = vmand %vm1175, %vm1176
      %vm1178 = vmand %vm1177, %vm1162
      %vm1179 = vmand %vm1178, %vm1164
      %vm1180 = vmand %vm1177, %vm1171
      %vm1181 = vmand %vm1180, %vm1173
      %v1182 = vadd.s32 %v1155, 1
      %vm1183 = vcmp.ge.s32.totalorder %v1182, 0
      %vm1184 = vcmp.lt.s32.totalorder %v1182, 4
      %vm1185 = vmand %vm1183, %vm1184
      %vm1186 = vmand %vm1185, %vm1162
      %vm1187 = vmand %vm1186, %vm1164
      %vm1188 = vmand %vm1185, %vm1166
      %vm1189 = vmand %vm1188, %vm1168
      %vm1190 = vmand %vm1185, %vm1171
      %vm1191 = vmand %vm1190, %vm1173
      %v1192 = vld [vmem:[%s1] sm:$0xff]
      %v1193 = vld [vmem:[%s732] sm:$0xff]
      %v1194 = vld [vmem:[%s732 + $0x8] sm:$0xff]
      %v1195 = vld [vmem:[%s732 + $0x10] sm:$0xff]
      %v1196 = vld [vmem:[%s732 + $0x18] sm:$0xff]
      %v1197 = vld [vmem:[%s732 + $0x20] sm:$0xff]
      %v1198 = vld [vmem:[%s732 + $0x28] sm:$0xff]
      %v1199 = vld [vmem:[%s732 + $0x30] sm:$0xff]
      %v1200 = vld [vmem:[%s732 + $0x38] sm:$0xff]
      %v1201 = vld [vmem:[%s732 + $0x40] sm:$0xff]
      %v1202 = vld [vmem:[%s732 + $0x48] sm:$0xff]
      %v1203 = vld [vmem:[%s732 + $0x50] sm:$0xff]
      %v1204 = vld [vmem:[%s732 + $0x58] sm:$0xff]
      %v1205 = vld [vmem:[%s732 + $0x60] sm:$0xff]
      %v1206 = vld [vmem:[%s732 + $0x68] sm:$0xff]
      %v1207 = vld [vmem:[%s732 + $0x70] sm:$0xff]
      %v1208 = vld [vmem:[%s732 + $0x78] sm:$0xff]
      %v1209 = vld [vmem:[%s732 + $0x80] sm:$0xff]
      %v1210 = vld [vmem:[%s732 + $0x88] sm:$0xff]
      %v1211 = vld [vmem:[%s732 + $0x90] sm:$0xff]
      %v1212 = vld [vmem:[%s732 + $0x98] sm:$0xff]
      %v1213 = vld [vmem:[%s732 + $0xa0] sm:$0xff]
      %v1214 = vld [vmem:[%s732 + $0xa8] sm:$0xff]
      %v1215 = vld [vmem:[%s732 + $0xb0] sm:$0xff]
      %v1216 = vld [vmem:[%s732 + $0xb8] sm:$0xff]
      %v1217 = vld [vmem:[%s732 + $0xc0] sm:$0xff]
      %v1218 = vld [vmem:[%s732 + $0xc8] sm:$0xff]
      %v1219 = vld [vmem:[%s732 + $0xd0] sm:$0xff]
      %v1220 = vld [vmem:[%s732 + $0xd8] sm:$0xff]
      %v1221 = vld [vmem:[%s732 + $0xe0] sm:$0xff]
      %v1222 = vld [vmem:[%s732 + $0xe8] sm:$0xff]
      %v1223 = vld [vmem:[%s732 + $0xf0] sm:$0xff]
      %v1224 = vld [vmem:[%s732 + $0xf8] sm:$0xff]
      %v1225 = vld [vmem:[%s732 + $0x100] sm:$0xff]
      %v1226 = vld [vmem:[%s732 + $0x108] sm:$0xff]
      %v1227 = vld [vmem:[%s732 + $0x110] sm:$0xff]
      %v1228 = vld [vmem:[%s732 + $0x118] sm:$0xff]
      %v1229 = vld [vmem:[%s732 + $0x120] sm:$0xff]
      %v1230 = vld [vmem:[%s732 + $0x128] sm:$0xff]
      %v1231 = vld [vmem:[%s732 + $0x130] sm:$0xff]
      %v1232 = vld [vmem:[%s732 + $0x138] sm:$0xff]
      %v1233 = vld [vmem:[%s732 + $0x140] sm:$0xff]
      %v1234 = vld [vmem:[%s732 + $0x148] sm:$0xff]
      %v1235 = vld [vmem:[%s732 + $0x150] sm:$0xff]
      %v1236 = vld [vmem:[%s732 + $0x158] sm:$0xff]
      %v1237 = vld [vmem:[%s732 + $0x160] sm:$0xff]
      %v1238 = vld [vmem:[%s732 + $0x168] sm:$0xff]
      %v1239 = vld [vmem:[%s732 + $0x170] sm:$0xff]
      %v1240 = vld [vmem:[%s732 + $0x178] sm:$0xff]
      %v1241 = vld [vmem:[%s732 + $0x180] sm:$0xff]
      %v1242 = vld [vmem:[%s732 + $0x188] sm:$0xff]
      %v1243 = vld [vmem:[%s732 + $0x190] sm:$0xff]
      %v1244 = vld [vmem:[%s732 + $0x198] sm:$0xff]
      %v1245 = vld [vmem:[%s732 + $0x1a0] sm:$0xff]
      %v1246 = vld [vmem:[%s732 + $0x1a8] sm:$0xff]
      %v1247 = vld [vmem:[%s732 + $0x1b0] sm:$0xff]
      %v1248 = vld [vmem:[%s732 + $0x1b8] sm:$0xff]
      %v1249 = vld [vmem:[%s732 + $0x1c0] sm:$0xff]
      %v1250 = vld [vmem:[%s732 + $0x1c8] sm:$0xff]
      %v1251 = vld [vmem:[%s732 + $0x1d0] sm:$0xff]
      %v1252 = vld [vmem:[%s732 + $0x1d8] sm:$0xff]
      %v1253 = vld [vmem:[%s732 + $0x1e0] sm:$0xff]
      %v1254 = vld [vmem:[%s732 + $0x1e8] sm:$0xff]
      %v1255 = vld [vmem:[%s732 + $0x1f0] sm:$0xff]
      %v1256 = vld [vmem:[%s732 + $0x1f8] sm:$0xff]
      %v1257 = vld [vmem:[%s732 + $0x200] sm:$0xff]
      %v1258 = vld [vmem:[%s732 + $0x208] sm:$0xff]
      %v1259 = vld [vmem:[%s732 + $0x210] sm:$0xff]
      %v1260 = vld [vmem:[%s732 + $0x218] sm:$0xff]
      %v1261 = vld [vmem:[%s732 + $0x220] sm:$0xff]
      %v1262 = vld [vmem:[%s732 + $0x228] sm:$0xff]
      %v1263 = vld [vmem:[%s732 + $0x230] sm:$0xff]
      %v1264 = vld [vmem:[%s732 + $0x238] sm:$0xff]
      %v1265 = vld [vmem:[%s732 + $0x240] sm:$0xff]
      %v1266 = vld [vmem:[%s732 + $0x248] sm:$0xff]
      %v1267 = vld [vmem:[%s732 + $0x250] sm:$0xff]
      %v1268 = vld [vmem:[%s732 + $0x258] sm:$0xff]
      %v1269 = vld [vmem:[%s732 + $0x260] sm:$0xff]
      %v1270 = vld [vmem:[%s732 + $0x268] sm:$0xff]
      %v1271 = vld [vmem:[%s732 + $0x270] sm:$0xff]
      %v1272 = vld [vmem:[%s732 + $0x278] sm:$0xff]
      %v1273 = vld [vmem:[%s2] sm:$0xff]
      %1275 = vset.pattern.permute.xlu0 0
      %1276 = vperm.xlu0 %1275, %v1273
      %v1277 = vpop.permute.xlu0 %1276
      %v1280 = vunpack.c.l.b16 %v1192
      %v1281 = vunpack.c.h.b16 %v1192
      %v1282 = vpack.c.b16 %v1280, %v1280
      %v1283 = vpack.c.b16 %v1281, %v1281
      %v1365 = vunpack.c.l.b16 %v1193
      %v1366 = vunpack.c.h.b16 %v1193
      %v1367 = vunpack.c.l.b16 %v1194
      %v1368 = vunpack.c.h.b16 %v1194
      %v1369 = vunpack.c.l.b16 %v1195
      %v1370 = vunpack.c.h.b16 %v1195
      %v1371 = vunpack.c.l.b16 %v1196
      %v1372 = vunpack.c.h.b16 %v1196
      %v1373 = vunpack.c.l.b16 %v1197
      %v1374 = vunpack.c.h.b16 %v1197
      %v1375 = vunpack.c.l.b16 %v1198
      %v1376 = vunpack.c.h.b16 %v1198
      %v1377 = vunpack.c.l.b16 %v1199
      %v1378 = vunpack.c.h.b16 %v1199
      %v1379 = vunpack.c.l.b16 %v1200
      %v1380 = vunpack.c.h.b16 %v1200
      %v1381 = vunpack.c.l.b16 %v1201
      %v1382 = vunpack.c.h.b16 %v1201
      %v1383 = vunpack.c.l.b16 %v1202
      %v1384 = vunpack.c.h.b16 %v1202
      %v1385 = vunpack.c.l.b16 %v1203
      %v1386 = vunpack.c.h.b16 %v1203
      %v1387 = vunpack.c.l.b16 %v1204
      %v1388 = vunpack.c.h.b16 %v1204
      %v1389 = vunpack.c.l.b16 %v1205
      %v1390 = vunpack.c.h.b16 %v1205
      %v1391 = vunpack.c.l.b16 %v1206
      %v1392 = vunpack.c.h.b16 %v1206
      %v1393 = vunpack.c.l.b16 %v1207
      %v1394 = vunpack.c.h.b16 %v1207
      %v1395 = vunpack.c.l.b16 %v1208
      %v1396 = vunpack.c.h.b16 %v1208
      %v1397 = vunpack.c.l.b16 %v1209
      %v1398 = vunpack.c.h.b16 %v1209
      %v1399 = vunpack.c.l.b16 %v1210
      %v1400 = vunpack.c.h.b16 %v1210
      %v1401 = vunpack.c.l.b16 %v1211
      %v1402 = vunpack.c.h.b16 %v1211
      %v1403 = vunpack.c.l.b16 %v1212
      %v1404 = vunpack.c.h.b16 %v1212
      %v1405 = vunpack.c.l.b16 %v1213
      %v1406 = vunpack.c.h.b16 %v1213
      %v1407 = vunpack.c.l.b16 %v1214
      %v1408 = vunpack.c.h.b16 %v1214
      %v1409 = vunpack.c.l.b16 %v1215
      %v1410 = vunpack.c.h.b16 %v1215
      %v1411 = vunpack.c.l.b16 %v1216
      %v1412 = vunpack.c.h.b16 %v1216
      %v1413 = vunpack.c.l.b16 %v1217
      %v1414 = vunpack.c.h.b16 %v1217
      %v1415 = vunpack.c.l.b16 %v1218
      %v1416 = vunpack.c.h.b16 %v1218
      %v1417 = vunpack.c.l.b16 %v1219
      %v1418 = vunpack.c.h.b16 %v1219
      %v1419 = vunpack.c.l.b16 %v1220
      %v1420 = vunpack.c.h.b16 %v1220
      %v1421 = vunpack.c.l.b16 %v1221
      %v1422 = vunpack.c.h.b16 %v1221
      %v1423 = vunpack.c.l.b16 %v1222
      %v1424 = vunpack.c.h.b16 %v1222
      %v1425 = vunpack.c.l.b16 %v1223
      %v1426 = vunpack.c.h.b16 %v1223
      %v1427 = vunpack.c.l.b16 %v1224
      %v1428 = vunpack.c.h.b16 %v1224
      %v1429 = vunpack.c.l.b16 %v1225
      %v1430 = vunpack.c.h.b16 %v1225
      %v1431 = vunpack.c.l.b16 %v1226
      %v1432 = vunpack.c.h.b16 %v1226
      %v1433 = vunpack.c.l.b16 %v1227
      %v1434 = vunpack.c.h.b16 %v1227
      %v1435 = vunpack.c.l.b16 %v1228
      %v1436 = vunpack.c.h.b16 %v1228
      %v1437 = vunpack.c.l.b16 %v1229
      %v1438 = vunpack.c.h.b16 %v1229
      %v1439 = vunpack.c.l.b16 %v1230
      %v1440 = vunpack.c.h.b16 %v1230
      %v1441 = vunpack.c.l.b16 %v1231
      %v1442 = vunpack.c.h.b16 %v1231
      %v1443 = vunpack.c.l.b16 %v1232
      %v1444 = vunpack.c.h.b16 %v1232
      %v1445 = vunpack.c.l.b16 %v1233
      %v1446 = vunpack.c.h.b16 %v1233
      %v1447 = vunpack.c.l.b16 %v1234
      %v1448 = vunpack.c.h.b16 %v1234
      %v1449 = vunpack.c.l.b16 %v1235
      %v1450 = vunpack.c.h.b16 %v1235
      %v1451 = vunpack.c.l.b16 %v1236
      %v1452 = vunpack.c.h.b16 %v1236
      %v1453 = vunpack.c.l.b16 %v1237
      %v1454 = vunpack.c.h.b16 %v1237
      %v1455 = vunpack.c.l.b16 %v1238
      %v1456 = vunpack.c.h.b16 %v1238
      %v1457 = vunpack.c.l.b16 %v1239
      %v1458 = vunpack.c.h.b16 %v1239
      %v1459 = vunpack.c.l.b16 %v1240
      %v1460 = vunpack.c.h.b16 %v1240
      %v1461 = vunpack.c.l.b16 %v1241
      %v1462 = vunpack.c.h.b16 %v1241
      %v1463 = vunpack.c.l.b16 %v1242
      %v1464 = vunpack.c.h.b16 %v1242
      %v1465 = vunpack.c.l.b16 %v1243
      %v1466 = vunpack.c.h.b16 %v1243
      %v1467 = vunpack.c.l.b16 %v1244
      %v1468 = vunpack.c.h.b16 %v1244
      %v1469 = vunpack.c.l.b16 %v1245
      %v1470 = vunpack.c.h.b16 %v1245
      %v1471 = vunpack.c.l.b16 %v1246
      %v1472 = vunpack.c.h.b16 %v1246
      %v1473 = vunpack.c.l.b16 %v1247
      %v1474 = vunpack.c.h.b16 %v1247
      %v1475 = vunpack.c.l.b16 %v1248
      %v1476 = vunpack.c.h.b16 %v1248
      %v1477 = vunpack.c.l.b16 %v1249
      %v1478 = vunpack.c.h.b16 %v1249
      %v1479 = vunpack.c.l.b16 %v1250
      %v1480 = vunpack.c.h.b16 %v1250
      %v1481 = vunpack.c.l.b16 %v1251
      %v1482 = vunpack.c.h.b16 %v1251
      %v1483 = vunpack.c.l.b16 %v1252
      %v1484 = vunpack.c.h.b16 %v1252
      %v1485 = vunpack.c.l.b16 %v1253
      %v1486 = vunpack.c.h.b16 %v1253
      %v1487 = vunpack.c.l.b16 %v1254
      %v1488 = vunpack.c.h.b16 %v1254
      %v1489 = vunpack.c.l.b16 %v1255
      %v1490 = vunpack.c.h.b16 %v1255
      %v1491 = vunpack.c.l.b16 %v1256
      %v1492 = vunpack.c.h.b16 %v1256
      %v1493 = vunpack.c.l.b16 %v1257
      %v1494 = vunpack.c.h.b16 %v1257
      %v1495 = vunpack.c.l.b16 %v1258
      %v1496 = vunpack.c.h.b16 %v1258
      %v1497 = vunpack.c.l.b16 %v1259
      %v1498 = vunpack.c.h.b16 %v1259
      %v1499 = vunpack.c.l.b16 %v1260
      %v1500 = vunpack.c.h.b16 %v1260
      %v1501 = vunpack.c.l.b16 %v1261
      %v1502 = vunpack.c.h.b16 %v1261
      %v1503 = vunpack.c.l.b16 %v1262
      %v1504 = vunpack.c.h.b16 %v1262
      %v1505 = vunpack.c.l.b16 %v1263
      %v1506 = vunpack.c.h.b16 %v1263
      %v1507 = vunpack.c.l.b16 %v1264
      %v1508 = vunpack.c.h.b16 %v1264
      %v1509 = vunpack.c.l.b16 %v1265
      %v1510 = vunpack.c.h.b16 %v1265
      %v1511 = vunpack.c.l.b16 %v1266
      %v1512 = vunpack.c.h.b16 %v1266
      %v1513 = vunpack.c.l.b16 %v1267
      %v1514 = vunpack.c.h.b16 %v1267
      %v1515 = vunpack.c.l.b16 %v1268
      %v1516 = vunpack.c.h.b16 %v1268
      %v1517 = vunpack.c.l.b16 %v1269
      %v1518 = vunpack.c.h.b16 %v1269
      %v1519 = vunpack.c.l.b16 %v1270
      %v1520 = vunpack.c.h.b16 %v1270
      %v1521 = vunpack.c.l.b16 %v1271
      %v1522 = vunpack.c.h.b16 %v1271
      %v1523 = vunpack.c.l.b16 %v1272
      %v1524 = vunpack.c.h.b16 %v1272
      %v1525 = vpack.c.b16 %v1373, %v1365
      %v1526 = vpack.c.b16 %v1374, %v1366
      %v1527 = vpack.c.b16 %v1375, %v1367
      %v1528 = vpack.c.b16 %v1376, %v1368
      %v1529 = vpack.c.b16 %v1377, %v1369
      %v1530 = vpack.c.b16 %v1378, %v1370
      %v1531 = vpack.c.b16 %v1379, %v1371
      %v1532 = vpack.c.b16 %v1380, %v1372
      %v1533 = vpack.c.b16 %v1389, %v1381
      %v1534 = vpack.c.b16 %v1390, %v1382
      %v1535 = vpack.c.b16 %v1391, %v1383
      %v1536 = vpack.c.b16 %v1392, %v1384
      %v1537 = vpack.c.b16 %v1393, %v1385
      %v1538 = vpack.c.b16 %v1394, %v1386
      %v1539 = vpack.c.b16 %v1395, %v1387
      %v1540 = vpack.c.b16 %v1396, %v1388
      %v1541 = vpack.c.b16 %v1405, %v1397
      %v1542 = vpack.c.b16 %v1406, %v1398
      %v1543 = vpack.c.b16 %v1407, %v1399
      %v1544 = vpack.c.b16 %v1408, %v1400
      %v1545 = vpack.c.b16 %v1409, %v1401
      %v1546 = vpack.c.b16 %v1410, %v1402
      %v1547 = vpack.c.b16 %v1411, %v1403
      %v1548 = vpack.c.b16 %v1412, %v1404
      %v1549 = vpack.c.b16 %v1421, %v1413
      %v1550 = vpack.c.b16 %v1422, %v1414
      %v1551 = vpack.c.b16 %v1423, %v1415
      %v1552 = vpack.c.b16 %v1424, %v1416
      %v1553 = vpack.c.b16 %v1425, %v1417
      %v1554 = vpack.c.b16 %v1426, %v1418
      %v1555 = vpack.c.b16 %v1427, %v1419
      %v1556 = vpack.c.b16 %v1428, %v1420
      %v1557 = vpack.c.b16 %v1437, %v1429
      %v1558 = vpack.c.b16 %v1438, %v1430
      %v1559 = vpack.c.b16 %v1439, %v1431
      %v1560 = vpack.c.b16 %v1440, %v1432
      %v1561 = vpack.c.b16 %v1441, %v1433
      %v1562 = vpack.c.b16 %v1442, %v1434
      %v1563 = vpack.c.b16 %v1443, %v1435
      %v1564 = vpack.c.b16 %v1444, %v1436
      %v1565 = vpack.c.b16 %v1453, %v1445
      %v1566 = vpack.c.b16 %v1454, %v1446
      %v1567 = vpack.c.b16 %v1455, %v1447
      %v1568 = vpack.c.b16 %v1456, %v1448
      %v1569 = vpack.c.b16 %v1457, %v1449
      %v1570 = vpack.c.b16 %v1458, %v1450
      %v1571 = vpack.c.b16 %v1459, %v1451
      %v1572 = vpack.c.b16 %v1460, %v1452
      %v1573 = vpack.c.b16 %v1469, %v1461
      %v1574 = vpack.c.b16 %v1470, %v1462
      %v1575 = vpack.c.b16 %v1471, %v1463
      %v1576 = vpack.c.b16 %v1472, %v1464
      %v1577 = vpack.c.b16 %v1473, %v1465
      %v1578 = vpack.c.b16 %v1474, %v1466
      %v1579 = vpack.c.b16 %v1475, %v1467
      %v1580 = vpack.c.b16 %v1476, %v1468
      %v1581 = vpack.c.b16 %v1485, %v1477
      %v1582 = vpack.c.b16 %v1486, %v1478
      %v1583 = vpack.c.b16 %v1487, %v1479
      %v1584 = vpack.c.b16 %v1488, %v1480
      %v1585 = vpack.c.b16 %v1489, %v1481
      %v1586 = vpack.c.b16 %v1490, %v1482
      %v1587 = vpack.c.b16 %v1491, %v1483
      %v1588 = vpack.c.b16 %v1492, %v1484
      %v1589 = vpack.c.b16 %v1501, %v1493
      %v1590 = vpack.c.b16 %v1502, %v1494
      %v1591 = vpack.c.b16 %v1503, %v1495
      %v1592 = vpack.c.b16 %v1504, %v1496
      %v1593 = vpack.c.b16 %v1505, %v1497
      %v1594 = vpack.c.b16 %v1506, %v1498
      %v1595 = vpack.c.b16 %v1507, %v1499
      %v1596 = vpack.c.b16 %v1508, %v1500
      %v1597 = vpack.c.b16 %v1517, %v1509
      %v1598 = vpack.c.b16 %v1518, %v1510
      %v1599 = vpack.c.b16 %v1519, %v1511
      %v1600 = vpack.c.b16 %v1520, %v1512
      %v1601 = vpack.c.b16 %v1521, %v1513
      %v1602 = vpack.c.b16 %v1522, %v1514
      %v1603 = vpack.c.b16 %v1523, %v1515
      %v1604 = vpack.c.b16 %v1524, %v1516
      %vm1685 = vcmask 261120
      %v1687 = vsel %vm1685, %v1283, 0
      %1689 = vmatprep.subr.bf16.mxu0 %v1526
      %1690 = vmatpush1.bf16.msra.mxu0 %v1525
      %1691 = vmatprep.subr.bf16.mxu0 %v1534
      %1692 = vmatpush1.bf16.msra.mxu0 %v1533
      %1693 = vmatprep.subr.bf16.mxu0 %v1542
      %1694 = vmatpush1.bf16.msra.mxu0 %v1541
      %1695 = vmatprep.subr.bf16.mxu0 %v1550
      %1696 = vmatpush1.bf16.msra.mxu0 %v1549
      %1697 = vmatprep.subr.bf16.mxu0 %v1558
      %1698 = vmatpush1.bf16.msra.mxu0 %v1557
      %1699 = vmatprep.subr.bf16.mxu0 %v1566
      %1700 = vmatpush1.bf16.msra.mxu0 %v1565
      %1701 = vmatprep.subr.bf16.mxu0 %v1574
      %1702 = vmatpush1.bf16.msra.mxu0 %v1573
      %1703 = vmatprep.subr.bf16.mxu0 %v1582
      %1704 = vmatpush1.bf16.msra.mxu0 %v1581
      %1705 = vmatprep.subr.bf16.mxu0 %v1590
      %1706 = vmatpush1.bf16.msra.mxu0 %v1589
      %1707 = vmatprep.subr.bf16.mxu0 %v1598
      %1708 = vmatpush1.bf16.msra.mxu0 %v1597
      %1709 = vmatprep.subr.bf16.mxu0 0
      %1710 = vmatpush1.bf16.msra.mxu0 0
      %1711 = vmatprep.subr.bf16.mxu0 0
      %1712 = vmatpush1.bf16.msra.mxu0 0
      %1713 = vmatprep.subr.bf16.mxu0 0
      %1714 = vmatpush1.bf16.msra.mxu0 0
      %1715 = vmatprep.subr.bf16.mxu0 0
      %1716 = vmatpush1.bf16.msra.mxu0 0
      %1717 = vmatprep.subr.bf16.mxu0 0
      %1718 = vmatpush1.bf16.msra.mxu0 0
      %1719 = vmatprep.subr.bf16.mxu0 0
      %1720 = vmatpush1.bf16.msra.mxu0 0
      %1721 = vmatprep.mubr.bf16.mxu0 %v1687
      %1722 = vmatmul.mubr.bf16.gmra.mrb[0].mxu0 %v1282
      %v1723 = vpop.f32.mrb[0].mxu0
      %v1724 = vadd.f32 %v1277, %v1723
      %v1725 = vpop.f32.mrb[0].mxu0
      %v1726 = vadd.f32 %v1277, %v1725
      %v1727 = vpop.f32.mrb[0].mxu0
      %v1728 = vpop.f32.mrb[0].mxu0
      %1729 = vdwg.mxu0
      %1730 = vmatprep.subr.bf16.mxu0 %v1528
      %1731 = vmatpush1.bf16.msra.mxu0 %v1527
      %1732 = vmatprep.subr.bf16.mxu0 %v1536
      %1733 = vmatpush1.bf16.msra.mxu0 %v1535
      %1734 = vmatprep.subr.bf16.mxu0 %v1544
      %1735 = vmatpush1.bf16.msra.mxu0 %v1543
      %1736 = vmatprep.subr.bf16.mxu0 %v1552
      %1737 = vmatpush1.bf16.msra.mxu0 %v1551
      %1738 = vmatprep.subr.bf16.mxu0 %v1560
      %1739 = vmatpush1.bf16.msra.mxu0 %v1559
      %1740 = vmatprep.subr.bf16.mxu0 %v1568
      %1741 = vmatpush1.bf16.msra.mxu0 %v1567
      %1742 = vmatprep.subr.bf16.mxu0 %v1576
      %1743 = vmatpush1.bf16.msra.mxu0 %v1575
      %1744 = vmatprep.subr.bf16.mxu0 %v1584
      %1745 = vmatpush1.bf16.msra.mxu0 %v1583
      %1746 = vmatprep.subr.bf16.mxu0 %v1592
      %1747 = vmatpush1.bf16.msra.mxu0 %v1591
      %1748 = vmatprep.subr.bf16.mxu0 %v1600
      %1749 = vmatpush1.bf16.msra.mxu0 %v1599
      %1750 = vmatprep.subr.bf16.mxu0 0
      %1751 = vmatpush1.bf16.msra.mxu0 0
      %1752 = vmatprep.subr.bf16.mxu0 0
      %1753 = vmatpush1.bf16.msra.mxu0 0
      %1754 = vmatprep.subr.bf16.mxu0 0
      %1755 = vmatpush1.bf16.msra.mxu0 0
      %1756 = vmatprep.subr.bf16.mxu0 0
      %1757 = vmatpush1.bf16.msra.mxu0 0
      %1758 = vmatprep.subr.bf16.mxu0 0
      %1759 = vmatpush1.bf16.msra.mxu0 0
      %1760 = vmatprep.subr.bf16.mxu0 0
      %1761 = vmatpush1.bf16.msra.mxu0 0
      %1762 = vmatprep.mubr.bf16.mxu0 %v1687
      %1763 = vmatmul.mubr.bf16.gmra.mrb[0].mxu0 %v1282
      %v1764 = vpop.f32.mrb[0].mxu0
      %v1765 = vadd.f32 %v1277, %v1764
      %v1766 = vpop.f32.mrb[0].mxu0
      %v1767 = vadd.f32 %v1277, %v1766
      %v1768 = vpop.f32.mrb[0].mxu0
      %v1769 = vpop.f32.mrb[0].mxu0
      %1770 = vdwg.mxu0
      %1771 = vmatprep.subr.bf16.mxu0 %v1530
      %1772 = vmatpush1.bf16.msra.mxu0 %v1529
      %1773 = vmatprep.subr.bf16.mxu0 %v1538
      %1774 = vmatpush1.bf16.msra.mxu0 %v1537
      %1775 = vmatprep.subr.bf16.mxu0 %v1546
      %1776 = vmatpush1.bf16.msra.mxu0 %v1545
      %1777 = vmatprep.subr.bf16.mxu0 %v1554
      %1778 = vmatpush1.bf16.msra.mxu0 %v1553
      %1779 = vmatprep.subr.bf16.mxu0 %v1562
      %1780 = vmatpush1.bf16.msra.mxu0 %v1561
      %1781 = vmatprep.subr.bf16.mxu0 %v1570
      %1782 = vmatpush1.bf16.msra.mxu0 %v1569
      %1783 = vmatprep.subr.bf16.mxu0 %v1578
      %1784 = vmatpush1.bf16.msra.mxu0 %v1577
      %1785 = vmatprep.subr.bf16.mxu0 %v1586
      %1786 = vmatpush1.bf16.msra.mxu0 %v1585
      %1787 = vmatprep.subr.bf16.mxu0 %v1594
      %1788 = vmatpush1.bf16.msra.mxu0 %v1593
      %1789 = vmatprep.subr.bf16.mxu0 %v1602
      %1790 = vmatpush1.bf16.msra.mxu0 %v1601
      %1791 = vmatprep.subr.bf16.mxu0 0
      %1792 = vmatpush1.bf16.msra.mxu0 0
      %1793 = vmatprep.subr.bf16.mxu0 0
      %1794 = vmatpush1.bf16.msra.mxu0 0
      %1795 = vmatprep.subr.bf16.mxu0 0
      %1796 = vmatpush1.bf16.msra.mxu0 0
      %1797 = vmatprep.subr.bf16.mxu0 0
      %1798 = vmatpush1.bf16.msra.mxu0 0
      %1799 = vmatprep.subr.bf16.mxu0 0
      %1800 = vmatpush1.bf16.msra.mxu0 0
      %1801 = vmatprep.subr.bf16.mxu0 0
      %1802 = vmatpush1.bf16.msra.mxu0 0
      %1803 = vmatprep.mubr.bf16.mxu0 %v1687
      %1804 = vmatmul.mubr.bf16.gmra.mrb[0].mxu0 %v1282
      %v1805 = vpop.f32.mrb[0].mxu0
      %v1806 = vadd.f32 %v1277, %v1805
      %v1807 = vpop.f32.mrb[0].mxu0
      %v1808 = vadd.f32 %v1277, %v1807
      %v1809 = vpop.f32.mrb[0].mxu0
      %v1810 = vpop.f32.mrb[0].mxu0
      %1811 = vdwg.mxu0
      %1812 = vmatprep.subr.bf16.mxu0 %v1532
      %1813 = vmatpush1.bf16.msra.mxu0 %v1531
      %1814 = vmatprep.subr.bf16.mxu0 %v1540
      %1815 = vmatpush1.bf16.msra.mxu0 %v1539
      %1816 = vmatprep.subr.bf16.mxu0 %v1548
      %1817 = vmatpush1.bf16.msra.mxu0 %v1547
      %1818 = vmatprep.subr.bf16.mxu0 %v1556
      %1819 = vmatpush1.bf16.msra.mxu0 %v1555
      %1820 = vmatprep.subr.bf16.mxu0 %v1564
      %1821 = vmatpush1.bf16.msra.mxu0 %v1563
      %1822 = vmatprep.subr.bf16.mxu0 %v1572
      %1823 = vmatpush1.bf16.msra.mxu0 %v1571
      %1824 = vmatprep.subr.bf16.mxu0 %v1580
      %1825 = vmatpush1.bf16.msra.mxu0 %v1579
      %1826 = vmatprep.subr.bf16.mxu0 %v1588
      %1827 = vmatpush1.bf16.msra.mxu0 %v1587
      %1828 = vmatprep.subr.bf16.mxu0 %v1596
      %1829 = vmatpush1.bf16.msra.mxu0 %v1595
      %1830 = vmatprep.subr.bf16.mxu0 %v1604
      %1831 = vmatpush1.bf16.msra.mxu0 %v1603
      %1832 = vmatprep.subr.bf16.mxu0 0
      %1833 = vmatpush1.bf16.msra.mxu0 0
      %1834 = vmatprep.subr.bf16.mxu0 0
      %1835 = vmatpush1.bf16.msra.mxu0 0
      %1836 = vmatprep.subr.bf16.mxu0 0
      %1837 = vmatpush1.bf16.msra.mxu0 0
      %1838 = vmatprep.subr.bf16.mxu0 0
      %1839 = vmatpush1.bf16.msra.mxu0 0
      %1840 = vmatprep.subr.bf16.mxu0 0
      %1841 = vmatpush1.bf16.msra.mxu0 0
      %1842 = vmatprep.subr.bf16.mxu0 0
      %1843 = vmatpush1.bf16.msra.mxu0 0
      %1844 = vmatprep.mubr.bf16.mxu0 %v1687
      %1845 = vmatmul.mubr.bf16.gmra.mrb[0].mxu0 %v1282
      %v1846 = vpop.f32.mrb[0].mxu0
      %v1847 = vadd.f32 %v1277, %v1846
      %v1848 = vpop.f32.mrb[0].mxu0
      %v1849 = vadd.f32 %v1277, %v1848
      %v1850 = vpop.f32.mrb[0].mxu0
      %v1851 = vpop.f32.mrb[0].mxu0
      %1852 = vdwg.mxu0
      %v1853 = vmax.f32 %v1724, 0.0
      %v1854 = vmax.f32 %v1726, 0.0
      %v1855 = vmax.f32 %v1765, 0.0
      %v1856 = vmax.f32 %v1767, 0.0
      %v1857 = vmax.f32 %v1806, 0.0
      %v1858 = vmax.f32 %v1808, 0.0
      %v1859 = vmax.f32 %v1847, 0.0
      %v1860 = vmax.f32 %v1849, 0.0
      %1861 = vrot.lane.b32.xlu0 %v1853, 33
      %v1862 = vpop.permute.xlu0 %1861
      %1863 = vrot.lane.b32.xlu0 %v1854, 33
      %v1864 = vpop.permute.xlu0 %1863
      %1865 = vrot.lane.b32.xlu0 %v1855, 33
      %v1866 = vpop.permute.xlu0 %1865
      %1867 = vrot.lane.b32.xlu0 %v1856, 33
      %v1868 = vpop.permute.xlu0 %1867
      %1869 = vrot.lane.b32.xlu0 %v1857, 33
      %v1870 = vpop.permute.xlu0 %1869
      %1871 = vrot.lane.b32.xlu0 %v1858, 33
      %v1872 = vpop.permute.xlu0 %1871
      %1873 = vrot.lane.b32.xlu0 %v1859, 33
      %v1874 = vpop.permute.xlu0 %1873
      %1875 = vrot.lane.b32.xlu0 %v1860, 33
      %v1876 = vpop.permute.xlu0 %1875
      %vm1877 = vcmp.lt.s32.totalorder %v740, 33
      %v1878 = vsel %vm1877, %v1874, %v1876
      %v1879 = vsel %vm1877, %v1872, %v1874
      %v1880 = vsel %vm1877, %v1870, %v1872
      %v1881 = vsel %vm1877, %v1868, %v1870
      %v1882 = vsel %vm1877, %v1866, %v1868
      %v1883 = vsel %vm1877, %v1864, %v1866
      %v1884 = vsel %vm1877, %v1862, %v1864
      %v1885 = vsel %vm1877, %v1876, %v1862
      %v1886 = vsel %vm828, 1, 0
      %v1887 = vsel %vm829, 1, 0
      %v1888 = vsel %vm830, 1, 0
      %v1889 = vsel %vm831, 1, 0
      %v1890 = vsel %vm832, 1, 0
      %v1891 = vsel %vm833, 1, 0
      %v1892 = vsel %vm834, 1, 0
      %v1893 = vsel %vm835, 1, 0
      %vm1894 = vcmp.eq.s32.totalorder %v1886, 1
      %vm1895 = vcmp.eq.s32.totalorder %v1887, 1
      %vm1896 = vcmp.eq.s32.totalorder %v1888, 1
      %vm1897 = vcmp.eq.s32.totalorder %v1889, 1
      %vm1898 = vcmp.eq.s32.totalorder %v1890, 1
      %vm1899 = vcmp.eq.s32.totalorder %v1891, 1
      %vm1900 = vcmp.eq.s32.totalorder %v1892, 1
      %vm1901 = vcmp.eq.s32.totalorder %v1893, 1
      %v1902 = vsel %vm1894, %v1885, -1e+30
      %v1903 = vsel %vm1895, %v1884, -1e+30
      %v1904 = vsel %vm1896, %v1883, -1e+30
      %v1905 = vsel %vm1897, %v1882, -1e+30
      %v1906 = vsel %vm1898, %v1881, -1e+30
      %v1907 = vsel %vm1899, %v1880, -1e+30
      %v1908 = vsel %vm1900, %v1879, -1e+30
      %v1909 = vsel %vm1901, %v1878, -1e+30
      %1910 = vrot.lane.b32.xlu0 %v1853, 32
      %v1911 = vpop.permute.xlu0 %1910
      %1912 = vrot.lane.b32.xlu0 %v1854, 32
      %v1913 = vpop.permute.xlu0 %1912
      %1914 = vrot.lane.b32.xlu0 %v1855, 32
      %v1915 = vpop.permute.xlu0 %1914
      %1916 = vrot.lane.b32.xlu0 %v1856, 32
      %v1917 = vpop.permute.xlu0 %1916
      %1918 = vrot.lane.b32.xlu0 %v1857, 32
      %v1919 = vpop.permute.xlu0 %1918
      %1920 = vrot.lane.b32.xlu0 %v1858, 32
      %v1921 = vpop.permute.xlu0 %1920
      %1922 = vrot.lane.b32.xlu0 %v1859, 32
      %v1923 = vpop.permute.xlu0 %1922
      %1924 = vrot.lane.b32.xlu0 %v1860, 32
      %v1925 = vpop.permute.xlu0 %1924
      %vm1926 = vcmp.lt.s32.totalorder %v740, 32
      %v1927 = vsel %vm1926, %v1923, %v1925
      %v1928 = vsel %vm1926, %v1921, %v1923
      %v1929 = vsel %vm1926, %v1919, %v1921
      %v1930 = vsel %vm1926, %v1917, %v1919
      %v1931 = vsel %vm1926, %v1915, %v1917
      %v1932 = vsel %vm1926, %v1913, %v1915
      %v1933 = vsel %vm1926, %v1911, %v1913
      %v1934 = vsel %vm1926, %v1925, %v1911
      %v1935 = vsel %vm860, 1, 0
      %v1936 = vsel %vm861, 1, 0
      %v1937 = vsel %vm862, 1, 0
      %v1938 = vsel %vm863, 1, 0
      %v1939 = vsel %vm864, 1, 0
      %v1940 = vsel %vm865, 1, 0
      %v1941 = vsel %vm866, 1, 0
      %v1942 = vsel %vm867, 1, 0
      %vm1943 = vcmp.eq.s32.totalorder %v1935, 1
      %vm1944 = vcmp.eq.s32.totalorder %v1936, 1
      %vm1945 = vcmp.eq.s32.totalorder %v1937, 1
      %vm1946 = vcmp.eq.s32.totalorder %v1938, 1
      %vm1947 = vcmp.eq.s32.totalorder %v1939, 1
      %vm1948 = vcmp.eq.s32.totalorder %v1940, 1
      %vm1949 = vcmp.eq.s32.totalorder %v1941, 1
      %vm1950 = vcmp.eq.s32.totalorder %v1942, 1
      %v1951 = vsel %vm1943, %v1934, -1e+30
      %v1952 = vsel %vm1944, %v1933, -1e+30
      %v1953 = vsel %vm1945, %v1932, -1e+30
      %v1954 = vsel %vm1946, %v1931, -1e+30
      %v1955 = vsel %vm1947, %v1930, -1e+30
      %v1956 = vsel %vm1948, %v1929, -1e+30
      %v1957 = vsel %vm1949, %v1928, -1e+30
      %v1958 = vsel %vm1950, %v1927, -1e+30
      %1959 = vrot.lane.b32.xlu0 %v1853, 31
      %v1960 = vpop.permute.xlu0 %1959
      %1961 = vrot.lane.b32.xlu0 %v1854, 31
      %v1962 = vpop.permute.xlu0 %1961
      %1963 = vrot.lane.b32.xlu0 %v1855, 31
      %v1964 = vpop.permute.xlu0 %1963
      %1965 = vrot.lane.b32.xlu0 %v1856, 31
      %v1966 = vpop.permute.xlu0 %1965
      %1967 = vrot.lane.b32.xlu0 %v1857, 31
      %v1968 = vpop.permute.xlu0 %1967
      %1969 = vrot.lane.b32.xlu0 %v1858, 31
      %v1970 = vpop.permute.xlu0 %1969
      %1971 = vrot.lane.b32.xlu0 %v1859, 31
      %v1972 = vpop.permute.xlu0 %1971
      %1973 = vrot.lane.b32.xlu0 %v1860, 31
      %v1974 = vpop.permute.xlu0 %1973
      %vm1975 = vcmp.lt.s32.totalorder %v740, 31
      %v1976 = vsel %vm1975, %v1972, %v1974
      %v1977 = vsel %vm1975, %v1970, %v1972
      %v1978 = vsel %vm1975, %v1968, %v1970
      %v1979 = vsel %vm1975, %v1966, %v1968
      %v1980 = vsel %vm1975, %v1964, %v1966
      %v1981 = vsel %vm1975, %v1962, %v1964
      %v1982 = vsel %vm1975, %v1960, %v1962
      %v1983 = vsel %vm1975, %v1974, %v1960
      %v1984 = vsel %vm900, 1, 0
      %v1985 = vsel %vm901, 1, 0
      %v1986 = vsel %vm902, 1, 0
      %v1987 = vsel %vm903, 1, 0
      %v1988 = vsel %vm904, 1, 0
      %v1989 = vsel %vm905, 1, 0
      %v1990 = vsel %vm906, 1, 0
      %v1991 = vsel %vm907, 1, 0
      %vm1992 = vcmp.eq.s32.totalorder %v1984, 1
      %vm1993 = vcmp.eq.s32.totalorder %v1985, 1
      %vm1994 = vcmp.eq.s32.totalorder %v1986, 1
      %vm1995 = vcmp.eq.s32.totalorder %v1987, 1
      %vm1996 = vcmp.eq.s32.totalorder %v1988, 1
      %vm1997 = vcmp.eq.s32.totalorder %v1989, 1
      %vm1998 = vcmp.eq.s32.totalorder %v1990, 1
      %vm1999 = vcmp.eq.s32.totalorder %v1991, 1
      %v2000 = vsel %vm1992, %v1983, -1e+30
      %v2001 = vsel %vm1993, %v1982, -1e+30
      %v2002 = vsel %vm1994, %v1981, -1e+30
      %v2003 = vsel %vm1995, %v1980, -1e+30
      %v2004 = vsel %vm1996, %v1979, -1e+30
      %v2005 = vsel %vm1997, %v1978, -1e+30
      %v2006 = vsel %vm1998, %v1977, -1e+30
      %v2007 = vsel %vm1999, %v1976, -1e+30
      %2008 = vrot.lane.b32.xlu0 %v1853, 1
      %v2009 = vpop.permute.xlu0 %2008
      %2010 = vrot.lane.b32.xlu0 %v1854, 1
      %v2011 = vpop.permute.xlu0 %2010
      %2012 = vrot.lane.b32.xlu0 %v1855, 1
      %v2013 = vpop.permute.xlu0 %2012
      %2014 = vrot.lane.b32.xlu0 %v1856, 1
      %v2015 = vpop.permute.xlu0 %2014
      %2016 = vrot.lane.b32.xlu0 %v1857, 1
      %v2017 = vpop.permute.xlu0 %2016
      %2018 = vrot.lane.b32.xlu0 %v1858, 1
      %v2019 = vpop.permute.xlu0 %2018
      %2020 = vrot.lane.b32.xlu0 %v1859, 1
      %v2021 = vpop.permute.xlu0 %2020
      %2022 = vrot.lane.b32.xlu0 %v1860, 1
      %v2023 = vpop.permute.xlu0 %2022
      %vm2024 = vcmp.lt.s32.totalorder %v740, 1
      %v2025 = vsel %vm2024, %v2021, %v2023
      %v2026 = vsel %vm2024, %v2019, %v2021
      %v2027 = vsel %vm2024, %v2017, %v2019
      %v2028 = vsel %vm2024, %v2015, %v2017
      %v2029 = vsel %vm2024, %v2013, %v2015
      %v2030 = vsel %vm2024, %v2011, %v2013
      %v2031 = vsel %vm2024, %v2009, %v2011
      %v2032 = vsel %vm2024, %v2023, %v2009
      %v2033 = vsel %vm940, 1, 0
      %v2034 = vsel %vm941, 1, 0
      %v2035 = vsel %vm942, 1, 0
      %v2036 = vsel %vm943, 1, 0
      %v2037 = vsel %vm944, 1, 0
      %v2038 = vsel %vm945, 1, 0
      %v2039 = vsel %vm946, 1, 0
      %v2040 = vsel %vm947, 1, 0
      %vm2041 = vcmp.eq.s32.totalorder %v2033, 1
      %vm2042 = vcmp.eq.s32.totalorder %v2034, 1
      %vm2043 = vcmp.eq.s32.totalorder %v2035, 1
      %vm2044 = vcmp.eq.s32.totalorder %v2036, 1
      %vm2045 = vcmp.eq.s32.totalorder %v2037, 1
      %vm2046 = vcmp.eq.s32.totalorder %v2038, 1
      %vm2047 = vcmp.eq.s32.totalorder %v2039, 1
      %vm2048 = vcmp.eq.s32.totalorder %v2040, 1
      %v2049 = vsel %vm2041, %v2032, -1e+30
      %v2050 = vsel %vm2042, %v2031, -1e+30
      %v2051 = vsel %vm2043, %v2030, -1e+30
      %v2052 = vsel %vm2044, %v2029, -1e+30
      %v2053 = vsel %vm2045, %v2028, -1e+30
      %v2054 = vsel %vm2046, %v2027, -1e+30
      %v2055 = vsel %vm2047, %v2026, -1e+30
      %v2056 = vsel %vm2048, %v2025, -1e+30
      %2057 = vrot.lane.b32.xlu0 %v1853, 127
      %v2058 = vpop.permute.xlu0 %2057
      %2059 = vrot.lane.b32.xlu0 %v1854, 127
      %v2060 = vpop.permute.xlu0 %2059
      %2061 = vrot.lane.b32.xlu0 %v1855, 127
      %v2062 = vpop.permute.xlu0 %2061
      %2063 = vrot.lane.b32.xlu0 %v1856, 127
      %v2064 = vpop.permute.xlu0 %2063
      %2065 = vrot.lane.b32.xlu0 %v1857, 127
      %v2066 = vpop.permute.xlu0 %2065
      %2067 = vrot.lane.b32.xlu0 %v1858, 127
      %v2068 = vpop.permute.xlu0 %2067
      %2069 = vrot.lane.b32.xlu0 %v1859, 127
      %v2070 = vpop.permute.xlu0 %2069
      %2071 = vrot.lane.b32.xlu0 %v1860, 127
      %v2072 = vpop.permute.xlu0 %2071
      %vm2073 = vcmp.lt.s32.totalorder %v740, 127
      %v2074 = vsel %vm2073, %v2070, %v2072
      %v2075 = vsel %vm2073, %v2068, %v2070
      %v2076 = vsel %vm2073, %v2066, %v2068
      %v2077 = vsel %vm2073, %v2064, %v2066
      %v2078 = vsel %vm2073, %v2062, %v2064
      %v2079 = vsel %vm2073, %v2060, %v2062
      %v2080 = vsel %vm2073, %v2058, %v2060
      %v2081 = vsel %vm2073, %v2072, %v2058
      %v2082 = vsel %vm956, 1, 0
      %v2083 = vsel %vm957, 1, 0
      %v2084 = vsel %vm958, 1, 0
      %v2085 = vsel %vm959, 1, 0
      %v2086 = vsel %vm960, 1, 0
      %v2087 = vsel %vm961, 1, 0
      %v2088 = vsel %vm962, 1, 0
      %v2089 = vsel %vm963, 1, 0
      %vm2090 = vcmp.eq.s32.totalorder %v2082, 1
      %vm2091 = vcmp.eq.s32.totalorder %v2083, 1
      %vm2092 = vcmp.eq.s32.totalorder %v2084, 1
      %vm2093 = vcmp.eq.s32.totalorder %v2085, 1
      %vm2094 = vcmp.eq.s32.totalorder %v2086, 1
      %vm2095 = vcmp.eq.s32.totalorder %v2087, 1
      %vm2096 = vcmp.eq.s32.totalorder %v2088, 1
      %vm2097 = vcmp.eq.s32.totalorder %v2089, 1
      %v2098 = vsel %vm2090, %v2080, -1e+30
      %v2099 = vsel %vm2091, %v2079, -1e+30
      %v2100 = vsel %vm2092, %v2078, -1e+30
      %v2101 = vsel %vm2093, %v2077, -1e+30
      %v2102 = vsel %vm2094, %v2076, -1e+30
      %v2103 = vsel %vm2095, %v2075, -1e+30
      %v2104 = vsel %vm2096, %v2074, -1e+30
      %v2105 = vsel %vm2097, %v2081, -1e+30
      %2106 = vrot.lane.b32.xlu0 %v1853, 97
      %v2107 = vpop.permute.xlu0 %2106
      %2108 = vrot.lane.b32.xlu0 %v1854, 97
      %v2109 = vpop.permute.xlu0 %2108
      %2110 = vrot.lane.b32.xlu0 %v1855, 97
      %v2111 = vpop.permute.xlu0 %2110
      %2112 = vrot.lane.b32.xlu0 %v1856, 97
      %v2113 = vpop.permute.xlu0 %2112
      %2114 = vrot.lane.b32.xlu0 %v1857, 97
      %v2115 = vpop.permute.xlu0 %2114
      %2116 = vrot.lane.b32.xlu0 %v1858, 97
      %v2117 = vpop.permute.xlu0 %2116
      %2118 = vrot.lane.b32.xlu0 %v1859, 97
      %v2119 = vpop.permute.xlu0 %2118
      %2120 = vrot.lane.b32.xlu0 %v1860, 97
      %v2121 = vpop.permute.xlu0 %2120
      %vm2122 = vcmp.lt.s32.totalorder %v740, 97
      %v2123 = vsel %vm2122, %v2119, %v2121
      %v2124 = vsel %vm2122, %v2117, %v2119
      %v2125 = vsel %vm2122, %v2115, %v2117
      %v2126 = vsel %vm2122, %v2113, %v2115
      %v2127 = vsel %vm2122, %v2111, %v2113
      %v2128 = vsel %vm2122, %v2109, %v2111
      %v2129 = vsel %vm2122, %v2107, %v2109
      %v2130 = vsel %vm2122, %v2121, %v2107
      %v2131 = vsel %vm1004, 1, 0
      %v2132 = vsel %vm1005, 1, 0
      %v2133 = vsel %vm1006, 1, 0
      %v2134 = vsel %vm1007, 1, 0
      %v2135 = vsel %vm1008, 1, 0
      %v2136 = vsel %vm1009, 1, 0
      %v2137 = vsel %vm1010, 1, 0
      %v2138 = vsel %vm1011, 1, 0
      %vm2139 = vcmp.eq.s32.totalorder %v2131, 1
      %vm2140 = vcmp.eq.s32.totalorder %v2132, 1
      %vm2141 = vcmp.eq.s32.totalorder %v2133, 1
      %vm2142 = vcmp.eq.s32.totalorder %v2134, 1
      %vm2143 = vcmp.eq.s32.totalorder %v2135, 1
      %vm2144 = vcmp.eq.s32.totalorder %v2136, 1
      %vm2145 = vcmp.eq.s32.totalorder %v2137, 1
      %vm2146 = vcmp.eq.s32.totalorder %v2138, 1
      %v2147 = vsel %vm2139, %v2129, -1e+30
      %v2148 = vsel %vm2140, %v2128, -1e+30
      %v2149 = vsel %vm2141, %v2127, -1e+30
      %v2150 = vsel %vm2142, %v2126, -1e+30
      %v2151 = vsel %vm2143, %v2125, -1e+30
      %v2152 = vsel %vm2144, %v2124, -1e+30
      %v2153 = vsel %vm2145, %v2123, -1e+30
      %v2154 = vsel %vm2146, %v2130, -1e+30
      %2155 = vrot.lane.b32.xlu0 %v1853, 96
      %v2156 = vpop.permute.xlu0 %2155
      %2157 = vrot.lane.b32.xlu0 %v1854, 96
      %v2158 = vpop.permute.xlu0 %2157
      %2159 = vrot.lane.b32.xlu0 %v1855, 96
      %v2160 = vpop.permute.xlu0 %2159
      %2161 = vrot.lane.b32.xlu0 %v1856, 96
      %v2162 = vpop.permute.xlu0 %2161
      %2163 = vrot.lane.b32.xlu0 %v1857, 96
      %v2164 = vpop.permute.xlu0 %2163
      %2165 = vrot.lane.b32.xlu0 %v1858, 96
      %v2166 = vpop.permute.xlu0 %2165
      %2167 = vrot.lane.b32.xlu0 %v1859, 96
      %v2168 = vpop.permute.xlu0 %2167
      %2169 = vrot.lane.b32.xlu0 %v1860, 96
      %v2170 = vpop.permute.xlu0 %2169
      %vm2171 = vcmp.lt.s32.totalorder %v740, 96
      %v2172 = vsel %vm2171, %v2168, %v2170
      %v2173 = vsel %vm2171, %v2166, %v2168
      %v2174 = vsel %vm2171, %v2164, %v2166
      %v2175 = vsel %vm2171, %v2162, %v2164
      %v2176 = vsel %vm2171, %v2160, %v2162
      %v2177 = vsel %vm2171, %v2158, %v2160
      %v2178 = vsel %vm2171, %v2156, %v2158
      %v2179 = vsel %vm2171, %v2170, %v2156
      %v2180 = vsel %vm1020, 1, 0
      %v2181 = vsel %vm1021, 1, 0
      %v2182 = vsel %vm1022, 1, 0
      %v2183 = vsel %vm1023, 1, 0
      %v2184 = vsel %vm1024, 1, 0
      %v2185 = vsel %vm1025, 1, 0
      %v2186 = vsel %vm1026, 1, 0
      %v2187 = vsel %vm1027, 1, 0
      %vm2188 = vcmp.eq.s32.totalorder %v2180, 1
      %vm2189 = vcmp.eq.s32.totalorder %v2181, 1
      %vm2190 = vcmp.eq.s32.totalorder %v2182, 1
      %vm2191 = vcmp.eq.s32.totalorder %v2183, 1
      %vm2192 = vcmp.eq.s32.totalorder %v2184, 1
      %vm2193 = vcmp.eq.s32.totalorder %v2185, 1
      %vm2194 = vcmp.eq.s32.totalorder %v2186, 1
      %vm2195 = vcmp.eq.s32.totalorder %v2187, 1
      %v2196 = vsel %vm2188, %v2178, -1e+30
      %v2197 = vsel %vm2189, %v2177, -1e+30
      %v2198 = vsel %vm2190, %v2176, -1e+30
      %v2199 = vsel %vm2191, %v2175, -1e+30
      %v2200 = vsel %vm2192, %v2174, -1e+30
      %v2201 = vsel %vm2193, %v2173, -1e+30
      %v2202 = vsel %vm2194, %v2172, -1e+30
      %v2203 = vsel %vm2195, %v2179, -1e+30
      %2204 = vrot.lane.b32.xlu0 %v1853, 95
      %v2205 = vpop.permute.xlu0 %2204
      %2206 = vrot.lane.b32.xlu0 %v1854, 95
      %v2207 = vpop.permute.xlu0 %2206
      %2208 = vrot.lane.b32.xlu0 %v1855, 95
      %v2209 = vpop.permute.xlu0 %2208
      %2210 = vrot.lane.b32.xlu0 %v1856, 95
      %v2211 = vpop.permute.xlu0 %2210
      %2212 = vrot.lane.b32.xlu0 %v1857, 95
      %v2213 = vpop.permute.xlu0 %2212
      %2214 = vrot.lane.b32.xlu0 %v1858, 95
      %v2215 = vpop.permute.xlu0 %2214
      %2216 = vrot.lane.b32.xlu0 %v1859, 95
      %v2217 = vpop.permute.xlu0 %2216
      %2218 = vrot.lane.b32.xlu0 %v1860, 95
      %v2219 = vpop.permute.xlu0 %2218
      %vm2220 = vcmp.lt.s32.totalorder %v740, 95
      %v2221 = vsel %vm2220, %v2217, %v2219
      %v2222 = vsel %vm2220, %v2215, %v2217
      %v2223 = vsel %vm2220, %v2213, %v2215
      %v2224 = vsel %vm2220, %v2211, %v2213
      %v2225 = vsel %vm2220, %v2209, %v2211
      %v2226 = vsel %vm2220, %v2207, %v2209
      %v2227 = vsel %vm2220, %v2205, %v2207
      %v2228 = vsel %vm2220, %v2219, %v2205
      %v2229 = vsel %vm1036, 1, 0
      %v2230 = vsel %vm1037, 1, 0
      %v2231 = vsel %vm1038, 1, 0
      %v2232 = vsel %vm1039, 1, 0
      %v2233 = vsel %vm1040, 1, 0
      %v2234 = vsel %vm1041, 1, 0
      %v2235 = vsel %vm1042, 1, 0
      %v2236 = vsel %vm1043, 1, 0
      %vm2237 = vcmp.eq.s32.totalorder %v2229, 1
      %vm2238 = vcmp.eq.s32.totalorder %v2230, 1
      %vm2239 = vcmp.eq.s32.totalorder %v2231, 1
      %vm2240 = vcmp.eq.s32.totalorder %v2232, 1
      %vm2241 = vcmp.eq.s32.totalorder %v2233, 1
      %vm2242 = vcmp.eq.s32.totalorder %v2234, 1
      %vm2243 = vcmp.eq.s32.totalorder %v2235, 1
      %vm2244 = vcmp.eq.s32.totalorder %v2236, 1
      %v2245 = vsel %vm2237, %v2227, -1e+30
      %v2246 = vsel %vm2238, %v2226, -1e+30
      %v2247 = vsel %vm2239, %v2225, -1e+30
      %v2248 = vsel %vm2240, %v2224, -1e+30
      %v2249 = vsel %vm2241, %v2223, -1e+30
      %v2250 = vsel %vm2242, %v2222, -1e+30
      %v2251 = vsel %vm2243, %v2221, -1e+30
      %v2252 = vsel %vm2244, %v2228, -1e+30
      %v2253 = vmax.f32 %v1902, %v1951
      %v2254 = vmax.f32 %v1903, %v1952
      %v2255 = vmax.f32 %v1904, %v1953
      %v2256 = vmax.f32 %v1905, %v1954
      %v2257 = vmax.f32 %v1906, %v1955
      %v2258 = vmax.f32 %v1907, %v1956
      %v2259 = vmax.f32 %v1908, %v1957
      %v2260 = vmax.f32 %v1909, %v1958
      %v2261 = vmax.f32 %v2253, %v2000
      %v2262 = vmax.f32 %v2254, %v2001
      %v2263 = vmax.f32 %v2255, %v2002
      %v2264 = vmax.f32 %v2256, %v2003
      %v2265 = vmax.f32 %v2257, %v2004
      %v2266 = vmax.f32 %v2258, %v2005
      %v2267 = vmax.f32 %v2259, %v2006
      %v2268 = vmax.f32 %v2260, %v2007
      %v2269 = vmax.f32 %v2261, %v2049
      %v2270 = vmax.f32 %v2262, %v2050
      %v2271 = vmax.f32 %v2263, %v2051
      %v2272 = vmax.f32 %v2264, %v2052
      %v2273 = vmax.f32 %v2265, %v2053
      %v2274 = vmax.f32 %v2266, %v2054
      %v2275 = vmax.f32 %v2267, %v2055
      %v2276 = vmax.f32 %v2268, %v2056
      %v2277 = vmax.f32 %v2269, %v1853
      %v2278 = vmax.f32 %v2270, %v1854
      %v2279 = vmax.f32 %v2271, %v1855
      %v2280 = vmax.f32 %v2272, %v1856
      %v2281 = vmax.f32 %v2273, %v1857
      %v2282 = vmax.f32 %v2274, %v1858
      %v2283 = vmax.f32 %v2275, %v1859
      %v2284 = vmax.f32 %v2276, %v1860
      %v2285 = vmax.f32 %v2277, %v2098
      %v2286 = vmax.f32 %v2278, %v2099
      %v2287 = vmax.f32 %v2279, %v2100
      %v2288 = vmax.f32 %v2280, %v2101
      %v2289 = vmax.f32 %v2281, %v2102
      %v2290 = vmax.f32 %v2282, %v2103
      %v2291 = vmax.f32 %v2283, %v2104
      %v2292 = vmax.f32 %v2284, %v2105
      %v2293 = vmax.f32 %v2285, %v2147
      %v2294 = vmax.f32 %v2286, %v2148
      %v2295 = vmax.f32 %v2287, %v2149
      %v2296 = vmax.f32 %v2288, %v2150
      %v2297 = vmax.f32 %v2289, %v2151
      %v2298 = vmax.f32 %v2290, %v2152
      %v2299 = vmax.f32 %v2291, %v2153
      %v2300 = vmax.f32 %v2292, %v2154
      %v2301 = vmax.f32 %v2293, %v2196
      %v2302 = vmax.f32 %v2294, %v2197
      %v2303 = vmax.f32 %v2295, %v2198
      %v2304 = vmax.f32 %v2296, %v2199
      %v2305 = vmax.f32 %v2297, %v2200
      %v2306 = vmax.f32 %v2298, %v2201
      %v2307 = vmax.f32 %v2299, %v2202
      %v2308 = vmax.f32 %v2300, %v2203
      %v2309 = vmax.f32 %v2301, %v2245
      %v2310 = vmax.f32 %v2302, %v2246
      %v2311 = vmax.f32 %v2303, %v2247
      %v2312 = vmax.f32 %v2304, %v2248
      %v2313 = vmax.f32 %v2305, %v2249
      %v2314 = vmax.f32 %v2306, %v2250
      %v2315 = vmax.f32 %v2307, %v2251
      %v2316 = vmax.f32 %v2308, %v2252
      %v2317 = vpack.c.bf16 %v2309, %v2309
      %v2318 = vpack.c.bf16 %v2310, %v2310
      %v2319 = vpack.c.bf16 %v2311, %v2311
      %v2320 = vpack.c.bf16 %v2312, %v2312
      %v2321 = vpack.c.bf16 %v2313, %v2313
      %v2322 = vpack.c.bf16 %v2314, %v2314
      %v2323 = vpack.c.bf16 %v2315, %v2315
      %v2324 = vpack.c.bf16 %v2316, %v2316
      %v2325 = vld [vmem:[%s3] sm:$0xff]
      %v2326 = vld [vmem:[%s3 + $0x8] sm:$0xff]
      %v2327 = vld [vmem:[%s3 + $0x10] sm:$0xff]
      %v2328 = vld [vmem:[%s3 + $0x18] sm:$0xff]
      %v2329 = vld [vmem:[%s3 + $0x20] sm:$0xff]
      %v2330 = vld [vmem:[%s3 + $0x28] sm:$0xff]
      %v2331 = vld [vmem:[%s3 + $0x30] sm:$0xff]
      %v2332 = vld [vmem:[%s3 + $0x38] sm:$0xff]
      %v2333 = vld [vmem:[%s3 + $0x40] sm:$0xff]
      %v2334 = vld [vmem:[%s3 + $0x48] sm:$0xff]
      %v2335 = vld [vmem:[%s3 + $0x50] sm:$0xff]
      %v2336 = vld [vmem:[%s3 + $0x58] sm:$0xff]
      %v2337 = vld [vmem:[%s3 + $0x60] sm:$0xff]
      %v2338 = vld [vmem:[%s3 + $0x68] sm:$0xff]
      %v2339 = vld [vmem:[%s3 + $0x70] sm:$0xff]
      %v2340 = vld [vmem:[%s3 + $0x78] sm:$0xff]
      %v2341 = vld [vmem:[%s3 + $0x80] sm:$0xff]
      %v2342 = vld [vmem:[%s3 + $0x88] sm:$0xff]
      %v2343 = vld [vmem:[%s3 + $0x90] sm:$0xff]
      %v2344 = vld [vmem:[%s3 + $0x98] sm:$0xff]
      %v2345 = vld [vmem:[%s3 + $0xa0] sm:$0xff]
      %v2346 = vld [vmem:[%s3 + $0xa8] sm:$0xff]
      %v2347 = vld [vmem:[%s3 + $0xb0] sm:$0xff]
      %v2348 = vld [vmem:[%s3 + $0xb8] sm:$0xff]
      %v2349 = vld [vmem:[%s3 + $0xc0] sm:$0xff]
      %v2350 = vld [vmem:[%s3 + $0xc8] sm:$0xff]
      %v2351 = vld [vmem:[%s3 + $0xd0] sm:$0xff]
      %v2352 = vld [vmem:[%s3 + $0xd8] sm:$0xff]
      %v2353 = vld [vmem:[%s3 + $0xe0] sm:$0xff]
      %v2354 = vld [vmem:[%s3 + $0xe8] sm:$0xff]
      %v2355 = vld [vmem:[%s3 + $0xf0] sm:$0xff]
      %v2356 = vld [vmem:[%s3 + $0xf8] sm:$0xff]
      %v2357 = vld [vmem:[%s3 + $0x100] sm:$0xff]
      %v2358 = vld [vmem:[%s3 + $0x108] sm:$0xff]
      %v2359 = vld [vmem:[%s3 + $0x110] sm:$0xff]
      %v2360 = vld [vmem:[%s3 + $0x118] sm:$0xff]
      %v2361 = vld [vmem:[%s3 + $0x120] sm:$0xff]
      %v2362 = vld [vmem:[%s3 + $0x128] sm:$0xff]
      %v2363 = vld [vmem:[%s3 + $0x130] sm:$0xff]
      %v2364 = vld [vmem:[%s3 + $0x138] sm:$0xff]
      %v2365 = vld [vmem:[%s3 + $0x140] sm:$0xff]
      %v2366 = vld [vmem:[%s3 + $0x148] sm:$0xff]
      %v2367 = vld [vmem:[%s3 + $0x150] sm:$0xff]
      %v2368 = vld [vmem:[%s3 + $0x158] sm:$0xff]
      %v2369 = vld [vmem:[%s3 + $0x160] sm:$0xff]
      %v2370 = vld [vmem:[%s3 + $0x168] sm:$0xff]
      %v2371 = vld [vmem:[%s3 + $0x170] sm:$0xff]
      %v2372 = vld [vmem:[%s3 + $0x178] sm:$0xff]
      %v2373 = vld [vmem:[%s3 + $0x180] sm:$0xff]
      %v2374 = vld [vmem:[%s3 + $0x188] sm:$0xff]
      %v2375 = vld [vmem:[%s3 + $0x190] sm:$0xff]
      %v2376 = vld [vmem:[%s3 + $0x198] sm:$0xff]
      %v2377 = vld [vmem:[%s3 + $0x1a0] sm:$0xff]
      %v2378 = vld [vmem:[%s3 + $0x1a8] sm:$0xff]
      %v2379 = vld [vmem:[%s3 + $0x1b0] sm:$0xff]
      %v2380 = vld [vmem:[%s3 + $0x1b8] sm:$0xff]
      %v2381 = vld [vmem:[%s3 + $0x1c0] sm:$0xff]
      %v2382 = vld [vmem:[%s3 + $0x1c8] sm:$0xff]
      %v2383 = vld [vmem:[%s3 + $0x1d0] sm:$0xff]
      %v2384 = vld [vmem:[%s3 + $0x1d8] sm:$0xff]
      %v2385 = vld [vmem:[%s3 + $0x1e0] sm:$0xff]
      %v2386 = vld [vmem:[%s3 + $0x1e8] sm:$0xff]
      %v2387 = vld [vmem:[%s3 + $0x1f0] sm:$0xff]
      %v2388 = vld [vmem:[%s3 + $0x1f8] sm:$0xff]
      %v2389 = vld [vmem:[%s3 + $0x200] sm:$0xff]
      %v2390 = vld [vmem:[%s3 + $0x208] sm:$0xff]
      %v2391 = vld [vmem:[%s3 + $0x210] sm:$0xff]
      %v2392 = vld [vmem:[%s3 + $0x218] sm:$0xff]
      %v2393 = vld [vmem:[%s3 + $0x220] sm:$0xff]
      %v2394 = vld [vmem:[%s3 + $0x228] sm:$0xff]
      %v2395 = vld [vmem:[%s3 + $0x230] sm:$0xff]
      %v2396 = vld [vmem:[%s3 + $0x238] sm:$0xff]
      %v2397 = vld [vmem:[%s3 + $0x240] sm:$0xff]
      %v2398 = vld [vmem:[%s3 + $0x248] sm:$0xff]
      %v2399 = vld [vmem:[%s3 + $0x250] sm:$0xff]
      %v2400 = vld [vmem:[%s3 + $0x258] sm:$0xff]
      %v2401 = vld [vmem:[%s3 + $0x260] sm:$0xff]
      %v2402 = vld [vmem:[%s3 + $0x268] sm:$0xff]
      %v2403 = vld [vmem:[%s3 + $0x270] sm:$0xff]
      %v2404 = vld [vmem:[%s3 + $0x278] sm:$0xff]
      %v2405 = vld [vmem:[%s3 + $0x280] sm:$0xff]
      %v2406 = vld [vmem:[%s3 + $0x288] sm:$0xff]
      %v2407 = vld [vmem:[%s3 + $0x290] sm:$0xff]
      %v2408 = vld [vmem:[%s3 + $0x298] sm:$0xff]
      %v2409 = vld [vmem:[%s3 + $0x2a0] sm:$0xff]
      %v2410 = vld [vmem:[%s3 + $0x2a8] sm:$0xff]
      %v2411 = vld [vmem:[%s3 + $0x2b0] sm:$0xff]
      %v2412 = vld [vmem:[%s3 + $0x2b8] sm:$0xff]
      %v2413 = vld [vmem:[%s3 + $0x2c0] sm:$0xff]
      %v2414 = vld [vmem:[%s3 + $0x2c8] sm:$0xff]
      %v2415 = vld [vmem:[%s3 + $0x2d0] sm:$0xff]
      %v2416 = vld [vmem:[%s3 + $0x2d8] sm:$0xff]
      %v2417 = vld [vmem:[%s3 + $0x2e0] sm:$0xff]
      %v2418 = vld [vmem:[%s3 + $0x2e8] sm:$0xff]
      %v2419 = vld [vmem:[%s3 + $0x2f0] sm:$0xff]
      %v2420 = vld [vmem:[%s3 + $0x2f8] sm:$0xff]
      %v2421 = vld [vmem:[%s3 + $0x300] sm:$0xff]
      %v2422 = vld [vmem:[%s3 + $0x308] sm:$0xff]
      %v2423 = vld [vmem:[%s3 + $0x310] sm:$0xff]
      %v2424 = vld [vmem:[%s3 + $0x318] sm:$0xff]
      %v2425 = vld [vmem:[%s3 + $0x320] sm:$0xff]
      %v2426 = vld [vmem:[%s3 + $0x328] sm:$0xff]
      %v2427 = vld [vmem:[%s3 + $0x330] sm:$0xff]
      %v2428 = vld [vmem:[%s3 + $0x338] sm:$0xff]
      %v2429 = vld [vmem:[%s3 + $0x340] sm:$0xff]
      %v2430 = vld [vmem:[%s3 + $0x348] sm:$0xff]
      %v2431 = vld [vmem:[%s3 + $0x350] sm:$0xff]
      %v2432 = vld [vmem:[%s3 + $0x358] sm:$0xff]
      %v2433 = vld [vmem:[%s3 + $0x360] sm:$0xff]
      %v2434 = vld [vmem:[%s3 + $0x368] sm:$0xff]
      %v2435 = vld [vmem:[%s3 + $0x370] sm:$0xff]
      %v2436 = vld [vmem:[%s3 + $0x378] sm:$0xff]
      %v2437 = vld [vmem:[%s3 + $0x380] sm:$0xff]
      %v2438 = vld [vmem:[%s3 + $0x388] sm:$0xff]
      %v2439 = vld [vmem:[%s3 + $0x390] sm:$0xff]
      %v2440 = vld [vmem:[%s3 + $0x398] sm:$0xff]
      %v2441 = vld [vmem:[%s3 + $0x3a0] sm:$0xff]
      %v2442 = vld [vmem:[%s3 + $0x3a8] sm:$0xff]
      %v2443 = vld [vmem:[%s3 + $0x3b0] sm:$0xff]
      %v2444 = vld [vmem:[%s3 + $0x3b8] sm:$0xff]
      %v2445 = vld [vmem:[%s3 + $0x3c0] sm:$0xff]
      %v2446 = vld [vmem:[%s3 + $0x3c8] sm:$0xff]
      %v2447 = vld [vmem:[%s3 + $0x3d0] sm:$0xff]
      %v2448 = vld [vmem:[%s3 + $0x3d8] sm:$0xff]
      %v2449 = vld [vmem:[%s3 + $0x3e0] sm:$0xff]
      %v2450 = vld [vmem:[%s3 + $0x3e8] sm:$0xff]
      %v2451 = vld [vmem:[%s3 + $0x3f0] sm:$0xff]
      %v2452 = vld [vmem:[%s3 + $0x3f8] sm:$0xff]
      %v2581 = vunpack.c.l.b16 %v2325
      %v2582 = vunpack.c.h.b16 %v2325
      %v2583 = vunpack.c.l.b16 %v2326
      %v2584 = vunpack.c.h.b16 %v2326
      %v2585 = vunpack.c.l.b16 %v2327
      %v2586 = vunpack.c.h.b16 %v2327
      %v2587 = vunpack.c.l.b16 %v2328
      %v2588 = vunpack.c.h.b16 %v2328
      %v2589 = vunpack.c.l.b16 %v2329
      %v2590 = vunpack.c.h.b16 %v2329
      %v2591 = vunpack.c.l.b16 %v2330
      %v2592 = vunpack.c.h.b16 %v2330
      %v2593 = vunpack.c.l.b16 %v2331
      %v2594 = vunpack.c.h.b16 %v2331
      %v2595 = vunpack.c.l.b16 %v2332
      %v2596 = vunpack.c.h.b16 %v2332
      %v2597 = vunpack.c.l.b16 %v2333
      %v2598 = vunpack.c.h.b16 %v2333
      %v2599 = vunpack.c.l.b16 %v2334
      %v2600 = vunpack.c.h.b16 %v2334
      %v2601 = vunpack.c.l.b16 %v2335
      %v2602 = vunpack.c.h.b16 %v2335
      %v2603 = vunpack.c.l.b16 %v2336
      %v2604 = vunpack.c.h.b16 %v2336
      %v2605 = vunpack.c.l.b16 %v2337
      %v2606 = vunpack.c.h.b16 %v2337
      %v2607 = vunpack.c.l.b16 %v2338
      %v2608 = vunpack.c.h.b16 %v2338
      %v2609 = vunpack.c.l.b16 %v2339
      %v2610 = vunpack.c.h.b16 %v2339
      %v2611 = vunpack.c.l.b16 %v2340
      %v2612 = vunpack.c.h.b16 %v2340
      %v2613 = vunpack.c.l.b16 %v2341
      %v2614 = vunpack.c.h.b16 %v2341
      %v2615 = vunpack.c.l.b16 %v2342
      %v2616 = vunpack.c.h.b16 %v2342
      %v2617 = vunpack.c.l.b16 %v2343
      %v2618 = vunpack.c.h.b16 %v2343
      %v2619 = vunpack.c.l.b16 %v2344
      %v2620 = vunpack.c.h.b16 %v2344
      %v2621 = vunpack.c.l.b16 %v2345
      %v2622 = vunpack.c.h.b16 %v2345
      %v2623 = vunpack.c.l.b16 %v2346
      %v2624 = vunpack.c.h.b16 %v2346
      %v2625 = vunpack.c.l.b16 %v2347
      %v2626 = vunpack.c.h.b16 %v2347
      %v2627 = vunpack.c.l.b16 %v2348
      %v2628 = vunpack.c.h.b16 %v2348
      %v2629 = vunpack.c.l.b16 %v2349
      %v2630 = vunpack.c.h.b16 %v2349
      %v2631 = vunpack.c.l.b16 %v2350
      %v2632 = vunpack.c.h.b16 %v2350
      %v2633 = vunpack.c.l.b16 %v2351
      %v2634 = vunpack.c.h.b16 %v2351
      %v2635 = vunpack.c.l.b16 %v2352
      %v2636 = vunpack.c.h.b16 %v2352
      %v2637 = vunpack.c.l.b16 %v2353
      %v2638 = vunpack.c.h.b16 %v2353
      %v2639 = vunpack.c.l.b16 %v2354
      %v2640 = vunpack.c.h.b16 %v2354
      %v2641 = vunpack.c.l.b16 %v2355
      %v2642 = vunpack.c.h.b16 %v2355
      %v2643 = vunpack.c.l.b16 %v2356
      %v2644 = vunpack.c.h.b16 %v2356
      %v2645 = vunpack.c.l.b16 %v2357
      %v2646 = vunpack.c.h.b16 %v2357
      %v2647 = vunpack.c.l.b16 %v2358
      %v2648 = vunpack.c.h.b16 %v2358
      %v2649 = vunpack.c.l.b16 %v2359
      %v2650 = vunpack.c.h.b16 %v2359
      %v2651 = vunpack.c.l.b16 %v2360
      %v2652 = vunpack.c.h.b16 %v2360
      %v2653 = vunpack.c.l.b16 %v2361
      %v2654 = vunpack.c.h.b16 %v2361
      %v2655 = vunpack.c.l.b16 %v2362
      %v2656 = vunpack.c.h.b16 %v2362
      %v2657 = vunpack.c.l.b16 %v2363
      %v2658 = vunpack.c.h.b16 %v2363
      %v2659 = vunpack.c.l.b16 %v2364
      %v2660 = vunpack.c.h.b16 %v2364
      %v2661 = vunpack.c.l.b16 %v2365
      %v2662 = vunpack.c.h.b16 %v2365
      %v2663 = vunpack.c.l.b16 %v2366
      %v2664 = vunpack.c.h.b16 %v2366
      %v2665 = vunpack.c.l.b16 %v2367
      %v2666 = vunpack.c.h.b16 %v2367
      %v2667 = vunpack.c.l.b16 %v2368
      %v2668 = vunpack.c.h.b16 %v2368
      %v2669 = vunpack.c.l.b16 %v2369
      %v2670 = vunpack.c.h.b16 %v2369
      %v2671 = vunpack.c.l.b16 %v2370
      %v2672 = vunpack.c.h.b16 %v2370
      %v2673 = vunpack.c.l.b16 %v2371
      %v2674 = vunpack.c.h.b16 %v2371
      %v2675 = vunpack.c.l.b16 %v2372
      %v2676 = vunpack.c.h.b16 %v2372
      %v2677 = vunpack.c.l.b16 %v2373
      %v2678 = vunpack.c.h.b16 %v2373
      %v2679 = vunpack.c.l.b16 %v2374
      %v2680 = vunpack.c.h.b16 %v2374
      %v2681 = vunpack.c.l.b16 %v2375
      %v2682 = vunpack.c.h.b16 %v2375
      %v2683 = vunpack.c.l.b16 %v2376
      %v2684 = vunpack.c.h.b16 %v2376
      %v2685 = vunpack.c.l.b16 %v2377
      %v2686 = vunpack.c.h.b16 %v2377
      %v2687 = vunpack.c.l.b16 %v2378
      %v2688 = vunpack.c.h.b16 %v2378
      %v2689 = vunpack.c.l.b16 %v2379
      %v2690 = vunpack.c.h.b16 %v2379
      %v2691 = vunpack.c.l.b16 %v2380
      %v2692 = vunpack.c.h.b16 %v2380
      %v2693 = vunpack.c.l.b16 %v2381
      %v2694 = vunpack.c.h.b16 %v2381
      %v2695 = vunpack.c.l.b16 %v2382
      %v2696 = vunpack.c.h.b16 %v2382
      %v2697 = vunpack.c.l.b16 %v2383
      %v2698 = vunpack.c.h.b16 %v2383
      %v2699 = vunpack.c.l.b16 %v2384
      %v2700 = vunpack.c.h.b16 %v2384
      %v2701 = vunpack.c.l.b16 %v2385
      %v2702 = vunpack.c.h.b16 %v2385
      %v2703 = vunpack.c.l.b16 %v2386
      %v2704 = vunpack.c.h.b16 %v2386
      %v2705 = vunpack.c.l.b16 %v2387
      %v2706 = vunpack.c.h.b16 %v2387
      %v2707 = vunpack.c.l.b16 %v2388
      %v2708 = vunpack.c.h.b16 %v2388
      %v2709 = vunpack.c.l.b16 %v2389
      %v2710 = vunpack.c.h.b16 %v2389
      %v2711 = vunpack.c.l.b16 %v2390
      %v2712 = vunpack.c.h.b16 %v2390
      %v2713 = vunpack.c.l.b16 %v2391
      %v2714 = vunpack.c.h.b16 %v2391
      %v2715 = vunpack.c.l.b16 %v2392
      %v2716 = vunpack.c.h.b16 %v2392
      %v2717 = vunpack.c.l.b16 %v2393
      %v2718 = vunpack.c.h.b16 %v2393
      %v2719 = vunpack.c.l.b16 %v2394
      %v2720 = vunpack.c.h.b16 %v2394
      %v2721 = vunpack.c.l.b16 %v2395
      %v2722 = vunpack.c.h.b16 %v2395
      %v2723 = vunpack.c.l.b16 %v2396
      %v2724 = vunpack.c.h.b16 %v2396
      %v2725 = vunpack.c.l.b16 %v2397
      %v2726 = vunpack.c.h.b16 %v2397
      %v2727 = vunpack.c.l.b16 %v2398
      %v2728 = vunpack.c.h.b16 %v2398
      %v2729 = vunpack.c.l.b16 %v2399
      %v2730 = vunpack.c.h.b16 %v2399
      %v2731 = vunpack.c.l.b16 %v2400
      %v2732 = vunpack.c.h.b16 %v2400
      %v2733 = vunpack.c.l.b16 %v2401
      %v2734 = vunpack.c.h.b16 %v2401
      %v2735 = vunpack.c.l.b16 %v2402
      %v2736 = vunpack.c.h.b16 %v2402
      %v2737 = vunpack.c.l.b16 %v2403
      %v2738 = vunpack.c.h.b16 %v2403
      %v2739 = vunpack.c.l.b16 %v2404
      %v2740 = vunpack.c.h.b16 %v2404
      %v2741 = vunpack.c.l.b16 %v2405
      %v2742 = vunpack.c.h.b16 %v2405
      %v2743 = vunpack.c.l.b16 %v2406
      %v2744 = vunpack.c.h.b16 %v2406
      %v2745 = vunpack.c.l.b16 %v2407
      %v2746 = vunpack.c.h.b16 %v2407
      %v2747 = vunpack.c.l.b16 %v2408
      %v2748 = vunpack.c.h.b16 %v2408
      %v2749 = vunpack.c.l.b16 %v2409
      %v2750 = vunpack.c.h.b16 %v2409
      %v2751 = vunpack.c.l.b16 %v2410
      %v2752 = vunpack.c.h.b16 %v2410
      %v2753 = vunpack.c.l.b16 %v2411
      %v2754 = vunpack.c.h.b16 %v2411
      %v2755 = vunpack.c.l.b16 %v2412
      %v2756 = vunpack.c.h.b16 %v2412
      %v2757 = vunpack.c.l.b16 %v2413
      %v2758 = vunpack.c.h.b16 %v2413
      %v2759 = vunpack.c.l.b16 %v2414
      %v2760 = vunpack.c.h.b16 %v2414
      %v2761 = vunpack.c.l.b16 %v2415
      %v2762 = vunpack.c.h.b16 %v2415
      %v2763 = vunpack.c.l.b16 %v2416
      %v2764 = vunpack.c.h.b16 %v2416
      %v2765 = vunpack.c.l.b16 %v2417
      %v2766 = vunpack.c.h.b16 %v2417
      %v2767 = vunpack.c.l.b16 %v2418
      %v2768 = vunpack.c.h.b16 %v2418
      %v2769 = vunpack.c.l.b16 %v2419
      %v2770 = vunpack.c.h.b16 %v2419
      %v2771 = vunpack.c.l.b16 %v2420
      %v2772 = vunpack.c.h.b16 %v2420
      %v2773 = vunpack.c.l.b16 %v2421
      %v2774 = vunpack.c.h.b16 %v2421
      %v2775 = vunpack.c.l.b16 %v2422
      %v2776 = vunpack.c.h.b16 %v2422
      %v2777 = vunpack.c.l.b16 %v2423
      %v2778 = vunpack.c.h.b16 %v2423
      %v2779 = vunpack.c.l.b16 %v2424
      %v2780 = vunpack.c.h.b16 %v2424
      %v2781 = vunpack.c.l.b16 %v2425
      %v2782 = vunpack.c.h.b16 %v2425
      %v2783 = vunpack.c.l.b16 %v2426
      %v2784 = vunpack.c.h.b16 %v2426
      %v2785 = vunpack.c.l.b16 %v2427
      %v2786 = vunpack.c.h.b16 %v2427
      %v2787 = vunpack.c.l.b16 %v2428
      %v2788 = vunpack.c.h.b16 %v2428
      %v2789 = vunpack.c.l.b16 %v2429
      %v2790 = vunpack.c.h.b16 %v2429
      %v2791 = vunpack.c.l.b16 %v2430
      %v2792 = vunpack.c.h.b16 %v2430
      %v2793 = vunpack.c.l.b16 %v2431
      %v2794 = vunpack.c.h.b16 %v2431
      %v2795 = vunpack.c.l.b16 %v2432
      %v2796 = vunpack.c.h.b16 %v2432
      %v2797 = vunpack.c.l.b16 %v2433
      %v2798 = vunpack.c.h.b16 %v2433
      %v2799 = vunpack.c.l.b16 %v2434
      %v2800 = vunpack.c.h.b16 %v2434
      %v2801 = vunpack.c.l.b16 %v2435
      %v2802 = vunpack.c.h.b16 %v2435
      %v2803 = vunpack.c.l.b16 %v2436
      %v2804 = vunpack.c.h.b16 %v2436
      %v2805 = vunpack.c.l.b16 %v2437
      %v2806 = vunpack.c.h.b16 %v2437
      %v2807 = vunpack.c.l.b16 %v2438
      %v2808 = vunpack.c.h.b16 %v2438
      %v2809 = vunpack.c.l.b16 %v2439
      %v2810 = vunpack.c.h.b16 %v2439
      %v2811 = vunpack.c.l.b16 %v2440
      %v2812 = vunpack.c.h.b16 %v2440
      %v2813 = vunpack.c.l.b16 %v2441
      %v2814 = vunpack.c.h.b16 %v2441
      %v2815 = vunpack.c.l.b16 %v2442
      %v2816 = vunpack.c.h.b16 %v2442
      %v2817 = vunpack.c.l.b16 %v2443
      %v2818 = vunpack.c.h.b16 %v2443
      %v2819 = vunpack.c.l.b16 %v2444
      %v2820 = vunpack.c.h.b16 %v2444
      %v2821 = vunpack.c.l.b16 %v2445
      %v2822 = vunpack.c.h.b16 %v2445
      %v2823 = vunpack.c.l.b16 %v2446
      %v2824 = vunpack.c.h.b16 %v2446
      %v2825 = vunpack.c.l.b16 %v2447
      %v2826 = vunpack.c.h.b16 %v2447
      %v2827 = vunpack.c.l.b16 %v2448
      %v2828 = vunpack.c.h.b16 %v2448
      %v2829 = vunpack.c.l.b16 %v2449
      %v2830 = vunpack.c.h.b16 %v2449
      %v2831 = vunpack.c.l.b16 %v2450
      %v2832 = vunpack.c.h.b16 %v2450
      %v2833 = vunpack.c.l.b16 %v2451
      %v2834 = vunpack.c.h.b16 %v2451
      %v2835 = vunpack.c.l.b16 %v2452
      %v2836 = vunpack.c.h.b16 %v2452
      %v2837 = vpack.c.b16 %v2583, %v2581
      %v2838 = vpack.c.b16 %v2584, %v2582
      %v2839 = vpack.c.b16 %v2587, %v2585
      %v2840 = vpack.c.b16 %v2588, %v2586
      %v2841 = vpack.c.b16 %v2591, %v2589
      %v2842 = vpack.c.b16 %v2592, %v2590
      %v2843 = vpack.c.b16 %v2595, %v2593
      %v2844 = vpack.c.b16 %v2596, %v2594
      %v2845 = vpack.c.b16 %v2599, %v2597
      %v2846 = vpack.c.b16 %v2600, %v2598
      %v2847 = vpack.c.b16 %v2603, %v2601
      %v2848 = vpack.c.b16 %v2604, %v2602
      %v2849 = vpack.c.b16 %v2607, %v2605
      %v2850 = vpack.c.b16 %v2608, %v2606
      %v2851 = vpack.c.b16 %v2611, %v2609
      %v2852 = vpack.c.b16 %v2612, %v2610
      %v2853 = vpack.c.b16 %v2615, %v2613
      %v2854 = vpack.c.b16 %v2616, %v2614
      %v2855 = vpack.c.b16 %v2619, %v2617
      %v2856 = vpack.c.b16 %v2620, %v2618
      %v2857 = vpack.c.b16 %v2623, %v2621
      %v2858 = vpack.c.b16 %v2624, %v2622
      %v2859 = vpack.c.b16 %v2627, %v2625
      %v2860 = vpack.c.b16 %v2628, %v2626
      %v2861 = vpack.c.b16 %v2631, %v2629
      %v2862 = vpack.c.b16 %v2632, %v2630
      %v2863 = vpack.c.b16 %v2635, %v2633
      %v2864 = vpack.c.b16 %v2636, %v2634
      %v2865 = vpack.c.b16 %v2639, %v2637
      %v2866 = vpack.c.b16 %v2640, %v2638
      %v2867 = vpack.c.b16 %v2643, %v2641
      %v2868 = vpack.c.b16 %v2644, %v2642
      %v2869 = vpack.c.b16 %v2647, %v2645
      %v2870 = vpack.c.b16 %v2648, %v2646
      %v2871 = vpack.c.b16 %v2651, %v2649
      %v2872 = vpack.c.b16 %v2652, %v2650
      %v2873 = vpack.c.b16 %v2655, %v2653
      %v2874 = vpack.c.b16 %v2656, %v2654
      %v2875 = vpack.c.b16 %v2659, %v2657
      %v2876 = vpack.c.b16 %v2660, %v2658
      %v2877 = vpack.c.b16 %v2663, %v2661
      %v2878 = vpack.c.b16 %v2664, %v2662
      %v2879 = vpack.c.b16 %v2667, %v2665
      %v2880 = vpack.c.b16 %v2668, %v2666
      %v2881 = vpack.c.b16 %v2671, %v2669
      %v2882 = vpack.c.b16 %v2672, %v2670
      %v2883 = vpack.c.b16 %v2675, %v2673
      %v2884 = vpack.c.b16 %v2676, %v2674
      %v2885 = vpack.c.b16 %v2679, %v2677
      %v2886 = vpack.c.b16 %v2680, %v2678
      %v2887 = vpack.c.b16 %v2683, %v2681
      %v2888 = vpack.c.b16 %v2684, %v2682
      %v2889 = vpack.c.b16 %v2687, %v2685
      %v2890 = vpack.c.b16 %v2688, %v2686
      %v2891 = vpack.c.b16 %v2691, %v2689
      %v2892 = vpack.c.b16 %v2692, %v2690
      %v2893 = vpack.c.b16 %v2695, %v2693
      %v2894 = vpack.c.b16 %v2696, %v2694
      %v2895 = vpack.c.b16 %v2699, %v2697
      %v2896 = vpack.c.b16 %v2700, %v2698
      %v2897 = vpack.c.b16 %v2703, %v2701
      %v2898 = vpack.c.b16 %v2704, %v2702
      %v2899 = vpack.c.b16 %v2707, %v2705
      %v2900 = vpack.c.b16 %v2708, %v2706
      %v2901 = vpack.c.b16 %v2711, %v2709
      %v2902 = vpack.c.b16 %v2712, %v2710
      %v2903 = vpack.c.b16 %v2715, %v2713
      %v2904 = vpack.c.b16 %v2716, %v2714
      %v2905 = vpack.c.b16 %v2719, %v2717
      %v2906 = vpack.c.b16 %v2720, %v2718
      %v2907 = vpack.c.b16 %v2723, %v2721
      %v2908 = vpack.c.b16 %v2724, %v2722
      %v2909 = vpack.c.b16 %v2727, %v2725
      %v2910 = vpack.c.b16 %v2728, %v2726
      %v2911 = vpack.c.b16 %v2731, %v2729
      %v2912 = vpack.c.b16 %v2732, %v2730
      %v2913 = vpack.c.b16 %v2735, %v2733
      %v2914 = vpack.c.b16 %v2736, %v2734
      %v2915 = vpack.c.b16 %v2739, %v2737
      %v2916 = vpack.c.b16 %v2740, %v2738
      %v2917 = vpack.c.b16 %v2743, %v2741
      %v2918 = vpack.c.b16 %v2744, %v2742
      %v2919 = vpack.c.b16 %v2747, %v2745
      %v2920 = vpack.c.b16 %v2748, %v2746
      %v2921 = vpack.c.b16 %v2751, %v2749
      %v2922 = vpack.c.b16 %v2752, %v2750
      %v2923 = vpack.c.b16 %v2755, %v2753
      %v2924 = vpack.c.b16 %v2756, %v2754
      %v2925 = vpack.c.b16 %v2759, %v2757
      %v2926 = vpack.c.b16 %v2760, %v2758
      %v2927 = vpack.c.b16 %v2763, %v2761
      %v2928 = vpack.c.b16 %v2764, %v2762
      %v2929 = vpack.c.b16 %v2767, %v2765
      %v2930 = vpack.c.b16 %v2768, %v2766
      %v2931 = vpack.c.b16 %v2771, %v2769
      %v2932 = vpack.c.b16 %v2772, %v2770
      %v2933 = vpack.c.b16 %v2775, %v2773
      %v2934 = vpack.c.b16 %v2776, %v2774
      %v2935 = vpack.c.b16 %v2779, %v2777
      %v2936 = vpack.c.b16 %v2780, %v2778
      %v2937 = vpack.c.b16 %v2783, %v2781
      %v2938 = vpack.c.b16 %v2784, %v2782
      %v2939 = vpack.c.b16 %v2787, %v2785
      %v2940 = vpack.c.b16 %v2788, %v2786
      %v2941 = vpack.c.b16 %v2791, %v2789
      %v2942 = vpack.c.b16 %v2792, %v2790
      %v2943 = vpack.c.b16 %v2795, %v2793
      %v2944 = vpack.c.b16 %v2796, %v2794
      %v2945 = vpack.c.b16 %v2799, %v2797
      %v2946 = vpack.c.b16 %v2800, %v2798
      %v2947 = vpack.c.b16 %v2803, %v2801
      %v2948 = vpack.c.b16 %v2804, %v2802
      %v2949 = vpack.c.b16 %v2807, %v2805
      %v2950 = vpack.c.b16 %v2808, %v2806
      %v2951 = vpack.c.b16 %v2811, %v2809
      %v2952 = vpack.c.b16 %v2812, %v2810
      %v2953 = vpack.c.b16 %v2815, %v2813
      %v2954 = vpack.c.b16 %v2816, %v2814
      %v2955 = vpack.c.b16 %v2819, %v2817
      %v2956 = vpack.c.b16 %v2820, %v2818
      %v2957 = vpack.c.b16 %v2823, %v2821
      %v2958 = vpack.c.b16 %v2824, %v2822
      %v2959 = vpack.c.b16 %v2827, %v2825
      %v2960 = vpack.c.b16 %v2828, %v2826
      %v2961 = vpack.c.b16 %v2831, %v2829
      %v2962 = vpack.c.b16 %v2832, %v2830
      %v2963 = vpack.c.b16 %v2835, %v2833
      %v2964 = vpack.c.b16 %v2836, %v2834
      %3093 = vmatprep.subr.bf16.mxu0 %v2838
      %3094 = vmatpush1.bf16.msra.mxu0 %v2837
      %3095 = vmatprep.subr.bf16.mxu0 %v2840
      %3096 = vmatpush1.bf16.msra.mxu0 %v2839
      %3097 = vmatprep.subr.bf16.mxu0 %v2842
      %3098 = vmatpush1.bf16.msra.mxu0 %v2841
      %3099 = vmatprep.subr.bf16.mxu0 %v2844
      %3100 = vmatpush1.bf16.msra.mxu0 %v2843
      %3101 = vmatprep.subr.bf16.mxu0 %v2846
      %3102 = vmatpush1.bf16.msra.mxu0 %v2845
      %3103 = vmatprep.subr.bf16.mxu0 %v2848
      %3104 = vmatpush1.bf16.msra.mxu0 %v2847
      %3105 = vmatprep.subr.bf16.mxu0 %v2850
      %3106 = vmatpush1.bf16.msra.mxu0 %v2849
      %3107 = vmatprep.subr.bf16.mxu0 %v2852
      %3108 = vmatpush1.bf16.msra.mxu0 %v2851
      %3109 = vmatprep.subr.bf16.mxu0 %v2854
      %3110 = vmatpush1.bf16.msra.mxu0 %v2853
      %3111 = vmatprep.subr.bf16.mxu0 %v2856
      %3112 = vmatpush1.bf16.msra.mxu0 %v2855
      %3113 = vmatprep.subr.bf16.mxu0 %v2858
      %3114 = vmatpush1.bf16.msra.mxu0 %v2857
      %3115 = vmatprep.subr.bf16.mxu0 %v2860
      %3116 = vmatpush1.bf16.msra.mxu0 %v2859
      %3117 = vmatprep.subr.bf16.mxu0 %v2862
      %3118 = vmatpush1.bf16.msra.mxu0 %v2861
      %3119 = vmatprep.subr.bf16.mxu0 %v2864
      %3120 = vmatpush1.bf16.msra.mxu0 %v2863
      %3121 = vmatprep.subr.bf16.mxu0 %v2866
      %3122 = vmatpush1.bf16.msra.mxu0 %v2865
      %3123 = vmatprep.subr.bf16.mxu0 %v2868
      %3124 = vmatpush1.bf16.msra.mxu0 %v2867
      %3125 = vmatprep.mubr.bf16.mxu0 %v2318
      %3126 = vmatmul.mubr.bf16.gmra.mrb[0].mxu0 %v2317
      %v3127 = vpop.f32.mrb[0].mxu0
      %v3128 = vadd.f32 0.0, %v3127
      %v3129 = vpop.f32.mrb[0].mxu0
      %v3130 = vadd.f32 0.0, %v3129
      %v3131 = vpop.f32.mrb[0].mxu0
      %v3132 = vpop.f32.mrb[0].mxu0
      %3133 = vdwg.mxu0
      %3134 = vmatprep.subr.bf16.mxu0 %v2870
      %3135 = vmatpush1.bf16.msra.mxu0 %v2869
      %3136 = vmatprep.subr.bf16.mxu0 %v2872
      %3137 = vmatpush1.bf16.msra.mxu0 %v2871
      %3138 = vmatprep.subr.bf16.mxu0 %v2874
      %3139 = vmatpush1.bf16.msra.mxu0 %v2873
      %3140 = vmatprep.subr.bf16.mxu0 %v2876
      %3141 = vmatpush1.bf16.msra.mxu0 %v2875
      %3142 = vmatprep.subr.bf16.mxu0 %v2878
      %3143 = vmatpush1.bf16.msra.mxu0 %v2877
      %3144 = vmatprep.subr.bf16.mxu0 %v2880
      %3145 = vmatpush1.bf16.msra.mxu0 %v2879
      %3146 = vmatprep.subr.bf16.mxu0 %v2882
      %3147 = vmatpush1.bf16.msra.mxu0 %v2881
      %3148 = vmatprep.subr.bf16.mxu0 %v2884
      %3149 = vmatpush1.bf16.msra.mxu0 %v2883
      %3150 = vmatprep.subr.bf16.mxu0 %v2886
      %3151 = vmatpush1.bf16.msra.mxu0 %v2885
      %3152 = vmatprep.subr.bf16.mxu0 %v2888
      %3153 = vmatpush1.bf16.msra.mxu0 %v2887
      %3154 = vmatprep.subr.bf16.mxu0 %v2890
      %3155 = vmatpush1.bf16.msra.mxu0 %v2889
      %3156 = vmatprep.subr.bf16.mxu0 %v2892
      %3157 = vmatpush1.bf16.msra.mxu0 %v2891
      %3158 = vmatprep.subr.bf16.mxu0 %v2894
      %3159 = vmatpush1.bf16.msra.mxu0 %v2893
      %3160 = vmatprep.subr.bf16.mxu0 %v2896
      %3161 = vmatpush1.bf16.msra.mxu0 %v2895
      %3162 = vmatprep.subr.bf16.mxu0 %v2898
      %3163 = vmatpush1.bf16.msra.mxu0 %v2897
      %3164 = vmatprep.subr.bf16.mxu0 %v2900
      %3165 = vmatpush1.bf16.msra.mxu0 %v2899
      %3166 = vmatprep.mubr.bf16.mxu0 %v2320
      %3167 = vmatmul.mubr.bf16.gmra.mrb[0].mxu0 %v2319
      %v3168 = vpop.f32.mrb[0].mxu0
      %v3169 = vadd.f32 %v3128, %v3168
      %v3170 = vpop.f32.mrb[0].mxu0
      %v3171 = vadd.f32 %v3130, %v3170
      %v3172 = vpop.f32.mrb[0].mxu0
      %v3173 = vpop.f32.mrb[0].mxu0
      %3174 = vdwg.mxu0
      %3175 = vmatprep.subr.bf16.mxu0 %v2902
      %3176 = vmatpush1.bf16.msra.mxu0 %v2901
      %3177 = vmatprep.subr.bf16.mxu0 %v2904
      %3178 = vmatpush1.bf16.msra.mxu0 %v2903
      %3179 = vmatprep.subr.bf16.mxu0 %v2906
      %3180 = vmatpush1.bf16.msra.mxu0 %v2905
      %3181 = vmatprep.subr.bf16.mxu0 %v2908
      %3182 = vmatpush1.bf16.msra.mxu0 %v2907
      %3183 = vmatprep.subr.bf16.mxu0 %v2910
      %3184 = vmatpush1.bf16.msra.mxu0 %v2909
      %3185 = vmatprep.subr.bf16.mxu0 %v2912
      %3186 = vmatpush1.bf16.msra.mxu0 %v2911
      %3187 = vmatprep.subr.bf16.mxu0 %v2914
      %3188 = vmatpush1.bf16.msra.mxu0 %v2913
      %3189 = vmatprep.subr.bf16.mxu0 %v2916
      %3190 = vmatpush1.bf16.msra.mxu0 %v2915
      %3191 = vmatprep.subr.bf16.mxu0 %v2918
      %3192 = vmatpush1.bf16.msra.mxu0 %v2917
      %3193 = vmatprep.subr.bf16.mxu0 %v2920
      %3194 = vmatpush1.bf16.msra.mxu0 %v2919
      %3195 = vmatprep.subr.bf16.mxu0 %v2922
      %3196 = vmatpush1.bf16.msra.mxu0 %v2921
      %3197 = vmatprep.subr.bf16.mxu0 %v2924
      %3198 = vmatpush1.bf16.msra.mxu0 %v2923
      %3199 = vmatprep.subr.bf16.mxu0 %v2926
      %3200 = vmatpush1.bf16.msra.mxu0 %v2925
      %3201 = vmatprep.subr.bf16.mxu0 %v2928
      %3202 = vmatpush1.bf16.msra.mxu0 %v2927
      %3203 = vmatprep.subr.bf16.mxu0 %v2930
      %3204 = vmatpush1.bf16.msra.mxu0 %v2929
      %3205 = vmatprep.subr.bf16.mxu0 %v2932
      %3206 = vmatpush1.bf16.msra.mxu0 %v2931
      %3207 = vmatprep.mubr.bf16.mxu0 %v2322
      %3208 = vmatmul.mubr.bf16.gmra.mrb[0].mxu0 %v2321
      %v3209 = vpop.f32.mrb[0].mxu0
      %v3210 = vadd.f32 %v3169, %v3209
      %v3211 = vpop.f32.mrb[0].mxu0
      %v3212 = vadd.f32 %v3171, %v3211
      %v3213 = vpop.f32.mrb[0].mxu0
      %v3214 = vpop.f32.mrb[0].mxu0
      %3215 = vdwg.mxu0
      %3216 = vmatprep.subr.bf16.mxu0 %v2934
      %3217 = vmatpush1.bf16.msra.mxu0 %v2933
      %3218 = vmatprep.subr.bf16.mxu0 %v2936
      %3219 = vmatpush1.bf16.msra.mxu0 %v2935
      %3220 = vmatprep.subr.bf16.mxu0 %v2938
      %3221 = vmatpush1.bf16.msra.mxu0 %v2937
      %3222 = vmatprep.subr.bf16.mxu0 %v2940
      %3223 = vmatpush1.bf16.msra.mxu0 %v2939
      %3224 = vmatprep.subr.bf16.mxu0 %v2942
      %3225 = vmatpush1.bf16.msra.mxu0 %v2941
      %3226 = vmatprep.subr.bf16.mxu0 %v2944
      %3227 = vmatpush1.bf16.msra.mxu0 %v2943
      %3228 = vmatprep.subr.bf16.mxu0 %v2946
      %3229 = vmatpush1.bf16.msra.mxu0 %v2945
      %3230 = vmatprep.subr.bf16.mxu0 %v2948
      %3231 = vmatpush1.bf16.msra.mxu0 %v2947
      %3232 = vmatprep.subr.bf16.mxu0 %v2950
      %3233 = vmatpush1.bf16.msra.mxu0 %v2949
      %3234 = vmatprep.subr.bf16.mxu0 %v2952
      %3235 = vmatpush1.bf16.msra.mxu0 %v2951
      %3236 = vmatprep.subr.bf16.mxu0 %v2954
      %3237 = vmatpush1.bf16.msra.mxu0 %v2953
      %3238 = vmatprep.subr.bf16.mxu0 %v2956
      %3239 = vmatpush1.bf16.msra.mxu0 %v2955
      %3240 = vmatprep.subr.bf16.mxu0 %v2958
      %3241 = vmatpush1.bf16.msra.mxu0 %v2957
      %3242 = vmatprep.subr.bf16.mxu0 %v2960
      %3243 = vmatpush1.bf16.msra.mxu0 %v2959
      %3244 = vmatprep.subr.bf16.mxu0 %v2962
      %3245 = vmatpush1.bf16.msra.mxu0 %v2961
      %3246 = vmatprep.subr.bf16.mxu0 %v2964
      %3247 = vmatpush1.bf16.msra.mxu0 %v2963
      %3248 = vmatprep.mubr.bf16.mxu0 %v2324
      %3249 = vmatmul.mubr.bf16.gmra.mrb[0].mxu0 %v2323
      %v3250 = vpop.f32.mrb[0].mxu0
      %v3251 = vadd.f32 %v3210, %v3250
      %v3252 = vpop.f32.mrb[0].mxu0
      %v3253 = vadd.f32 %v3212, %v3252
      %v3254 = vpop.f32.mrb[0].mxu0
      %v3255 = vpop.f32.mrb[0].mxu0
      %3256 = vdwg.mxu0
      %3257 = vrot.lane.b32.xlu0 %v3251, 17
      %v3258 = vpop.permute.xlu0 %3257
      %3259 = vrot.lane.b32.xlu0 %v3253, 17
      %v3260 = vpop.permute.xlu0 %3259
      %vm3261 = vcmp.lt.s32.totalorder %v740, 17
      %v3262 = vsel %vm3261, %v3258, %v3260
      %v3263 = vsel %vm3261, %v3260, %v3258
      %v3264 = vsel %vm1064, 1, 0
      %v3265 = vsel %vm1065, 1, 0
      %vm3266 = vcmp.eq.s32.totalorder %v3264, 1
      %vm3267 = vcmp.eq.s32.totalorder %v3265, 1
      %v3268 = vsel %vm3266, %v3263, 0.0
      %v3269 = vsel %vm3267, %v3262, 0.0
      %3270 = vrot.lane.b32.xlu0 %v3251, 16
      %v3271 = vpop.permute.xlu0 %3270
      %3272 = vrot.lane.b32.xlu0 %v3253, 16
      %v3273 = vpop.permute.xlu0 %3272
      %vm3274 = vcmp.lt.s32.totalorder %v740, 16
      %v3275 = vsel %vm3274, %v3271, %v3273
      %v3276 = vsel %vm3274, %v3273, %v3271
      %v3277 = vsel %vm1072, 1, 0
      %v3278 = vsel %vm1073, 1, 0
      %vm3279 = vcmp.eq.s32.totalorder %v3277, 1
      %vm3280 = vcmp.eq.s32.totalorder %v3278, 1
      %v3281 = vsel %vm3279, %v3276, 0.0
      %v3282 = vsel %vm3280, %v3275, 0.0
      %3283 = vrot.lane.b32.xlu0 %v3251, 15
      %v3284 = vpop.permute.xlu0 %3283
      %3285 = vrot.lane.b32.xlu0 %v3253, 15
      %v3286 = vpop.permute.xlu0 %3285
      %vm3287 = vcmp.lt.s32.totalorder %v740, 15
      %v3288 = vsel %vm3287, %v3284, %v3286
      %v3289 = vsel %vm3287, %v3286, %v3284
      %v3290 = vsel %vm1082, 1, 0
      %v3291 = vsel %vm1083, 1, 0
      %vm3292 = vcmp.eq.s32.totalorder %v3290, 1
      %vm3293 = vcmp.eq.s32.totalorder %v3291, 1
      %v3294 = vsel %vm3292, %v3289, 0.0
      %v3295 = vsel %vm3293, %v3288, 0.0
      %3296 = vrot.lane.b32.xlu0 %v3251, 1
      %v3297 = vpop.permute.xlu0 %3296
      %3298 = vrot.lane.b32.xlu0 %v3253, 1
      %v3299 = vpop.permute.xlu0 %3298
      %v3300 = vsel %vm2024, %v3297, %v3299
      %v3301 = vsel %vm2024, %v3299, %v3297
      %v3302 = vsel %vm1092, 1, 0
      %v3303 = vsel %vm1093, 1, 0
      %vm3304 = vcmp.eq.s32.totalorder %v3302, 1
      %vm3305 = vcmp.eq.s32.totalorder %v3303, 1
      %v3306 = vsel %vm3304, %v3301, 0.0
      %v3307 = vsel %vm3305, %v3300, 0.0
      %3308 = vrot.lane.b32.xlu0 %v3251, 127
      %v3309 = vpop.permute.xlu0 %3308
      %3310 = vrot.lane.b32.xlu0 %v3253, 127
      %v3311 = vpop.permute.xlu0 %3310
      %v3312 = vsel %vm2073, %v3309, %v3311
      %v3313 = vsel %vm2073, %v3311, %v3309
      %v3314 = vsel %vm1096, 1, 0
      %v3315 = vsel %vm1097, 1, 0
      %vm3316 = vcmp.eq.s32.totalorder %v3314, 1
      %vm3317 = vcmp.eq.s32.totalorder %v3315, 1
      %v3318 = vsel %vm3316, %v3312, 0.0
      %v3319 = vsel %vm3317, %v3313, 0.0
      %3320 = vrot.lane.b32.xlu0 %v3251, 113
      %v3321 = vpop.permute.xlu0 %3320
      %3322 = vrot.lane.b32.xlu0 %v3253, 113
      %v3323 = vpop.permute.xlu0 %3322
      %vm3324 = vcmp.lt.s32.totalorder %v740, 113
      %v3325 = vsel %vm3324, %v3321, %v3323
      %v3326 = vsel %vm3324, %v3323, %v3321
      %v3327 = vsel %vm1108, 1, 0
      %v3328 = vsel %vm1109, 1, 0
      %vm3329 = vcmp.eq.s32.totalorder %v3327, 1
      %vm3330 = vcmp.eq.s32.totalorder %v3328, 1
      %v3331 = vsel %vm3329, %v3325, 0.0
      %v3332 = vsel %vm3330, %v3326, 0.0
      %3333 = vrot.lane.b32.xlu0 %v3251, 112
      %v3334 = vpop.permute.xlu0 %3333
      %3335 = vrot.lane.b32.xlu0 %v3253, 112
      %v3336 = vpop.permute.xlu0 %3335
      %vm3337 = vcmp.lt.s32.totalorder %v740, 112
      %v3338 = vsel %vm3337, %v3334, %v3336
      %v3339 = vsel %vm3337, %v3336, %v3334
      %v3340 = vsel %vm1112, 1, 0
      %v3341 = vsel %vm1113, 1, 0
      %vm3342 = vcmp.eq.s32.totalorder %v3340, 1
      %vm3343 = vcmp.eq.s32.totalorder %v3341, 1
      %v3344 = vsel %vm3342, %v3338, 0.0
      %v3345 = vsel %vm3343, %v3339, 0.0
      %3346 = vrot.lane.b32.xlu0 %v3251, 111
      %v3347 = vpop.permute.xlu0 %3346
      %3348 = vrot.lane.b32.xlu0 %v3253, 111
      %v3349 = vpop.permute.xlu0 %3348
      %vm3350 = vcmp.lt.s32.totalorder %v740, 111
      %v3351 = vsel %vm3350, %v3347, %v3349
      %v3352 = vsel %vm3350, %v3349, %v3347
      %v3353 = vsel %vm1116, 1, 0
      %v3354 = vsel %vm1117, 1, 0
      %vm3355 = vcmp.eq.s32.totalorder %v3353, 1
      %vm3356 = vcmp.eq.s32.totalorder %v3354, 1
      %v3357 = vsel %vm3355, %v3351, 0.0
      %v3358 = vsel %vm3356, %v3352, 0.0
      %v3359 = vld [vmem:[%s4] sm:$0xf]
      %v3360 = vpack.c.bf16 %v3281, %v3268
      %v3361 = vpack.c.bf16 %v3282, %v3269
      %v3362 = vpack.c.bf16 %v3306, %v3294
      %v3363 = vpack.c.bf16 %v3307, %v3295
      %v3364 = vpack.c.bf16 %v3318, %v3251
      %v3365 = vpack.c.bf16 %v3319, %v3253
      %v3366 = vpack.c.bf16 %v3344, %v3331
      %v3367 = vpack.c.bf16 %v3345, %v3332
      %v3368 = vpack.c.bf16 %v3357, %v3357
      %v3369 = vpack.c.bf16 %v3358, %v3358
      %v3370 = vld [vmem:[%s5] sm:$0xff]
      %3372 = vset.pattern.permute.xlu0 0
      %3373 = vperm.xlu0 %3372, %v3370
      %v3374 = vpop.permute.xlu0 %3373
      %vm3376 = vcmask 588800
      %v3378 = vsel %vm3376, %v3359, 0
      %vm3380 = vcmask 1043456
      %v3382 = vsel %vm3380, %v3368, 0
      %v3385 = vsel %vm3380, %v3369, 0
      %3387 = vmatprep.subr.bf16.mxu0 %v3361
      %3388 = vmatpush1.bf16.msra.mxu0 %v3360
      %3389 = vmatprep.subr.bf16.mxu0 %v3363
      %3390 = vmatpush1.bf16.msra.mxu0 %v3362
      %3391 = vmatprep.subr.bf16.mxu0 %v3365
      %3392 = vmatpush1.bf16.msra.mxu0 %v3364
      %3393 = vmatprep.subr.bf16.mxu0 %v3367
      %3394 = vmatpush1.bf16.msra.mxu0 %v3366
      %3395 = vmatprep.subr.bf16.mxu0 %v3385
      %3396 = vmatpush1.bf16.msra.mxu0 %v3382
      %3397 = vmatprep.subr.bf16.mxu0 0
      %3398 = vmatpush1.bf16.msra.mxu0 0
      %3399 = vmatprep.subr.bf16.mxu0 0
      %3400 = vmatpush1.bf16.msra.mxu0 0
      %3401 = vmatprep.subr.bf16.mxu0 0
      %3402 = vmatpush1.bf16.msra.mxu0 0
      %3403 = vmatprep.subr.bf16.mxu0 0
      %3404 = vmatpush1.bf16.msra.mxu0 0
      %3405 = vmatprep.subr.bf16.mxu0 0
      %3406 = vmatpush1.bf16.msra.mxu0 0
      %3407 = vmatprep.subr.bf16.mxu0 0
      %3408 = vmatpush1.bf16.msra.mxu0 0
      %3409 = vmatprep.subr.bf16.mxu0 0
      %3410 = vmatpush1.bf16.msra.mxu0 0
      %3411 = vmatprep.subr.bf16.mxu0 0
      %3412 = vmatpush1.bf16.msra.mxu0 0
      %3413 = vmatprep.subr.bf16.mxu0 0
      %3414 = vmatpush1.bf16.msra.mxu0 0
      %3415 = vmatprep.subr.bf16.mxu0 0
      %3416 = vmatpush1.bf16.msra.mxu0 0
      %3417 = vmatprep.subr.bf16.mxu0 0
      %3418 = vmatpush1.bf16.msra.mxu0 0
      %3419 = vmatprep.mubr.bf16.mxu0 0
      %3420 = vmatmul.mubr.bf16.gmra.mrb[0].mxu0 %v3378
      %v3421 = vpop.f32.mrb[0].mxu0
      %v3422 = vadd.f32 %v3374, %v3421
      %v3423 = vpop.f32.mrb[0].mxu0
      %v3424 = vadd.f32 %v3374, %v3423
      %v3425 = vpop.f32.mrb[0].mxu0
      %v3426 = vpop.f32.mrb[0].mxu0
      %3427 = vdwg.mxu0
      %v3428 = vmax.f32 %v3422, 0.0
      %v3429 = vmax.f32 %v3424, 0.0
      %3430 = vrot.lane.b32.xlu0 %v3428, 17
      %v3431 = vpop.permute.xlu0 %3430
      %3432 = vrot.lane.b32.xlu0 %v3429, 17
      %v3433 = vpop.permute.xlu0 %3432
      %v3434 = vsel %vm3261, %v3431, %v3433
      %v3435 = vsel %vm3261, %v3433, %v3431
      %v3436 = vsel %vm3266, %v3435, 0.0
      %v3437 = vsel %vm3267, %v3434, 0.0
      %3438 = vrot.lane.b32.xlu0 %v3428, 16
      %v3439 = vpop.permute.xlu0 %3438
      %3440 = vrot.lane.b32.xlu0 %v3429, 16
      %v3441 = vpop.permute.xlu0 %3440
      %v3442 = vsel %vm3274, %v3439, %v3441
      %v3443 = vsel %vm3274, %v3441, %v3439
      %v3444 = vsel %vm3279, %v3443, 0.0
      %v3445 = vsel %vm3280, %v3442, 0.0
      %3446 = vrot.lane.b32.xlu0 %v3428, 15
      %v3447 = vpop.permute.xlu0 %3446
      %3448 = vrot.lane.b32.xlu0 %v3429, 15
      %v3449 = vpop.permute.xlu0 %3448
      %v3450 = vsel %vm3287, %v3447, %v3449
      %v3451 = vsel %vm3287, %v3449, %v3447
      %v3452 = vsel %vm3292, %v3451, 0.0
      %v3453 = vsel %vm3293, %v3450, 0.0
      %3454 = vrot.lane.b32.xlu0 %v3428, 1
      %v3455 = vpop.permute.xlu0 %3454
      %3456 = vrot.lane.b32.xlu0 %v3429, 1
      %v3457 = vpop.permute.xlu0 %3456
      %v3458 = vsel %vm2024, %v3455, %v3457
      %v3459 = vsel %vm2024, %v3457, %v3455
      %v3460 = vsel %vm3304, %v3459, 0.0
      %v3461 = vsel %vm3305, %v3458, 0.0
      %3462 = vrot.lane.b32.xlu0 %v3428, 127
      %v3463 = vpop.permute.xlu0 %3462
      %3464 = vrot.lane.b32.xlu0 %v3429, 127
      %v3465 = vpop.permute.xlu0 %3464
      %v3466 = vsel %vm2073, %v3463, %v3465
      %v3467 = vsel %vm2073, %v3465, %v3463
      %v3468 = vsel %vm3316, %v3466, 0.0
      %v3469 = vsel %vm3317, %v3467, 0.0
      %3470 = vrot.lane.b32.xlu0 %v3428, 113
      %v3471 = vpop.permute.xlu0 %3470
      %3472 = vrot.lane.b32.xlu0 %v3429, 113
      %v3473 = vpop.permute.xlu0 %3472
      %v3474 = vsel %vm3324, %v3471, %v3473
      %v3475 = vsel %vm3324, %v3473, %v3471
      %v3476 = vsel %vm3329, %v3474, 0.0
      %v3477 = vsel %vm3330, %v3475, 0.0
      %3478 = vrot.lane.b32.xlu0 %v3428, 112
      %v3479 = vpop.permute.xlu0 %3478
      %3480 = vrot.lane.b32.xlu0 %v3429, 112
      %v3481 = vpop.permute.xlu0 %3480
      %v3482 = vsel %vm3337, %v3479, %v3481
      %v3483 = vsel %vm3337, %v3481, %v3479
      %v3484 = vsel %vm3342, %v3482, 0.0
      %v3485 = vsel %vm3343, %v3483, 0.0
      %3486 = vrot.lane.b32.xlu0 %v3428, 111
      %v3487 = vpop.permute.xlu0 %3486
      %3488 = vrot.lane.b32.xlu0 %v3429, 111
      %v3489 = vpop.permute.xlu0 %3488
      %v3490 = vsel %vm3350, %v3487, %v3489
      %v3491 = vsel %vm3350, %v3489, %v3487
      %v3492 = vsel %vm3355, %v3490, 0.0
      %v3493 = vsel %vm3356, %v3491, 0.0
      %v3494 = vld [vmem:[%s6] sm:$0xf]
      %v3495 = vpack.c.bf16 %v3444, %v3436
      %v3496 = vpack.c.bf16 %v3445, %v3437
      %v3497 = vpack.c.bf16 %v3460, %v3452
      %v3498 = vpack.c.bf16 %v3461, %v3453
      %v3499 = vpack.c.bf16 %v3468, %v3428
      %v3500 = vpack.c.bf16 %v3469, %v3429
      %v3501 = vpack.c.bf16 %v3484, %v3476
      %v3502 = vpack.c.bf16 %v3485, %v3477
      %v3503 = vpack.c.bf16 %v3492, %v3492
      %v3504 = vpack.c.bf16 %v3493, %v3493
      %v3505 = vld [vmem:[%s7] sm:$0xff]
      %3507 = vset.pattern.permute.xlu0 0
      %3508 = vperm.xlu0 %3507, %v3505
      %v3509 = vpop.permute.xlu0 %3508
      %v3512 = vsel %vm3376, %v3494, 0
      %v3515 = vsel %vm3380, %v3503, 0
      %v3518 = vsel %vm3380, %v3504, 0
      %3520 = vmatprep.subr.bf16.mxu0 %v3496
      %3521 = vmatpush1.bf16.msra.mxu0 %v3495
      %3522 = vmatprep.subr.bf16.mxu0 %v3498
      %3523 = vmatpush1.bf16.msra.mxu0 %v3497
      %3524 = vmatprep.subr.bf16.mxu0 %v3500
      %3525 = vmatpush1.bf16.msra.mxu0 %v3499
      %3526 = vmatprep.subr.bf16.mxu0 %v3502
      %3527 = vmatpush1.bf16.msra.mxu0 %v3501
      %3528 = vmatprep.subr.bf16.mxu0 %v3518
      %3529 = vmatpush1.bf16.msra.mxu0 %v3515
      %3530 = vmatprep.subr.bf16.mxu0 0
      %3531 = vmatpush1.bf16.msra.mxu0 0
      %3532 = vmatprep.subr.bf16.mxu0 0
      %3533 = vmatpush1.bf16.msra.mxu0 0
      %3534 = vmatprep.subr.bf16.mxu0 0
      %3535 = vmatpush1.bf16.msra.mxu0 0
      %3536 = vmatprep.subr.bf16.mxu0 0
      %3537 = vmatpush1.bf16.msra.mxu0 0
      %3538 = vmatprep.subr.bf16.mxu0 0
      %3539 = vmatpush1.bf16.msra.mxu0 0
      %3540 = vmatprep.subr.bf16.mxu0 0
      %3541 = vmatpush1.bf16.msra.mxu0 0
      %3542 = vmatprep.subr.bf16.mxu0 0
      %3543 = vmatpush1.bf16.msra.mxu0 0
      %3544 = vmatprep.subr.bf16.mxu0 0
      %3545 = vmatpush1.bf16.msra.mxu0 0
      %3546 = vmatprep.subr.bf16.mxu0 0
      %3547 = vmatpush1.bf16.msra.mxu0 0
      %3548 = vmatprep.subr.bf16.mxu0 0
      %3549 = vmatpush1.bf16.msra.mxu0 0
      %3550 = vmatprep.subr.bf16.mxu0 0
      %3551 = vmatpush1.bf16.msra.mxu0 0
      %3552 = vmatprep.mubr.bf16.mxu0 0
      %3553 = vmatmul.mubr.bf16.gmra.mrb[0].mxu0 %v3512
      %v3554 = vpop.f32.mrb[0].mxu0
      %v3555 = vadd.f32 %v3509, %v3554
      %v3556 = vpop.f32.mrb[0].mxu0
      %v3557 = vadd.f32 %v3509, %v3556
      %v3558 = vpop.f32.mrb[0].mxu0
      %v3559 = vpop.f32.mrb[0].mxu0
      %3560 = vdwg.mxu0
      %v3561 = vadd.f32 %v3555, %v3251
      %v3562 = vadd.f32 %v3557, %v3253
      %v3563 = vmax.f32 %v3561, 0.0
      %v3564 = vmax.f32 %v3562, 0.0
      %3565 = vrot.lane.b32.xlu0 %v3563, 17
      %v3566 = vpop.permute.xlu0 %3565
      %3567 = vrot.lane.b32.xlu0 %v3564, 17
      %v3568 = vpop.permute.xlu0 %3567
      %v3569 = vsel %vm3261, %v3566, %v3568
      %v3570 = vsel %vm3261, %v3568, %v3566
      %v3571 = vsel %vm3266, %v3570, 0.0
      %v3572 = vsel %vm3267, %v3569, 0.0
      %3573 = vrot.lane.b32.xlu0 %v3563, 16
      %v3574 = vpop.permute.xlu0 %3573
      %3575 = vrot.lane.b32.xlu0 %v3564, 16
      %v3576 = vpop.permute.xlu0 %3575
      %v3577 = vsel %vm3274, %v3574, %v3576
      %v3578 = vsel %vm3274, %v3576, %v3574
      %v3579 = vsel %vm3279, %v3578, 0.0
      %v3580 = vsel %vm3280, %v3577, 0.0
      %3581 = vrot.lane.b32.xlu0 %v3563, 15
      %v3582 = vpop.permute.xlu0 %3581
      %3583 = vrot.lane.b32.xlu0 %v3564, 15
      %v3584 = vpop.permute.xlu0 %3583
      %v3585 = vsel %vm3287, %v3582, %v3584
      %v3586 = vsel %vm3287, %v3584, %v3582
      %v3587 = vsel %vm3292, %v3586, 0.0
      %v3588 = vsel %vm3293, %v3585, 0.0
      %3589 = vrot.lane.b32.xlu0 %v3563, 1
      %v3590 = vpop.permute.xlu0 %3589
      %3591 = vrot.lane.b32.xlu0 %v3564, 1
      %v3592 = vpop.permute.xlu0 %3591
      %v3593 = vsel %vm2024, %v3590, %v3592
      %v3594 = vsel %vm2024, %v3592, %v3590
      %v3595 = vsel %vm3304, %v3594, 0.0
      %v3596 = vsel %vm3305, %v3593, 0.0
      %3597 = vrot.lane.b32.xlu0 %v3563, 127
      %v3598 = vpop.permute.xlu0 %3597
      %3599 = vrot.lane.b32.xlu0 %v3564, 127
      %v3600 = vpop.permute.xlu0 %3599
      %v3601 = vsel %vm2073, %v3598, %v3600
      %v3602 = vsel %vm2073, %v3600, %v3598
      %v3603 = vsel %vm3316, %v3601, 0.0
      %v3604 = vsel %vm3317, %v3602, 0.0
      %3605 = vrot.lane.b32.xlu0 %v3563, 113
      %v3606 = vpop.permute.xlu0 %3605
      %3607 = vrot.lane.b32.xlu0 %v3564, 113
      %v3608 = vpop.permute.xlu0 %3607
      %v3609 = vsel %vm3324, %v3606, %v3608
      %v3610 = vsel %vm3324, %v3608, %v3606
      %v3611 = vsel %vm3329, %v3609, 0.0
      %v3612 = vsel %vm3330, %v3610, 0.0
      %3613 = vrot.lane.b32.xlu0 %v3563, 112
      %v3614 = vpop.permute.xlu0 %3613
      %3615 = vrot.lane.b32.xlu0 %v3564, 112
      %v3616 = vpop.permute.xlu0 %3615
      %v3617 = vsel %vm3337, %v3614, %v3616
      %v3618 = vsel %vm3337, %v3616, %v3614
      %v3619 = vsel %vm3342, %v3617, 0.0
      %v3620 = vsel %vm3343, %v3618, 0.0
      %3621 = vrot.lane.b32.xlu0 %v3563, 111
      %v3622 = vpop.permute.xlu0 %3621
      %3623 = vrot.lane.b32.xlu0 %v3564, 111
      %v3624 = vpop.permute.xlu0 %3623
      %v3625 = vsel %vm3350, %v3622, %v3624
      %v3626 = vsel %vm3350, %v3624, %v3622
      %v3627 = vsel %vm3355, %v3625, 0.0
      %v3628 = vsel %vm3356, %v3626, 0.0
      %v3629 = vld [vmem:[%s8] sm:$0xf]
      %v3630 = vld [vmem:[%s8 + $0x4] sm:$0xf]
      %v3631 = vpack.c.bf16 %v3579, %v3571
      %v3632 = vpack.c.bf16 %v3580, %v3572
      %v3633 = vpack.c.bf16 %v3595, %v3587
      %v3634 = vpack.c.bf16 %v3596, %v3588
      %v3635 = vpack.c.bf16 %v3603, %v3563
      %v3636 = vpack.c.bf16 %v3604, %v3564
      %v3637 = vpack.c.bf16 %v3619, %v3611
      %v3638 = vpack.c.bf16 %v3620, %v3612
      %v3639 = vpack.c.bf16 %v3627, %v3627
      %v3640 = vpack.c.bf16 %v3628, %v3628
      %v3641 = vld [vmem:[%s9] sm:$0xff]
      %v3642 = vld [vmem:[%s9 + $0x8] sm:$0xff]
      %3644 = vset.pattern.permute.xlu0 0
      %3645 = vperm.xlu0 %3644, %v3641
      %v3646 = vpop.permute.xlu0 %3645
      %3649 = vset.pattern.permute.xlu0 0
      %3650 = vperm.xlu0 %3649, %v3642
      %v3651 = vpop.permute.xlu0 %3650
      %v3655 = vunpack.c.l.b16 %v3629
      %v3656 = vunpack.c.l.b16 %v3630
      %v3657 = vpack.c.b16 %v3656, %v3655
      %v3659 = vsel %vm3376, %v3657, 0
      %v3662 = vsel %vm3380, %v3639, 0
      %v3665 = vsel %vm3380, %v3640, 0
      %3667 = vmatprep.subr.bf16.mxu0 %v3632
      %3668 = vmatpush1.bf16.msra.mxu0 %v3631
      %3669 = vmatprep.subr.bf16.mxu0 %v3634
      %3670 = vmatpush1.bf16.msra.mxu0 %v3633
      %3671 = vmatprep.subr.bf16.mxu0 %v3636
      %3672 = vmatpush1.bf16.msra.mxu0 %v3635
      %3673 = vmatprep.subr.bf16.mxu0 %v3638
      %3674 = vmatpush1.bf16.msra.mxu0 %v3637
      %3675 = vmatprep.subr.bf16.mxu0 %v3665
      %3676 = vmatpush1.bf16.msra.mxu0 %v3662
      %3677 = vmatprep.subr.bf16.mxu0 0
      %3678 = vmatpush1.bf16.msra.mxu0 0
      %3679 = vmatprep.subr.bf16.mxu0 0
      %3680 = vmatpush1.bf16.msra.mxu0 0
      %3681 = vmatprep.subr.bf16.mxu0 0
      %3682 = vmatpush1.bf16.msra.mxu0 0
      %3683 = vmatprep.subr.bf16.mxu0 0
      %3684 = vmatpush1.bf16.msra.mxu0 0
      %3685 = vmatprep.subr.bf16.mxu0 0
      %3686 = vmatpush1.bf16.msra.mxu0 0
      %3687 = vmatprep.subr.bf16.mxu0 0
      %3688 = vmatpush1.bf16.msra.mxu0 0
      %3689 = vmatprep.subr.bf16.mxu0 0
      %3690 = vmatpush1.bf16.msra.mxu0 0
      %3691 = vmatprep.subr.bf16.mxu0 0
      %3692 = vmatpush1.bf16.msra.mxu0 0
      %3693 = vmatprep.subr.bf16.mxu0 0
      %3694 = vmatpush1.bf16.msra.mxu0 0
      %3695 = vmatprep.subr.bf16.mxu0 0
      %3696 = vmatpush1.bf16.msra.mxu0 0
      %3697 = vmatprep.subr.bf16.mxu0 0
      %3698 = vmatpush1.bf16.msra.mxu0 0
      %3699 = vmatprep.mubr.bf16.mxu0 0
      %3700 = vmatmul.mubr.bf16.gmra.mrb[0].mxu0 %v3659
      %v3701 = vpop.f32.mrb[0].mxu0
      %v3702 = vadd.f32 %v3646, %v3701
      %v3703 = vpop.f32.mrb[0].mxu0
      %v3704 = vadd.f32 %v3646, %v3703
      %v3705 = vpop.f32.mrb[0].mxu0
      %v3706 = vadd.f32 %v3651, %v3705
      %v3707 = vpop.f32.mrb[0].mxu0
      %v3708 = vadd.f32 %v3651, %v3707
      %3709 = vdwg.mxu0
      %v3710 = vmax.f32 %v3702, 0.0
      %v3711 = vmax.f32 %v3704, 0.0
      %v3712 = vmax.f32 %v3706, 0.0
      %v3713 = vmax.f32 %v3708, 0.0
      %v3714 = vpack.c.bf16 %v3712, %v3710
      %v3715 = vpack.c.bf16 %v3713, %v3711
      %v3716 = vld [vmem:[%s14] sm:$0xf]
      %v3717 = vld [vmem:[%s14 + $0x4] sm:$0xf]
      %v3718 = vld [vmem:[%s14 + $0x8] sm:$0xf]
      %v3719 = vld [vmem:[%s14 + $0xc] sm:$0xf]
      %v3720 = vld [vmem:[%s14 + $0x10] sm:$0xf]
      %v3721 = vld [vmem:[%s14 + $0x14] sm:$0xf]
      %v3722 = vld [vmem:[%s14 + $0x18] sm:$0xf]
      %v3723 = vld [vmem:[%s14 + $0x1c] sm:$0xf]
      %v3724 = vld [vmem:[%s14 + $0x20] sm:$0xf]
      %v3725 = vld [vmem:[%s14 + $0x24] sm:$0xf]
      %v3726 = vld [vmem:[%s14 + $0x28] sm:$0xf]
      %v3727 = vld [vmem:[%s14 + $0x2c] sm:$0xf]
      %v3728 = vld [vmem:[%s14 + $0x30] sm:$0xf]
      %v3729 = vld [vmem:[%s14 + $0x34] sm:$0xf]
      %v3730 = vld [vmem:[%s14 + $0x38] sm:$0xf]
      %v3731 = vld [vmem:[%s14 + $0x3c] sm:$0xf]
      %v3732 = vld [vmem:[%s14 + $0x40] sm:$0xf]
      %v3733 = vld [vmem:[%s14 + $0x44] sm:$0xf]
      %v3734 = vld [vmem:[%s14 + $0x48] sm:$0xf]
      %v3735 = vld [vmem:[%s14 + $0x4c] sm:$0xf]
      %v3736 = vld [vmem:[%s14 + $0x50] sm:$0xf]
      %v3737 = vld [vmem:[%s14 + $0x54] sm:$0xf]
      %v3738 = vld [vmem:[%s14 + $0x58] sm:$0xf]
      %v3739 = vld [vmem:[%s14 + $0x5c] sm:$0xf]
      %v3740 = vld [vmem:[%s14 + $0x60] sm:$0xf]
      %v3741 = vld [vmem:[%s14 + $0x64] sm:$0xf]
      %v3742 = vld [vmem:[%s14 + $0x68] sm:$0xf]
      %v3743 = vld [vmem:[%s14 + $0x6c] sm:$0xf]
      %v3744 = vld [vmem:[%s14 + $0x70] sm:$0xf]
      %v3745 = vld [vmem:[%s14 + $0x74] sm:$0xf]
      %v3746 = vld [vmem:[%s14 + $0x78] sm:$0xf]
      %v3747 = vld [vmem:[%s14 + $0x7c] sm:$0xf]
      %v3780 = vunpack.c.l.b16 %v3716
      %v3781 = vunpack.c.l.b16 %v3717
      %v3782 = vunpack.c.l.b16 %v3718
      %v3783 = vunpack.c.l.b16 %v3719
      %v3784 = vunpack.c.l.b16 %v3720
      %v3785 = vunpack.c.l.b16 %v3721
      %v3786 = vunpack.c.l.b16 %v3722
      %v3787 = vunpack.c.l.b16 %v3723
      %v3788 = vunpack.c.l.b16 %v3724
      %v3789 = vunpack.c.l.b16 %v3725
      %v3790 = vunpack.c.l.b16 %v3726
      %v3791 = vunpack.c.l.b16 %v3727
      %v3792 = vunpack.c.l.b16 %v3728
      %v3793 = vunpack.c.l.b16 %v3729
      %v3794 = vunpack.c.l.b16 %v3730
      %v3795 = vunpack.c.l.b16 %v3731
      %v3796 = vunpack.c.l.b16 %v3732
      %v3797 = vunpack.c.l.b16 %v3733
      %v3798 = vunpack.c.l.b16 %v3734
      %v3799 = vunpack.c.l.b16 %v3735
      %v3800 = vunpack.c.l.b16 %v3736
      %v3801 = vunpack.c.l.b16 %v3737
      %v3802 = vunpack.c.l.b16 %v3738
      %v3803 = vunpack.c.l.b16 %v3739
      %v3804 = vunpack.c.l.b16 %v3740
      %v3805 = vunpack.c.l.b16 %v3741
      %v3806 = vunpack.c.l.b16 %v3742
      %v3807 = vunpack.c.l.b16 %v3743
      %v3808 = vunpack.c.l.b16 %v3744
      %v3809 = vunpack.c.l.b16 %v3745
      %v3810 = vunpack.c.l.b16 %v3746
      %v3811 = vunpack.c.l.b16 %v3747
      %v3812 = vpack.c.b16 %v3781, %v3780
      %v3813 = vpack.c.b16 %v3783, %v3782
      %v3814 = vpack.c.b16 %v3785, %v3784
      %v3815 = vpack.c.b16 %v3787, %v3786
      %v3816 = vpack.c.b16 %v3789, %v3788
      %v3817 = vpack.c.b16 %v3791, %v3790
      %v3818 = vpack.c.b16 %v3793, %v3792
      %v3819 = vpack.c.b16 %v3795, %v3794
      %v3820 = vpack.c.b16 %v3797, %v3796
      %v3821 = vpack.c.b16 %v3799, %v3798
      %v3822 = vpack.c.b16 %v3801, %v3800
      %v3823 = vpack.c.b16 %v3803, %v3802
      %v3824 = vpack.c.b16 %v3805, %v3804
      %v3825 = vpack.c.b16 %v3807, %v3806
      %v3826 = vpack.c.b16 %v3809, %v3808
      %v3827 = vpack.c.b16 %v3811, %v3810
      %3844 = vmatprep.subr.bf16.mxu0 0
      %3845 = vmatpush1.bf16.msra.mxu0 %v3812
      %3846 = vmatprep.subr.bf16.mxu0 0
      %3847 = vmatpush1.bf16.msra.mxu0 %v3813
      %3848 = vmatprep.subr.bf16.mxu0 0
      %3849 = vmatpush1.bf16.msra.mxu0 %v3814
      %3850 = vmatprep.subr.bf16.mxu0 0
      %3851 = vmatpush1.bf16.msra.mxu0 %v3815
      %3852 = vmatprep.subr.bf16.mxu0 0
      %3853 = vmatpush1.bf16.msra.mxu0 %v3816
      %3854 = vmatprep.subr.bf16.mxu0 0
      %3855 = vmatpush1.bf16.msra.mxu0 %v3817
      %3856 = vmatprep.subr.bf16.mxu0 0
      %3857 = vmatpush1.bf16.msra.mxu0 %v3818
      %3858 = vmatprep.subr.bf16.mxu0 0
      %3859 = vmatpush1.bf16.msra.mxu0 %v3819
      %3860 = vmatprep.subr.bf16.mxu0 0
      %3861 = vmatpush1.bf16.msra.mxu0 %v3820
      %3862 = vmatprep.subr.bf16.mxu0 0
      %3863 = vmatpush1.bf16.msra.mxu0 %v3821
      %3864 = vmatprep.subr.bf16.mxu0 0
      %3865 = vmatpush1.bf16.msra.mxu0 %v3822
      %3866 = vmatprep.subr.bf16.mxu0 0
      %3867 = vmatpush1.bf16.msra.mxu0 %v3823
      %3868 = vmatprep.subr.bf16.mxu0 0
      %3869 = vmatpush1.bf16.msra.mxu0 %v3824
      %3870 = vmatprep.subr.bf16.mxu0 0
      %3871 = vmatpush1.bf16.msra.mxu0 %v3825
      %3872 = vmatprep.subr.bf16.mxu0 0
      %3873 = vmatpush1.bf16.msra.mxu0 %v3826
      %3874 = vmatprep.subr.bf16.mxu0 0
      %3875 = vmatpush1.bf16.msra.mxu0 %v3827
      %3876 = vmatprep.mubr.bf16.mxu0 %v3715
      %3877 = vmatmul.mubr.bf16.gmra.mrb[0].mxu0 %v3714
      %v3878 = vpop.f32.mrb[0].mxu0
      %v3879 = vadd.f32 0.0, %v3878
      %v3880 = vpop.f32.mrb[0].mxu0
      %v3881 = vpop.f32.mrb[0].mxu0
      %v3882 = vadd.f32 0.0, %v3881
      %v3883 = vpop.f32.mrb[0].mxu0
      %3884 = vdwg.mxu0
      %v3885 = vpack.c.bf16 %v3563, %v3563
      %v3886 = vpack.c.bf16 %v3564, %v3564
      %3887 = vmatprep.subr.bf16.mxu0 0
      %3888 = vmatpush1.bf16.msra.mxu0 %v3812
      %3889 = vmatprep.subr.bf16.mxu0 0
      %3890 = vmatpush1.bf16.msra.mxu0 %v3813
      %3891 = vmatprep.subr.bf16.mxu0 0
      %3892 = vmatpush1.bf16.msra.mxu0 %v3814
      %3893 = vmatprep.subr.bf16.mxu0 0
      %3894 = vmatpush1.bf16.msra.mxu0 %v3815
      %3895 = vmatprep.subr.bf16.mxu0 0
      %3896 = vmatpush1.bf16.msra.mxu0 %v3816
      %3897 = vmatprep.subr.bf16.mxu0 0
      %3898 = vmatpush1.bf16.msra.mxu0 %v3817
      %3899 = vmatprep.subr.bf16.mxu0 0
      %3900 = vmatpush1.bf16.msra.mxu0 %v3818
      %3901 = vmatprep.subr.bf16.mxu0 0
      %3902 = vmatpush1.bf16.msra.mxu0 %v3819
      %3903 = vmatprep.subr.bf16.mxu0 0
      %3904 = vmatpush1.bf16.msra.mxu0 %v3820
      %3905 = vmatprep.subr.bf16.mxu0 0
      %3906 = vmatpush1.bf16.msra.mxu0 %v3821
      %3907 = vmatprep.subr.bf16.mxu0 0
      %3908 = vmatpush1.bf16.msra.mxu0 %v3822
      %3909 = vmatprep.subr.bf16.mxu0 0
      %3910 = vmatpush1.bf16.msra.mxu0 %v3823
      %3911 = vmatprep.subr.bf16.mxu0 0
      %3912 = vmatpush1.bf16.msra.mxu0 %v3824
      %3913 = vmatprep.subr.bf16.mxu0 0
      %3914 = vmatpush1.bf16.msra.mxu0 %v3825
      %3915 = vmatprep.subr.bf16.mxu0 0
      %3916 = vmatpush1.bf16.msra.mxu0 %v3826
      %3917 = vmatprep.subr.bf16.mxu0 0
      %3918 = vmatpush1.bf16.msra.mxu0 %v3827
      %3919 = vmatprep.mubr.bf16.mxu0 %v3886
      %3920 = vmatmul.mubr.bf16.gmra.mrb[0].mxu0 %v3885
      %v3921 = vpop.f32.mrb[0].mxu0
      %v3922 = vadd.f32 0.0, %v3921
      %v3923 = vpop.f32.mrb[0].mxu0
      %v3924 = vpop.f32.mrb[0].mxu0
      %v3925 = vpop.f32.mrb[0].mxu0
      %3926 = vdwg.mxu0
      %v3927 = vld [vmem:[%s12] sm:$0xf]
      %v3928 = vld [vmem:[%s12 + $0x4] sm:$0xf]
      %v3929 = vpack.c.bf16 %v3922, %v3922
      %v3930 = vld [vmem:[%s13] sm:$0xff]
      %v3931 = vld [vmem:[%s13 + $0x8] sm:$0xff]
      %3933 = vset.pattern.permute.xlu0 0
      %3934 = vperm.xlu0 %3933, %v3930
      %v3935 = vpop.permute.xlu0 %3934
      %3938 = vset.pattern.permute.xlu0 0
      %3939 = vperm.xlu0 %3938, %v3931
      %v3940 = vpop.permute.xlu0 %3939
      %v3944 = vunpack.c.l.b16 %v3927
      %v3945 = vunpack.c.l.b16 %v3928
      %v3946 = vpack.c.b16 %v3945, %v3944
      %vm3947 = vcmask 64512
      %v3949 = vsel %vm3947, %v3946, 0
      %v3952 = vsel %vm3380, %v3929, 0
      %3954 = vmatprep.subr.bf16.mxu0 0
      %3955 = vmatpush1.bf16.msra.mxu0 %v3952
      %3956 = vmatprep.subr.bf16.mxu0 0
      %3957 = vmatpush1.bf16.msra.mxu0 0
      %3958 = vmatprep.subr.bf16.mxu0 0
      %3959 = vmatpush1.bf16.msra.mxu0 0
      %3960 = vmatprep.subr.bf16.mxu0 0
      %3961 = vmatpush1.bf16.msra.mxu0 0
      %3962 = vmatprep.subr.bf16.mxu0 0
      %3963 = vmatpush1.bf16.msra.mxu0 0
      %3964 = vmatprep.subr.bf16.mxu0 0
      %3965 = vmatpush1.bf16.msra.mxu0 0
      %3966 = vmatprep.subr.bf16.mxu0 0
      %3967 = vmatpush1.bf16.msra.mxu0 0
      %3968 = vmatprep.subr.bf16.mxu0 0
      %3969 = vmatpush1.bf16.msra.mxu0 0
      %3970 = vmatprep.subr.bf16.mxu0 0
      %3971 = vmatpush1.bf16.msra.mxu0 0
      %3972 = vmatprep.subr.bf16.mxu0 0
      %3973 = vmatpush1.bf16.msra.mxu0 0
      %3974 = vmatprep.subr.bf16.mxu0 0
      %3975 = vmatpush1.bf16.msra.mxu0 0
      %3976 = vmatprep.subr.bf16.mxu0 0
      %3977 = vmatpush1.bf16.msra.mxu0 0
      %3978 = vmatprep.subr.bf16.mxu0 0
      %3979 = vmatpush1.bf16.msra.mxu0 0
      %3980 = vmatprep.subr.bf16.mxu0 0
      %3981 = vmatpush1.bf16.msra.mxu0 0
      %3982 = vmatprep.subr.bf16.mxu0 0
      %3983 = vmatpush1.bf16.msra.mxu0 0
      %3984 = vmatprep.subr.bf16.mxu0 0
      %3985 = vmatpush1.bf16.msra.mxu0 0
      %3986 = vmatprep.mubr.bf16.mxu0 0
      %3987 = vmatmul.mubr.bf16.gmra.mrb[0].mxu0 %v3949
      %v3988 = vpop.f32.mrb[0].mxu0
      %v3989 = vadd.f32 %v3935, %v3988
      %v3990 = vpop.f32.mrb[0].mxu0
      %v3991 = vpop.f32.mrb[0].mxu0
      %v3992 = vadd.f32 %v3940, %v3991
      %v3993 = vpop.f32.mrb[0].mxu0
      %3994 = vdwg.mxu0
      %vm3995 = vcmask 523264
      %3996 = vst.msk [vmem:[#allocation2 + $0x8] sm:$0xff] %vm3995, %v3879
      %3997 = vst.msk [vmem:[#allocation2 + $0x20] sm:$0xff] %vm3995, %v3882
      %v3998 = vld [vmem:[#allocation2] sm:$0xff]
      %v3999 = vld [vmem:[#allocation2 + $0x8] sm:$0xff]
      %v4000 = vld [vmem:[#allocation2 + $0x18] sm:$0xff]
      %v4001 = vld [vmem:[#allocation2 + $0x20] sm:$0xff]
      %v4002 = vsel %vm1128, 1, 0
      %vm4003 = vcmp.eq.s32.totalorder %v4002, 1
      %4008 = vrot.lane.b32.xlu0 %v3998, 9
      %v4009 = vpop.permute.xlu0 %4008
      %4010 = vrot.lane.b32.xlu0 %v3999, 9
      %v4011 = vpop.permute.xlu0 %4010
      %4012 = vrot.lane.b32.xlu0 %v4000, 9
      %v4013 = vpop.permute.xlu0 %4012
      %4014 = vrot.lane.b32.xlu0 %v4001, 9
      %v4015 = vpop.permute.xlu0 %4014
      %vm4016 = vcmask 72704
      %v4017 = vsel %vm4016, %v4009, %v4011
      %v4018 = vsel %vm4016, %v4013, %v4015
      %v4021 = vsel %vm4003, %v4017, 0.0
      %v4022 = vsel %vm4003, %v4018, 0.0
      %v4023 = vsel %vm1132, 1, 0
      %vm4024 = vcmp.eq.s32.totalorder %v4023, 1
      %4025 = vrot.lane.b32.xlu0 %v3998, 8
      %v4026 = vpop.permute.xlu0 %4025
      %4027 = vrot.lane.b32.xlu0 %v3999, 8
      %v4028 = vpop.permute.xlu0 %4027
      %4029 = vrot.lane.b32.xlu0 %v4000, 8
      %v4030 = vpop.permute.xlu0 %4029
      %4031 = vrot.lane.b32.xlu0 %v4001, 8
      %v4032 = vpop.permute.xlu0 %4031
      %v4033 = vsel %vm3947, %v4026, %v4028
      %v4034 = vsel %vm3947, %v4030, %v4032
      %v4037 = vsel %vm4024, %v4033, 0.0
      %v4038 = vsel %vm4024, %v4034, 0.0
      %v4039 = vsel %vm1137, 1, 0
      %vm4040 = vcmp.eq.s32.totalorder %v4039, 1
      %4041 = vrot.lane.b32.xlu0 %v3998, 7
      %v4042 = vpop.permute.xlu0 %4041
      %4043 = vrot.lane.b32.xlu0 %v3999, 7
      %v4044 = vpop.permute.xlu0 %4043
      %4045 = vrot.lane.b32.xlu0 %v4000, 7
      %v4046 = vpop.permute.xlu0 %4045
      %4047 = vrot.lane.b32.xlu0 %v4001, 7
      %v4048 = vpop.permute.xlu0 %4047
      %vm4049 = vcmask 56320
      %v4050 = vsel %vm4049, %v4042, %v4044
      %v4051 = vsel %vm4049, %v4046, %v4048
      %v4054 = vsel %vm4040, %v4050, 0.0
      %v4055 = vsel %vm4040, %v4051, 0.0
      %v4056 = vsel %vm1142, 1, 0
      %vm4057 = vcmp.eq.s32.totalorder %v4056, 1
      %4058 = vrot.lane.b32.xlu0 %v3998, 1
      %v4059 = vpop.permute.xlu0 %4058
      %4060 = vrot.lane.b32.xlu0 %v3999, 1
      %v4061 = vpop.permute.xlu0 %4060
      %4062 = vrot.lane.b32.xlu0 %v4000, 1
      %v4063 = vpop.permute.xlu0 %4062
      %4064 = vrot.lane.b32.xlu0 %v4001, 1
      %v4065 = vpop.permute.xlu0 %4064
      %vm4066 = vcmask 7168
      %v4067 = vsel %vm4066, %v4059, %v4061
      %v4068 = vsel %vm4066, %v4063, %v4065
      %v4071 = vsel %vm4057, %v4067, 0.0
      %v4072 = vsel %vm4057, %v4068, 0.0
      %v4073 = vsel %vm1144, 1, 0
      %vm4074 = vcmp.eq.s32.totalorder %v4073, 1
      %4075 = vrot.lane.b32.xlu0 %v3999, 127
      %v4076 = vpop.permute.xlu0 %4075
      %4077 = vrot.lane.b32.xlu0 %v4001, 127
      %v4078 = vpop.permute.xlu0 %4077
      %v4081 = vsel %vm4074, %v4076, 0.0
      %v4082 = vsel %vm4074, %v4078, 0.0
      %v4083 = vsel %vm1150, 1, 0
      %vm4084 = vcmp.eq.s32.totalorder %v4083, 1
      %4085 = vrot.lane.b32.xlu0 %v3999, 121
      %v4086 = vpop.permute.xlu0 %4085
      %4087 = vrot.lane.b32.xlu0 %v4001, 121
      %v4088 = vpop.permute.xlu0 %4087
      %v4091 = vsel %vm4084, %v4086, 0.0
      %v4092 = vsel %vm4084, %v4088, 0.0
      %v4093 = vsel %vm1152, 1, 0
      %vm4094 = vcmp.eq.s32.totalorder %v4093, 1
      %4095 = vrot.lane.b32.xlu0 %v3999, 120
      %v4096 = vpop.permute.xlu0 %4095
      %4097 = vrot.lane.b32.xlu0 %v4001, 120
      %v4098 = vpop.permute.xlu0 %4097
      %v4101 = vsel %vm4094, %v4096, 0.0
      %v4102 = vsel %vm4094, %v4098, 0.0
      %v4103 = vsel %vm1154, 1, 0
      %vm4104 = vcmp.eq.s32.totalorder %v4103, 1
      %4105 = vrot.lane.b32.xlu0 %v3999, 119
      %v4106 = vpop.permute.xlu0 %4105
      %4107 = vrot.lane.b32.xlu0 %v4001, 119
      %v4108 = vpop.permute.xlu0 %4107
      %v4111 = vsel %vm4104, %v4106, 0.0
      %v4112 = vsel %vm4104, %v4108, 0.0
      %v4113 = vld [vmem:[%s10] sm:$0xff]
      %v4114 = vld [vmem:[%s10 + $0x8] sm:$0xff]
      %v4115 = vpack.c.bf16 %v4022, %v4021
      %v4116 = vpack.c.bf16 %v4038, %v4037
      %v4117 = vpack.c.bf16 %v4055, %v4054
      %v4118 = vpack.c.bf16 %v4072, %v4071
      %v4119 = vpack.c.bf16 %v3882, %v3879
      %v4120 = vpack.c.bf16 %v4082, %v4081
      %v4121 = vpack.c.bf16 %v4092, %v4091
      %v4122 = vpack.c.bf16 %v4102, %v4101
      %v4123 = vpack.c.bf16 %v4112, %v4111
      %v4124 = vld [vmem:[%s11] sm:$0xff]
      %v4125 = vld [vmem:[%s11 + $0x8] sm:$0xff]
      %4127 = vset.pattern.permute.xlu0 0
      %4128 = vperm.xlu0 %4127, %v4124
      %v4129 = vpop.permute.xlu0 %4128
      %4132 = vset.pattern.permute.xlu0 0
      %4133 = vperm.xlu0 %4132, %v4125
      %v4134 = vpop.permute.xlu0 %4133
      %v4138 = vunpack.c.l.b16 %v4113
      %v4139 = vunpack.c.h.b16 %v4113
      %v4140 = vunpack.c.l.b16 %v4114
      %v4141 = vunpack.c.h.b16 %v4114
      %v4142 = vpack.c.b16 %v4140, %v4138
      %v4143 = vpack.c.b16 %v4141, %v4139
      %vm4145 = vcmask 130048
      %v4147 = vsel %vm4145, %v4143, 0
      %4149 = vmatprep.subr.bf16.mxu0 0
      %4150 = vmatpush1.bf16.msra.mxu0 %v4115
      %4151 = vmatprep.subr.bf16.mxu0 0
      %4152 = vmatpush1.bf16.msra.mxu0 %v4116
      %4153 = vmatprep.subr.bf16.mxu0 0
      %4154 = vmatpush1.bf16.msra.mxu0 %v4117
      %4155 = vmatprep.subr.bf16.mxu0 0
      %4156 = vmatpush1.bf16.msra.mxu0 %v4118
      %4157 = vmatprep.subr.bf16.mxu0 0
      %4158 = vmatpush1.bf16.msra.mxu0 %v4119
      %4159 = vmatprep.subr.bf16.mxu0 0
      %4160 = vmatpush1.bf16.msra.mxu0 %v4120
      %4161 = vmatprep.subr.bf16.mxu0 0
      %4162 = vmatpush1.bf16.msra.mxu0 %v4121
      %4163 = vmatprep.subr.bf16.mxu0 0
      %4164 = vmatpush1.bf16.msra.mxu0 %v4122
      %4165 = vmatprep.subr.bf16.mxu0 0
      %4166 = vmatpush1.bf16.msra.mxu0 %v4123
      %4167 = vmatprep.subr.bf16.mxu0 0
      %4168 = vmatpush1.bf16.msra.mxu0 0
      %4169 = vmatprep.subr.bf16.mxu0 0
      %4170 = vmatpush1.bf16.msra.mxu0 0
      %4171 = vmatprep.subr.bf16.mxu0 0
      %4172 = vmatpush1.bf16.msra.mxu0 0
      %4173 = vmatprep.subr.bf16.mxu0 0
      %4174 = vmatpush1.bf16.msra.mxu0 0
      %4175 = vmatprep.subr.bf16.mxu0 0
      %4176 = vmatpush1.bf16.msra.mxu0 0
      %4177 = vmatprep.subr.bf16.mxu0 0
      %4178 = vmatpush1.bf16.msra.mxu0 0
      %4179 = vmatprep.subr.bf16.mxu0 0
      %4180 = vmatpush1.bf16.msra.mxu0 0
      %4181 = vmatprep.mubr.bf16.mxu0 %v4147
      %4182 = vmatmul.mubr.bf16.gmra.mrb[0].mxu0 %v4142
      %v4183 = vpop.f32.mrb[0].mxu0
      %v4184 = vadd.f32 %v4129, %v4183
      %v4185 = vpop.f32.mrb[0].mxu0
      %v4186 = vpop.f32.mrb[0].mxu0
      %v4187 = vadd.f32 %v4134, %v4186
      %v4188 = vpop.f32.mrb[0].mxu0
      %4189 = vdwg.mxu0
      %v4190 = vadd.f32 %v4184, %v3989
      %v4191 = vadd.f32 %v4187, %v3992
      %v4192 = vmax.f32 %v4190, 0.0
      %v4193 = vmax.f32 %v4191, 0.0
      %v4194 = vpack.c.bf16 %v4193, %v4192
      %v4195 = vld [vmem:[%s22] sm:$0xf]
      %v4196 = vld [vmem:[%s22 + $0x4] sm:$0xf]
      %v4197 = vld [vmem:[%s22 + $0x8] sm:$0xf]
      %v4198 = vld [vmem:[%s22 + $0xc] sm:$0xf]
      %v4199 = vld [vmem:[%s22 + $0x10] sm:$0xf]
      %v4200 = vld [vmem:[%s22 + $0x14] sm:$0xf]
      %v4201 = vld [vmem:[%s22 + $0x18] sm:$0xf]
      %v4202 = vld [vmem:[%s22 + $0x1c] sm:$0xf]
      %v4211 = vunpack.c.l.b16 %v4195
      %v4212 = vunpack.c.l.b16 %v4196
      %v4213 = vunpack.c.l.b16 %v4197
      %v4214 = vunpack.c.l.b16 %v4198
      %v4215 = vunpack.c.l.b16 %v4199
      %v4216 = vunpack.c.l.b16 %v4200
      %v4217 = vunpack.c.l.b16 %v4201
      %v4218 = vunpack.c.l.b16 %v4202
      %v4219 = vpack.c.b16 %v4212, %v4211
      %v4220 = vpack.c.b16 %v4214, %v4213
      %v4221 = vpack.c.b16 %v4216, %v4215
      %v4222 = vpack.c.b16 %v4218, %v4217
      %v4228 = vsel %vm3995, %v4194, 0
      %4230 = vmatprep.subr.bf16.mxu0 0
      %4231 = vmatpush1.bf16.msra.mxu0 %v4219
      %4232 = vmatprep.subr.bf16.mxu0 0
      %4233 = vmatpush1.bf16.msra.mxu0 %v4220
      %4234 = vmatprep.subr.bf16.mxu0 0
      %4235 = vmatpush1.bf16.msra.mxu0 %v4221
      %4236 = vmatprep.subr.bf16.mxu0 0
      %4237 = vmatpush1.bf16.msra.mxu0 %v4222
      %4238 = vmatprep.subr.bf16.mxu0 0
      %4239 = vmatpush1.bf16.msra.mxu0 0
      %4240 = vmatprep.subr.bf16.mxu0 0
      %4241 = vmatpush1.bf16.msra.mxu0 0
      %4242 = vmatprep.subr.bf16.mxu0 0
      %4243 = vmatpush1.bf16.msra.mxu0 0
      %4244 = vmatprep.subr.bf16.mxu0 0
      %4245 = vmatpush1.bf16.msra.mxu0 0
      %4246 = vmatprep.subr.bf16.mxu0 0
      %4247 = vmatpush1.bf16.msra.mxu0 0
      %4248 = vmatprep.subr.bf16.mxu0 0
      %4249 = vmatpush1.bf16.msra.mxu0 0
      %4250 = vmatprep.subr.bf16.mxu0 0
      %4251 = vmatpush1.bf16.msra.mxu0 0
      %4252 = vmatprep.subr.bf16.mxu0 0
      %4253 = vmatpush1.bf16.msra.mxu0 0
      %4254 = vmatprep.subr.bf16.mxu0 0
      %4255 = vmatpush1.bf16.msra.mxu0 0
      %4256 = vmatprep.subr.bf16.mxu0 0
      %4257 = vmatpush1.bf16.msra.mxu0 0
      %4258 = vmatprep.subr.bf16.mxu0 0
      %4259 = vmatpush1.bf16.msra.mxu0 0
      %4260 = vmatprep.subr.bf16.mxu0 0
      %4261 = vmatpush1.bf16.msra.mxu0 0
      %4262 = vmatprep.mubr.bf16.mxu0 0
      %4263 = vmatmul.mubr.bf16.gmra.mrb[0].mxu0 %v4228
      %v4264 = vpop.f32.mrb[0].mxu0
      %v4265 = vadd.f32 0.0, %v4264
      %v4266 = vpop.f32.mrb[0].mxu0
      %v4267 = vpop.f32.mrb[0].mxu0
      %v4268 = vadd.f32 0.0, %v4267
      %v4269 = vpop.f32.mrb[0].mxu0
      %4270 = vdwg.mxu0
      %4271 = vst.msk [vmem:[%s737] sm:$0xff] %vm3995, %v4265
      %4272 = vst.msk [vmem:[%s737 + $0x8] sm:$0xff] %vm3995, %v4268
      %4273 = vst.msk [vmem:[#allocation2 + $0x8] sm:$0xff] %vm3995, %v4192
      %4274 = vst.msk [vmem:[#allocation2 + $0x20] sm:$0xff] %vm3995, %v4193
      %v4275 = vld [vmem:[#allocation2] sm:$0xff]
      %v4276 = vld [vmem:[#allocation2 + $0x8] sm:$0xff]
      %v4277 = vld [vmem:[#allocation2 + $0x18] sm:$0xff]
      %v4278 = vld [vmem:[#allocation2 + $0x20] sm:$0xff]
      %4283 = vrot.lane.b32.xlu0 %v4275, 9
      %v4284 = vpop.permute.xlu0 %4283
      %4285 = vrot.lane.b32.xlu0 %v4276, 9
      %v4286 = vpop.permute.xlu0 %4285
      %4287 = vrot.lane.b32.xlu0 %v4277, 9
      %v4288 = vpop.permute.xlu0 %4287
      %4289 = vrot.lane.b32.xlu0 %v4278, 9
      %v4290 = vpop.permute.xlu0 %4289
      %v4291 = vsel %vm4016, %v4284, %v4286
      %v4292 = vsel %vm4016, %v4288, %v4290
      %v4295 = vsel %vm4003, %v4291, 0.0
      %v4296 = vsel %vm4003, %v4292, 0.0
      %4297 = vrot.lane.b32.xlu0 %v4275, 8
      %v4298 = vpop.permute.xlu0 %4297
      %4299 = vrot.lane.b32.xlu0 %v4276, 8
      %v4300 = vpop.permute.xlu0 %4299
      %4301 = vrot.lane.b32.xlu0 %v4277, 8
      %v4302 = vpop.permute.xlu0 %4301
      %4303 = vrot.lane.b32.xlu0 %v4278, 8
      %v4304 = vpop.permute.xlu0 %4303
      %v4305 = vsel %vm3947, %v4298, %v4300
      %v4306 = vsel %vm3947, %v4302, %v4304
      %v4309 = vsel %vm4024, %v4305, 0.0
      %v4310 = vsel %vm4024, %v4306, 0.0
      %4311 = vrot.lane.b32.xlu0 %v4275, 7
      %v4312 = vpop.permute.xlu0 %4311
      %4313 = vrot.lane.b32.xlu0 %v4276, 7
      %v4314 = vpop.permute.xlu0 %4313
      %4315 = vrot.lane.b32.xlu0 %v4277, 7
      %v4316 = vpop.permute.xlu0 %4315
      %4317 = vrot.lane.b32.xlu0 %v4278, 7
      %v4318 = vpop.permute.xlu0 %4317
      %v4319 = vsel %vm4049, %v4312, %v4314
      %v4320 = vsel %vm4049, %v4316, %v4318
      %v4323 = vsel %vm4040, %v4319, 0.0
      %v4324 = vsel %vm4040, %v4320, 0.0
      %4325 = vrot.lane.b32.xlu0 %v4275, 1
      %v4326 = vpop.permute.xlu0 %4325
      %4327 = vrot.lane.b32.xlu0 %v4276, 1
      %v4328 = vpop.permute.xlu0 %4327
      %4329 = vrot.lane.b32.xlu0 %v4277, 1
      %v4330 = vpop.permute.xlu0 %4329
      %4331 = vrot.lane.b32.xlu0 %v4278, 1
      %v4332 = vpop.permute.xlu0 %4331
      %v4333 = vsel %vm4066, %v4326, %v4328
      %v4334 = vsel %vm4066, %v4330, %v4332
      %v4337 = vsel %vm4057, %v4333, 0.0
      %v4338 = vsel %vm4057, %v4334, 0.0
      %4339 = vrot.lane.b32.xlu0 %v4276, 127
      %v4340 = vpop.permute.xlu0 %4339
      %4341 = vrot.lane.b32.xlu0 %v4278, 127
      %v4342 = vpop.permute.xlu0 %4341
      %v4345 = vsel %vm4074, %v4340, 0.0
      %v4346 = vsel %vm4074, %v4342, 0.0
      %4347 = vrot.lane.b32.xlu0 %v4276, 121
      %v4348 = vpop.permute.xlu0 %4347
      %4349 = vrot.lane.b32.xlu0 %v4278, 121
      %v4350 = vpop.permute.xlu0 %4349
      %v4353 = vsel %vm4084, %v4348, 0.0
      %v4354 = vsel %vm4084, %v4350, 0.0
      %4355 = vrot.lane.b32.xlu0 %v4276, 120
      %v4356 = vpop.permute.xlu0 %4355
      %4357 = vrot.lane.b32.xlu0 %v4278, 120
      %v4358 = vpop.permute.xlu0 %4357
      %v4361 = vsel %vm4094, %v4356, 0.0
      %v4362 = vsel %vm4094, %v4358, 0.0
      %4363 = vrot.lane.b32.xlu0 %v4276, 119
      %v4364 = vpop.permute.xlu0 %4363
      %4365 = vrot.lane.b32.xlu0 %v4278, 119
      %v4366 = vpop.permute.xlu0 %4365
      %v4369 = vsel %vm4104, %v4364, 0.0
      %v4370 = vsel %vm4104, %v4366, 0.0
      %v4371 = vld [vmem:[%s15] sm:$0xff]
      %v4372 = vld [vmem:[%s15 + $0x8] sm:$0xff]
      %v4373 = vld [vmem:[%s15 + $0x10] sm:$0xff]
      %v4374 = vld [vmem:[%s15 + $0x18] sm:$0xff]
      %v4375 = vpack.c.bf16 %v4296, %v4295
      %v4376 = vpack.c.bf16 %v4310, %v4309
      %v4377 = vpack.c.bf16 %v4324, %v4323
      %v4378 = vpack.c.bf16 %v4338, %v4337
      %v4379 = vpack.c.bf16 %v4346, %v4345
      %v4380 = vpack.c.bf16 %v4354, %v4353
      %v4381 = vpack.c.bf16 %v4362, %v4361
      %v4382 = vpack.c.bf16 %v4370, %v4369
      %v4383 = vld [vmem:[%s16] sm:$0xff]
      %v4384 = vld [vmem:[%s16 + $0x8] sm:$0xff]
      %v4385 = vld [vmem:[%s16 + $0x10] sm:$0xff]
      %v4386 = vld [vmem:[%s16 + $0x18] sm:$0xff]
      %4388 = vset.pattern.permute.xlu0 0
      %4389 = vperm.xlu0 %4388, %v4383
      %v4390 = vpop.permute.xlu0 %4389
      %4393 = vset.pattern.permute.xlu0 0
      %4394 = vperm.xlu0 %4393, %v4384
      %v4395 = vpop.permute.xlu0 %4394
      %4398 = vset.pattern.permute.xlu0 0
      %4399 = vperm.xlu0 %4398, %v4385
      %v4400 = vpop.permute.xlu0 %4399
      %4403 = vset.pattern.permute.xlu0 0
      %4404 = vperm.xlu0 %4403, %v4386
      %v4405 = vpop.permute.xlu0 %4404
      %v4411 = vunpack.c.l.b16 %v4371
      %v4412 = vunpack.c.h.b16 %v4371
      %v4413 = vunpack.c.l.b16 %v4372
      %v4414 = vunpack.c.h.b16 %v4372
      %v4415 = vunpack.c.l.b16 %v4373
      %v4416 = vunpack.c.h.b16 %v4373
      %v4417 = vunpack.c.l.b16 %v4374
      %v4418 = vunpack.c.h.b16 %v4374
      %v4419 = vpack.c.b16 %v4413, %v4411
      %v4420 = vpack.c.b16 %v4414, %v4412
      %v4421 = vpack.c.b16 %v4417, %v4415
      %v4422 = vpack.c.b16 %v4418, %v4416
      %v4426 = vsel %vm4145, %v4420, 0
      %v4429 = vsel %vm4145, %v4422, 0
      %4431 = vmatprep.subr.bf16.mxu0 0
      %4432 = vmatpush1.bf16.msra.mxu0 %v4375
      %4433 = vmatprep.subr.bf16.mxu0 0
      %4434 = vmatpush1.bf16.msra.mxu0 %v4376
      %4435 = vmatprep.subr.bf16.mxu0 0
      %4436 = vmatpush1.bf16.msra.mxu0 %v4377
      %4437 = vmatprep.subr.bf16.mxu0 0
      %4438 = vmatpush1.bf16.msra.mxu0 %v4378
      %4439 = vmatprep.subr.bf16.mxu0 0
      %4440 = vmatpush1.bf16.msra.mxu0 %v4194
      %4441 = vmatprep.subr.bf16.mxu0 0
      %4442 = vmatpush1.bf16.msra.mxu0 %v4379
      %4443 = vmatprep.subr.bf16.mxu0 0
      %4444 = vmatpush1.bf16.msra.mxu0 %v4380
      %4445 = vmatprep.subr.bf16.mxu0 0
      %4446 = vmatpush1.bf16.msra.mxu0 %v4381
      %4447 = vmatprep.subr.bf16.mxu0 0
      %4448 = vmatpush1.bf16.msra.mxu0 %v4382
      %4449 = vmatprep.subr.bf16.mxu0 0
      %4450 = vmatpush1.bf16.msra.mxu0 0
      %4451 = vmatprep.subr.bf16.mxu0 0
      %4452 = vmatpush1.bf16.msra.mxu0 0
      %4453 = vmatprep.subr.bf16.mxu0 0
      %4454 = vmatpush1.bf16.msra.mxu0 0
      %4455 = vmatprep.subr.bf16.mxu0 0
      %4456 = vmatpush1.bf16.msra.mxu0 0
      %4457 = vmatprep.subr.bf16.mxu0 0
      %4458 = vmatpush1.bf16.msra.mxu0 0
      %4459 = vmatprep.subr.bf16.mxu0 0
      %4460 = vmatpush1.bf16.msra.mxu0 0
      %4461 = vmatprep.subr.bf16.mxu0 0
      %4462 = vmatpush1.bf16.msra.mxu0 0
      %4463 = vmatprep.mubr.bf16.mxu0 %v4426
      %4464 = vmatmul.mubr.bf16.gmra.mrb[0].mxu0 %v4419
      %v4465 = vpop.f32.mrb[0].mxu0
      %v4466 = vadd.f32 %v4390, %v4465
      %v4467 = vpop.f32.mrb[0].mxu0
      %v4468 = vpop.f32.mrb[0].mxu0
      %v4469 = vadd.f32 %v4395, %v4468
      %v4470 = vpop.f32.mrb[0].mxu0
      %4471 = vmatprep.mubr.bf16.mxu0 %v4429
      %4472 = vmatmul.mubr.bf16.gmra.mrb[0].mxu0 %v4421
      %v4473 = vpop.f32.mrb[0].mxu0
      %v4474 = vadd.f32 %v4400, %v4473
      %v4475 = vpop.f32.mrb[0].mxu0
      %v4476 = vpop.f32.mrb[0].mxu0
      %v4477 = vadd.f32 %v4405, %v4476
      %v4478 = vpop.f32.mrb[0].mxu0
      %4479 = vdwg.mxu0
      %v4480 = vmax.f32 %v4466, 0.0
      %v4481 = vmax.f32 %v4469, 0.0
      %v4482 = vmax.f32 %v4474, 0.0
      %v4483 = vmax.f32 %v4477, 0.0
      %v4484 = vpack.c.bf16 %v4481, %v4480
      %v4485 = vpack.c.bf16 %v4483, %v4482
      %v4486 = vld [vmem:[%s21] sm:$0xf]
      %v4487 = vld [vmem:[%s21 + $0x4] sm:$0xf]
      %v4488 = vld [vmem:[%s21 + $0x8] sm:$0xf]
      %v4489 = vld [vmem:[%s21 + $0xc] sm:$0xf]
      %v4490 = vld [vmem:[%s21 + $0x10] sm:$0xf]
      %v4491 = vld [vmem:[%s21 + $0x14] sm:$0xf]
      %v4492 = vld [vmem:[%s21 + $0x18] sm:$0xf]
      %v4493 = vld [vmem:[%s21 + $0x1c] sm:$0xf]
      %v4502 = vunpack.c.l.b16 %v4486
      %v4503 = vunpack.c.l.b16 %v4487
      %v4504 = vunpack.c.l.b16 %v4488
      %v4505 = vunpack.c.l.b16 %v4489
      %v4506 = vunpack.c.l.b16 %v4490
      %v4507 = vunpack.c.l.b16 %v4491
      %v4508 = vunpack.c.l.b16 %v4492
      %v4509 = vunpack.c.l.b16 %v4493
      %v4510 = vpack.c.b16 %v4503, %v4502
      %v4511 = vpack.c.b16 %v4505, %v4504
      %v4512 = vpack.c.b16 %v4507, %v4506
      %v4513 = vpack.c.b16 %v4509, %v4508
      %v4519 = vsel %vm3995, %v4484, 0
      %v4522 = vsel %vm3995, %v4485, 0
      %4524 = vmatprep.subr.bf16.mxu0 0
      %4525 = vmatpush1.bf16.msra.mxu0 %v4510
      %4526 = vmatprep.subr.bf16.mxu0 0
      %4527 = vmatpush1.bf16.msra.mxu0 %v4511
      %4528 = vmatprep.subr.bf16.mxu0 0
      %4529 = vmatpush1.bf16.msra.mxu0 %v4512
      %4530 = vmatprep.subr.bf16.mxu0 0
      %4531 = vmatpush1.bf16.msra.mxu0 %v4513
      %4532 = vmatprep.subr.bf16.mxu0 0
      %4533 = vmatpush1.bf16.msra.mxu0 0
      %4534 = vmatprep.subr.bf16.mxu0 0
      %4535 = vmatpush1.bf16.msra.mxu0 0
      %4536 = vmatprep.subr.bf16.mxu0 0
      %4537 = vmatpush1.bf16.msra.mxu0 0
      %4538 = vmatprep.subr.bf16.mxu0 0
      %4539 = vmatpush1.bf16.msra.mxu0 0
      %4540 = vmatprep.subr.bf16.mxu0 0
      %4541 = vmatpush1.bf16.msra.mxu0 0
      %4542 = vmatprep.subr.bf16.mxu0 0
      %4543 = vmatpush1.bf16.msra.mxu0 0
      %4544 = vmatprep.subr.bf16.mxu0 0
      %4545 = vmatpush1.bf16.msra.mxu0 0
      %4546 = vmatprep.subr.bf16.mxu0 0
      %4547 = vmatpush1.bf16.msra.mxu0 0
      %4548 = vmatprep.subr.bf16.mxu0 0
      %4549 = vmatpush1.bf16.msra.mxu0 0
      %4550 = vmatprep.subr.bf16.mxu0 0
      %4551 = vmatpush1.bf16.msra.mxu0 0
      %4552 = vmatprep.subr.bf16.mxu0 0
      %4553 = vmatpush1.bf16.msra.mxu0 0
      %4554 = vmatprep.subr.bf16.mxu0 0
      %4555 = vmatpush1.bf16.msra.mxu0 0
      %4556 = vmatprep.mubr.bf16.mxu0 0
      %4557 = vmatmul.mubr.bf16.gmra.mrb[0].mxu0 %v4519
      %v4558 = vpop.f32.mrb[0].mxu0
      %v4559 = vadd.f32 0.0, %v4558
      %v4560 = vpop.f32.mrb[0].mxu0
      %v4561 = vpop.f32.mrb[0].mxu0
      %v4562 = vadd.f32 0.0, %v4561
      %v4563 = vpop.f32.mrb[0].mxu0
      %4564 = vmatprep.mubr.bf16.mxu0 0
      %4565 = vmatmul.mubr.bf16.gmra.mrb[0].mxu0 %v4522
      %v4566 = vpop.f32.mrb[0].mxu0
      %v4567 = vadd.f32 0.0, %v4566
      %v4568 = vpop.f32.mrb[0].mxu0
      %v4569 = vpop.f32.mrb[0].mxu0
      %v4570 = vadd.f32 0.0, %v4569
      %v4571 = vpop.f32.mrb[0].mxu0
      %4572 = vdwg.mxu0
      %4573 = vmatprep.subr.bf16.mxu0 0
      %4574 = vmatpush1.bf16.msra.mxu0 %v4510
      %4575 = vmatprep.subr.bf16.mxu0 0
      %4576 = vmatpush1.bf16.msra.mxu0 %v4511
      %4577 = vmatprep.subr.bf16.mxu0 0
      %4578 = vmatpush1.bf16.msra.mxu0 %v4512
      %4579 = vmatprep.subr.bf16.mxu0 0
      %4580 = vmatpush1.bf16.msra.mxu0 %v4513
      %4581 = vmatprep.subr.bf16.mxu0 0
      %4582 = vmatpush1.bf16.msra.mxu0 0
      %4583 = vmatprep.subr.bf16.mxu0 0
      %4584 = vmatpush1.bf16.msra.mxu0 0
      %4585 = vmatprep.subr.bf16.mxu0 0
      %4586 = vmatpush1.bf16.msra.mxu0 0
      %4587 = vmatprep.subr.bf16.mxu0 0
      %4588 = vmatpush1.bf16.msra.mxu0 0
      %4589 = vmatprep.subr.bf16.mxu0 0
      %4590 = vmatpush1.bf16.msra.mxu0 0
      %4591 = vmatprep.subr.bf16.mxu0 0
      %4592 = vmatpush1.bf16.msra.mxu0 0
      %4593 = vmatprep.subr.bf16.mxu0 0
      %4594 = vmatpush1.bf16.msra.mxu0 0
      %4595 = vmatprep.subr.bf16.mxu0 0
      %4596 = vmatpush1.bf16.msra.mxu0 0
      %4597 = vmatprep.subr.bf16.mxu0 0
      %4598 = vmatpush1.bf16.msra.mxu0 0
      %4599 = vmatprep.subr.bf16.mxu0 0
      %4600 = vmatpush1.bf16.msra.mxu0 0
      %4601 = vmatprep.subr.bf16.mxu0 0
      %4602 = vmatpush1.bf16.msra.mxu0 0
      %4603 = vmatprep.subr.bf16.mxu0 0
      %4604 = vmatpush1.bf16.msra.mxu0 0
      %4605 = vmatprep.mubr.bf16.mxu0 0
      %4606 = vmatmul.mubr.bf16.gmra.mrb[0].mxu0 %v4228
      %v4607 = vpop.f32.mrb[0].mxu0
      %v4608 = vadd.f32 0.0, %v4607
      %v4609 = vpop.f32.mrb[0].mxu0
      %v4610 = vpop.f32.mrb[0].mxu0
      %v4611 = vadd.f32 0.0, %v4610
      %v4612 = vpop.f32.mrb[0].mxu0
      %4613 = vdwg.mxu0
      %v4614 = vld [vmem:[%s19] sm:$0xf]
      %v4615 = vld [vmem:[%s19 + $0x4] sm:$0xf]
      %v4616 = vld [vmem:[%s19 + $0x8] sm:$0xf]
      %v4617 = vld [vmem:[%s19 + $0xc] sm:$0xf]
      %v4618 = vpack.c.bf16 %v4611, %v4608
      %v4619 = vld [vmem:[%s20] sm:$0xff]
      %v4620 = vld [vmem:[%s20 + $0x8] sm:$0xff]
      %v4621 = vld [vmem:[%s20 + $0x10] sm:$0xff]
      %v4622 = vld [vmem:[%s20 + $0x18] sm:$0xff]
      %4624 = vset.pattern.permute.xlu0 0
      %4625 = vperm.xlu0 %4624, %v4619
      %v4626 = vpop.permute.xlu0 %4625
      %4629 = vset.pattern.permute.xlu0 0
      %4630 = vperm.xlu0 %4629, %v4620
      %v4631 = vpop.permute.xlu0 %4630
      %4634 = vset.pattern.permute.xlu0 0
      %4635 = vperm.xlu0 %4634, %v4621
      %v4636 = vpop.permute.xlu0 %4635
      %4639 = vset.pattern.permute.xlu0 0
      %4640 = vperm.xlu0 %4639, %v4622
      %v4641 = vpop.permute.xlu0 %4640
      %v4647 = vunpack.c.l.b16 %v4614
      %v4648 = vunpack.c.l.b16 %v4615
      %v4649 = vunpack.c.l.b16 %v4616
      %v4650 = vunpack.c.l.b16 %v4617
      %v4651 = vpack.c.b16 %v4648, %v4647
      %v4652 = vpack.c.b16 %v4650, %v4649
      %v4654 = vsel %vm4145, %v4651, 0
      %v4657 = vsel %vm4145, %v4652, 0
      %4659 = vmatprep.subr.bf16.mxu0 0
      %4660 = vmatpush1.bf16.msra.mxu0 %v4618
      %4661 = vmatprep.subr.bf16.mxu0 0
      %4662 = vmatpush1.bf16.msra.mxu0 0
      %4663 = vmatprep.subr.bf16.mxu0 0
      %4664 = vmatpush1.bf16.msra.mxu0 0
      %4665 = vmatprep.subr.bf16.mxu0 0
      %4666 = vmatpush1.bf16.msra.mxu0 0
      %4667 = vmatprep.subr.bf16.mxu0 0
      %4668 = vmatpush1.bf16.msra.mxu0 0
      %4669 = vmatprep.subr.bf16.mxu0 0
      %4670 = vmatpush1.bf16.msra.mxu0 0
      %4671 = vmatprep.subr.bf16.mxu0 0
      %4672 = vmatpush1.bf16.msra.mxu0 0
      %4673 = vmatprep.subr.bf16.mxu0 0
      %4674 = vmatpush1.bf16.msra.mxu0 0
      %4675 = vmatprep.subr.bf16.mxu0 0
      %4676 = vmatpush1.bf16.msra.mxu0 0
      %4677 = vmatprep.subr.bf16.mxu0 0
      %4678 = vmatpush1.bf16.msra.mxu0 0
      %4679 = vmatprep.subr.bf16.mxu0 0
      %4680 = vmatpush1.bf16.msra.mxu0 0
      %4681 = vmatprep.subr.bf16.mxu0 0
      %4682 = vmatpush1.bf16.msra.mxu0 0
      %4683 = vmatprep.subr.bf16.mxu0 0
      %4684 = vmatpush1.bf16.msra.mxu0 0
      %4685 = vmatprep.subr.bf16.mxu0 0
      %4686 = vmatpush1.bf16.msra.mxu0 0
      %4687 = vmatprep.subr.bf16.mxu0 0
      %4688 = vmatpush1.bf16.msra.mxu0 0
      %4689 = vmatprep.subr.bf16.mxu0 0
      %4690 = vmatpush1.bf16.msra.mxu0 0
      %4691 = vmatprep.mubr.bf16.mxu0 0
      %4692 = vmatmul.mubr.bf16.gmra.mrb[0].mxu0 %v4654
      %v4693 = vpop.f32.mrb[0].mxu0
      %v4694 = vadd.f32 %v4626, %v4693
      %v4695 = vpop.f32.mrb[0].mxu0
      %v4696 = vpop.f32.mrb[0].mxu0
      %v4697 = vadd.f32 %v4631, %v4696
      %v4698 = vpop.f32.mrb[0].mxu0
      %4699 = vmatprep.mubr.bf16.mxu0 0
      %4700 = vmatmul.mubr.bf16.gmra.mrb[0].mxu0 %v4657
      %v4701 = vpop.f32.mrb[0].mxu0
      %v4702 = vadd.f32 %v4636, %v4701
      %v4703 = vpop.f32.mrb[0].mxu0
      %v4704 = vpop.f32.mrb[0].mxu0
      %v4705 = vadd.f32 %v4641, %v4704
      %v4706 = vpop.f32.mrb[0].mxu0
      %4707 = vdwg.mxu0
      %4708 = vst.msk [vmem:[#allocation3 + $0x8] sm:$0xff] %vm4145, %v4559
      %4709 = vst.msk [vmem:[#allocation3 + $0x20] sm:$0xff] %vm4145, %v4562
      %4710 = vst.msk [vmem:[#allocation3 + $0x38] sm:$0xff] %vm4145, %v4567
      %4711 = vst.msk [vmem:[#allocation3 + $0x50] sm:$0xff] %vm4145, %v4570
      %v4712 = vld [vmem:[#allocation3] sm:$0xff]
      %v4713 = vld [vmem:[#allocation3 + $0x8] sm:$0xff]
      %v4714 = vld [vmem:[#allocation3 + $0x18] sm:$0xff]
      %v4715 = vld [vmem:[#allocation3 + $0x20] sm:$0xff]
      %v4716 = vld [vmem:[#allocation3 + $0x30] sm:$0xff]
      %v4717 = vld [vmem:[#allocation3 + $0x38] sm:$0xff]
      %v4718 = vld [vmem:[#allocation3 + $0x48] sm:$0xff]
      %v4719 = vld [vmem:[#allocation3 + $0x50] sm:$0xff]
      %v4720 = vsel %vm1165, 1, 0
      %vm4721 = vcmp.eq.s32.totalorder %v4720, 1
      %4730 = vrot.lane.b32.xlu0 %v4712, 5
      %v4731 = vpop.permute.xlu0 %4730
      %4732 = vrot.lane.b32.xlu0 %v4713, 5
      %v4733 = vpop.permute.xlu0 %4732
      %4734 = vrot.lane.b32.xlu0 %v4714, 5
      %v4735 = vpop.permute.xlu0 %4734
      %4736 = vrot.lane.b32.xlu0 %v4715, 5
      %v4737 = vpop.permute.xlu0 %4736
      %4738 = vrot.lane.b32.xlu0 %v4716, 5
      %v4739 = vpop.permute.xlu0 %4738
      %4740 = vrot.lane.b32.xlu0 %v4717, 5
      %v4741 = vpop.permute.xlu0 %4740
      %4742 = vrot.lane.b32.xlu0 %v4718, 5
      %v4743 = vpop.permute.xlu0 %4742
      %4744 = vrot.lane.b32.xlu0 %v4719, 5
      %v4745 = vpop.permute.xlu0 %4744
      %vm4746 = vcmask 39936
      %v4747 = vsel %vm4746, %v4731, %v4733
      %v4748 = vsel %vm4746, %v4735, %v4737
      %v4749 = vsel %vm4746, %v4739, %v4741
      %v4750 = vsel %vm4746, %v4743, %v4745
      %v4755 = vsel %vm4721, %v4747, 0.0
      %v4756 = vsel %vm4721, %v4748, 0.0
      %v4757 = vsel %vm4721, %v4749, 0.0
      %v4758 = vsel %vm4721, %v4750, 0.0
      %v4759 = vsel %vm1169, 1, 0
      %vm4760 = vcmp.eq.s32.totalorder %v4759, 1
      %4761 = vrot.lane.b32.xlu0 %v4712, 4
      %v4762 = vpop.permute.xlu0 %4761
      %4763 = vrot.lane.b32.xlu0 %v4713, 4
      %v4764 = vpop.permute.xlu0 %4763
      %4765 = vrot.lane.b32.xlu0 %v4714, 4
      %v4766 = vpop.permute.xlu0 %4765
      %4767 = vrot.lane.b32.xlu0 %v4715, 4
      %v4768 = vpop.permute.xlu0 %4767
      %4769 = vrot.lane.b32.xlu0 %v4716, 4
      %v4770 = vpop.permute.xlu0 %4769
      %4771 = vrot.lane.b32.xlu0 %v4717, 4
      %v4772 = vpop.permute.xlu0 %4771
      %4773 = vrot.lane.b32.xlu0 %v4718, 4
      %v4774 = vpop.permute.xlu0 %4773
      %4775 = vrot.lane.b32.xlu0 %v4719, 4
      %v4776 = vpop.permute.xlu0 %4775
      %vm4777 = vcmask 31744
      %v4778 = vsel %vm4777, %v4762, %v4764
      %v4779 = vsel %vm4777, %v4766, %v4768
      %v4780 = vsel %vm4777, %v4770, %v4772
      %v4781 = vsel %vm4777, %v4774, %v4776
      %v4786 = vsel %vm4760, %v4778, 0.0
      %v4787 = vsel %vm4760, %v4779, 0.0
      %v4788 = vsel %vm4760, %v4780, 0.0
      %v4789 = vsel %vm4760, %v4781, 0.0
      %v4790 = vsel %vm1174, 1, 0
      %vm4791 = vcmp.eq.s32.totalorder %v4790, 1
      %4792 = vrot.lane.b32.xlu0 %v4712, 3
      %v4793 = vpop.permute.xlu0 %4792
      %4794 = vrot.lane.b32.xlu0 %v4713, 3
      %v4795 = vpop.permute.xlu0 %4794
      %4796 = vrot.lane.b32.xlu0 %v4714, 3
      %v4797 = vpop.permute.xlu0 %4796
      %4798 = vrot.lane.b32.xlu0 %v4715, 3
      %v4799 = vpop.permute.xlu0 %4798
      %4800 = vrot.lane.b32.xlu0 %v4716, 3
      %v4801 = vpop.permute.xlu0 %4800
      %4802 = vrot.lane.b32.xlu0 %v4717, 3
      %v4803 = vpop.permute.xlu0 %4802
      %4804 = vrot.lane.b32.xlu0 %v4718, 3
      %v4805 = vpop.permute.xlu0 %4804
      %4806 = vrot.lane.b32.xlu0 %v4719, 3
      %v4807 = vpop.permute.xlu0 %4806
      %vm4808 = vcmask 23552
      %v4809 = vsel %vm4808, %v4793, %v4795
      %v4810 = vsel %vm4808, %v4797, %v4799
      %v4811 = vsel %vm4808, %v4801, %v4803
      %v4812 = vsel %vm4808, %v4805, %v4807
      %v4817 = vsel %vm4791, %v4809, 0.0
      %v4818 = vsel %vm4791, %v4810, 0.0
      %v4819 = vsel %vm4791, %v4811, 0.0
      %v4820 = vsel %vm4791, %v4812, 0.0
      %v4821 = vsel %vm1179, 1, 0
      %vm4822 = vcmp.eq.s32.totalorder %v4821, 1
      %4823 = vrot.lane.b32.xlu0 %v4712, 1
      %v4824 = vpop.permute.xlu0 %4823
      %4825 = vrot.lane.b32.xlu0 %v4713, 1
      %v4826 = vpop.permute.xlu0 %4825
      %4827 = vrot.lane.b32.xlu0 %v4714, 1
      %v4828 = vpop.permute.xlu0 %4827
      %4829 = vrot.lane.b32.xlu0 %v4715, 1
      %v4830 = vpop.permute.xlu0 %4829
      %4831 = vrot.lane.b32.xlu0 %v4716, 1
      %v4832 = vpop.permute.xlu0 %4831
      %4833 = vrot.lane.b32.xlu0 %v4717, 1
      %v4834 = vpop.permute.xlu0 %4833
      %4835 = vrot.lane.b32.xlu0 %v4718, 1
      %v4836 = vpop.permute.xlu0 %4835
      %4837 = vrot.lane.b32.xlu0 %v4719, 1
      %v4838 = vpop.permute.xlu0 %4837
      %v4839 = vsel %vm4066, %v4824, %v4826
      %v4840 = vsel %vm4066, %v4828, %v4830
      %v4841 = vsel %vm4066, %v4832, %v4834
      %v4842 = vsel %vm4066, %v4836, %v4838
      %v4847 = vsel %vm4822, %v4839, 0.0
      %v4848 = vsel %vm4822, %v4840, 0.0
      %v4849 = vsel %vm4822, %v4841, 0.0
      %v4850 = vsel %vm4822, %v4842, 0.0
      %v4851 = vsel %vm1181, 1, 0
      %vm4852 = vcmp.eq.s32.totalorder %v4851, 1
      %4853 = vrot.lane.b32.xlu0 %v4713, 127
      %v4854 = vpop.permute.xlu0 %4853
      %4855 = vrot.lane.b32.xlu0 %v4715, 127
      %v4856 = vpop.permute.xlu0 %4855
      %4857 = vrot.lane.b32.xlu0 %v4717, 127
      %v4858 = vpop.permute.xlu0 %4857
      %4859 = vrot.lane.b32.xlu0 %v4719, 127
      %v4860 = vpop.permute.xlu0 %4859
      %v4865 = vsel %vm4852, %v4854, 0.0
      %v4866 = vsel %vm4852, %v4856, 0.0
      %v4867 = vsel %vm4852, %v4858, 0.0
      %v4868 = vsel %vm4852, %v4860, 0.0
      %v4869 = vsel %vm1187, 1, 0
      %vm4870 = vcmp.eq.s32.totalorder %v4869, 1
      %4871 = vrot.lane.b32.xlu0 %v4713, 125
      %v4872 = vpop.permute.xlu0 %4871
      %4873 = vrot.lane.b32.xlu0 %v4715, 125
      %v4874 = vpop.permute.xlu0 %4873
      %4875 = vrot.lane.b32.xlu0 %v4717, 125
      %v4876 = vpop.permute.xlu0 %4875
      %4877 = vrot.lane.b32.xlu0 %v4719, 125
      %v4878 = vpop.permute.xlu0 %4877
      %v4883 = vsel %vm4870, %v4872, 0.0
      %v4884 = vsel %vm4870, %v4874, 0.0
      %v4885 = vsel %vm4870, %v4876, 0.0
      %v4886 = vsel %vm4870, %v4878, 0.0
      %v4887 = vsel %vm1189, 1, 0
      %vm4888 = vcmp.eq.s32.totalorder %v4887, 1
      %4889 = vrot.lane.b32.xlu0 %v4713, 124
      %v4890 = vpop.permute.xlu0 %4889
      %4891 = vrot.lane.b32.xlu0 %v4715, 124
      %v4892 = vpop.permute.xlu0 %4891
      %4893 = vrot.lane.b32.xlu0 %v4717, 124
      %v4894 = vpop.permute.xlu0 %4893
      %4895 = vrot.lane.b32.xlu0 %v4719, 124
      %v4896 = vpop.permute.xlu0 %4895
      %v4901 = vsel %vm4888, %v4890, 0.0
      %v4902 = vsel %vm4888, %v4892, 0.0
      %v4903 = vsel %vm4888, %v4894, 0.0
      %v4904 = vsel %vm4888, %v4896, 0.0
      %v4905 = vsel %vm1191, 1, 0
      %vm4906 = vcmp.eq.s32.totalorder %v4905, 1
      %4907 = vrot.lane.b32.xlu0 %v4713, 123
      %v4908 = vpop.permute.xlu0 %4907
      %4909 = vrot.lane.b32.xlu0 %v4715, 123
      %v4910 = vpop.permute.xlu0 %4909
      %4911 = vrot.lane.b32.xlu0 %v4717, 123
      %v4912 = vpop.permute.xlu0 %4911
      %4913 = vrot.lane.b32.xlu0 %v4719, 123
      %v4914 = vpop.permute.xlu0 %4913
      %v4919 = vsel %vm4906, %v4908, 0.0
      %v4920 = vsel %vm4906, %v4910, 0.0
      %v4921 = vsel %vm4906, %v4912, 0.0
      %v4922 = vsel %vm4906, %v4914, 0.0
      %v4923 = vld [vmem:[%s17] sm:$0xff]
      %v4924 = vld [vmem:[%s17 + $0x8] sm:$0xf]
      %v4925 = vld [vmem:[%s17 + $0xc] sm:$0xff]
      %v4926 = vld [vmem:[%s17 + $0x14] sm:$0xf]
      %v4927 = vld [vmem:[%s17 + $0x18] sm:$0xff]
      %v4928 = vld [vmem:[%s17 + $0x20] sm:$0xf]
      %v4929 = vld [vmem:[%s17 + $0x24] sm:$0xff]
      %v4930 = vld [vmem:[%s17 + $0x2c] sm:$0xf]
      %v4931 = vpack.c.bf16 %v4756, %v4755
      %v4932 = vpack.c.bf16 %v4758, %v4757
      %v4933 = vpack.c.bf16 %v4787, %v4786
      %v4934 = vpack.c.bf16 %v4789, %v4788
      %v4935 = vpack.c.bf16 %v4818, %v4817
      %v4936 = vpack.c.bf16 %v4820, %v4819
      %v4937 = vpack.c.bf16 %v4848, %v4847
      %v4938 = vpack.c.bf16 %v4850, %v4849
      %v4939 = vpack.c.bf16 %v4562, %v4559
      %v4940 = vpack.c.bf16 %v4570, %v4567
      %v4941 = vpack.c.bf16 %v4866, %v4865
      %v4942 = vpack.c.bf16 %v4868, %v4867
      %v4943 = vpack.c.bf16 %v4884, %v4883
      %v4944 = vpack.c.bf16 %v4886, %v4885
      %v4945 = vpack.c.bf16 %v4902, %v4901
      %v4946 = vpack.c.bf16 %v4904, %v4903
      %v4947 = vpack.c.bf16 %v4920, %v4919
      %v4948 = vpack.c.bf16 %v4922, %v4921
      %v4949 = vld [vmem:[%s18] sm:$0xff]
      %v4950 = vld [vmem:[%s18 + $0x8] sm:$0xff]
      %v4951 = vld [vmem:[%s18 + $0x10] sm:$0xff]
      %v4952 = vld [vmem:[%s18 + $0x18] sm:$0xff]
      %4954 = vset.pattern.permute.xlu0 0
      %4955 = vperm.xlu0 %4954, %v4949
      %v4956 = vpop.permute.xlu0 %4955
      %4959 = vset.pattern.permute.xlu0 0
      %4960 = vperm.xlu0 %4959, %v4950
      %v4961 = vpop.permute.xlu0 %4960
      %4964 = vset.pattern.permute.xlu0 0
      %4965 = vperm.xlu0 %4964, %v4951
      %v4966 = vpop.permute.xlu0 %4965
      %4969 = vset.pattern.permute.xlu0 0
      %4970 = vperm.xlu0 %4969, %v4952
      %v4971 = vpop.permute.xlu0 %4970
      %v4981 = vunpack.c.l.b16 %v4923
      %v4982 = vunpack.c.h.b16 %v4923
      %v4983 = vunpack.c.l.b16 %v4924
      %v4984 = vunpack.c.l.b16 %v4925
      %v4985 = vunpack.c.h.b16 %v4925
      %v4986 = vunpack.c.l.b16 %v4926
      %v4987 = vunpack.c.l.b16 %v4927
      %v4988 = vunpack.c.h.b16 %v4927
      %v4989 = vunpack.c.l.b16 %v4928
      %v4990 = vunpack.c.l.b16 %v4929
      %v4991 = vunpack.c.h.b16 %v4929
      %v4992 = vunpack.c.l.b16 %v4930
      %v4993 = vpack.c.b16 %v4984, %v4981
      %v4994 = vpack.c.b16 %v4985, %v4982
      %v4995 = vpack.c.b16 %v4986, %v4983
      %v4996 = vpack.c.b16 %v4990, %v4987
      %v4997 = vpack.c.b16 %v4991, %v4988
      %v4998 = vpack.c.b16 %v4992, %v4989
      %v5004 = vsel %vm1685, %v4995, 0
      %v5007 = vsel %vm1685, %v4998, 0
      %5009 = vmatprep.subr.bf16.mxu0 0
      %5010 = vmatpush1.bf16.msra.mxu0 %v4931
      %5011 = vmatprep.subr.bf16.mxu0 0
      %5012 = vmatpush1.bf16.msra.mxu0 %v4932
      %5013 = vmatprep.subr.bf16.mxu0 0
      %5014 = vmatpush1.bf16.msra.mxu0 %v4933
      %5015 = vmatprep.subr.bf16.mxu0 0
      %5016 = vmatpush1.bf16.msra.mxu0 %v4934
      %5017 = vmatprep.subr.bf16.mxu0 0
      %5018 = vmatpush1.bf16.msra.mxu0 %v4935
      %5019 = vmatprep.subr.bf16.mxu0 0
      %5020 = vmatpush1.bf16.msra.mxu0 %v4936
      %5021 = vmatprep.subr.bf16.mxu0 0
      %5022 = vmatpush1.bf16.msra.mxu0 %v4937
      %5023 = vmatprep.subr.bf16.mxu0 0
      %5024 = vmatpush1.bf16.msra.mxu0 %v4938
      %5025 = vmatprep.subr.bf16.mxu0 0
      %5026 = vmatpush1.bf16.msra.mxu0 %v4939
      %5027 = vmatprep.subr.bf16.mxu0 0
      %5028 = vmatpush1.bf16.msra.mxu0 %v4940
      %5029 = vmatprep.subr.bf16.mxu0 0
      %5030 = vmatpush1.bf16.msra.mxu0 %v4941
      %5031 = vmatprep.subr.bf16.mxu0 0
      %5032 = vmatpush1.bf16.msra.mxu0 %v4942
      %5033 = vmatprep.subr.bf16.mxu0 0
      %5034 = vmatpush1.bf16.msra.mxu0 %v4943
      %5035 = vmatprep.subr.bf16.mxu0 0
      %5036 = vmatpush1.bf16.msra.mxu0 %v4944
      %5037 = vmatprep.subr.bf16.mxu0 0
      %5038 = vmatpush1.bf16.msra.mxu0 %v4945
      %5039 = vmatprep.subr.bf16.mxu0 0
      %5040 = vmatpush1.bf16.msra.mxu0 %v4946
      %5041 = vmatprep.mubr.bf16.mxu0 %v4994
      %5042 = vmatmul.mubr.bf16.gmra.mrb[0].mxu0 %v4993
      %v5043 = vpop.f32.mrb[0].mxu0
      %v5044 = vadd.f32 %v4956, %v5043
      %v5045 = vpop.f32.mrb[0].mxu0
      %v5046 = vpop.f32.mrb[0].mxu0
      %v5047 = vadd.f32 %v4961, %v5046
      %v5048 = vpop.f32.mrb[0].mxu0
      %5049 = vmatprep.mubr.bf16.mxu0 %v4997
      %5050 = vmatmul.mubr.bf16.gmra.mrb[0].mxu0 %v4996
      %v5051 = vpop.f32.mrb[0].mxu0
      %v5052 = vadd.f32 %v4966, %v5051
      %v5053 = vpop.f32.mrb[0].mxu0
      %v5054 = vpop.f32.mrb[0].mxu0
      %v5055 = vadd.f32 %v4971, %v5054
      %v5056 = vpop.f32.mrb[0].mxu0
      %5057 = vdwg.mxu0
      %5058 = vmatprep.subr.bf16.mxu0 0
      %5059 = vmatpush1.bf16.msra.mxu0 %v4947
      %5060 = vmatprep.subr.bf16.mxu0 0
      %5061 = vmatpush1.bf16.msra.mxu0 %v4948
      %5062 = vmatprep.subr.bf16.mxu0 0
      %5063 = vmatpush1.bf16.msra.mxu0 0
      %5064 = vmatprep.subr.bf16.mxu0 0
      %5065 = vmatpush1.bf16.msra.mxu0 0
      %5066 = vmatprep.subr.bf16.mxu0 0
      %5067 = vmatpush1.bf16.msra.mxu0 0
      %5068 = vmatprep.subr.bf16.mxu0 0
      %5069 = vmatpush1.bf16.msra.mxu0 0
      %5070 = vmatprep.subr.bf16.mxu0 0
      %5071 = vmatpush1.bf16.msra.mxu0 0
      %5072 = vmatprep.subr.bf16.mxu0 0
      %5073 = vmatpush1.bf16.msra.mxu0 0
      %5074 = vmatprep.subr.bf16.mxu0 0
      %5075 = vmatpush1.bf16.msra.mxu0 0
      %5076 = vmatprep.subr.bf16.mxu0 0
      %5077 = vmatpush1.bf16.msra.mxu0 0
      %5078 = vmatprep.subr.bf16.mxu0 0
      %5079 = vmatpush1.bf16.msra.mxu0 0
      %5080 = vmatprep.subr.bf16.mxu0 0
      %5081 = vmatpush1.bf16.msra.mxu0 0
      %5082 = vmatprep.subr.bf16.mxu0 0
      %5083 = vmatpush1.bf16.msra.mxu0 0
      %5084 = vmatprep.subr.bf16.mxu0 0
      %5085 = vmatpush1.bf16.msra.mxu0 0
      %5086 = vmatprep.subr.bf16.mxu0 0
      %5087 = vmatpush1.bf16.msra.mxu0 0
      %5088 = vmatprep.subr.bf16.mxu0 0
      %5089 = vmatpush1.bf16.msra.mxu0 0
      %5090 = vmatprep.mubr.bf16.mxu0 0
      %5091 = vmatmul.mubr.bf16.gmra.mrb[0].mxu0 %v5004
      %v5092 = vpop.f32.mrb[0].mxu0
      %v5093 = vadd.f32 %v5044, %v5092
      %v5094 = vpop.f32.mrb[0].mxu0
      %v5095 = vpop.f32.mrb[0].mxu0
      %v5096 = vadd.f32 %v5047, %v5095
      %v5097 = vpop.f32.mrb[0].mxu0
      %5098 = vmatprep.mubr.bf16.mxu0 0
      %5099 = vmatmul.mubr.bf16.gmra.mrb[0].mxu0 %v5007
      %v5100 = vpop.f32.mrb[0].mxu0
      %v5101 = vadd.f32 %v5052, %v5100
      %v5102 = vpop.f32.mrb[0].mxu0
      %v5103 = vpop.f32.mrb[0].mxu0
      %v5104 = vadd.f32 %v5055, %v5103
      %v5105 = vpop.f32.mrb[0].mxu0
      %5106 = vdwg.mxu0
      %v5107 = vadd.f32 %v5093, %v4694
      %v5108 = vadd.f32 %v5096, %v4697
      %v5109 = vadd.f32 %v5101, %v4702
      %v5110 = vadd.f32 %v5104, %v4705
      %v5111 = vmax.f32 %v5107, 0.0
      %v5112 = vmax.f32 %v5108, 0.0
      %v5113 = vmax.f32 %v5109, 0.0
      %v5114 = vmax.f32 %v5110, 0.0
      %v5115 = vpack.c.bf16 %v5112, %v5111
      %v5116 = vpack.c.bf16 %v5114, %v5113
      %v5117 = vld [vmem:[%s23] sm:$0xf]
      %v5118 = vld [vmem:[%s23 + $0x4] sm:$0xf]
      %v5121 = vunpack.c.l.b16 %v5117
      %v5122 = vunpack.c.l.b16 %v5118
      %v5123 = vpack.c.b16 %v5122, %v5121
      %v5126 = vsel %vm4145, %v5115, 0
      %v5129 = vsel %vm4145, %v5116, 0
      %5131 = vmatprep.subr.bf16.mxu0 0
      %5132 = vmatpush1.bf16.msra.mxu0 %v5123
      %5133 = vmatprep.subr.bf16.mxu0 0
      %5134 = vmatpush1.bf16.msra.mxu0 0
      %5135 = vmatprep.subr.bf16.mxu0 0
      %5136 = vmatpush1.bf16.msra.mxu0 0
      %5137 = vmatprep.subr.bf16.mxu0 0
      %5138 = vmatpush1.bf16.msra.mxu0 0
      %5139 = vmatprep.subr.bf16.mxu0 0
      %5140 = vmatpush1.bf16.msra.mxu0 0
      %5141 = vmatprep.subr.bf16.mxu0 0
      %5142 = vmatpush1.bf16.msra.mxu0 0
      %5143 = vmatprep.subr.bf16.mxu0 0
      %5144 = vmatpush1.bf16.msra.mxu0 0
      %5145 = vmatprep.subr.bf16.mxu0 0
      %5146 = vmatpush1.bf16.msra.mxu0 0
      %5147 = vmatprep.subr.bf16.mxu0 0
      %5148 = vmatpush1.bf16.msra.mxu0 0
      %5149 = vmatprep.subr.bf16.mxu0 0
      %5150 = vmatpush1.bf16.msra.mxu0 0
      %5151 = vmatprep.subr.bf16.mxu0 0
      %5152 = vmatpush1.bf16.msra.mxu0 0
      %5153 = vmatprep.subr.bf16.mxu0 0
      %5154 = vmatpush1.bf16.msra.mxu0 0
      %5155 = vmatprep.subr.bf16.mxu0 0
      %5156 = vmatpush1.bf16.msra.mxu0 0
      %5157 = vmatprep.subr.bf16.mxu0 0
      %5158 = vmatpush1.bf16.msra.mxu0 0
      %5159 = vmatprep.subr.bf16.mxu0 0
      %5160 = vmatpush1.bf16.msra.mxu0 0
      %5161 = vmatprep.subr.bf16.mxu0 0
      %5162 = vmatpush1.bf16.msra.mxu0 0
      %5163 = vmatprep.mubr.bf16.mxu0 0
      %5164 = vmatmul.mubr.bf16.gmra.mrb[0].mxu0 %v5126
      %v5165 = vpop.f32.mrb[0].mxu0
      %v5166 = vadd.f32 0.0, %v5165
      %v5167 = vpop.f32.mrb[0].mxu0
      %v5168 = vpop.f32.mrb[0].mxu0
      %v5169 = vadd.f32 0.0, %v5168
      %v5170 = vpop.f32.mrb[0].mxu0
      %5171 = vmatprep.mubr.bf16.mxu0 0
      %5172 = vmatmul.mubr.bf16.gmra.mrb[0].mxu0 %v5129
      %v5173 = vpop.f32.mrb[0].mxu0
      %v5174 = vadd.f32 0.0, %v5173
      %v5175 = vpop.f32.mrb[0].mxu0
      %v5176 = vpop.f32.mrb[0].mxu0
      %v5177 = vadd.f32 0.0, %v5176
      %v5178 = vpop.f32.mrb[0].mxu0
      %5179 = vdwg.mxu0
      %5180 = vst.msk [vmem:[%s737 + $0x10] sm:$0xff] %vm3995, %v5166
      %5181 = vst.msk [vmem:[%s737 + $0x18] sm:$0xff] %vm3995, %v5169
      %5182 = vst.msk [vmem:[%s737 + $0x20] sm:$0xff] %vm3995, %v5174
      %5183 = vst.msk [vmem:[%s737 + $0x28] sm:$0xff] %vm3995, %v5177
      %p5184 = scmp.lt.s32.totalorder %s35, 1
      %s5185 = scalar_select %p5184, %s35, 1
      %s5186 = smul.addr %s5185, 6
      %s5187 = smul.addr %s5186, 8
      %s5188 = scalar_lea.vmem %s24, %s5187
      // Predicated region
      $region117: #{feature_extractor_forward.1} parent=115 // pred_check
        %p5189 = pneg %p562
      $region118: #{feature_extractor_forward.1} parent=115 // pred_check_branch
        %5191 = sbr.rel (%p5189) target = $region120
      $region119: #{feature_extractor_forward.1} parent=115 // pred_region
        _
      $region120: #{feature_extractor_forward.1} parent=115 // pred_fallthru
        _
    $region116: #{feature_extractor_forward.1} parent=5 // pred_fallthru
      _
    %p5192 = scmp.le.s32.totalorder 2, %s30
    // Predicated region
    $region121: #{feature_extractor_forward.1} parent=5 // pred_check
      %p5193 = pneg %p5192
    $region122: #{feature_extractor_forward.1} parent=5 // pred_check_branch
      %5195 = sbr.rel (%p5193) target = $region124
    $region123: #{feature_extractor_forward.1} parent=5 // pred_region
      %s5196 = ssub.s32 %s30, 2
      // Predicated region
      $region125: #{feature_extractor_forward.1} parent=123 // pred_check
        %p5197 = pneg %p568
      $region126: #{feature_extractor_forward.1} parent=123 // pred_check_branch
        %5199 = sbr.rel (%p5197) target = $region128
      $region127: #{feature_extractor_forward.1} parent=123 // pred_region
        %p5200 = scmp.lt.s32.totalorder %s36, 1
        %s5201 = scalar_select %p5200, %s36, 1
        %s5202 = smul.addr %s5201, 6
        %s5203 = smul.addr %s5202, 8
        %s5204 = scalar_lea.vmem %s24, %s5203
      $region128: #{feature_extractor_forward.1} parent=123 // pred_fallthru
        _
    $region124: #{feature_extractor_forward.1} parent=5 // pred_fallthru
      _
  $region6: #{feature_extractor_forward.1} parent=0 // loop_footer
    %s34 = sadd.s32 1, %s30
  $region7: #{feature_extractor_forward.1} parent=0 // loop_footer_branch
    %29 = sbr.rel target = $region3
  $region8: #{feature_extractor_forward.1} parent=0 // loop_exit
    _

</llo_original>
